<compile_context>
chip_gen: v7x
topology: tpu7x:2x2x1
jax: 0.10.0
libtpu: 0.0.40
codegen_flags: <defaults>
</compile_context>

<pallas_src>
import jax
import jax.numpy as jnp
from jax.experimental import pallas as pl
from jax.experimental.pallas import tpu as pltpu


def _sigmoid(x):
    return 1.0 / (1.0 + jnp.exp(-x))


# --------------------------------------------------------------------------------------
# Fused kernel: embedding-row gather (manual DMA) + BiLSTM over valid timesteps + max pool
# --------------------------------------------------------------------------------------
def _bilstm_pool_kernel(ids_ref,                    # [S*B] int32 (SMEM, scalar prefetch, time-major)
                        table_ref,                  # [V, E] f32, left in HBM (pl.ANY)
                        len_ref, pad_ref,           # [B, 1] int32 / f32
                        wih_f_ref, whh_f_ref, b_f_ref,
                        wih_b_ref, whh_b_ref, b_b_ref,
                        out_ref,                    # [B, 2H]
                        emb_ref, xf_ref, xb_ref, sem):
    N, E = emb_ref.shape                            # N = S * B, time-major rows
    S, TB, H4 = xf_ref.shape
    H = H4 // 4

    # ---- Gather: one row DMA per token, all in flight on one shared DMA semaphore. ----
    @pl.loop(0, N)
    def _issue(n):
        row = ids_ref[n]
        pltpu.make_async_copy(table_ref.at[pl.ds(row, 1)],
                              emb_ref.at[pl.ds(n, 1)],
                              sem.at[0]).start()

    @pl.loop(0, N)
    def _retire(n):
        del n
        # Equal-size wait retires exactly one row-copy's completion on the shared sem.
        pltpu.make_async_copy(table_ref.at[pl.ds(0, 1)],
                              emb_ref.at[pl.ds(0, 1)],
                              sem.at[0]).wait()

    # ---- Input projections for every timestep, hoisted as two big MXU matmuls. --------
    emb = emb_ref[...]                                              # [S*B, E]
    xf_ref[...] = (jnp.dot(emb, wih_f_ref[...], preferred_element_type=jnp.float32)
                   + b_f_ref[...]).reshape(S, TB, H4)
    xb_ref[...] = (jnp.dot(emb, wih_b_ref[...], preferred_element_type=jnp.float32)
                   + b_b_ref[...]).reshape(S, TB, H4)

    whh_f = whh_f_ref[...]
    whh_b = whh_b_ref[...]
    lens = len_ref[...]                                             # [TB, 1] int32

    neg = jnp.finfo(jnp.float32).min
    zeros = jnp.zeros((TB, H), jnp.float32)
    init = (zeros, zeros, jnp.full((TB, H), neg, jnp.float32),
            zeros, zeros, jnp.full((TB, H), neg, jnp.float32))

    def lstm_cell(pre, c_prev):
        # PyTorch gate order: i, f, g, o  (128-lane aligned slices for H=128)
        i = _sigmoid(pre[:, 0 * H:1 * H])
        f = _sigmoid(pre[:, 1 * H:2 * H])
        g = jnp.tanh(pre[:, 2 * H:3 * H])
        o = _sigmoid(pre[:, 3 * H:4 * H])
        c_new = f * c_prev + i * g
        h_new = o * jnp.tanh(c_new)
        return h_new, c_new

    def step(t, carry):
        h_f, c_f, m_f, h_b, c_b, m_b = carry

        # Forward direction at time t (only rows with t < length are live — packed fwd).
        pre_f = xf_ref[t] + jnp.dot(h_f, whh_f, preferred_element_type=jnp.float32)
        hf_new, cf_new = lstm_cell(pre_f, c_f)
        act_f = t < lens
        h_f = jnp.where(act_f, hf_new, h_f)
        c_f = jnp.where(act_f, cf_new, c_f)
        m_f = jnp.where(act_f, jnp.maximum(m_f, hf_new), m_f)

        # Backward direction at time S-1-t; state stays at zero init until tb < length[b],
        # i.e. it starts at the sequence's own last valid token (packed reverse semantics).
        tb = S - 1 - t
        pre_b = xb_ref[tb] + jnp.dot(h_b, whh_b, preferred_element_type=jnp.float32)
        hb_new, cb_new = lstm_cell(pre_b, c_b)
        act_b = tb < lens
        h_b = jnp.where(act_b, hb_new, h_b)
        c_b = jnp.where(act_b, cb_new, c_b)
        m_b = jnp.where(act_b, jnp.maximum(m_b, hb_new), m_b)

        return h_f, c_f, m_f, h_b, c_b, m_b

    _, _, m_f, _, _, m_b = jax.lax.fori_loop(0, S, step, init, unroll=True)

    # pad_packed_sequence pads to the batch max length with zero rows; those zero rows
    # participate in torch's max(dim=1) for any sequence shorter than that max.
    pad = pad_ref[...] > 0.0                                        # [TB, 1]
    m_f = jnp.where(pad, jnp.maximum(m_f, 0.0), m_f)
    m_b = jnp.where(pad, jnp.maximum(m_b, 0.0), m_b)
    out_ref[...] = jnp.concatenate([m_f, m_b], axis=1)              # [TB, 2H] lane-dense


# --------------------------------------------------------------------------------------
# Wrapper
# --------------------------------------------------------------------------------------
def bilstm_pooled_embedder(input_ids, lengths, vectors,
                           wih_f, whh_f, b_f, wih_b, whh_b, b_b):
    B, S = input_ids.shape
    V, E = vectors.shape
    H4 = wih_f.shape[1]
    H = H4 // 4

    # Time-major flat token ids: row n = s*B + b  (matches the in-kernel emb scratch rows).
    ids_tm = jnp.transpose(input_ids.astype(jnp.int32)).reshape(S * B)
    table = vectors.astype(jnp.float32)
    lens = lengths.astype(jnp.int32).reshape(B, 1)
    pad_flag = (lens < jnp.max(lens)).astype(jnp.float32)   # 1.0 where zero pad rows enter the max

    matmul_flops = 2 * 2 * B * S * H4 * (E + H)
    out = pl.pallas_call(
        _bilstm_pool_kernel,
        out_shape=jax.ShapeDtypeStruct((B, 2 * H), jnp.float32),
        grid_spec=pltpu.PrefetchScalarGridSpec(
            num_scalar_prefetch=1,
            grid=(1,),
            in_specs=[
                pl.BlockSpec(memory_space=pl.ANY),                  # embedding table stays in HBM
                pl.BlockSpec((B, 1), lambda i, ids: (0, 0)),        # lengths
                pl.BlockSpec((B, 1), lambda i, ids: (0, 0)),        # pad flag
                pl.BlockSpec((E, H4), lambda i, ids: (0, 0)),       # W_ih fwd (transposed)
                pl.BlockSpec((H, H4), lambda i, ids: (0, 0)),       # W_hh fwd (transposed)
                pl.BlockSpec((1, H4), lambda i, ids: (0, 0)),       # bias fwd (b_ih + b_hh)
                pl.BlockSpec((E, H4), lambda i, ids: (0, 0)),       # W_ih bwd
                pl.BlockSpec((H, H4), lambda i, ids: (0, 0)),       # W_hh bwd
                pl.BlockSpec((1, H4), lambda i, ids: (0, 0)),       # bias bwd
            ],
            out_specs=pl.BlockSpec((B, 2 * H), lambda i, ids: (0, 0)),
            scratch_shapes=[
                pltpu.VMEM((S * B, E), jnp.float32),    # gathered embeddings (time-major)
                pltpu.VMEM((S, B, H4), jnp.float32),    # fwd input projections
                pltpu.VMEM((S, B, H4), jnp.float32),    # bwd input projections
                pltpu.SemaphoreType.DMA((1,)),          # shared gather-DMA semaphore
            ],
        ),
        compiler_params=pltpu.CompilerParams(dimension_semantics=("arbitrary",)),
        cost_estimate=pl.CostEstimate(
            flops=int(matmul_flops),
            transcendentals=int(2 * B * S * 5 * H),
            bytes_accessed=int(4 * (S * B * E + B * 2 * H
                                    + 2 * (E * H4 + H * H4 + H4) + 2 * B) + 4 * S * B),
        ),
    )(ids_tm, table, lens, pad_flag, wih_f, whh_f, b_f, wih_b, whh_b, b_b)

    return out


# --------------------------------------------------------------------------------------
# Pure-JAX reference mirroring the PyTorch module (packed BiLSTM + max over time).
# --------------------------------------------------------------------------------------
def bilstm_reference(input_ids, lengths, table, wih_f, whh_f, b_f, wih_b, whh_b, b_b):
    emb = jnp.take(table.astype(jnp.float32), input_ids, axis=0)   # [B, S, E]
    B, S, _ = emb.shape
    H = whh_f.shape[0]
    lens = lengths.astype(jnp.int32)
    hi = jax.lax.Precision.HIGHEST

    def run(wih, whh, b, times):
        def cell(carry, t):
            h, c = carry
            x = emb[:, t, :]
            pre = (jnp.dot(x, wih, precision=hi) + jnp.dot(h, whh, precision=hi) + b)
            i = _sigmoid(pre[:, 0 * H:1 * H])
            f = _sigmoid(pre[:, 1 * H:2 * H])
            g = jnp.tanh(pre[:, 2 * H:3 * H])
            o = _sigmoid(pre[:, 3 * H:4 * H])
            c_new = f * c + i * g
            h_new = o * jnp.tanh(c_new)
            act = (t < lens)[:, None]
            h = jnp.where(act, h_new, h)
            c = jnp.where(act, c_new, c)
            out_t = jnp.where(act, h_new, 0.0)            # padded steps output zero
            return (h, c), out_t
        z = jnp.zeros((B, H), jnp.float32)
        (_, _), outs = jax.lax.scan(cell, (z, z), times)
        return outs                                       # [S, B, H] in processing order

    fwd = run(wih_f, whh_f, b_f, jnp.arange(S))
    bwd = run(wih_b, whh_b, b_b, jnp.arange(S - 1, -1, -1))[::-1]
    out = jnp.concatenate([fwd, bwd], axis=-1)            # [S, B, 2H]
    out = jnp.transpose(out, (1, 0, 2))                   # [B, S, 2H]

    t_max = jnp.max(lens)                                 # pad_packed_sequence length
    in_range = jnp.arange(S)[None, :, None] < t_max
    out = jnp.where(in_range, out, -jnp.inf)
    return jnp.max(out, axis=1)                           # [B, 2H]


if __name__ == "__main__":
    B, S = 8, 12          # batch (sublane-aligned), sequence length
    V, E = 256, 64        # vocab size, embedding_dim (frozen table)
    H = 128               # n_hidden per direction -> gates 4H=512, output 2H=256 (lane-aligned)

    key = jax.random.PRNGKey(0)
    k = jax.random.split(key, 9)
    vectors = jax.random.normal(k[0], (V, E), dtype=jnp.float32)            # pretrained, frozen
    input_ids = jax.random.randint(k[1], (B, S), 0, V, dtype=jnp.int32)     # x['input_ids']
    lengths = jax.random.randint(k[2], (B,), 3, S + 1, dtype=jnp.int32)     # x['length']

    scale = 0.1
    wih_f = scale * jax.random.normal(k[3], (E, 4 * H), dtype=jnp.float32)  # weight_ih_l0.T
    whh_f = scale * jax.random.normal(k[4], (H, 4 * H), dtype=jnp.float32)  # weight_hh_l0.T
    b_f = scale * jax.random.normal(k[5], (1, 4 * H), dtype=jnp.float32)    # b_ih + b_hh
    wih_b = scale * jax.random.normal(k[6], (E, 4 * H), dtype=jnp.float32)  # *_reverse
    whh_b = scale * jax.random.normal(k[7], (H, 4 * H), dtype=jnp.float32)
    b_b = scale * jax.random.normal(k[8], (1, 4 * H), dtype=jnp.float32)

    fwd_fn = jax.jit(bilstm_pooled_embedder)
    out = fwd_fn(input_ids, lengths, vectors, wih_f, whh_f, b_f, wih_b, whh_b, b_b)
    out = jax.block_until_ready(out)

    ref = bilstm_reference(input_ids, lengths, vectors, wih_f, whh_f, b_f, wih_b, whh_b, b_b)

    assert out.shape == (B, 2 * H), out.shape
    assert out.dtype == jnp.float32, out.dtype
    max_err = float(jnp.max(jnp.abs(out - ref)))
    assert jnp.allclose(out, ref, atol=1e-3, rtol=1e-3), max_err

    print("KERNEL_OK")
</pallas_src>

<mosaic_0001>
module attributes {stable_mosaic.version = 11 : i64} {
  func.func @_bilstm_pool_kernel(%arg0: i32, %arg1: memref<96xi32, #tpu.memory_space<smem>>, %arg2: memref<256x64xf32, #tpu.memory_space<any>>, %arg3: memref<8x1xi32, #tpu.memory_space<vmem>>, %arg4: memref<8x1xf32, #tpu.memory_space<vmem>>, %arg5: memref<64x512xf32, #tpu.memory_space<vmem>>, %arg6: memref<128x512xf32, #tpu.memory_space<vmem>>, %arg7: memref<1x512xf32, #tpu.memory_space<vmem>>, %arg8: memref<64x512xf32, #tpu.memory_space<vmem>>, %arg9: memref<128x512xf32, #tpu.memory_space<vmem>>, %arg10: memref<1x512xf32, #tpu.memory_space<vmem>>, %arg11: memref<8x256xf32, #tpu.memory_space<vmem>>, %arg12: memref<96x64xf32, #tpu.memory_space<vmem>>, %arg13: memref<12x8x512xf32, #tpu.memory_space<vmem>>, %arg14: memref<12x8x512xf32, #tpu.memory_space<vmem>>, %arg15: memref<1x!tpu.dma_semaphore, #tpu.memory_space<semaphore_mem>>) attributes {dimension_semantics = [#tpu.dimension_semantics<arbitrary>], iteration_bounds = array<i64: 1>, scalar_prefetch = 1 : i64, scratch_operands = 4 : i64, tpu.core_type = #tpu.core_type<tc>, window_params = [{}, {pipeline_mode = #tpu.pipeline_mode<synchronous>, transform_indices = @transform_1, window_bounds = array<i64: 8, 1>}, {pipeline_mode = #tpu.pipeline_mode<synchronous>, transform_indices = @transform_2, window_bounds = array<i64: 8, 1>}, {pipeline_mode = #tpu.pipeline_mode<synchronous>, transform_indices = @transform_3, window_bounds = array<i64: 64, 512>}, {pipeline_mode = #tpu.pipeline_mode<synchronous>, transform_indices = @transform_4, window_bounds = array<i64: 128, 512>}, {pipeline_mode = #tpu.pipeline_mode<synchronous>, transform_indices = @transform_5, window_bounds = array<i64: 1, 512>}, {pipeline_mode = #tpu.pipeline_mode<synchronous>, transform_indices = @transform_6, window_bounds = array<i64: 64, 512>}, {pipeline_mode = #tpu.pipeline_mode<synchronous>, transform_indices = @transform_7, window_bounds = array<i64: 128, 512>}, {pipeline_mode = #tpu.pipeline_mode<synchronous>, transform_indices = @transform_8, window_bounds = array<i64: 1, 512>}, {pipeline_mode = #tpu.pipeline_mode<synchronous>, transform_indices = @transform_9, window_bounds = array<i64: 8, 256>}]} {
    %c0_i32 = arith.constant 0 : i32
    %c96_i32 = arith.constant 96 : i32
    %0 = arith.addi %c0_i32, %c96_i32 : i32
    %c1_i32 = arith.constant 1 : i32
    scf.for %arg16 = %c0_i32 to %0 step %c1_i32  : i32 {
      %c1_i32_338 = arith.constant 1 : i32
      %1202 = arith.muli %arg16, %c1_i32_338 : i32
      %c0_i32_339 = arith.constant 0 : i32
      %1203 = arith.addi %c0_i32_339, %1202 : i32
      %1204 = arith.index_cast %1203 : i32 to index
      %1205 = memref.load %arg1[%1204] : memref<96xi32, #tpu.memory_space<smem>>
      %c0_i32_340 = arith.constant 0 : i32
      %c0_i32_341 = arith.constant 0 : i32
      %1206 = tpu.memref_slice %arg2[%1205, %c0_i32_341] : memref<256x64xf32, #tpu.memory_space<any>> -> memref<1x64xf32, #tpu.memory_space<any>>
      %c0_i32_342 = arith.constant 0 : i32
      %1207 = tpu.memref_slice %arg12[%1203, %c0_i32_342] : memref<96x64xf32, #tpu.memory_space<vmem>> -> memref<1x64xf32, #tpu.memory_space<vmem>>
      %1208 = tpu.memref_slice %arg15[%c0_i32_340] : memref<1x!tpu.dma_semaphore, #tpu.memory_space<semaphore_mem>> -> memref<1x!tpu.dma_semaphore, #tpu.memory_space<semaphore_mem>>
      %1209 = tpu.memref_squeeze %1208 : memref<1x!tpu.dma_semaphore, #tpu.memory_space<semaphore_mem>> -> memref<!tpu.dma_semaphore, #tpu.memory_space<semaphore_mem>>
      tpu.enqueue_dma source(%1206 : memref<1x64xf32, #tpu.memory_space<any>>) target(%1207 : memref<1x64xf32, #tpu.memory_space<vmem>>) target_semaphore(%1209 : memref<!tpu.dma_semaphore, #tpu.memory_space<semaphore_mem>>)
    }
    %c96_i32_0 = arith.constant 96 : i32
    %c0_i32_1 = arith.constant 0 : i32
    %c96_i32_2 = arith.constant 96 : i32
    %1 = arith.addi %c0_i32_1, %c96_i32_2 : i32
    %c1_i32_3 = arith.constant 1 : i32
    scf.for %arg16 = %c0_i32_1 to %1 step %c1_i32_3  : i32 {
      %c0_i32_338 = arith.constant 0 : i32
      %c0_i32_339 = arith.constant 0 : i32
      %c0_i32_340 = arith.constant 0 : i32
      %1202 = tpu.memref_slice %arg2[%c0_i32_339, %c0_i32_340] : memref<256x64xf32, #tpu.memory_space<any>> -> memref<1x64xf32, #tpu.memory_space<any>>
      %c0_i32_341 = arith.constant 0 : i32
      %c0_i32_342 = arith.constant 0 : i32
      %1203 = tpu.memref_slice %arg12[%c0_i32_341, %c0_i32_342] : memref<96x64xf32, #tpu.memory_space<vmem>> -> memref<1x64xf32, #tpu.memory_space<vmem>>
      %1204 = tpu.memref_slice %arg15[%c0_i32_338] : memref<1x!tpu.dma_semaphore, #tpu.memory_space<semaphore_mem>> -> memref<1x!tpu.dma_semaphore, #tpu.memory_space<semaphore_mem>>
      %1205 = tpu.memref_squeeze %1204 : memref<1x!tpu.dma_semaphore, #tpu.memory_space<semaphore_mem>> -> memref<!tpu.dma_semaphore, #tpu.memory_space<semaphore_mem>>
      tpu.wait_dma2 semaphore(%1205 : memref<!tpu.dma_semaphore, #tpu.memory_space<semaphore_mem>>) src(%1202 : memref<1x64xf32, #tpu.memory_space<any>>) dst(%1203 : memref<1x64xf32, #tpu.memory_space<vmem>>)
    }
    %c0 = arith.constant 0 : index
    %c0_4 = arith.constant 0 : index
    %2 = vector.load %arg12[%c0, %c0_4] : memref<96x64xf32, #tpu.memory_space<vmem>>, vector<96x64xf32>
    %c0_5 = arith.constant 0 : index
    %c0_6 = arith.constant 0 : index
    %3 = vector.load %arg5[%c0_5, %c0_6] : memref<64x512xf32, #tpu.memory_space<vmem>>, vector<64x512xf32>
    %cst = arith.constant dense<0.000000e+00> : vector<96x512xf32>
    %4 = tpu.matmul %2, %3, %cst {dimension_numbers = #tpu.dot_dimension_numbers<[1], [0], [0], [1], [0, 0, 1, 1], [], []>} : vector<96x64xf32>, vector<64x512xf32>, vector<96x512xf32> -> vector<96x512xf32>
    %c0_7 = arith.constant 0 : index
    %c0_8 = arith.constant 0 : index
    %5 = vector.load %arg7[%c0_7, %c0_8] : memref<1x512xf32, #tpu.memory_space<vmem>>, vector<1x512xf32>
    %6 = vector.broadcast %5 : vector<1x512xf32> to vector<96x512xf32>
    %7 = arith.addf %4, %6 : vector<96x512xf32>
    %8 = vector.shape_cast %7 : vector<96x512xf32> to vector<12x8x512xf32>
    %c0_9 = arith.constant 0 : index
    %c0_10 = arith.constant 0 : index
    %c0_11 = arith.constant 0 : index
    %9 = vector.load %arg13[%c0_9, %c0_10, %c0_11] : memref<12x8x512xf32, #tpu.memory_space<vmem>>, vector<12x8x512xf32>
    tpu.vector_store %arg13[%c0_9, %c0_10, %c0_11], %8 {strides = array<i32>} : memref<12x8x512xf32, #tpu.memory_space<vmem>>, vector<12x8x512xf32>,
    %c0_12 = arith.constant 0 : index
    %c0_13 = arith.constant 0 : index
    %10 = vector.load %arg8[%c0_12, %c0_13] : memref<64x512xf32, #tpu.memory_space<vmem>>, vector<64x512xf32>
    %cst_14 = arith.constant dense<0.000000e+00> : vector<96x512xf32>
    %11 = tpu.matmul %2, %10, %cst_14 {dimension_numbers = #tpu.dot_dimension_numbers<[1], [0], [0], [1], [0, 0, 1, 1], [], []>} : vector<96x64xf32>, vector<64x512xf32>, vector<96x512xf32> -> vector<96x512xf32>
    %c0_15 = arith.constant 0 : index
    %c0_16 = arith.constant 0 : index
    %12 = vector.load %arg10[%c0_15, %c0_16] : memref<1x512xf32, #tpu.memory_space<vmem>>, vector<1x512xf32>
    %13 = vector.broadcast %12 : vector<1x512xf32> to vector<96x512xf32>
    %14 = arith.addf %11, %13 : vector<96x512xf32>
    %15 = vector.shape_cast %14 : vector<96x512xf32> to vector<12x8x512xf32>
    %c0_17 = arith.constant 0 : index
    %c0_18 = arith.constant 0 : index
    %c0_19 = arith.constant 0 : index
    %16 = vector.load %arg14[%c0_17, %c0_18, %c0_19] : memref<12x8x512xf32, #tpu.memory_space<vmem>>, vector<12x8x512xf32>
    tpu.vector_store %arg14[%c0_17, %c0_18, %c0_19], %15 {strides = array<i32>} : memref<12x8x512xf32, #tpu.memory_space<vmem>>, vector<12x8x512xf32>,
    %c0_20 = arith.constant 0 : index
    %c0_21 = arith.constant 0 : index
    %17 = vector.load %arg6[%c0_20, %c0_21] : memref<128x512xf32, #tpu.memory_space<vmem>>, vector<128x512xf32>
    %c0_22 = arith.constant 0 : index
    %c0_23 = arith.constant 0 : index
    %18 = vector.load %arg9[%c0_22, %c0_23] : memref<128x512xf32, #tpu.memory_space<vmem>>, vector<128x512xf32>
    %c0_24 = arith.constant 0 : index
    %c0_25 = arith.constant 0 : index
    %19 = vector.load %arg3[%c0_24, %c0_25] : memref<8x1xi32, #tpu.memory_space<vmem>>, vector<8x1xi32>
    %cst_26 = arith.constant 0.000000e+00 : f32
    %20 = vector.broadcast %cst_26 : f32 to vector<8x128xf32>
    %cst_27 = arith.constant -3.40282347E+38 : f32
    %21 = vector.broadcast %cst_27 : f32 to vector<8x128xf32>
    %cst_28 = arith.constant -3.40282347E+38 : f32
    %22 = vector.broadcast %cst_28 : f32 to vector<8x128xf32>
    %c0_i32_29 = arith.constant 0 : i32
    %23 = arith.index_cast %c0_i32_29 : i32 to index
    %c0_30 = arith.constant 0 : index
    %c0_31 = arith.constant 0 : index
    %24 = vector.load %arg13[%23, %c0_30, %c0_31] : memref<12x8x512xf32, #tpu.memory_space<vmem>>, vector<1x8x512xf32>
    %25 = vector.shape_cast %24 : vector<1x8x512xf32> to vector<8x512xf32>
    %cst_32 = arith.constant dense<0.000000e+00> : vector<8x512xf32>
    %26 = tpu.matmul %20, %17, %cst_32 {dimension_numbers = #tpu.dot_dimension_numbers<[1], [0], [0], [1], [0, 0, 1, 1], [], []>} : vector<8x128xf32>, vector<128x512xf32>, vector<8x512xf32> -> vector<8x512xf32>
    %27 = arith.addf %25, %26 : vector<8x512xf32>
    %28 = vector.extract_strided_slice %27 {offsets = [0, 0], sizes = [8, 128], strides = [1, 1]} : vector<8x512xf32> to vector<8x128xf32>
    %cst_33 = arith.constant 0.000000e+00 : f32
    %29 = vector.broadcast %cst_33 : f32 to vector<8x128xf32>
    %30 = arith.subf %29, %28 : vector<8x128xf32>
    %31 = math.exp %30 : vector<8x128xf32>
    %cst_34 = arith.constant 1.000000e+00 : f32
    %32 = vector.broadcast %cst_34 : f32 to vector<8x128xf32>
    %33 = arith.addf %32, %31 : vector<8x128xf32>
    %cst_35 = arith.constant 1.000000e+00 : f32
    %34 = vector.broadcast %cst_35 : f32 to vector<8x128xf32>
    %35 = arith.divf %34, %33 : vector<8x128xf32>
    %36 = vector.extract_strided_slice %27 {offsets = [0, 128], sizes = [8, 128], strides = [1, 1]} : vector<8x512xf32> to vector<8x128xf32>
    %cst_36 = arith.constant 0.000000e+00 : f32
    %37 = vector.broadcast %cst_36 : f32 to vector<8x128xf32>
    %38 = arith.subf %37, %36 : vector<8x128xf32>
    %39 = math.exp %38 : vector<8x128xf32>
    %cst_37 = arith.constant 1.000000e+00 : f32
    %40 = vector.broadcast %cst_37 : f32 to vector<8x128xf32>
    %41 = arith.addf %40, %39 : vector<8x128xf32>
    %cst_38 = arith.constant 1.000000e+00 : f32
    %42 = vector.broadcast %cst_38 : f32 to vector<8x128xf32>
    %43 = arith.divf %42, %41 : vector<8x128xf32>
    %44 = vector.extract_strided_slice %27 {offsets = [0, 256], sizes = [8, 128], strides = [1, 1]} : vector<8x512xf32> to vector<8x128xf32>
    %45 = math.tanh %44 : vector<8x128xf32>
    %46 = vector.extract_strided_slice %27 {offsets = [0, 384], sizes = [8, 128], strides = [1, 1]} : vector<8x512xf32> to vector<8x128xf32>
    %cst_39 = arith.constant 0.000000e+00 : f32
    %47 = vector.broadcast %cst_39 : f32 to vector<8x128xf32>
    %48 = arith.subf %47, %46 : vector<8x128xf32>
    %49 = math.exp %48 : vector<8x128xf32>
    %cst_40 = arith.constant 1.000000e+00 : f32
    %50 = vector.broadcast %cst_40 : f32 to vector<8x128xf32>
    %51 = arith.addf %50, %49 : vector<8x128xf32>
    %cst_41 = arith.constant 1.000000e+00 : f32
    %52 = vector.broadcast %cst_41 : f32 to vector<8x128xf32>
    %53 = arith.divf %52, %51 : vector<8x128xf32>
    %54 = arith.mulf %43, %20 : vector<8x128xf32>
    %55 = arith.mulf %35, %45 : vector<8x128xf32>
    %56 = arith.addf %54, %55 : vector<8x128xf32>
    %57 = math.tanh %56 : vector<8x128xf32>
    %58 = arith.mulf %53, %57 : vector<8x128xf32>
    %59 = vector.broadcast %c0_i32_29 : i32 to vector<8x1xi32>
    %60 = arith.cmpi slt, %59, %19 : vector<8x1xi32>
    %61 = vector.shape_cast %60 : vector<8x1xi1> to vector<8x1xi1>
    %62 = vector.broadcast %61 : vector<8x1xi1> to vector<8x128xi1>
    %63 = arith.select %62, %58, %20 : vector<8x128xi1>, vector<8x128xf32>
    %64 = vector.shape_cast %60 : vector<8x1xi1> to vector<8x1xi1>
    %65 = vector.broadcast %64 : vector<8x1xi1> to vector<8x128xi1>
    %66 = arith.select %65, %56, %20 : vector<8x128xi1>, vector<8x128xf32>
    %67 = arith.maximumf %21, %58 : vector<8x128xf32>
    %68 = vector.shape_cast %60 : vector<8x1xi1> to vector<8x1xi1>
    %69 = vector.broadcast %68 : vector<8x1xi1> to vector<8x128xi1>
    %70 = arith.select %69, %67, %21 : vector<8x128xi1>, vector<8x128xf32>
    %c11_i32 = arith.constant 11 : i32
    %71 = arith.subi %c11_i32, %c0_i32_29 : i32
    %72 = arith.index_cast %71 : i32 to index
    %c0_42 = arith.constant 0 : index
    %c0_43 = arith.constant 0 : index
    %73 = vector.load %arg14[%72, %c0_42, %c0_43] : memref<12x8x512xf32, #tpu.memory_space<vmem>>, vector<1x8x512xf32>
    %74 = vector.shape_cast %73 : vector<1x8x512xf32> to vector<8x512xf32>
    %cst_44 = arith.constant dense<0.000000e+00> : vector<8x512xf32>
    %75 = tpu.matmul %20, %18, %cst_44 {dimension_numbers = #tpu.dot_dimension_numbers<[1], [0], [0], [1], [0, 0, 1, 1], [], []>} : vector<8x128xf32>, vector<128x512xf32>, vector<8x512xf32> -> vector<8x512xf32>
    %76 = arith.addf %74, %75 : vector<8x512xf32>
    %77 = vector.extract_strided_slice %76 {offsets = [0, 0], sizes = [8, 128], strides = [1, 1]} : vector<8x512xf32> to vector<8x128xf32>
    %cst_45 = arith.constant 0.000000e+00 : f32
    %78 = vector.broadcast %cst_45 : f32 to vector<8x128xf32>
    %79 = arith.subf %78, %77 : vector<8x128xf32>
    %80 = math.exp %79 : vector<8x128xf32>
    %cst_46 = arith.constant 1.000000e+00 : f32
    %81 = vector.broadcast %cst_46 : f32 to vector<8x128xf32>
    %82 = arith.addf %81, %80 : vector<8x128xf32>
    %cst_47 = arith.constant 1.000000e+00 : f32
    %83 = vector.broadcast %cst_47 : f32 to vector<8x128xf32>
    %84 = arith.divf %83, %82 : vector<8x128xf32>
    %85 = vector.extract_strided_slice %76 {offsets = [0, 128], sizes = [8, 128], strides = [1, 1]} : vector<8x512xf32> to vector<8x128xf32>
    %cst_48 = arith.constant 0.000000e+00 : f32
    %86 = vector.broadcast %cst_48 : f32 to vector<8x128xf32>
    %87 = arith.subf %86, %85 : vector<8x128xf32>
    %88 = math.exp %87 : vector<8x128xf32>
    %cst_49 = arith.constant 1.000000e+00 : f32
    %89 = vector.broadcast %cst_49 : f32 to vector<8x128xf32>
    %90 = arith.addf %89, %88 : vector<8x128xf32>
    %cst_50 = arith.constant 1.000000e+00 : f32
    %91 = vector.broadcast %cst_50 : f32 to vector<8x128xf32>
    %92 = arith.divf %91, %90 : vector<8x128xf32>
    %93 = vector.extract_strided_slice %76 {offsets = [0, 256], sizes = [8, 128], strides = [1, 1]} : vector<8x512xf32> to vector<8x128xf32>
    %94 = math.tanh %93 : vector<8x128xf32>
    %95 = vector.extract_strided_slice %76 {offsets = [0, 384], sizes = [8, 128], strides = [1, 1]} : vector<8x512xf32> to vector<8x128xf32>
    %cst_51 = arith.constant 0.000000e+00 : f32
    %96 = vector.broadcast %cst_51 : f32 to vector<8x128xf32>
    %97 = arith.subf %96, %95 : vector<8x128xf32>
    %98 = math.exp %97 : vector<8x128xf32>
    %cst_52 = arith.constant 1.000000e+00 : f32
    %99 = vector.broadcast %cst_52 : f32 to vector<8x128xf32>
    %100 = arith.addf %99, %98 : vector<8x128xf32>
    %cst_53 = arith.constant 1.000000e+00 : f32
    %101 = vector.broadcast %cst_53 : f32 to vector<8x128xf32>
    %102 = arith.divf %101, %100 : vector<8x128xf32>
    %103 = arith.mulf %92, %20 : vector<8x128xf32>
    %104 = arith.mulf %84, %94 : vector<8x128xf32>
    %105 = arith.addf %103, %104 : vector<8x128xf32>
    %106 = math.tanh %105 : vector<8x128xf32>
    %107 = arith.mulf %102, %106 : vector<8x128xf32>
    %108 = vector.broadcast %71 : i32 to vector<8x1xi32>
    %109 = arith.cmpi slt, %108, %19 : vector<8x1xi32>
    %110 = vector.shape_cast %109 : vector<8x1xi1> to vector<8x1xi1>
    %111 = vector.broadcast %110 : vector<8x1xi1> to vector<8x128xi1>
    %112 = arith.select %111, %107, %20 : vector<8x128xi1>, vector<8x128xf32>
    %113 = vector.shape_cast %109 : vector<8x1xi1> to vector<8x1xi1>
    %114 = vector.broadcast %113 : vector<8x1xi1> to vector<8x128xi1>
    %115 = arith.select %114, %105, %20 : vector<8x128xi1>, vector<8x128xf32>
    %116 = arith.maximumf %22, %107 : vector<8x128xf32>
    %117 = vector.shape_cast %109 : vector<8x1xi1> to vector<8x1xi1>
    %118 = vector.broadcast %117 : vector<8x1xi1> to vector<8x128xi1>
    %119 = arith.select %118, %116, %22 : vector<8x128xi1>, vector<8x128xf32>
    %c1_i32_54 = arith.constant 1 : i32
    %120 = arith.index_cast %c1_i32_54 : i32 to index
    %c0_55 = arith.constant 0 : index
    %c0_56 = arith.constant 0 : index
    %121 = vector.load %arg13[%120, %c0_55, %c0_56] : memref<12x8x512xf32, #tpu.memory_space<vmem>>, vector<1x8x512xf32>
    %122 = vector.shape_cast %121 : vector<1x8x512xf32> to vector<8x512xf32>
    %cst_57 = arith.constant dense<0.000000e+00> : vector<8x512xf32>
    %123 = tpu.matmul %63, %17, %cst_57 {dimension_numbers = #tpu.dot_dimension_numbers<[1], [0], [0], [1], [0, 0, 1, 1], [], []>} : vector<8x128xf32>, vector<128x512xf32>, vector<8x512xf32> -> vector<8x512xf32>
    %124 = arith.addf %122, %123 : vector<8x512xf32>
    %125 = vector.extract_strided_slice %124 {offsets = [0, 0], sizes = [8, 128], strides = [1, 1]} : vector<8x512xf32> to vector<8x128xf32>
    %cst_58 = arith.constant 0.000000e+00 : f32
    %126 = vector.broadcast %cst_58 : f32 to vector<8x128xf32>
    %127 = arith.subf %126, %125 : vector<8x128xf32>
    %128 = math.exp %127 : vector<8x128xf32>
    %cst_59 = arith.constant 1.000000e+00 : f32
    %129 = vector.broadcast %cst_59 : f32 to vector<8x128xf32>
    %130 = arith.addf %129, %128 : vector<8x128xf32>
    %cst_60 = arith.constant 1.000000e+00 : f32
    %131 = vector.broadcast %cst_60 : f32 to vector<8x128xf32>
    %132 = arith.divf %131, %130 : vector<8x128xf32>
    %133 = vector.extract_strided_slice %124 {offsets = [0, 128], sizes = [8, 128], strides = [1, 1]} : vector<8x512xf32> to vector<8x128xf32>
    %cst_61 = arith.constant 0.000000e+00 : f32
    %134 = vector.broadcast %cst_61 : f32 to vector<8x128xf32>
    %135 = arith.subf %134, %133 : vector<8x128xf32>
    %136 = math.exp %135 : vector<8x128xf32>
    %cst_62 = arith.constant 1.000000e+00 : f32
    %137 = vector.broadcast %cst_62 : f32 to vector<8x128xf32>
    %138 = arith.addf %137, %136 : vector<8x128xf32>
    %cst_63 = arith.constant 1.000000e+00 : f32
    %139 = vector.broadcast %cst_63 : f32 to vector<8x128xf32>
    %140 = arith.divf %139, %138 : vector<8x128xf32>
    %141 = vector.extract_strided_slice %124 {offsets = [0, 256], sizes = [8, 128], strides = [1, 1]} : vector<8x512xf32> to vector<8x128xf32>
    %142 = math.tanh %141 : vector<8x128xf32>
    %143 = vector.extract_strided_slice %124 {offsets = [0, 384], sizes = [8, 128], strides = [1, 1]} : vector<8x512xf32> to vector<8x128xf32>
    %cst_64 = arith.constant 0.000000e+00 : f32
    %144 = vector.broadcast %cst_64 : f32 to vector<8x128xf32>
    %145 = arith.subf %144, %143 : vector<8x128xf32>
    %146 = math.exp %145 : vector<8x128xf32>
    %cst_65 = arith.constant 1.000000e+00 : f32
    %147 = vector.broadcast %cst_65 : f32 to vector<8x128xf32>
    %148 = arith.addf %147, %146 : vector<8x128xf32>
    %cst_66 = arith.constant 1.000000e+00 : f32
    %149 = vector.broadcast %cst_66 : f32 to vector<8x128xf32>
    %150 = arith.divf %149, %148 : vector<8x128xf32>
    %151 = arith.mulf %140, %66 : vector<8x128xf32>
    %152 = arith.mulf %132, %142 : vector<8x128xf32>
    %153 = arith.addf %151, %152 : vector<8x128xf32>
    %154 = math.tanh %153 : vector<8x128xf32>
    %155 = arith.mulf %150, %154 : vector<8x128xf32>
    %156 = vector.broadcast %c1_i32_54 : i32 to vector<8x1xi32>
    %157 = arith.cmpi slt, %156, %19 : vector<8x1xi32>
    %158 = vector.shape_cast %157 : vector<8x1xi1> to vector<8x1xi1>
    %159 = vector.broadcast %158 : vector<8x1xi1> to vector<8x128xi1>
    %160 = arith.select %159, %155, %63 : vector<8x128xi1>, vector<8x128xf32>
    %161 = vector.shape_cast %157 : vector<8x1xi1> to vector<8x1xi1>
    %162 = vector.broadcast %161 : vector<8x1xi1> to vector<8x128xi1>
    %163 = arith.select %162, %153, %66 : vector<8x128xi1>, vector<8x128xf32>
    %164 = arith.maximumf %70, %155 : vector<8x128xf32>
    %165 = vector.shape_cast %157 : vector<8x1xi1> to vector<8x1xi1>
    %166 = vector.broadcast %165 : vector<8x1xi1> to vector<8x128xi1>
    %167 = arith.select %166, %164, %70 : vector<8x128xi1>, vector<8x128xf32>
    %c11_i32_67 = arith.constant 11 : i32
    %168 = arith.subi %c11_i32_67, %c1_i32_54 : i32
    %169 = arith.index_cast %168 : i32 to index
    %c0_68 = arith.constant 0 : index
    %c0_69 = arith.constant 0 : index
    %170 = vector.load %arg14[%169, %c0_68, %c0_69] : memref<12x8x512xf32, #tpu.memory_space<vmem>>, vector<1x8x512xf32>
    %171 = vector.shape_cast %170 : vector<1x8x512xf32> to vector<8x512xf32>
    %cst_70 = arith.constant dense<0.000000e+00> : vector<8x512xf32>
    %172 = tpu.matmul %112, %18, %cst_70 {dimension_numbers = #tpu.dot_dimension_numbers<[1], [0], [0], [1], [0, 0, 1, 1], [], []>} : vector<8x128xf32>, vector<128x512xf32>, vector<8x512xf32> -> vector<8x512xf32>
    %173 = arith.addf %171, %172 : vector<8x512xf32>
    %174 = vector.extract_strided_slice %173 {offsets = [0, 0], sizes = [8, 128], strides = [1, 1]} : vector<8x512xf32> to vector<8x128xf32>
    %cst_71 = arith.constant 0.000000e+00 : f32
    %175 = vector.broadcast %cst_71 : f32 to vector<8x128xf32>
    %176 = arith.subf %175, %174 : vector<8x128xf32>
    %177 = math.exp %176 : vector<8x128xf32>
    %cst_72 = arith.constant 1.000000e+00 : f32
    %178 = vector.broadcast %cst_72 : f32 to vector<8x128xf32>
    %179 = arith.addf %178, %177 : vector<8x128xf32>
    %cst_73 = arith.constant 1.000000e+00 : f32
    %180 = vector.broadcast %cst_73 : f32 to vector<8x128xf32>
    %181 = arith.divf %180, %179 : vector<8x128xf32>
    %182 = vector.extract_strided_slice %173 {offsets = [0, 128], sizes = [8, 128], strides = [1, 1]} : vector<8x512xf32> to vector<8x128xf32>
    %cst_74 = arith.constant 0.000000e+00 : f32
    %183 = vector.broadcast %cst_74 : f32 to vector<8x128xf32>
    %184 = arith.subf %183, %182 : vector<8x128xf32>
    %185 = math.exp %184 : vector<8x128xf32>
    %cst_75 = arith.constant 1.000000e+00 : f32
    %186 = vector.broadcast %cst_75 : f32 to vector<8x128xf32>
    %187 = arith.addf %186, %185 : vector<8x128xf32>
    %cst_76 = arith.constant 1.000000e+00 : f32
    %188 = vector.broadcast %cst_76 : f32 to vector<8x128xf32>
    %189 = arith.divf %188, %187 : vector<8x128xf32>
    %190 = vector.extract_strided_slice %173 {offsets = [0, 256], sizes = [8, 128], strides = [1, 1]} : vector<8x512xf32> to vector<8x128xf32>
    %191 = math.tanh %190 : vector<8x128xf32>
    %192 = vector.extract_strided_slice %173 {offsets = [0, 384], sizes = [8, 128], strides = [1, 1]} : vector<8x512xf32> to vector<8x128xf32>
    %cst_77 = arith.constant 0.000000e+00 : f32
    %193 = vector.broadcast %cst_77 : f32 to vector<8x128xf32>
    %194 = arith.subf %193, %192 : vector<8x128xf32>
    %195 = math.exp %194 : vector<8x128xf32>
    %cst_78 = arith.constant 1.000000e+00 : f32
    %196 = vector.broadcast %cst_78 : f32 to vector<8x128xf32>
    %197 = arith.addf %196, %195 : vector<8x128xf32>
    %cst_79 = arith.constant 1.000000e+00 : f32
    %198 = vector.broadcast %cst_79 : f32 to vector<8x128xf32>
    %199 = arith.divf %198, %197 : vector<8x128xf32>
    %200 = arith.mulf %189, %115 : vector<8x128xf32>
    %201 = arith.mulf %181, %191 : vector<8x128xf32>
    %202 = arith.addf %200, %201 : vector<8x128xf32>
    %203 = math.tanh %202 : vector<8x128xf32>
    %204 = arith.mulf %199, %203 : vector<8x128xf32>
    %205 = vector.broadcast %168 : i32 to vector<8x1xi32>
    %206 = arith.cmpi slt, %205, %19 : vector<8x1xi32>
    %207 = vector.shape_cast %206 : vector<8x1xi1> to vector<8x1xi1>
    %208 = vector.broadcast %207 : vector<8x1xi1> to vector<8x128xi1>
    %209 = arith.select %208, %204, %112 : vector<8x128xi1>, vector<8x128xf32>
    %210 = vector.shape_cast %206 : vector<8x1xi1> to vector<8x1xi1>
    %211 = vector.broadcast %210 : vector<8x1xi1> to vector<8x128xi1>
    %212 = arith.select %211, %202, %115 : vector<8x128xi1>, vector<8x128xf32>
    %213 = arith.maximumf %119, %204 : vector<8x128xf32>
    %214 = vector.shape_cast %206 : vector<8x1xi1> to vector<8x1xi1>
    %215 = vector.broadcast %214 : vector<8x1xi1> to vector<8x128xi1>
    %216 = arith.select %215, %213, %119 : vector<8x128xi1>, vector<8x128xf32>
    %c2_i32 = arith.constant 2 : i32
    %217 = arith.index_cast %c2_i32 : i32 to index
    %c0_80 = arith.constant 0 : index
    %c0_81 = arith.constant 0 : index
    %218 = vector.load %arg13[%217, %c0_80, %c0_81] : memref<12x8x512xf32, #tpu.memory_space<vmem>>, vector<1x8x512xf32>
    %219 = vector.shape_cast %218 : vector<1x8x512xf32> to vector<8x512xf32>
    %cst_82 = arith.constant dense<0.000000e+00> : vector<8x512xf32>
    %220 = tpu.matmul %160, %17, %cst_82 {dimension_numbers = #tpu.dot_dimension_numbers<[1], [0], [0], [1], [0, 0, 1, 1], [], []>} : vector<8x128xf32>, vector<128x512xf32>, vector<8x512xf32> -> vector<8x512xf32>
    %221 = arith.addf %219, %220 : vector<8x512xf32>
    %222 = vector.extract_strided_slice %221 {offsets = [0, 0], sizes = [8, 128], strides = [1, 1]} : vector<8x512xf32> to vector<8x128xf32>
    %cst_83 = arith.constant 0.000000e+00 : f32
    %223 = vector.broadcast %cst_83 : f32 to vector<8x128xf32>
    %224 = arith.subf %223, %222 : vector<8x128xf32>
    %225 = math.exp %224 : vector<8x128xf32>
    %cst_84 = arith.constant 1.000000e+00 : f32
    %226 = vector.broadcast %cst_84 : f32 to vector<8x128xf32>
    %227 = arith.addf %226, %225 : vector<8x128xf32>
    %cst_85 = arith.constant 1.000000e+00 : f32
    %228 = vector.broadcast %cst_85 : f32 to vector<8x128xf32>
    %229 = arith.divf %228, %227 : vector<8x128xf32>
    %230 = vector.extract_strided_slice %221 {offsets = [0, 128], sizes = [8, 128], strides = [1, 1]} : vector<8x512xf32> to vector<8x128xf32>
    %cst_86 = arith.constant 0.000000e+00 : f32
    %231 = vector.broadcast %cst_86 : f32 to vector<8x128xf32>
    %232 = arith.subf %231, %230 : vector<8x128xf32>
    %233 = math.exp %232 : vector<8x128xf32>
    %cst_87 = arith.constant 1.000000e+00 : f32
    %234 = vector.broadcast %cst_87 : f32 to vector<8x128xf32>
    %235 = arith.addf %234, %233 : vector<8x128xf32>
    %cst_88 = arith.constant 1.000000e+00 : f32
    %236 = vector.broadcast %cst_88 : f32 to vector<8x128xf32>
    %237 = arith.divf %236, %235 : vector<8x128xf32>
    %238 = vector.extract_strided_slice %221 {offsets = [0, 256], sizes = [8, 128], strides = [1, 1]} : vector<8x512xf32> to vector<8x128xf32>
    %239 = math.tanh %238 : vector<8x128xf32>
    %240 = vector.extract_strided_slice %221 {offsets = [0, 384], sizes = [8, 128], strides = [1, 1]} : vector<8x512xf32> to vector<8x128xf32>
    %cst_89 = arith.constant 0.000000e+00 : f32
    %241 = vector.broadcast %cst_89 : f32 to vector<8x128xf32>
    %242 = arith.subf %241, %240 : vector<8x128xf32>
    %243 = math.exp %242 : vector<8x128xf32>
    %cst_90 = arith.constant 1.000000e+00 : f32
    %244 = vector.broadcast %cst_90 : f32 to vector<8x128xf32>
    %245 = arith.addf %244, %243 : vector<8x128xf32>
    %cst_91 = arith.constant 1.000000e+00 : f32
    %246 = vector.broadcast %cst_91 : f32 to vector<8x128xf32>
    %247 = arith.divf %246, %245 : vector<8x128xf32>
    %248 = arith.mulf %237, %163 : vector<8x128xf32>
    %249 = arith.mulf %229, %239 : vector<8x128xf32>
    %250 = arith.addf %248, %249 : vector<8x128xf32>
    %251 = math.tanh %250 : vector<8x128xf32>
    %252 = arith.mulf %247, %251 : vector<8x128xf32>
    %253 = vector.broadcast %c2_i32 : i32 to vector<8x1xi32>
    %254 = arith.cmpi slt, %253, %19 : vector<8x1xi32>
    %255 = vector.shape_cast %254 : vector<8x1xi1> to vector<8x1xi1>
    %256 = vector.broadcast %255 : vector<8x1xi1> to vector<8x128xi1>
    %257 = arith.select %256, %252, %160 : vector<8x128xi1>, vector<8x128xf32>
    %258 = vector.shape_cast %254 : vector<8x1xi1> to vector<8x1xi1>
    %259 = vector.broadcast %258 : vector<8x1xi1> to vector<8x128xi1>
    %260 = arith.select %259, %250, %163 : vector<8x128xi1>, vector<8x128xf32>
    %261 = arith.maximumf %167, %252 : vector<8x128xf32>
    %262 = vector.shape_cast %254 : vector<8x1xi1> to vector<8x1xi1>
    %263 = vector.broadcast %262 : vector<8x1xi1> to vector<8x128xi1>
    %264 = arith.select %263, %261, %167 : vector<8x128xi1>, vector<8x128xf32>
    %c11_i32_92 = arith.constant 11 : i32
    %265 = arith.subi %c11_i32_92, %c2_i32 : i32
    %266 = arith.index_cast %265 : i32 to index
    %c0_93 = arith.constant 0 : index
    %c0_94 = arith.constant 0 : index
    %267 = vector.load %arg14[%266, %c0_93, %c0_94] : memref<12x8x512xf32, #tpu.memory_space<vmem>>, vector<1x8x512xf32>
    %268 = vector.shape_cast %267 : vector<1x8x512xf32> to vector<8x512xf32>
    %cst_95 = arith.constant dense<0.000000e+00> : vector<8x512xf32>
    %269 = tpu.matmul %209, %18, %cst_95 {dimension_numbers = #tpu.dot_dimension_numbers<[1], [0], [0], [1], [0, 0, 1, 1], [], []>} : vector<8x128xf32>, vector<128x512xf32>, vector<8x512xf32> -> vector<8x512xf32>
    %270 = arith.addf %268, %269 : vector<8x512xf32>
    %271 = vector.extract_strided_slice %270 {offsets = [0, 0], sizes = [8, 128], strides = [1, 1]} : vector<8x512xf32> to vector<8x128xf32>
    %cst_96 = arith.constant 0.000000e+00 : f32
    %272 = vector.broadcast %cst_96 : f32 to vector<8x128xf32>
    %273 = arith.subf %272, %271 : vector<8x128xf32>
    %274 = math.exp %273 : vector<8x128xf32>
    %cst_97 = arith.constant 1.000000e+00 : f32
    %275 = vector.broadcast %cst_97 : f32 to vector<8x128xf32>
    %276 = arith.addf %275, %274 : vector<8x128xf32>
    %cst_98 = arith.constant 1.000000e+00 : f32
    %277 = vector.broadcast %cst_98 : f32 to vector<8x128xf32>
    %278 = arith.divf %277, %276 : vector<8x128xf32>
    %279 = vector.extract_strided_slice %270 {offsets = [0, 128], sizes = [8, 128], strides = [1, 1]} : vector<8x512xf32> to vector<8x128xf32>
    %cst_99 = arith.constant 0.000000e+00 : f32
    %280 = vector.broadcast %cst_99 : f32 to vector<8x128xf32>
    %281 = arith.subf %280, %279 : vector<8x128xf32>
    %282 = math.exp %281 : vector<8x128xf32>
    %cst_100 = arith.constant 1.000000e+00 : f32
    %283 = vector.broadcast %cst_100 : f32 to vector<8x128xf32>
    %284 = arith.addf %283, %282 : vector<8x128xf32>
    %cst_101 = arith.constant 1.000000e+00 : f32
    %285 = vector.broadcast %cst_101 : f32 to vector<8x128xf32>
    %286 = arith.divf %285, %284 : vector<8x128xf32>
    %287 = vector.extract_strided_slice %270 {offsets = [0, 256], sizes = [8, 128], strides = [1, 1]} : vector<8x512xf32> to vector<8x128xf32>
    %288 = math.tanh %287 : vector<8x128xf32>
    %289 = vector.extract_strided_slice %270 {offsets = [0, 384], sizes = [8, 128], strides = [1, 1]} : vector<8x512xf32> to vector<8x128xf32>
    %cst_102 = arith.constant 0.000000e+00 : f32
    %290 = vector.broadcast %cst_102 : f32 to vector<8x128xf32>
    %291 = arith.subf %290, %289 : vector<8x128xf32>
    %292 = math.exp %291 : vector<8x128xf32>
    %cst_103 = arith.constant 1.000000e+00 : f32
    %293 = vector.broadcast %cst_103 : f32 to vector<8x128xf32>
    %294 = arith.addf %293, %292 : vector<8x128xf32>
    %cst_104 = arith.constant 1.000000e+00 : f32
    %295 = vector.broadcast %cst_104 : f32 to vector<8x128xf32>
    %296 = arith.divf %295, %294 : vector<8x128xf32>
    %297 = arith.mulf %286, %212 : vector<8x128xf32>
    %298 = arith.mulf %278, %288 : vector<8x128xf32>
    %299 = arith.addf %297, %298 : vector<8x128xf32>
    %300 = math.tanh %299 : vector<8x128xf32>
    %301 = arith.mulf %296, %300 : vector<8x128xf32>
    %302 = vector.broadcast %265 : i32 to vector<8x1xi32>
    %303 = arith.cmpi slt, %302, %19 : vector<8x1xi32>
    %304 = vector.shape_cast %303 : vector<8x1xi1> to vector<8x1xi1>
    %305 = vector.broadcast %304 : vector<8x1xi1> to vector<8x128xi1>
    %306 = arith.select %305, %301, %209 : vector<8x128xi1>, vector<8x128xf32>
    %307 = vector.shape_cast %303 : vector<8x1xi1> to vector<8x1xi1>
    %308 = vector.broadcast %307 : vector<8x1xi1> to vector<8x128xi1>
    %309 = arith.select %308, %299, %212 : vector<8x128xi1>, vector<8x128xf32>
    %310 = arith.maximumf %216, %301 : vector<8x128xf32>
    %311 = vector.shape_cast %303 : vector<8x1xi1> to vector<8x1xi1>
    %312 = vector.broadcast %311 : vector<8x1xi1> to vector<8x128xi1>
    %313 = arith.select %312, %310, %216 : vector<8x128xi1>, vector<8x128xf32>
    %c3_i32 = arith.constant 3 : i32
    %314 = arith.index_cast %c3_i32 : i32 to index
    %c0_105 = arith.constant 0 : index
    %c0_106 = arith.constant 0 : index
    %315 = vector.load %arg13[%314, %c0_105, %c0_106] : memref<12x8x512xf32, #tpu.memory_space<vmem>>, vector<1x8x512xf32>
    %316 = vector.shape_cast %315 : vector<1x8x512xf32> to vector<8x512xf32>
    %cst_107 = arith.constant dense<0.000000e+00> : vector<8x512xf32>
    %317 = tpu.matmul %257, %17, %cst_107 {dimension_numbers = #tpu.dot_dimension_numbers<[1], [0], [0], [1], [0, 0, 1, 1], [], []>} : vector<8x128xf32>, vector<128x512xf32>, vector<8x512xf32> -> vector<8x512xf32>
    %318 = arith.addf %316, %317 : vector<8x512xf32>
    %319 = vector.extract_strided_slice %318 {offsets = [0, 0], sizes = [8, 128], strides = [1, 1]} : vector<8x512xf32> to vector<8x128xf32>
    %cst_108 = arith.constant 0.000000e+00 : f32
    %320 = vector.broadcast %cst_108 : f32 to vector<8x128xf32>
    %321 = arith.subf %320, %319 : vector<8x128xf32>
    %322 = math.exp %321 : vector<8x128xf32>
    %cst_109 = arith.constant 1.000000e+00 : f32
    %323 = vector.broadcast %cst_109 : f32 to vector<8x128xf32>
    %324 = arith.addf %323, %322 : vector<8x128xf32>
    %cst_110 = arith.constant 1.000000e+00 : f32
    %325 = vector.broadcast %cst_110 : f32 to vector<8x128xf32>
    %326 = arith.divf %325, %324 : vector<8x128xf32>
    %327 = vector.extract_strided_slice %318 {offsets = [0, 128], sizes = [8, 128], strides = [1, 1]} : vector<8x512xf32> to vector<8x128xf32>
    %cst_111 = arith.constant 0.000000e+00 : f32
    %328 = vector.broadcast %cst_111 : f32 to vector<8x128xf32>
    %329 = arith.subf %328, %327 : vector<8x128xf32>
    %330 = math.exp %329 : vector<8x128xf32>
    %cst_112 = arith.constant 1.000000e+00 : f32
    %331 = vector.broadcast %cst_112 : f32 to vector<8x128xf32>
    %332 = arith.addf %331, %330 : vector<8x128xf32>
    %cst_113 = arith.constant 1.000000e+00 : f32
    %333 = vector.broadcast %cst_113 : f32 to vector<8x128xf32>
    %334 = arith.divf %333, %332 : vector<8x128xf32>
    %335 = vector.extract_strided_slice %318 {offsets = [0, 256], sizes = [8, 128], strides = [1, 1]} : vector<8x512xf32> to vector<8x128xf32>
    %336 = math.tanh %335 : vector<8x128xf32>
    %337 = vector.extract_strided_slice %318 {offsets = [0, 384], sizes = [8, 128], strides = [1, 1]} : vector<8x512xf32> to vector<8x128xf32>
    %cst_114 = arith.constant 0.000000e+00 : f32
    %338 = vector.broadcast %cst_114 : f32 to vector<8x128xf32>
    %339 = arith.subf %338, %337 : vector<8x128xf32>
    %340 = math.exp %339 : vector<8x128xf32>
    %cst_115 = arith.constant 1.000000e+00 : f32
    %341 = vector.broadcast %cst_115 : f32 to vector<8x128xf32>
    %342 = arith.addf %341, %340 : vector<8x128xf32>
    %cst_116 = arith.constant 1.000000e+00 : f32
    %343 = vector.broadcast %cst_116 : f32 to vector<8x128xf32>
    %344 = arith.divf %343, %342 : vector<8x128xf32>
    %345 = arith.mulf %334, %260 : vector<8x128xf32>
    %346 = arith.mulf %326, %336 : vector<8x128xf32>
    %347 = arith.addf %345, %346 : vector<8x128xf32>
    %348 = math.tanh %347 : vector<8x128xf32>
    %349 = arith.mulf %344, %348 : vector<8x128xf32>
    %350 = vector.broadcast %c3_i32 : i32 to vector<8x1xi32>
    %351 = arith.cmpi slt, %350, %19 : vector<8x1xi32>
    %352 = vector.shape_cast %351 : vector<8x1xi1> to vector<8x1xi1>
    %353 = vector.broadcast %352 : vector<8x1xi1> to vector<8x128xi1>
    %354 = arith.select %353, %349, %257 : vector<8x128xi1>, vector<8x128xf32>
    %355 = vector.shape_cast %351 : vector<8x1xi1> to vector<8x1xi1>
    %356 = vector.broadcast %355 : vector<8x1xi1> to vector<8x128xi1>
    %357 = arith.select %356, %347, %260 : vector<8x128xi1>, vector<8x128xf32>
    %358 = arith.maximumf %264, %349 : vector<8x128xf32>
    %359 = vector.shape_cast %351 : vector<8x1xi1> to vector<8x1xi1>
    %360 = vector.broadcast %359 : vector<8x1xi1> to vector<8x128xi1>
    %361 = arith.select %360, %358, %264 : vector<8x128xi1>, vector<8x128xf32>
    %c11_i32_117 = arith.constant 11 : i32
    %362 = arith.subi %c11_i32_117, %c3_i32 : i32
    %363 = arith.index_cast %362 : i32 to index
    %c0_118 = arith.constant 0 : index
    %c0_119 = arith.constant 0 : index
    %364 = vector.load %arg14[%363, %c0_118, %c0_119] : memref<12x8x512xf32, #tpu.memory_space<vmem>>, vector<1x8x512xf32>
    %365 = vector.shape_cast %364 : vector<1x8x512xf32> to vector<8x512xf32>
    %cst_120 = arith.constant dense<0.000000e+00> : vector<8x512xf32>
    %366 = tpu.matmul %306, %18, %cst_120 {dimension_numbers = #tpu.dot_dimension_numbers<[1], [0], [0], [1], [0, 0, 1, 1], [], []>} : vector<8x128xf32>, vector<128x512xf32>, vector<8x512xf32> -> vector<8x512xf32>
    %367 = arith.addf %365, %366 : vector<8x512xf32>
    %368 = vector.extract_strided_slice %367 {offsets = [0, 0], sizes = [8, 128], strides = [1, 1]} : vector<8x512xf32> to vector<8x128xf32>
    %cst_121 = arith.constant 0.000000e+00 : f32
    %369 = vector.broadcast %cst_121 : f32 to vector<8x128xf32>
    %370 = arith.subf %369, %368 : vector<8x128xf32>
    %371 = math.exp %370 : vector<8x128xf32>
    %cst_122 = arith.constant 1.000000e+00 : f32
    %372 = vector.broadcast %cst_122 : f32 to vector<8x128xf32>
    %373 = arith.addf %372, %371 : vector<8x128xf32>
    %cst_123 = arith.constant 1.000000e+00 : f32
    %374 = vector.broadcast %cst_123 : f32 to vector<8x128xf32>
    %375 = arith.divf %374, %373 : vector<8x128xf32>
    %376 = vector.extract_strided_slice %367 {offsets = [0, 128], sizes = [8, 128], strides = [1, 1]} : vector<8x512xf32> to vector<8x128xf32>
    %cst_124 = arith.constant 0.000000e+00 : f32
    %377 = vector.broadcast %cst_124 : f32 to vector<8x128xf32>
    %378 = arith.subf %377, %376 : vector<8x128xf32>
    %379 = math.exp %378 : vector<8x128xf32>
    %cst_125 = arith.constant 1.000000e+00 : f32
    %380 = vector.broadcast %cst_125 : f32 to vector<8x128xf32>
    %381 = arith.addf %380, %379 : vector<8x128xf32>
    %cst_126 = arith.constant 1.000000e+00 : f32
    %382 = vector.broadcast %cst_126 : f32 to vector<8x128xf32>
    %383 = arith.divf %382, %381 : vector<8x128xf32>
    %384 = vector.extract_strided_slice %367 {offsets = [0, 256], sizes = [8, 128], strides = [1, 1]} : vector<8x512xf32> to vector<8x128xf32>
    %385 = math.tanh %384 : vector<8x128xf32>
    %386 = vector.extract_strided_slice %367 {offsets = [0, 384], sizes = [8, 128], strides = [1, 1]} : vector<8x512xf32> to vector<8x128xf32>
    %cst_127 = arith.constant 0.000000e+00 : f32
    %387 = vector.broadcast %cst_127 : f32 to vector<8x128xf32>
    %388 = arith.subf %387, %386 : vector<8x128xf32>
    %389 = math.exp %388 : vector<8x128xf32>
    %cst_128 = arith.constant 1.000000e+00 : f32
    %390 = vector.broadcast %cst_128 : f32 to vector<8x128xf32>
    %391 = arith.addf %390, %389 : vector<8x128xf32>
    %cst_129 = arith.constant 1.000000e+00 : f32
    %392 = vector.broadcast %cst_129 : f32 to vector<8x128xf32>
    %393 = arith.divf %392, %391 : vector<8x128xf32>
    %394 = arith.mulf %383, %309 : vector<8x128xf32>
    %395 = arith.mulf %375, %385 : vector<8x128xf32>
    %396 = arith.addf %394, %395 : vector<8x128xf32>
    %397 = math.tanh %396 : vector<8x128xf32>
    %398 = arith.mulf %393, %397 : vector<8x128xf32>
    %399 = vector.broadcast %362 : i32 to vector<8x1xi32>
    %400 = arith.cmpi slt, %399, %19 : vector<8x1xi32>
    %401 = vector.shape_cast %400 : vector<8x1xi1> to vector<8x1xi1>
    %402 = vector.broadcast %401 : vector<8x1xi1> to vector<8x128xi1>
    %403 = arith.select %402, %398, %306 : vector<8x128xi1>, vector<8x128xf32>
    %404 = vector.shape_cast %400 : vector<8x1xi1> to vector<8x1xi1>
    %405 = vector.broadcast %404 : vector<8x1xi1> to vector<8x128xi1>
    %406 = arith.select %405, %396, %309 : vector<8x128xi1>, vector<8x128xf32>
    %407 = arith.maximumf %313, %398 : vector<8x128xf32>
    %408 = vector.shape_cast %400 : vector<8x1xi1> to vector<8x1xi1>
    %409 = vector.broadcast %408 : vector<8x1xi1> to vector<8x128xi1>
    %410 = arith.select %409, %407, %313 : vector<8x128xi1>, vector<8x128xf32>
    %c4_i32 = arith.constant 4 : i32
    %411 = arith.index_cast %c4_i32 : i32 to index
    %c0_130 = arith.constant 0 : index
    %c0_131 = arith.constant 0 : index
    %412 = vector.load %arg13[%411, %c0_130, %c0_131] : memref<12x8x512xf32, #tpu.memory_space<vmem>>, vector<1x8x512xf32>
    %413 = vector.shape_cast %412 : vector<1x8x512xf32> to vector<8x512xf32>
    %cst_132 = arith.constant dense<0.000000e+00> : vector<8x512xf32>
    %414 = tpu.matmul %354, %17, %cst_132 {dimension_numbers = #tpu.dot_dimension_numbers<[1], [0], [0], [1], [0, 0, 1, 1], [], []>} : vector<8x128xf32>, vector<128x512xf32>, vector<8x512xf32> -> vector<8x512xf32>
    %415 = arith.addf %413, %414 : vector<8x512xf32>
    %416 = vector.extract_strided_slice %415 {offsets = [0, 0], sizes = [8, 128], strides = [1, 1]} : vector<8x512xf32> to vector<8x128xf32>
    %cst_133 = arith.constant 0.000000e+00 : f32
    %417 = vector.broadcast %cst_133 : f32 to vector<8x128xf32>
    %418 = arith.subf %417, %416 : vector<8x128xf32>
    %419 = math.exp %418 : vector<8x128xf32>
    %cst_134 = arith.constant 1.000000e+00 : f32
    %420 = vector.broadcast %cst_134 : f32 to vector<8x128xf32>
    %421 = arith.addf %420, %419 : vector<8x128xf32>
    %cst_135 = arith.constant 1.000000e+00 : f32
    %422 = vector.broadcast %cst_135 : f32 to vector<8x128xf32>
    %423 = arith.divf %422, %421 : vector<8x128xf32>
    %424 = vector.extract_strided_slice %415 {offsets = [0, 128], sizes = [8, 128], strides = [1, 1]} : vector<8x512xf32> to vector<8x128xf32>
    %cst_136 = arith.constant 0.000000e+00 : f32
    %425 = vector.broadcast %cst_136 : f32 to vector<8x128xf32>
    %426 = arith.subf %425, %424 : vector<8x128xf32>
    %427 = math.exp %426 : vector<8x128xf32>
    %cst_137 = arith.constant 1.000000e+00 : f32
    %428 = vector.broadcast %cst_137 : f32 to vector<8x128xf32>
    %429 = arith.addf %428, %427 : vector<8x128xf32>
    %cst_138 = arith.constant 1.000000e+00 : f32
    %430 = vector.broadcast %cst_138 : f32 to vector<8x128xf32>
    %431 = arith.divf %430, %429 : vector<8x128xf32>
    %432 = vector.extract_strided_slice %415 {offsets = [0, 256], sizes = [8, 128], strides = [1, 1]} : vector<8x512xf32> to vector<8x128xf32>
    %433 = math.tanh %432 : vector<8x128xf32>
    %434 = vector.extract_strided_slice %415 {offsets = [0, 384], sizes = [8, 128], strides = [1, 1]} : vector<8x512xf32> to vector<8x128xf32>
    %cst_139 = arith.constant 0.000000e+00 : f32
    %435 = vector.broadcast %cst_139 : f32 to vector<8x128xf32>
    %436 = arith.subf %435, %434 : vector<8x128xf32>
    %437 = math.exp %436 : vector<8x128xf32>
    %cst_140 = arith.constant 1.000000e+00 : f32
    %438 = vector.broadcast %cst_140 : f32 to vector<8x128xf32>
    %439 = arith.addf %438, %437 : vector<8x128xf32>
    %cst_141 = arith.constant 1.000000e+00 : f32
    %440 = vector.broadcast %cst_141 : f32 to vector<8x128xf32>
    %441 = arith.divf %440, %439 : vector<8x128xf32>
    %442 = arith.mulf %431, %357 : vector<8x128xf32>
    %443 = arith.mulf %423, %433 : vector<8x128xf32>
    %444 = arith.addf %442, %443 : vector<8x128xf32>
    %445 = math.tanh %444 : vector<8x128xf32>
    %446 = arith.mulf %441, %445 : vector<8x128xf32>
    %447 = vector.broadcast %c4_i32 : i32 to vector<8x1xi32>
    %448 = arith.cmpi slt, %447, %19 : vector<8x1xi32>
    %449 = vector.shape_cast %448 : vector<8x1xi1> to vector<8x1xi1>
    %450 = vector.broadcast %449 : vector<8x1xi1> to vector<8x128xi1>
    %451 = arith.select %450, %446, %354 : vector<8x128xi1>, vector<8x128xf32>
    %452 = vector.shape_cast %448 : vector<8x1xi1> to vector<8x1xi1>
    %453 = vector.broadcast %452 : vector<8x1xi1> to vector<8x128xi1>
    %454 = arith.select %453, %444, %357 : vector<8x128xi1>, vector<8x128xf32>
    %455 = arith.maximumf %361, %446 : vector<8x128xf32>
    %456 = vector.shape_cast %448 : vector<8x1xi1> to vector<8x1xi1>
    %457 = vector.broadcast %456 : vector<8x1xi1> to vector<8x128xi1>
    %458 = arith.select %457, %455, %361 : vector<8x128xi1>, vector<8x128xf32>
    %c11_i32_142 = arith.constant 11 : i32
    %459 = arith.subi %c11_i32_142, %c4_i32 : i32
    %460 = arith.index_cast %459 : i32 to index
    %c0_143 = arith.constant 0 : index
    %c0_144 = arith.constant 0 : index
    %461 = vector.load %arg14[%460, %c0_143, %c0_144] : memref<12x8x512xf32, #tpu.memory_space<vmem>>, vector<1x8x512xf32>
    %462 = vector.shape_cast %461 : vector<1x8x512xf32> to vector<8x512xf32>
    %cst_145 = arith.constant dense<0.000000e+00> : vector<8x512xf32>
    %463 = tpu.matmul %403, %18, %cst_145 {dimension_numbers = #tpu.dot_dimension_numbers<[1], [0], [0], [1], [0, 0, 1, 1], [], []>} : vector<8x128xf32>, vector<128x512xf32>, vector<8x512xf32> -> vector<8x512xf32>
    %464 = arith.addf %462, %463 : vector<8x512xf32>
    %465 = vector.extract_strided_slice %464 {offsets = [0, 0], sizes = [8, 128], strides = [1, 1]} : vector<8x512xf32> to vector<8x128xf32>
    %cst_146 = arith.constant 0.000000e+00 : f32
    %466 = vector.broadcast %cst_146 : f32 to vector<8x128xf32>
    %467 = arith.subf %466, %465 : vector<8x128xf32>
    %468 = math.exp %467 : vector<8x128xf32>
    %cst_147 = arith.constant 1.000000e+00 : f32
    %469 = vector.broadcast %cst_147 : f32 to vector<8x128xf32>
    %470 = arith.addf %469, %468 : vector<8x128xf32>
    %cst_148 = arith.constant 1.000000e+00 : f32
    %471 = vector.broadcast %cst_148 : f32 to vector<8x128xf32>
    %472 = arith.divf %471, %470 : vector<8x128xf32>
    %473 = vector.extract_strided_slice %464 {offsets = [0, 128], sizes = [8, 128], strides = [1, 1]} : vector<8x512xf32> to vector<8x128xf32>
    %cst_149 = arith.constant 0.000000e+00 : f32
    %474 = vector.broadcast %cst_149 : f32 to vector<8x128xf32>
    %475 = arith.subf %474, %473 : vector<8x128xf32>
    %476 = math.exp %475 : vector<8x128xf32>
    %cst_150 = arith.constant 1.000000e+00 : f32
    %477 = vector.broadcast %cst_150 : f32 to vector<8x128xf32>
    %478 = arith.addf %477, %476 : vector<8x128xf32>
    %cst_151 = arith.constant 1.000000e+00 : f32
    %479 = vector.broadcast %cst_151 : f32 to vector<8x128xf32>
    %480 = arith.divf %479, %478 : vector<8x128xf32>
    %481 = vector.extract_strided_slice %464 {offsets = [0, 256], sizes = [8, 128], strides = [1, 1]} : vector<8x512xf32> to vector<8x128xf32>
    %482 = math.tanh %481 : vector<8x128xf32>
    %483 = vector.extract_strided_slice %464 {offsets = [0, 384], sizes = [8, 128], strides = [1, 1]} : vector<8x512xf32> to vector<8x128xf32>
    %cst_152 = arith.constant 0.000000e+00 : f32
    %484 = vector.broadcast %cst_152 : f32 to vector<8x128xf32>
    %485 = arith.subf %484, %483 : vector<8x128xf32>
    %486 = math.exp %485 : vector<8x128xf32>
    %cst_153 = arith.constant 1.000000e+00 : f32
    %487 = vector.broadcast %cst_153 : f32 to vector<8x128xf32>
    %488 = arith.addf %487, %486 : vector<8x128xf32>
    %cst_154 = arith.constant 1.000000e+00 : f32
    %489 = vector.broadcast %cst_154 : f32 to vector<8x128xf32>
    %490 = arith.divf %489, %488 : vector<8x128xf32>
    %491 = arith.mulf %480, %406 : vector<8x128xf32>
    %492 = arith.mulf %472, %482 : vector<8x128xf32>
    %493 = arith.addf %491, %492 : vector<8x128xf32>
    %494 = math.tanh %493 : vector<8x128xf32>
    %495 = arith.mulf %490, %494 : vector<8x128xf32>
    %496 = vector.broadcast %459 : i32 to vector<8x1xi32>
    %497 = arith.cmpi slt, %496, %19 : vector<8x1xi32>
    %498 = vector.shape_cast %497 : vector<8x1xi1> to vector<8x1xi1>
    %499 = vector.broadcast %498 : vector<8x1xi1> to vector<8x128xi1>
    %500 = arith.select %499, %495, %403 : vector<8x128xi1>, vector<8x128xf32>
    %501 = vector.shape_cast %497 : vector<8x1xi1> to vector<8x1xi1>
    %502 = vector.broadcast %501 : vector<8x1xi1> to vector<8x128xi1>
    %503 = arith.select %502, %493, %406 : vector<8x128xi1>, vector<8x128xf32>
    %504 = arith.maximumf %410, %495 : vector<8x128xf32>
    %505 = vector.shape_cast %497 : vector<8x1xi1> to vector<8x1xi1>
    %506 = vector.broadcast %505 : vector<8x1xi1> to vector<8x128xi1>
    %507 = arith.select %506, %504, %410 : vector<8x128xi1>, vector<8x128xf32>
    %c5_i32 = arith.constant 5 : i32
    %508 = arith.index_cast %c5_i32 : i32 to index
    %c0_155 = arith.constant 0 : index
    %c0_156 = arith.constant 0 : index
    %509 = vector.load %arg13[%508, %c0_155, %c0_156] : memref<12x8x512xf32, #tpu.memory_space<vmem>>, vector<1x8x512xf32>
    %510 = vector.shape_cast %509 : vector<1x8x512xf32> to vector<8x512xf32>
    %cst_157 = arith.constant dense<0.000000e+00> : vector<8x512xf32>
    %511 = tpu.matmul %451, %17, %cst_157 {dimension_numbers = #tpu.dot_dimension_numbers<[1], [0], [0], [1], [0, 0, 1, 1], [], []>} : vector<8x128xf32>, vector<128x512xf32>, vector<8x512xf32> -> vector<8x512xf32>
    %512 = arith.addf %510, %511 : vector<8x512xf32>
    %513 = vector.extract_strided_slice %512 {offsets = [0, 0], sizes = [8, 128], strides = [1, 1]} : vector<8x512xf32> to vector<8x128xf32>
    %cst_158 = arith.constant 0.000000e+00 : f32
    %514 = vector.broadcast %cst_158 : f32 to vector<8x128xf32>
    %515 = arith.subf %514, %513 : vector<8x128xf32>
    %516 = math.exp %515 : vector<8x128xf32>
    %cst_159 = arith.constant 1.000000e+00 : f32
    %517 = vector.broadcast %cst_159 : f32 to vector<8x128xf32>
    %518 = arith.addf %517, %516 : vector<8x128xf32>
    %cst_160 = arith.constant 1.000000e+00 : f32
    %519 = vector.broadcast %cst_160 : f32 to vector<8x128xf32>
    %520 = arith.divf %519, %518 : vector<8x128xf32>
    %521 = vector.extract_strided_slice %512 {offsets = [0, 128], sizes = [8, 128], strides = [1, 1]} : vector<8x512xf32> to vector<8x128xf32>
    %cst_161 = arith.constant 0.000000e+00 : f32
    %522 = vector.broadcast %cst_161 : f32 to vector<8x128xf32>
    %523 = arith.subf %522, %521 : vector<8x128xf32>
    %524 = math.exp %523 : vector<8x128xf32>
    %cst_162 = arith.constant 1.000000e+00 : f32
    %525 = vector.broadcast %cst_162 : f32 to vector<8x128xf32>
    %526 = arith.addf %525, %524 : vector<8x128xf32>
    %cst_163 = arith.constant 1.000000e+00 : f32
    %527 = vector.broadcast %cst_163 : f32 to vector<8x128xf32>
    %528 = arith.divf %527, %526 : vector<8x128xf32>
    %529 = vector.extract_strided_slice %512 {offsets = [0, 256], sizes = [8, 128], strides = [1, 1]} : vector<8x512xf32> to vector<8x128xf32>
    %530 = math.tanh %529 : vector<8x128xf32>
    %531 = vector.extract_strided_slice %512 {offsets = [0, 384], sizes = [8, 128], strides = [1, 1]} : vector<8x512xf32> to vector<8x128xf32>
    %cst_164 = arith.constant 0.000000e+00 : f32
    %532 = vector.broadcast %cst_164 : f32 to vector<8x128xf32>
    %533 = arith.subf %532, %531 : vector<8x128xf32>
    %534 = math.exp %533 : vector<8x128xf32>
    %cst_165 = arith.constant 1.000000e+00 : f32
    %535 = vector.broadcast %cst_165 : f32 to vector<8x128xf32>
    %536 = arith.addf %535, %534 : vector<8x128xf32>
    %cst_166 = arith.constant 1.000000e+00 : f32
    %537 = vector.broadcast %cst_166 : f32 to vector<8x128xf32>
    %538 = arith.divf %537, %536 : vector<8x128xf32>
    %539 = arith.mulf %528, %454 : vector<8x128xf32>
    %540 = arith.mulf %520, %530 : vector<8x128xf32>
    %541 = arith.addf %539, %540 : vector<8x128xf32>
    %542 = math.tanh %541 : vector<8x128xf32>
    %543 = arith.mulf %538, %542 : vector<8x128xf32>
    %544 = vector.broadcast %c5_i32 : i32 to vector<8x1xi32>
    %545 = arith.cmpi slt, %544, %19 : vector<8x1xi32>
    %546 = vector.shape_cast %545 : vector<8x1xi1> to vector<8x1xi1>
    %547 = vector.broadcast %546 : vector<8x1xi1> to vector<8x128xi1>
    %548 = arith.select %547, %543, %451 : vector<8x128xi1>, vector<8x128xf32>
    %549 = vector.shape_cast %545 : vector<8x1xi1> to vector<8x1xi1>
    %550 = vector.broadcast %549 : vector<8x1xi1> to vector<8x128xi1>
    %551 = arith.select %550, %541, %454 : vector<8x128xi1>, vector<8x128xf32>
    %552 = arith.maximumf %458, %543 : vector<8x128xf32>
    %553 = vector.shape_cast %545 : vector<8x1xi1> to vector<8x1xi1>
    %554 = vector.broadcast %553 : vector<8x1xi1> to vector<8x128xi1>
    %555 = arith.select %554, %552, %458 : vector<8x128xi1>, vector<8x128xf32>
    %c11_i32_167 = arith.constant 11 : i32
    %556 = arith.subi %c11_i32_167, %c5_i32 : i32
    %557 = arith.index_cast %556 : i32 to index
    %c0_168 = arith.constant 0 : index
    %c0_169 = arith.constant 0 : index
    %558 = vector.load %arg14[%557, %c0_168, %c0_169] : memref<12x8x512xf32, #tpu.memory_space<vmem>>, vector<1x8x512xf32>
    %559 = vector.shape_cast %558 : vector<1x8x512xf32> to vector<8x512xf32>
    %cst_170 = arith.constant dense<0.000000e+00> : vector<8x512xf32>
    %560 = tpu.matmul %500, %18, %cst_170 {dimension_numbers = #tpu.dot_dimension_numbers<[1], [0], [0], [1], [0, 0, 1, 1], [], []>} : vector<8x128xf32>, vector<128x512xf32>, vector<8x512xf32> -> vector<8x512xf32>
    %561 = arith.addf %559, %560 : vector<8x512xf32>
    %562 = vector.extract_strided_slice %561 {offsets = [0, 0], sizes = [8, 128], strides = [1, 1]} : vector<8x512xf32> to vector<8x128xf32>
    %cst_171 = arith.constant 0.000000e+00 : f32
    %563 = vector.broadcast %cst_171 : f32 to vector<8x128xf32>
    %564 = arith.subf %563, %562 : vector<8x128xf32>
    %565 = math.exp %564 : vector<8x128xf32>
    %cst_172 = arith.constant 1.000000e+00 : f32
    %566 = vector.broadcast %cst_172 : f32 to vector<8x128xf32>
    %567 = arith.addf %566, %565 : vector<8x128xf32>
    %cst_173 = arith.constant 1.000000e+00 : f32
    %568 = vector.broadcast %cst_173 : f32 to vector<8x128xf32>
    %569 = arith.divf %568, %567 : vector<8x128xf32>
    %570 = vector.extract_strided_slice %561 {offsets = [0, 128], sizes = [8, 128], strides = [1, 1]} : vector<8x512xf32> to vector<8x128xf32>
    %cst_174 = arith.constant 0.000000e+00 : f32
    %571 = vector.broadcast %cst_174 : f32 to vector<8x128xf32>
    %572 = arith.subf %571, %570 : vector<8x128xf32>
    %573 = math.exp %572 : vector<8x128xf32>
    %cst_175 = arith.constant 1.000000e+00 : f32
    %574 = vector.broadcast %cst_175 : f32 to vector<8x128xf32>
    %575 = arith.addf %574, %573 : vector<8x128xf32>
    %cst_176 = arith.constant 1.000000e+00 : f32
    %576 = vector.broadcast %cst_176 : f32 to vector<8x128xf32>
    %577 = arith.divf %576, %575 : vector<8x128xf32>
    %578 = vector.extract_strided_slice %561 {offsets = [0, 256], sizes = [8, 128], strides = [1, 1]} : vector<8x512xf32> to vector<8x128xf32>
    %579 = math.tanh %578 : vector<8x128xf32>
    %580 = vector.extract_strided_slice %561 {offsets = [0, 384], sizes = [8, 128], strides = [1, 1]} : vector<8x512xf32> to vector<8x128xf32>
    %cst_177 = arith.constant 0.000000e+00 : f32
    %581 = vector.broadcast %cst_177 : f32 to vector<8x128xf32>
    %582 = arith.subf %581, %580 : vector<8x128xf32>
    %583 = math.exp %582 : vector<8x128xf32>
    %cst_178 = arith.constant 1.000000e+00 : f32
    %584 = vector.broadcast %cst_178 : f32 to vector<8x128xf32>
    %585 = arith.addf %584, %583 : vector<8x128xf32>
    %cst_179 = arith.constant 1.000000e+00 : f32
    %586 = vector.broadcast %cst_179 : f32 to vector<8x128xf32>
    %587 = arith.divf %586, %585 : vector<8x128xf32>
    %588 = arith.mulf %577, %503 : vector<8x128xf32>
    %589 = arith.mulf %569, %579 : vector<8x128xf32>
    %590 = arith.addf %588, %589 : vector<8x128xf32>
    %591 = math.tanh %590 : vector<8x128xf32>
    %592 = arith.mulf %587, %591 : vector<8x128xf32>
    %593 = vector.broadcast %556 : i32 to vector<8x1xi32>
    %594 = arith.cmpi slt, %593, %19 : vector<8x1xi32>
    %595 = vector.shape_cast %594 : vector<8x1xi1> to vector<8x1xi1>
    %596 = vector.broadcast %595 : vector<8x1xi1> to vector<8x128xi1>
    %597 = arith.select %596, %592, %500 : vector<8x128xi1>, vector<8x128xf32>
    %598 = vector.shape_cast %594 : vector<8x1xi1> to vector<8x1xi1>
    %599 = vector.broadcast %598 : vector<8x1xi1> to vector<8x128xi1>
    %600 = arith.select %599, %590, %503 : vector<8x128xi1>, vector<8x128xf32>
    %601 = arith.maximumf %507, %592 : vector<8x128xf32>
    %602 = vector.shape_cast %594 : vector<8x1xi1> to vector<8x1xi1>
    %603 = vector.broadcast %602 : vector<8x1xi1> to vector<8x128xi1>
    %604 = arith.select %603, %601, %507 : vector<8x128xi1>, vector<8x128xf32>
    %c6_i32 = arith.constant 6 : i32
    %605 = arith.index_cast %c6_i32 : i32 to index
    %c0_180 = arith.constant 0 : index
    %c0_181 = arith.constant 0 : index
    %606 = vector.load %arg13[%605, %c0_180, %c0_181] : memref<12x8x512xf32, #tpu.memory_space<vmem>>, vector<1x8x512xf32>
    %607 = vector.shape_cast %606 : vector<1x8x512xf32> to vector<8x512xf32>
    %cst_182 = arith.constant dense<0.000000e+00> : vector<8x512xf32>
    %608 = tpu.matmul %548, %17, %cst_182 {dimension_numbers = #tpu.dot_dimension_numbers<[1], [0], [0], [1], [0, 0, 1, 1], [], []>} : vector<8x128xf32>, vector<128x512xf32>, vector<8x512xf32> -> vector<8x512xf32>
    %609 = arith.addf %607, %608 : vector<8x512xf32>
    %610 = vector.extract_strided_slice %609 {offsets = [0, 0], sizes = [8, 128], strides = [1, 1]} : vector<8x512xf32> to vector<8x128xf32>
    %cst_183 = arith.constant 0.000000e+00 : f32
    %611 = vector.broadcast %cst_183 : f32 to vector<8x128xf32>
    %612 = arith.subf %611, %610 : vector<8x128xf32>
    %613 = math.exp %612 : vector<8x128xf32>
    %cst_184 = arith.constant 1.000000e+00 : f32
    %614 = vector.broadcast %cst_184 : f32 to vector<8x128xf32>
    %615 = arith.addf %614, %613 : vector<8x128xf32>
    %cst_185 = arith.constant 1.000000e+00 : f32
    %616 = vector.broadcast %cst_185 : f32 to vector<8x128xf32>
    %617 = arith.divf %616, %615 : vector<8x128xf32>
    %618 = vector.extract_strided_slice %609 {offsets = [0, 128], sizes = [8, 128], strides = [1, 1]} : vector<8x512xf32> to vector<8x128xf32>
    %cst_186 = arith.constant 0.000000e+00 : f32
    %619 = vector.broadcast %cst_186 : f32 to vector<8x128xf32>
    %620 = arith.subf %619, %618 : vector<8x128xf32>
    %621 = math.exp %620 : vector<8x128xf32>
    %cst_187 = arith.constant 1.000000e+00 : f32
    %622 = vector.broadcast %cst_187 : f32 to vector<8x128xf32>
    %623 = arith.addf %622, %621 : vector<8x128xf32>
    %cst_188 = arith.constant 1.000000e+00 : f32
    %624 = vector.broadcast %cst_188 : f32 to vector<8x128xf32>
    %625 = arith.divf %624, %623 : vector<8x128xf32>
    %626 = vector.extract_strided_slice %609 {offsets = [0, 256], sizes = [8, 128], strides = [1, 1]} : vector<8x512xf32> to vector<8x128xf32>
    %627 = math.tanh %626 : vector<8x128xf32>
    %628 = vector.extract_strided_slice %609 {offsets = [0, 384], sizes = [8, 128], strides = [1, 1]} : vector<8x512xf32> to vector<8x128xf32>
    %cst_189 = arith.constant 0.000000e+00 : f32
    %629 = vector.broadcast %cst_189 : f32 to vector<8x128xf32>
    %630 = arith.subf %629, %628 : vector<8x128xf32>
    %631 = math.exp %630 : vector<8x128xf32>
    %cst_190 = arith.constant 1.000000e+00 : f32
    %632 = vector.broadcast %cst_190 : f32 to vector<8x128xf32>
    %633 = arith.addf %632, %631 : vector<8x128xf32>
    %cst_191 = arith.constant 1.000000e+00 : f32
    %634 = vector.broadcast %cst_191 : f32 to vector<8x128xf32>
    %635 = arith.divf %634, %633 : vector<8x128xf32>
    %636 = arith.mulf %625, %551 : vector<8x128xf32>
    %637 = arith.mulf %617, %627 : vector<8x128xf32>
    %638 = arith.addf %636, %637 : vector<8x128xf32>
    %639 = math.tanh %638 : vector<8x128xf32>
    %640 = arith.mulf %635, %639 : vector<8x128xf32>
    %641 = vector.broadcast %c6_i32 : i32 to vector<8x1xi32>
    %642 = arith.cmpi slt, %641, %19 : vector<8x1xi32>
    %643 = vector.shape_cast %642 : vector<8x1xi1> to vector<8x1xi1>
    %644 = vector.broadcast %643 : vector<8x1xi1> to vector<8x128xi1>
    %645 = arith.select %644, %640, %548 : vector<8x128xi1>, vector<8x128xf32>
    %646 = vector.shape_cast %642 : vector<8x1xi1> to vector<8x1xi1>
    %647 = vector.broadcast %646 : vector<8x1xi1> to vector<8x128xi1>
    %648 = arith.select %647, %638, %551 : vector<8x128xi1>, vector<8x128xf32>
    %649 = arith.maximumf %555, %640 : vector<8x128xf32>
    %650 = vector.shape_cast %642 : vector<8x1xi1> to vector<8x1xi1>
    %651 = vector.broadcast %650 : vector<8x1xi1> to vector<8x128xi1>
    %652 = arith.select %651, %649, %555 : vector<8x128xi1>, vector<8x128xf32>
    %c11_i32_192 = arith.constant 11 : i32
    %653 = arith.subi %c11_i32_192, %c6_i32 : i32
    %654 = arith.index_cast %653 : i32 to index
    %c0_193 = arith.constant 0 : index
    %c0_194 = arith.constant 0 : index
    %655 = vector.load %arg14[%654, %c0_193, %c0_194] : memref<12x8x512xf32, #tpu.memory_space<vmem>>, vector<1x8x512xf32>
    %656 = vector.shape_cast %655 : vector<1x8x512xf32> to vector<8x512xf32>
    %cst_195 = arith.constant dense<0.000000e+00> : vector<8x512xf32>
    %657 = tpu.matmul %597, %18, %cst_195 {dimension_numbers = #tpu.dot_dimension_numbers<[1], [0], [0], [1], [0, 0, 1, 1], [], []>} : vector<8x128xf32>, vector<128x512xf32>, vector<8x512xf32> -> vector<8x512xf32>
    %658 = arith.addf %656, %657 : vector<8x512xf32>
    %659 = vector.extract_strided_slice %658 {offsets = [0, 0], sizes = [8, 128], strides = [1, 1]} : vector<8x512xf32> to vector<8x128xf32>
    %cst_196 = arith.constant 0.000000e+00 : f32
    %660 = vector.broadcast %cst_196 : f32 to vector<8x128xf32>
    %661 = arith.subf %660, %659 : vector<8x128xf32>
    %662 = math.exp %661 : vector<8x128xf32>
    %cst_197 = arith.constant 1.000000e+00 : f32
    %663 = vector.broadcast %cst_197 : f32 to vector<8x128xf32>
    %664 = arith.addf %663, %662 : vector<8x128xf32>
    %cst_198 = arith.constant 1.000000e+00 : f32
    %665 = vector.broadcast %cst_198 : f32 to vector<8x128xf32>
    %666 = arith.divf %665, %664 : vector<8x128xf32>
    %667 = vector.extract_strided_slice %658 {offsets = [0, 128], sizes = [8, 128], strides = [1, 1]} : vector<8x512xf32> to vector<8x128xf32>
    %cst_199 = arith.constant 0.000000e+00 : f32
    %668 = vector.broadcast %cst_199 : f32 to vector<8x128xf32>
    %669 = arith.subf %668, %667 : vector<8x128xf32>
    %670 = math.exp %669 : vector<8x128xf32>
    %cst_200 = arith.constant 1.000000e+00 : f32
    %671 = vector.broadcast %cst_200 : f32 to vector<8x128xf32>
    %672 = arith.addf %671, %670 : vector<8x128xf32>
    %cst_201 = arith.constant 1.000000e+00 : f32
    %673 = vector.broadcast %cst_201 : f32 to vector<8x128xf32>
    %674 = arith.divf %673, %672 : vector<8x128xf32>
    %675 = vector.extract_strided_slice %658 {offsets = [0, 256], sizes = [8, 128], strides = [1, 1]} : vector<8x512xf32> to vector<8x128xf32>
    %676 = math.tanh %675 : vector<8x128xf32>
    %677 = vector.extract_strided_slice %658 {offsets = [0, 384], sizes = [8, 128], strides = [1, 1]} : vector<8x512xf32> to vector<8x128xf32>
    %cst_202 = arith.constant 0.000000e+00 : f32
    %678 = vector.broadcast %cst_202 : f32 to vector<8x128xf32>
    %679 = arith.subf %678, %677 : vector<8x128xf32>
    %680 = math.exp %679 : vector<8x128xf32>
    %cst_203 = arith.constant 1.000000e+00 : f32
    %681 = vector.broadcast %cst_203 : f32 to vector<8x128xf32>
    %682 = arith.addf %681, %680 : vector<8x128xf32>
    %cst_204 = arith.constant 1.000000e+00 : f32
    %683 = vector.broadcast %cst_204 : f32 to vector<8x128xf32>
    %684 = arith.divf %683, %682 : vector<8x128xf32>
    %685 = arith.mulf %674, %600 : vector<8x128xf32>
    %686 = arith.mulf %666, %676 : vector<8x128xf32>
    %687 = arith.addf %685, %686 : vector<8x128xf32>
    %688 = math.tanh %687 : vector<8x128xf32>
    %689 = arith.mulf %684, %688 : vector<8x128xf32>
    %690 = vector.broadcast %653 : i32 to vector<8x1xi32>
    %691 = arith.cmpi slt, %690, %19 : vector<8x1xi32>
    %692 = vector.shape_cast %691 : vector<8x1xi1> to vector<8x1xi1>
    %693 = vector.broadcast %692 : vector<8x1xi1> to vector<8x128xi1>
    %694 = arith.select %693, %689, %597 : vector<8x128xi1>, vector<8x128xf32>
    %695 = vector.shape_cast %691 : vector<8x1xi1> to vector<8x1xi1>
    %696 = vector.broadcast %695 : vector<8x1xi1> to vector<8x128xi1>
    %697 = arith.select %696, %687, %600 : vector<8x128xi1>, vector<8x128xf32>
    %698 = arith.maximumf %604, %689 : vector<8x128xf32>
    %699 = vector.shape_cast %691 : vector<8x1xi1> to vector<8x1xi1>
    %700 = vector.broadcast %699 : vector<8x1xi1> to vector<8x128xi1>
    %701 = arith.select %700, %698, %604 : vector<8x128xi1>, vector<8x128xf32>
    %c7_i32 = arith.constant 7 : i32
    %702 = arith.index_cast %c7_i32 : i32 to index
    %c0_205 = arith.constant 0 : index
    %c0_206 = arith.constant 0 : index
    %703 = vector.load %arg13[%702, %c0_205, %c0_206] : memref<12x8x512xf32, #tpu.memory_space<vmem>>, vector<1x8x512xf32>
    %704 = vector.shape_cast %703 : vector<1x8x512xf32> to vector<8x512xf32>
    %cst_207 = arith.constant dense<0.000000e+00> : vector<8x512xf32>
    %705 = tpu.matmul %645, %17, %cst_207 {dimension_numbers = #tpu.dot_dimension_numbers<[1], [0], [0], [1], [0, 0, 1, 1], [], []>} : vector<8x128xf32>, vector<128x512xf32>, vector<8x512xf32> -> vector<8x512xf32>
    %706 = arith.addf %704, %705 : vector<8x512xf32>
    %707 = vector.extract_strided_slice %706 {offsets = [0, 0], sizes = [8, 128], strides = [1, 1]} : vector<8x512xf32> to vector<8x128xf32>
    %cst_208 = arith.constant 0.000000e+00 : f32
    %708 = vector.broadcast %cst_208 : f32 to vector<8x128xf32>
    %709 = arith.subf %708, %707 : vector<8x128xf32>
    %710 = math.exp %709 : vector<8x128xf32>
    %cst_209 = arith.constant 1.000000e+00 : f32
    %711 = vector.broadcast %cst_209 : f32 to vector<8x128xf32>
    %712 = arith.addf %711, %710 : vector<8x128xf32>
    %cst_210 = arith.constant 1.000000e+00 : f32
    %713 = vector.broadcast %cst_210 : f32 to vector<8x128xf32>
    %714 = arith.divf %713, %712 : vector<8x128xf32>
    %715 = vector.extract_strided_slice %706 {offsets = [0, 128], sizes = [8, 128], strides = [1, 1]} : vector<8x512xf32> to vector<8x128xf32>
    %cst_211 = arith.constant 0.000000e+00 : f32
    %716 = vector.broadcast %cst_211 : f32 to vector<8x128xf32>
    %717 = arith.subf %716, %715 : vector<8x128xf32>
    %718 = math.exp %717 : vector<8x128xf32>
    %cst_212 = arith.constant 1.000000e+00 : f32
    %719 = vector.broadcast %cst_212 : f32 to vector<8x128xf32>
    %720 = arith.addf %719, %718 : vector<8x128xf32>
    %cst_213 = arith.constant 1.000000e+00 : f32
    %721 = vector.broadcast %cst_213 : f32 to vector<8x128xf32>
    %722 = arith.divf %721, %720 : vector<8x128xf32>
    %723 = vector.extract_strided_slice %706 {offsets = [0, 256], sizes = [8, 128], strides = [1, 1]} : vector<8x512xf32> to vector<8x128xf32>
    %724 = math.tanh %723 : vector<8x128xf32>
    %725 = vector.extract_strided_slice %706 {offsets = [0, 384], sizes = [8, 128], strides = [1, 1]} : vector<8x512xf32> to vector<8x128xf32>
    %cst_214 = arith.constant 0.000000e+00 : f32
    %726 = vector.broadcast %cst_214 : f32 to vector<8x128xf32>
    %727 = arith.subf %726, %725 : vector<8x128xf32>
    %728 = math.exp %727 : vector<8x128xf32>
    %cst_215 = arith.constant 1.000000e+00 : f32
    %729 = vector.broadcast %cst_215 : f32 to vector<8x128xf32>
    %730 = arith.addf %729, %728 : vector<8x128xf32>
    %cst_216 = arith.constant 1.000000e+00 : f32
    %731 = vector.broadcast %cst_216 : f32 to vector<8x128xf32>
    %732 = arith.divf %731, %730 : vector<8x128xf32>
    %733 = arith.mulf %722, %648 : vector<8x128xf32>
    %734 = arith.mulf %714, %724 : vector<8x128xf32>
    %735 = arith.addf %733, %734 : vector<8x128xf32>
    %736 = math.tanh %735 : vector<8x128xf32>
    %737 = arith.mulf %732, %736 : vector<8x128xf32>
    %738 = vector.broadcast %c7_i32 : i32 to vector<8x1xi32>
    %739 = arith.cmpi slt, %738, %19 : vector<8x1xi32>
    %740 = vector.shape_cast %739 : vector<8x1xi1> to vector<8x1xi1>
    %741 = vector.broadcast %740 : vector<8x1xi1> to vector<8x128xi1>
    %742 = arith.select %741, %737, %645 : vector<8x128xi1>, vector<8x128xf32>
    %743 = vector.shape_cast %739 : vector<8x1xi1> to vector<8x1xi1>
    %744 = vector.broadcast %743 : vector<8x1xi1> to vector<8x128xi1>
    %745 = arith.select %744, %735, %648 : vector<8x128xi1>, vector<8x128xf32>
    %746 = arith.maximumf %652, %737 : vector<8x128xf32>
    %747 = vector.shape_cast %739 : vector<8x1xi1> to vector<8x1xi1>
    %748 = vector.broadcast %747 : vector<8x1xi1> to vector<8x128xi1>
    %749 = arith.select %748, %746, %652 : vector<8x128xi1>, vector<8x128xf32>
    %c11_i32_217 = arith.constant 11 : i32
    %750 = arith.subi %c11_i32_217, %c7_i32 : i32
    %751 = arith.index_cast %750 : i32 to index
    %c0_218 = arith.constant 0 : index
    %c0_219 = arith.constant 0 : index
    %752 = vector.load %arg14[%751, %c0_218, %c0_219] : memref<12x8x512xf32, #tpu.memory_space<vmem>>, vector<1x8x512xf32>
    %753 = vector.shape_cast %752 : vector<1x8x512xf32> to vector<8x512xf32>
    %cst_220 = arith.constant dense<0.000000e+00> : vector<8x512xf32>
    %754 = tpu.matmul %694, %18, %cst_220 {dimension_numbers = #tpu.dot_dimension_numbers<[1], [0], [0], [1], [0, 0, 1, 1], [], []>} : vector<8x128xf32>, vector<128x512xf32>, vector<8x512xf32> -> vector<8x512xf32>
    %755 = arith.addf %753, %754 : vector<8x512xf32>
    %756 = vector.extract_strided_slice %755 {offsets = [0, 0], sizes = [8, 128], strides = [1, 1]} : vector<8x512xf32> to vector<8x128xf32>
    %cst_221 = arith.constant 0.000000e+00 : f32
    %757 = vector.broadcast %cst_221 : f32 to vector<8x128xf32>
    %758 = arith.subf %757, %756 : vector<8x128xf32>
    %759 = math.exp %758 : vector<8x128xf32>
    %cst_222 = arith.constant 1.000000e+00 : f32
    %760 = vector.broadcast %cst_222 : f32 to vector<8x128xf32>
    %761 = arith.addf %760, %759 : vector<8x128xf32>
    %cst_223 = arith.constant 1.000000e+00 : f32
    %762 = vector.broadcast %cst_223 : f32 to vector<8x128xf32>
    %763 = arith.divf %762, %761 : vector<8x128xf32>
    %764 = vector.extract_strided_slice %755 {offsets = [0, 128], sizes = [8, 128], strides = [1, 1]} : vector<8x512xf32> to vector<8x128xf32>
    %cst_224 = arith.constant 0.000000e+00 : f32
    %765 = vector.broadcast %cst_224 : f32 to vector<8x128xf32>
    %766 = arith.subf %765, %764 : vector<8x128xf32>
    %767 = math.exp %766 : vector<8x128xf32>
    %cst_225 = arith.constant 1.000000e+00 : f32
    %768 = vector.broadcast %cst_225 : f32 to vector<8x128xf32>
    %769 = arith.addf %768, %767 : vector<8x128xf32>
    %cst_226 = arith.constant 1.000000e+00 : f32
    %770 = vector.broadcast %cst_226 : f32 to vector<8x128xf32>
    %771 = arith.divf %770, %769 : vector<8x128xf32>
    %772 = vector.extract_strided_slice %755 {offsets = [0, 256], sizes = [8, 128], strides = [1, 1]} : vector<8x512xf32> to vector<8x128xf32>
    %773 = math.tanh %772 : vector<8x128xf32>
    %774 = vector.extract_strided_slice %755 {offsets = [0, 384], sizes = [8, 128], strides = [1, 1]} : vector<8x512xf32> to vector<8x128xf32>
    %cst_227 = arith.constant 0.000000e+00 : f32
    %775 = vector.broadcast %cst_227 : f32 to vector<8x128xf32>
    %776 = arith.subf %775, %774 : vector<8x128xf32>
    %777 = math.exp %776 : vector<8x128xf32>
    %cst_228 = arith.constant 1.000000e+00 : f32
    %778 = vector.broadcast %cst_228 : f32 to vector<8x128xf32>
    %779 = arith.addf %778, %777 : vector<8x128xf32>
    %cst_229 = arith.constant 1.000000e+00 : f32
    %780 = vector.broadcast %cst_229 : f32 to vector<8x128xf32>
    %781 = arith.divf %780, %779 : vector<8x128xf32>
    %782 = arith.mulf %771, %697 : vector<8x128xf32>
    %783 = arith.mulf %763, %773 : vector<8x128xf32>
    %784 = arith.addf %782, %783 : vector<8x128xf32>
    %785 = math.tanh %784 : vector<8x128xf32>
    %786 = arith.mulf %781, %785 : vector<8x128xf32>
    %787 = vector.broadcast %750 : i32 to vector<8x1xi32>
    %788 = arith.cmpi slt, %787, %19 : vector<8x1xi32>
    %789 = vector.shape_cast %788 : vector<8x1xi1> to vector<8x1xi1>
    %790 = vector.broadcast %789 : vector<8x1xi1> to vector<8x128xi1>
    %791 = arith.select %790, %786, %694 : vector<8x128xi1>, vector<8x128xf32>
    %792 = vector.shape_cast %788 : vector<8x1xi1> to vector<8x1xi1>
    %793 = vector.broadcast %792 : vector<8x1xi1> to vector<8x128xi1>
    %794 = arith.select %793, %784, %697 : vector<8x128xi1>, vector<8x128xf32>
    %795 = arith.maximumf %701, %786 : vector<8x128xf32>
    %796 = vector.shape_cast %788 : vector<8x1xi1> to vector<8x1xi1>
    %797 = vector.broadcast %796 : vector<8x1xi1> to vector<8x128xi1>
    %798 = arith.select %797, %795, %701 : vector<8x128xi1>, vector<8x128xf32>
    %c8_i32 = arith.constant 8 : i32
    %799 = arith.index_cast %c8_i32 : i32 to index
    %c0_230 = arith.constant 0 : index
    %c0_231 = arith.constant 0 : index
    %800 = vector.load %arg13[%799, %c0_230, %c0_231] : memref<12x8x512xf32, #tpu.memory_space<vmem>>, vector<1x8x512xf32>
    %801 = vector.shape_cast %800 : vector<1x8x512xf32> to vector<8x512xf32>
    %cst_232 = arith.constant dense<0.000000e+00> : vector<8x512xf32>
    %802 = tpu.matmul %742, %17, %cst_232 {dimension_numbers = #tpu.dot_dimension_numbers<[1], [0], [0], [1], [0, 0, 1, 1], [], []>} : vector<8x128xf32>, vector<128x512xf32>, vector<8x512xf32> -> vector<8x512xf32>
    %803 = arith.addf %801, %802 : vector<8x512xf32>
    %804 = vector.extract_strided_slice %803 {offsets = [0, 0], sizes = [8, 128], strides = [1, 1]} : vector<8x512xf32> to vector<8x128xf32>
    %cst_233 = arith.constant 0.000000e+00 : f32
    %805 = vector.broadcast %cst_233 : f32 to vector<8x128xf32>
    %806 = arith.subf %805, %804 : vector<8x128xf32>
    %807 = math.exp %806 : vector<8x128xf32>
    %cst_234 = arith.constant 1.000000e+00 : f32
    %808 = vector.broadcast %cst_234 : f32 to vector<8x128xf32>
    %809 = arith.addf %808, %807 : vector<8x128xf32>
    %cst_235 = arith.constant 1.000000e+00 : f32
    %810 = vector.broadcast %cst_235 : f32 to vector<8x128xf32>
    %811 = arith.divf %810, %809 : vector<8x128xf32>
    %812 = vector.extract_strided_slice %803 {offsets = [0, 128], sizes = [8, 128], strides = [1, 1]} : vector<8x512xf32> to vector<8x128xf32>
    %cst_236 = arith.constant 0.000000e+00 : f32
    %813 = vector.broadcast %cst_236 : f32 to vector<8x128xf32>
    %814 = arith.subf %813, %812 : vector<8x128xf32>
    %815 = math.exp %814 : vector<8x128xf32>
    %cst_237 = arith.constant 1.000000e+00 : f32
    %816 = vector.broadcast %cst_237 : f32 to vector<8x128xf32>
    %817 = arith.addf %816, %815 : vector<8x128xf32>
    %cst_238 = arith.constant 1.000000e+00 : f32
    %818 = vector.broadcast %cst_238 : f32 to vector<8x128xf32>
    %819 = arith.divf %818, %817 : vector<8x128xf32>
    %820 = vector.extract_strided_slice %803 {offsets = [0, 256], sizes = [8, 128], strides = [1, 1]} : vector<8x512xf32> to vector<8x128xf32>
    %821 = math.tanh %820 : vector<8x128xf32>
    %822 = vector.extract_strided_slice %803 {offsets = [0, 384], sizes = [8, 128], strides = [1, 1]} : vector<8x512xf32> to vector<8x128xf32>
    %cst_239 = arith.constant 0.000000e+00 : f32
    %823 = vector.broadcast %cst_239 : f32 to vector<8x128xf32>
    %824 = arith.subf %823, %822 : vector<8x128xf32>
    %825 = math.exp %824 : vector<8x128xf32>
    %cst_240 = arith.constant 1.000000e+00 : f32
    %826 = vector.broadcast %cst_240 : f32 to vector<8x128xf32>
    %827 = arith.addf %826, %825 : vector<8x128xf32>
    %cst_241 = arith.constant 1.000000e+00 : f32
    %828 = vector.broadcast %cst_241 : f32 to vector<8x128xf32>
    %829 = arith.divf %828, %827 : vector<8x128xf32>
    %830 = arith.mulf %819, %745 : vector<8x128xf32>
    %831 = arith.mulf %811, %821 : vector<8x128xf32>
    %832 = arith.addf %830, %831 : vector<8x128xf32>
    %833 = math.tanh %832 : vector<8x128xf32>
    %834 = arith.mulf %829, %833 : vector<8x128xf32>
    %835 = vector.broadcast %c8_i32 : i32 to vector<8x1xi32>
    %836 = arith.cmpi slt, %835, %19 : vector<8x1xi32>
    %837 = vector.shape_cast %836 : vector<8x1xi1> to vector<8x1xi1>
    %838 = vector.broadcast %837 : vector<8x1xi1> to vector<8x128xi1>
    %839 = arith.select %838, %834, %742 : vector<8x128xi1>, vector<8x128xf32>
    %840 = vector.shape_cast %836 : vector<8x1xi1> to vector<8x1xi1>
    %841 = vector.broadcast %840 : vector<8x1xi1> to vector<8x128xi1>
    %842 = arith.select %841, %832, %745 : vector<8x128xi1>, vector<8x128xf32>
    %843 = arith.maximumf %749, %834 : vector<8x128xf32>
    %844 = vector.shape_cast %836 : vector<8x1xi1> to vector<8x1xi1>
    %845 = vector.broadcast %844 : vector<8x1xi1> to vector<8x128xi1>
    %846 = arith.select %845, %843, %749 : vector<8x128xi1>, vector<8x128xf32>
    %c11_i32_242 = arith.constant 11 : i32
    %847 = arith.subi %c11_i32_242, %c8_i32 : i32
    %848 = arith.index_cast %847 : i32 to index
    %c0_243 = arith.constant 0 : index
    %c0_244 = arith.constant 0 : index
    %849 = vector.load %arg14[%848, %c0_243, %c0_244] : memref<12x8x512xf32, #tpu.memory_space<vmem>>, vector<1x8x512xf32>
    %850 = vector.shape_cast %849 : vector<1x8x512xf32> to vector<8x512xf32>
    %cst_245 = arith.constant dense<0.000000e+00> : vector<8x512xf32>
    %851 = tpu.matmul %791, %18, %cst_245 {dimension_numbers = #tpu.dot_dimension_numbers<[1], [0], [0], [1], [0, 0, 1, 1], [], []>} : vector<8x128xf32>, vector<128x512xf32>, vector<8x512xf32> -> vector<8x512xf32>
    %852 = arith.addf %850, %851 : vector<8x512xf32>
    %853 = vector.extract_strided_slice %852 {offsets = [0, 0], sizes = [8, 128], strides = [1, 1]} : vector<8x512xf32> to vector<8x128xf32>
    %cst_246 = arith.constant 0.000000e+00 : f32
    %854 = vector.broadcast %cst_246 : f32 to vector<8x128xf32>
    %855 = arith.subf %854, %853 : vector<8x128xf32>
    %856 = math.exp %855 : vector<8x128xf32>
    %cst_247 = arith.constant 1.000000e+00 : f32
    %857 = vector.broadcast %cst_247 : f32 to vector<8x128xf32>
    %858 = arith.addf %857, %856 : vector<8x128xf32>
    %cst_248 = arith.constant 1.000000e+00 : f32
    %859 = vector.broadcast %cst_248 : f32 to vector<8x128xf32>
    %860 = arith.divf %859, %858 : vector<8x128xf32>
    %861 = vector.extract_strided_slice %852 {offsets = [0, 128], sizes = [8, 128], strides = [1, 1]} : vector<8x512xf32> to vector<8x128xf32>
    %cst_249 = arith.constant 0.000000e+00 : f32
    %862 = vector.broadcast %cst_249 : f32 to vector<8x128xf32>
    %863 = arith.subf %862, %861 : vector<8x128xf32>
    %864 = math.exp %863 : vector<8x128xf32>
    %cst_250 = arith.constant 1.000000e+00 : f32
    %865 = vector.broadcast %cst_250 : f32 to vector<8x128xf32>
    %866 = arith.addf %865, %864 : vector<8x128xf32>
    %cst_251 = arith.constant 1.000000e+00 : f32
    %867 = vector.broadcast %cst_251 : f32 to vector<8x128xf32>
    %868 = arith.divf %867, %866 : vector<8x128xf32>
    %869 = vector.extract_strided_slice %852 {offsets = [0, 256], sizes = [8, 128], strides = [1, 1]} : vector<8x512xf32> to vector<8x128xf32>
    %870 = math.tanh %869 : vector<8x128xf32>
    %871 = vector.extract_strided_slice %852 {offsets = [0, 384], sizes = [8, 128], strides = [1, 1]} : vector<8x512xf32> to vector<8x128xf32>
    %cst_252 = arith.constant 0.000000e+00 : f32
    %872 = vector.broadcast %cst_252 : f32 to vector<8x128xf32>
    %873 = arith.subf %872, %871 : vector<8x128xf32>
    %874 = math.exp %873 : vector<8x128xf32>
    %cst_253 = arith.constant 1.000000e+00 : f32
    %875 = vector.broadcast %cst_253 : f32 to vector<8x128xf32>
    %876 = arith.addf %875, %874 : vector<8x128xf32>
    %cst_254 = arith.constant 1.000000e+00 : f32
    %877 = vector.broadcast %cst_254 : f32 to vector<8x128xf32>
    %878 = arith.divf %877, %876 : vector<8x128xf32>
    %879 = arith.mulf %868, %794 : vector<8x128xf32>
    %880 = arith.mulf %860, %870 : vector<8x128xf32>
    %881 = arith.addf %879, %880 : vector<8x128xf32>
    %882 = math.tanh %881 : vector<8x128xf32>
    %883 = arith.mulf %878, %882 : vector<8x128xf32>
    %884 = vector.broadcast %847 : i32 to vector<8x1xi32>
    %885 = arith.cmpi slt, %884, %19 : vector<8x1xi32>
    %886 = vector.shape_cast %885 : vector<8x1xi1> to vector<8x1xi1>
    %887 = vector.broadcast %886 : vector<8x1xi1> to vector<8x128xi1>
    %888 = arith.select %887, %883, %791 : vector<8x128xi1>, vector<8x128xf32>
    %889 = vector.shape_cast %885 : vector<8x1xi1> to vector<8x1xi1>
    %890 = vector.broadcast %889 : vector<8x1xi1> to vector<8x128xi1>
    %891 = arith.select %890, %881, %794 : vector<8x128xi1>, vector<8x128xf32>
    %892 = arith.maximumf %798, %883 : vector<8x128xf32>
    %893 = vector.shape_cast %885 : vector<8x1xi1> to vector<8x1xi1>
    %894 = vector.broadcast %893 : vector<8x1xi1> to vector<8x128xi1>
    %895 = arith.select %894, %892, %798 : vector<8x128xi1>, vector<8x128xf32>
    %c9_i32 = arith.constant 9 : i32
    %896 = arith.index_cast %c9_i32 : i32 to index
    %c0_255 = arith.constant 0 : index
    %c0_256 = arith.constant 0 : index
    %897 = vector.load %arg13[%896, %c0_255, %c0_256] : memref<12x8x512xf32, #tpu.memory_space<vmem>>, vector<1x8x512xf32>
    %898 = vector.shape_cast %897 : vector<1x8x512xf32> to vector<8x512xf32>
    %cst_257 = arith.constant dense<0.000000e+00> : vector<8x512xf32>
    %899 = tpu.matmul %839, %17, %cst_257 {dimension_numbers = #tpu.dot_dimension_numbers<[1], [0], [0], [1], [0, 0, 1, 1], [], []>} : vector<8x128xf32>, vector<128x512xf32>, vector<8x512xf32> -> vector<8x512xf32>
    %900 = arith.addf %898, %899 : vector<8x512xf32>
    %901 = vector.extract_strided_slice %900 {offsets = [0, 0], sizes = [8, 128], strides = [1, 1]} : vector<8x512xf32> to vector<8x128xf32>
    %cst_258 = arith.constant 0.000000e+00 : f32
    %902 = vector.broadcast %cst_258 : f32 to vector<8x128xf32>
    %903 = arith.subf %902, %901 : vector<8x128xf32>
    %904 = math.exp %903 : vector<8x128xf32>
    %cst_259 = arith.constant 1.000000e+00 : f32
    %905 = vector.broadcast %cst_259 : f32 to vector<8x128xf32>
    %906 = arith.addf %905, %904 : vector<8x128xf32>
    %cst_260 = arith.constant 1.000000e+00 : f32
    %907 = vector.broadcast %cst_260 : f32 to vector<8x128xf32>
    %908 = arith.divf %907, %906 : vector<8x128xf32>
    %909 = vector.extract_strided_slice %900 {offsets = [0, 128], sizes = [8, 128], strides = [1, 1]} : vector<8x512xf32> to vector<8x128xf32>
    %cst_261 = arith.constant 0.000000e+00 : f32
    %910 = vector.broadcast %cst_261 : f32 to vector<8x128xf32>
    %911 = arith.subf %910, %909 : vector<8x128xf32>
    %912 = math.exp %911 : vector<8x128xf32>
    %cst_262 = arith.constant 1.000000e+00 : f32
    %913 = vector.broadcast %cst_262 : f32 to vector<8x128xf32>
    %914 = arith.addf %913, %912 : vector<8x128xf32>
    %cst_263 = arith.constant 1.000000e+00 : f32
    %915 = vector.broadcast %cst_263 : f32 to vector<8x128xf32>
    %916 = arith.divf %915, %914 : vector<8x128xf32>
    %917 = vector.extract_strided_slice %900 {offsets = [0, 256], sizes = [8, 128], strides = [1, 1]} : vector<8x512xf32> to vector<8x128xf32>
    %918 = math.tanh %917 : vector<8x128xf32>
    %919 = vector.extract_strided_slice %900 {offsets = [0, 384], sizes = [8, 128], strides = [1, 1]} : vector<8x512xf32> to vector<8x128xf32>
    %cst_264 = arith.constant 0.000000e+00 : f32
    %920 = vector.broadcast %cst_264 : f32 to vector<8x128xf32>
    %921 = arith.subf %920, %919 : vector<8x128xf32>
    %922 = math.exp %921 : vector<8x128xf32>
    %cst_265 = arith.constant 1.000000e+00 : f32
    %923 = vector.broadcast %cst_265 : f32 to vector<8x128xf32>
    %924 = arith.addf %923, %922 : vector<8x128xf32>
    %cst_266 = arith.constant 1.000000e+00 : f32
    %925 = vector.broadcast %cst_266 : f32 to vector<8x128xf32>
    %926 = arith.divf %925, %924 : vector<8x128xf32>
    %927 = arith.mulf %916, %842 : vector<8x128xf32>
    %928 = arith.mulf %908, %918 : vector<8x128xf32>
    %929 = arith.addf %927, %928 : vector<8x128xf32>
    %930 = math.tanh %929 : vector<8x128xf32>
    %931 = arith.mulf %926, %930 : vector<8x128xf32>
    %932 = vector.broadcast %c9_i32 : i32 to vector<8x1xi32>
    %933 = arith.cmpi slt, %932, %19 : vector<8x1xi32>
    %934 = vector.shape_cast %933 : vector<8x1xi1> to vector<8x1xi1>
    %935 = vector.broadcast %934 : vector<8x1xi1> to vector<8x128xi1>
    %936 = arith.select %935, %931, %839 : vector<8x128xi1>, vector<8x128xf32>
    %937 = vector.shape_cast %933 : vector<8x1xi1> to vector<8x1xi1>
    %938 = vector.broadcast %937 : vector<8x1xi1> to vector<8x128xi1>
    %939 = arith.select %938, %929, %842 : vector<8x128xi1>, vector<8x128xf32>
    %940 = arith.maximumf %846, %931 : vector<8x128xf32>
    %941 = vector.shape_cast %933 : vector<8x1xi1> to vector<8x1xi1>
    %942 = vector.broadcast %941 : vector<8x1xi1> to vector<8x128xi1>
    %943 = arith.select %942, %940, %846 : vector<8x128xi1>, vector<8x128xf32>
    %c11_i32_267 = arith.constant 11 : i32
    %944 = arith.subi %c11_i32_267, %c9_i32 : i32
    %945 = arith.index_cast %944 : i32 to index
    %c0_268 = arith.constant 0 : index
    %c0_269 = arith.constant 0 : index
    %946 = vector.load %arg14[%945, %c0_268, %c0_269] : memref<12x8x512xf32, #tpu.memory_space<vmem>>, vector<1x8x512xf32>
    %947 = vector.shape_cast %946 : vector<1x8x512xf32> to vector<8x512xf32>
    %cst_270 = arith.constant dense<0.000000e+00> : vector<8x512xf32>
    %948 = tpu.matmul %888, %18, %cst_270 {dimension_numbers = #tpu.dot_dimension_numbers<[1], [0], [0], [1], [0, 0, 1, 1], [], []>} : vector<8x128xf32>, vector<128x512xf32>, vector<8x512xf32> -> vector<8x512xf32>
    %949 = arith.addf %947, %948 : vector<8x512xf32>
    %950 = vector.extract_strided_slice %949 {offsets = [0, 0], sizes = [8, 128], strides = [1, 1]} : vector<8x512xf32> to vector<8x128xf32>
    %cst_271 = arith.constant 0.000000e+00 : f32
    %951 = vector.broadcast %cst_271 : f32 to vector<8x128xf32>
    %952 = arith.subf %951, %950 : vector<8x128xf32>
    %953 = math.exp %952 : vector<8x128xf32>
    %cst_272 = arith.constant 1.000000e+00 : f32
    %954 = vector.broadcast %cst_272 : f32 to vector<8x128xf32>
    %955 = arith.addf %954, %953 : vector<8x128xf32>
    %cst_273 = arith.constant 1.000000e+00 : f32
    %956 = vector.broadcast %cst_273 : f32 to vector<8x128xf32>
    %957 = arith.divf %956, %955 : vector<8x128xf32>
    %958 = vector.extract_strided_slice %949 {offsets = [0, 128], sizes = [8, 128], strides = [1, 1]} : vector<8x512xf32> to vector<8x128xf32>
    %cst_274 = arith.constant 0.000000e+00 : f32
    %959 = vector.broadcast %cst_274 : f32 to vector<8x128xf32>
    %960 = arith.subf %959, %958 : vector<8x128xf32>
    %961 = math.exp %960 : vector<8x128xf32>
    %cst_275 = arith.constant 1.000000e+00 : f32
    %962 = vector.broadcast %cst_275 : f32 to vector<8x128xf32>
    %963 = arith.addf %962, %961 : vector<8x128xf32>
    %cst_276 = arith.constant 1.000000e+00 : f32
    %964 = vector.broadcast %cst_276 : f32 to vector<8x128xf32>
    %965 = arith.divf %964, %963 : vector<8x128xf32>
    %966 = vector.extract_strided_slice %949 {offsets = [0, 256], sizes = [8, 128], strides = [1, 1]} : vector<8x512xf32> to vector<8x128xf32>
    %967 = math.tanh %966 : vector<8x128xf32>
    %968 = vector.extract_strided_slice %949 {offsets = [0, 384], sizes = [8, 128], strides = [1, 1]} : vector<8x512xf32> to vector<8x128xf32>
    %cst_277 = arith.constant 0.000000e+00 : f32
    %969 = vector.broadcast %cst_277 : f32 to vector<8x128xf32>
    %970 = arith.subf %969, %968 : vector<8x128xf32>
    %971 = math.exp %970 : vector<8x128xf32>
    %cst_278 = arith.constant 1.000000e+00 : f32
    %972 = vector.broadcast %cst_278 : f32 to vector<8x128xf32>
    %973 = arith.addf %972, %971 : vector<8x128xf32>
    %cst_279 = arith.constant 1.000000e+00 : f32
    %974 = vector.broadcast %cst_279 : f32 to vector<8x128xf32>
    %975 = arith.divf %974, %973 : vector<8x128xf32>
    %976 = arith.mulf %965, %891 : vector<8x128xf32>
    %977 = arith.mulf %957, %967 : vector<8x128xf32>
    %978 = arith.addf %976, %977 : vector<8x128xf32>
    %979 = math.tanh %978 : vector<8x128xf32>
    %980 = arith.mulf %975, %979 : vector<8x128xf32>
    %981 = vector.broadcast %944 : i32 to vector<8x1xi32>
    %982 = arith.cmpi slt, %981, %19 : vector<8x1xi32>
    %983 = vector.shape_cast %982 : vector<8x1xi1> to vector<8x1xi1>
    %984 = vector.broadcast %983 : vector<8x1xi1> to vector<8x128xi1>
    %985 = arith.select %984, %980, %888 : vector<8x128xi1>, vector<8x128xf32>
    %986 = vector.shape_cast %982 : vector<8x1xi1> to vector<8x1xi1>
    %987 = vector.broadcast %986 : vector<8x1xi1> to vector<8x128xi1>
    %988 = arith.select %987, %978, %891 : vector<8x128xi1>, vector<8x128xf32>
    %989 = arith.maximumf %895, %980 : vector<8x128xf32>
    %990 = vector.shape_cast %982 : vector<8x1xi1> to vector<8x1xi1>
    %991 = vector.broadcast %990 : vector<8x1xi1> to vector<8x128xi1>
    %992 = arith.select %991, %989, %895 : vector<8x128xi1>, vector<8x128xf32>
    %c10_i32 = arith.constant 10 : i32
    %993 = arith.index_cast %c10_i32 : i32 to index
    %c0_280 = arith.constant 0 : index
    %c0_281 = arith.constant 0 : index
    %994 = vector.load %arg13[%993, %c0_280, %c0_281] : memref<12x8x512xf32, #tpu.memory_space<vmem>>, vector<1x8x512xf32>
    %995 = vector.shape_cast %994 : vector<1x8x512xf32> to vector<8x512xf32>
    %cst_282 = arith.constant dense<0.000000e+00> : vector<8x512xf32>
    %996 = tpu.matmul %936, %17, %cst_282 {dimension_numbers = #tpu.dot_dimension_numbers<[1], [0], [0], [1], [0, 0, 1, 1], [], []>} : vector<8x128xf32>, vector<128x512xf32>, vector<8x512xf32> -> vector<8x512xf32>
    %997 = arith.addf %995, %996 : vector<8x512xf32>
    %998 = vector.extract_strided_slice %997 {offsets = [0, 0], sizes = [8, 128], strides = [1, 1]} : vector<8x512xf32> to vector<8x128xf32>
    %cst_283 = arith.constant 0.000000e+00 : f32
    %999 = vector.broadcast %cst_283 : f32 to vector<8x128xf32>
    %1000 = arith.subf %999, %998 : vector<8x128xf32>
    %1001 = math.exp %1000 : vector<8x128xf32>
    %cst_284 = arith.constant 1.000000e+00 : f32
    %1002 = vector.broadcast %cst_284 : f32 to vector<8x128xf32>
    %1003 = arith.addf %1002, %1001 : vector<8x128xf32>
    %cst_285 = arith.constant 1.000000e+00 : f32
    %1004 = vector.broadcast %cst_285 : f32 to vector<8x128xf32>
    %1005 = arith.divf %1004, %1003 : vector<8x128xf32>
    %1006 = vector.extract_strided_slice %997 {offsets = [0, 128], sizes = [8, 128], strides = [1, 1]} : vector<8x512xf32> to vector<8x128xf32>
    %cst_286 = arith.constant 0.000000e+00 : f32
    %1007 = vector.broadcast %cst_286 : f32 to vector<8x128xf32>
    %1008 = arith.subf %1007, %1006 : vector<8x128xf32>
    %1009 = math.exp %1008 : vector<8x128xf32>
    %cst_287 = arith.constant 1.000000e+00 : f32
    %1010 = vector.broadcast %cst_287 : f32 to vector<8x128xf32>
    %1011 = arith.addf %1010, %1009 : vector<8x128xf32>
    %cst_288 = arith.constant 1.000000e+00 : f32
    %1012 = vector.broadcast %cst_288 : f32 to vector<8x128xf32>
    %1013 = arith.divf %1012, %1011 : vector<8x128xf32>
    %1014 = vector.extract_strided_slice %997 {offsets = [0, 256], sizes = [8, 128], strides = [1, 1]} : vector<8x512xf32> to vector<8x128xf32>
    %1015 = math.tanh %1014 : vector<8x128xf32>
    %1016 = vector.extract_strided_slice %997 {offsets = [0, 384], sizes = [8, 128], strides = [1, 1]} : vector<8x512xf32> to vector<8x128xf32>
    %cst_289 = arith.constant 0.000000e+00 : f32
    %1017 = vector.broadcast %cst_289 : f32 to vector<8x128xf32>
    %1018 = arith.subf %1017, %1016 : vector<8x128xf32>
    %1019 = math.exp %1018 : vector<8x128xf32>
    %cst_290 = arith.constant 1.000000e+00 : f32
    %1020 = vector.broadcast %cst_290 : f32 to vector<8x128xf32>
    %1021 = arith.addf %1020, %1019 : vector<8x128xf32>
    %cst_291 = arith.constant 1.000000e+00 : f32
    %1022 = vector.broadcast %cst_291 : f32 to vector<8x128xf32>
    %1023 = arith.divf %1022, %1021 : vector<8x128xf32>
    %1024 = arith.mulf %1013, %939 : vector<8x128xf32>
    %1025 = arith.mulf %1005, %1015 : vector<8x128xf32>
    %1026 = arith.addf %1024, %1025 : vector<8x128xf32>
    %1027 = math.tanh %1026 : vector<8x128xf32>
    %1028 = arith.mulf %1023, %1027 : vector<8x128xf32>
    %1029 = vector.broadcast %c10_i32 : i32 to vector<8x1xi32>
    %1030 = arith.cmpi slt, %1029, %19 : vector<8x1xi32>
    %1031 = vector.shape_cast %1030 : vector<8x1xi1> to vector<8x1xi1>
    %1032 = vector.broadcast %1031 : vector<8x1xi1> to vector<8x128xi1>
    %1033 = arith.select %1032, %1028, %936 : vector<8x128xi1>, vector<8x128xf32>
    %1034 = vector.shape_cast %1030 : vector<8x1xi1> to vector<8x1xi1>
    %1035 = vector.broadcast %1034 : vector<8x1xi1> to vector<8x128xi1>
    %1036 = arith.select %1035, %1026, %939 : vector<8x128xi1>, vector<8x128xf32>
    %1037 = arith.maximumf %943, %1028 : vector<8x128xf32>
    %1038 = vector.shape_cast %1030 : vector<8x1xi1> to vector<8x1xi1>
    %1039 = vector.broadcast %1038 : vector<8x1xi1> to vector<8x128xi1>
    %1040 = arith.select %1039, %1037, %943 : vector<8x128xi1>, vector<8x128xf32>
    %c11_i32_292 = arith.constant 11 : i32
    %1041 = arith.subi %c11_i32_292, %c10_i32 : i32
    %1042 = arith.index_cast %1041 : i32 to index
    %c0_293 = arith.constant 0 : index
    %c0_294 = arith.constant 0 : index
    %1043 = vector.load %arg14[%1042, %c0_293, %c0_294] : memref<12x8x512xf32, #tpu.memory_space<vmem>>, vector<1x8x512xf32>
    %1044 = vector.shape_cast %1043 : vector<1x8x512xf32> to vector<8x512xf32>
    %cst_295 = arith.constant dense<0.000000e+00> : vector<8x512xf32>
    %1045 = tpu.matmul %985, %18, %cst_295 {dimension_numbers = #tpu.dot_dimension_numbers<[1], [0], [0], [1], [0, 0, 1, 1], [], []>} : vector<8x128xf32>, vector<128x512xf32>, vector<8x512xf32> -> vector<8x512xf32>
    %1046 = arith.addf %1044, %1045 : vector<8x512xf32>
    %1047 = vector.extract_strided_slice %1046 {offsets = [0, 0], sizes = [8, 128], strides = [1, 1]} : vector<8x512xf32> to vector<8x128xf32>
    %cst_296 = arith.constant 0.000000e+00 : f32
    %1048 = vector.broadcast %cst_296 : f32 to vector<8x128xf32>
    %1049 = arith.subf %1048, %1047 : vector<8x128xf32>
    %1050 = math.exp %1049 : vector<8x128xf32>
    %cst_297 = arith.constant 1.000000e+00 : f32
    %1051 = vector.broadcast %cst_297 : f32 to vector<8x128xf32>
    %1052 = arith.addf %1051, %1050 : vector<8x128xf32>
    %cst_298 = arith.constant 1.000000e+00 : f32
    %1053 = vector.broadcast %cst_298 : f32 to vector<8x128xf32>
    %1054 = arith.divf %1053, %1052 : vector<8x128xf32>
    %1055 = vector.extract_strided_slice %1046 {offsets = [0, 128], sizes = [8, 128], strides = [1, 1]} : vector<8x512xf32> to vector<8x128xf32>
    %cst_299 = arith.constant 0.000000e+00 : f32
    %1056 = vector.broadcast %cst_299 : f32 to vector<8x128xf32>
    %1057 = arith.subf %1056, %1055 : vector<8x128xf32>
    %1058 = math.exp %1057 : vector<8x128xf32>
    %cst_300 = arith.constant 1.000000e+00 : f32
    %1059 = vector.broadcast %cst_300 : f32 to vector<8x128xf32>
    %1060 = arith.addf %1059, %1058 : vector<8x128xf32>
    %cst_301 = arith.constant 1.000000e+00 : f32
    %1061 = vector.broadcast %cst_301 : f32 to vector<8x128xf32>
    %1062 = arith.divf %1061, %1060 : vector<8x128xf32>
    %1063 = vector.extract_strided_slice %1046 {offsets = [0, 256], sizes = [8, 128], strides = [1, 1]} : vector<8x512xf32> to vector<8x128xf32>
    %1064 = math.tanh %1063 : vector<8x128xf32>
    %1065 = vector.extract_strided_slice %1046 {offsets = [0, 384], sizes = [8, 128], strides = [1, 1]} : vector<8x512xf32> to vector<8x128xf32>
    %cst_302 = arith.constant 0.000000e+00 : f32
    %1066 = vector.broadcast %cst_302 : f32 to vector<8x128xf32>
    %1067 = arith.subf %1066, %1065 : vector<8x128xf32>
    %1068 = math.exp %1067 : vector<8x128xf32>
    %cst_303 = arith.constant 1.000000e+00 : f32
    %1069 = vector.broadcast %cst_303 : f32 to vector<8x128xf32>
    %1070 = arith.addf %1069, %1068 : vector<8x128xf32>
    %cst_304 = arith.constant 1.000000e+00 : f32
    %1071 = vector.broadcast %cst_304 : f32 to vector<8x128xf32>
    %1072 = arith.divf %1071, %1070 : vector<8x128xf32>
    %1073 = arith.mulf %1062, %988 : vector<8x128xf32>
    %1074 = arith.mulf %1054, %1064 : vector<8x128xf32>
    %1075 = arith.addf %1073, %1074 : vector<8x128xf32>
    %1076 = math.tanh %1075 : vector<8x128xf32>
    %1077 = arith.mulf %1072, %1076 : vector<8x128xf32>
    %1078 = vector.broadcast %1041 : i32 to vector<8x1xi32>
    %1079 = arith.cmpi slt, %1078, %19 : vector<8x1xi32>
    %1080 = vector.shape_cast %1079 : vector<8x1xi1> to vector<8x1xi1>
    %1081 = vector.broadcast %1080 : vector<8x1xi1> to vector<8x128xi1>
    %1082 = arith.select %1081, %1077, %985 : vector<8x128xi1>, vector<8x128xf32>
    %1083 = vector.shape_cast %1079 : vector<8x1xi1> to vector<8x1xi1>
    %1084 = vector.broadcast %1083 : vector<8x1xi1> to vector<8x128xi1>
    %1085 = arith.select %1084, %1075, %988 : vector<8x128xi1>, vector<8x128xf32>
    %1086 = arith.maximumf %992, %1077 : vector<8x128xf32>
    %1087 = vector.shape_cast %1079 : vector<8x1xi1> to vector<8x1xi1>
    %1088 = vector.broadcast %1087 : vector<8x1xi1> to vector<8x128xi1>
    %1089 = arith.select %1088, %1086, %992 : vector<8x128xi1>, vector<8x128xf32>
    %c11_i32_305 = arith.constant 11 : i32
    %1090 = arith.index_cast %c11_i32_305 : i32 to index
    %c0_306 = arith.constant 0 : index
    %c0_307 = arith.constant 0 : index
    %1091 = vector.load %arg13[%1090, %c0_306, %c0_307] : memref<12x8x512xf32, #tpu.memory_space<vmem>>, vector<1x8x512xf32>
    %1092 = vector.shape_cast %1091 : vector<1x8x512xf32> to vector<8x512xf32>
    %cst_308 = arith.constant dense<0.000000e+00> : vector<8x512xf32>
    %1093 = tpu.matmul %1033, %17, %cst_308 {dimension_numbers = #tpu.dot_dimension_numbers<[1], [0], [0], [1], [0, 0, 1, 1], [], []>} : vector<8x128xf32>, vector<128x512xf32>, vector<8x512xf32> -> vector<8x512xf32>
    %1094 = arith.addf %1092, %1093 : vector<8x512xf32>
    %1095 = vector.extract_strided_slice %1094 {offsets = [0, 0], sizes = [8, 128], strides = [1, 1]} : vector<8x512xf32> to vector<8x128xf32>
    %cst_309 = arith.constant 0.000000e+00 : f32
    %1096 = vector.broadcast %cst_309 : f32 to vector<8x128xf32>
    %1097 = arith.subf %1096, %1095 : vector<8x128xf32>
    %1098 = math.exp %1097 : vector<8x128xf32>
    %cst_310 = arith.constant 1.000000e+00 : f32
    %1099 = vector.broadcast %cst_310 : f32 to vector<8x128xf32>
    %1100 = arith.addf %1099, %1098 : vector<8x128xf32>
    %cst_311 = arith.constant 1.000000e+00 : f32
    %1101 = vector.broadcast %cst_311 : f32 to vector<8x128xf32>
    %1102 = arith.divf %1101, %1100 : vector<8x128xf32>
    %1103 = vector.extract_strided_slice %1094 {offsets = [0, 128], sizes = [8, 128], strides = [1, 1]} : vector<8x512xf32> to vector<8x128xf32>
    %cst_312 = arith.constant 0.000000e+00 : f32
    %1104 = vector.broadcast %cst_312 : f32 to vector<8x128xf32>
    %1105 = arith.subf %1104, %1103 : vector<8x128xf32>
    %1106 = math.exp %1105 : vector<8x128xf32>
    %cst_313 = arith.constant 1.000000e+00 : f32
    %1107 = vector.broadcast %cst_313 : f32 to vector<8x128xf32>
    %1108 = arith.addf %1107, %1106 : vector<8x128xf32>
    %cst_314 = arith.constant 1.000000e+00 : f32
    %1109 = vector.broadcast %cst_314 : f32 to vector<8x128xf32>
    %1110 = arith.divf %1109, %1108 : vector<8x128xf32>
    %1111 = vector.extract_strided_slice %1094 {offsets = [0, 256], sizes = [8, 128], strides = [1, 1]} : vector<8x512xf32> to vector<8x128xf32>
    %1112 = math.tanh %1111 : vector<8x128xf32>
    %1113 = vector.extract_strided_slice %1094 {offsets = [0, 384], sizes = [8, 128], strides = [1, 1]} : vector<8x512xf32> to vector<8x128xf32>
    %cst_315 = arith.constant 0.000000e+00 : f32
    %1114 = vector.broadcast %cst_315 : f32 to vector<8x128xf32>
    %1115 = arith.subf %1114, %1113 : vector<8x128xf32>
    %1116 = math.exp %1115 : vector<8x128xf32>
    %cst_316 = arith.constant 1.000000e+00 : f32
    %1117 = vector.broadcast %cst_316 : f32 to vector<8x128xf32>
    %1118 = arith.addf %1117, %1116 : vector<8x128xf32>
    %cst_317 = arith.constant 1.000000e+00 : f32
    %1119 = vector.broadcast %cst_317 : f32 to vector<8x128xf32>
    %1120 = arith.divf %1119, %1118 : vector<8x128xf32>
    %1121 = arith.mulf %1110, %1036 : vector<8x128xf32>
    %1122 = arith.mulf %1102, %1112 : vector<8x128xf32>
    %1123 = arith.addf %1121, %1122 : vector<8x128xf32>
    %1124 = math.tanh %1123 : vector<8x128xf32>
    %1125 = arith.mulf %1120, %1124 : vector<8x128xf32>
    %1126 = vector.broadcast %c11_i32_305 : i32 to vector<8x1xi32>
    %1127 = arith.cmpi slt, %1126, %19 : vector<8x1xi32>
    %1128 = vector.shape_cast %1127 : vector<8x1xi1> to vector<8x1xi1>
    %1129 = vector.broadcast %1128 : vector<8x1xi1> to vector<8x128xi1>
    %1130 = arith.select %1129, %1125, %1033 : vector<8x128xi1>, vector<8x128xf32>
    %1131 = vector.shape_cast %1127 : vector<8x1xi1> to vector<8x1xi1>
    %1132 = vector.broadcast %1131 : vector<8x1xi1> to vector<8x128xi1>
    %1133 = arith.select %1132, %1123, %1036 : vector<8x128xi1>, vector<8x128xf32>
    %1134 = arith.maximumf %1040, %1125 : vector<8x128xf32>
    %1135 = vector.shape_cast %1127 : vector<8x1xi1> to vector<8x1xi1>
    %1136 = vector.broadcast %1135 : vector<8x1xi1> to vector<8x128xi1>
    %1137 = arith.select %1136, %1134, %1040 : vector<8x128xi1>, vector<8x128xf32>
    %c11_i32_318 = arith.constant 11 : i32
    %1138 = arith.subi %c11_i32_318, %c11_i32_305 : i32
    %1139 = arith.index_cast %1138 : i32 to index
    %c0_319 = arith.constant 0 : index
    %c0_320 = arith.constant 0 : index
    %1140 = vector.load %arg14[%1139, %c0_319, %c0_320] : memref<12x8x512xf32, #tpu.memory_space<vmem>>, vector<1x8x512xf32>
    %1141 = vector.shape_cast %1140 : vector<1x8x512xf32> to vector<8x512xf32>
    %cst_321 = arith.constant dense<0.000000e+00> : vector<8x512xf32>
    %1142 = tpu.matmul %1082, %18, %cst_321 {dimension_numbers = #tpu.dot_dimension_numbers<[1], [0], [0], [1], [0, 0, 1, 1], [], []>} : vector<8x128xf32>, vector<128x512xf32>, vector<8x512xf32> -> vector<8x512xf32>
    %1143 = arith.addf %1141, %1142 : vector<8x512xf32>
    %1144 = vector.extract_strided_slice %1143 {offsets = [0, 0], sizes = [8, 128], strides = [1, 1]} : vector<8x512xf32> to vector<8x128xf32>
    %cst_322 = arith.constant 0.000000e+00 : f32
    %1145 = vector.broadcast %cst_322 : f32 to vector<8x128xf32>
    %1146 = arith.subf %1145, %1144 : vector<8x128xf32>
    %1147 = math.exp %1146 : vector<8x128xf32>
    %cst_323 = arith.constant 1.000000e+00 : f32
    %1148 = vector.broadcast %cst_323 : f32 to vector<8x128xf32>
    %1149 = arith.addf %1148, %1147 : vector<8x128xf32>
    %cst_324 = arith.constant 1.000000e+00 : f32
    %1150 = vector.broadcast %cst_324 : f32 to vector<8x128xf32>
    %1151 = arith.divf %1150, %1149 : vector<8x128xf32>
    %1152 = vector.extract_strided_slice %1143 {offsets = [0, 128], sizes = [8, 128], strides = [1, 1]} : vector<8x512xf32> to vector<8x128xf32>
    %cst_325 = arith.constant 0.000000e+00 : f32
    %1153 = vector.broadcast %cst_325 : f32 to vector<8x128xf32>
    %1154 = arith.subf %1153, %1152 : vector<8x128xf32>
    %1155 = math.exp %1154 : vector<8x128xf32>
    %cst_326 = arith.constant 1.000000e+00 : f32
    %1156 = vector.broadcast %cst_326 : f32 to vector<8x128xf32>
    %1157 = arith.addf %1156, %1155 : vector<8x128xf32>
    %cst_327 = arith.constant 1.000000e+00 : f32
    %1158 = vector.broadcast %cst_327 : f32 to vector<8x128xf32>
    %1159 = arith.divf %1158, %1157 : vector<8x128xf32>
    %1160 = vector.extract_strided_slice %1143 {offsets = [0, 256], sizes = [8, 128], strides = [1, 1]} : vector<8x512xf32> to vector<8x128xf32>
    %1161 = math.tanh %1160 : vector<8x128xf32>
    %1162 = vector.extract_strided_slice %1143 {offsets = [0, 384], sizes = [8, 128], strides = [1, 1]} : vector<8x512xf32> to vector<8x128xf32>
    %cst_328 = arith.constant 0.000000e+00 : f32
    %1163 = vector.broadcast %cst_328 : f32 to vector<8x128xf32>
    %1164 = arith.subf %1163, %1162 : vector<8x128xf32>
    %1165 = math.exp %1164 : vector<8x128xf32>
    %cst_329 = arith.constant 1.000000e+00 : f32
    %1166 = vector.broadcast %cst_329 : f32 to vector<8x128xf32>
    %1167 = arith.addf %1166, %1165 : vector<8x128xf32>
    %cst_330 = arith.constant 1.000000e+00 : f32
    %1168 = vector.broadcast %cst_330 : f32 to vector<8x128xf32>
    %1169 = arith.divf %1168, %1167 : vector<8x128xf32>
    %1170 = arith.mulf %1159, %1085 : vector<8x128xf32>
    %1171 = arith.mulf %1151, %1161 : vector<8x128xf32>
    %1172 = arith.addf %1170, %1171 : vector<8x128xf32>
    %1173 = math.tanh %1172 : vector<8x128xf32>
    %1174 = arith.mulf %1169, %1173 : vector<8x128xf32>
    %1175 = vector.broadcast %1138 : i32 to vector<8x1xi32>
    %1176 = arith.cmpi slt, %1175, %19 : vector<8x1xi32>
    %1177 = vector.shape_cast %1176 : vector<8x1xi1> to vector<8x1xi1>
    %1178 = vector.broadcast %1177 : vector<8x1xi1> to vector<8x128xi1>
    %1179 = arith.select %1178, %1174, %1082 : vector<8x128xi1>, vector<8x128xf32>
    %1180 = vector.shape_cast %1176 : vector<8x1xi1> to vector<8x1xi1>
    %1181 = vector.broadcast %1180 : vector<8x1xi1> to vector<8x128xi1>
    %1182 = arith.select %1181, %1172, %1085 : vector<8x128xi1>, vector<8x128xf32>
    %1183 = arith.maximumf %1089, %1174 : vector<8x128xf32>
    %1184 = vector.shape_cast %1176 : vector<8x1xi1> to vector<8x1xi1>
    %1185 = vector.broadcast %1184 : vector<8x1xi1> to vector<8x128xi1>
    %1186 = arith.select %1185, %1183, %1089 : vector<8x128xi1>, vector<8x128xf32>
    %c12_i32 = arith.constant 12 : i32
    %c0_331 = arith.constant 0 : index
    %c0_332 = arith.constant 0 : index
    %1187 = vector.load %arg4[%c0_331, %c0_332] : memref<8x1xf32, #tpu.memory_space<vmem>>, vector<8x1xf32>
    %cst_333 = arith.constant 0.000000e+00 : f32
    %1188 = vector.broadcast %cst_333 : f32 to vector<8x1xf32>
    %1189 = arith.cmpf ogt, %1187, %1188 : vector<8x1xf32>
    %cst_334 = arith.constant 0.000000e+00 : f32
    %1190 = vector.broadcast %cst_334 : f32 to vector<8x128xf32>
    %1191 = arith.maximumf %1137, %1190 : vector<8x128xf32>
    %1192 = vector.shape_cast %1189 : vector<8x1xi1> to vector<8x1xi1>
    %1193 = vector.broadcast %1192 : vector<8x1xi1> to vector<8x128xi1>
    %1194 = arith.select %1193, %1191, %1137 : vector<8x128xi1>, vector<8x128xf32>
    %cst_335 = arith.constant 0.000000e+00 : f32
    %1195 = vector.broadcast %cst_335 : f32 to vector<8x128xf32>
    %1196 = arith.maximumf %1186, %1195 : vector<8x128xf32>
    %1197 = vector.shape_cast %1189 : vector<8x1xi1> to vector<8x1xi1>
    %1198 = vector.broadcast %1197 : vector<8x1xi1> to vector<8x128xi1>
    %1199 = arith.select %1198, %1196, %1186 : vector<8x128xi1>, vector<8x128xf32>
    %1200 = tpu.concatenate %1194, %1199 in 1 : vector<8x128xf32>, vector<8x128xf32> -> vector<8x256xf32>
    %c0_336 = arith.constant 0 : index
    %c0_337 = arith.constant 0 : index
    %1201 = vector.load %arg11[%c0_336, %c0_337] : memref<8x256xf32, #tpu.memory_space<vmem>>, vector<8x256xf32>
    tpu.vector_store %arg11[%c0_336, %c0_337], %1200 {strides = array<i32>} : memref<8x256xf32, #tpu.memory_space<vmem>>, vector<8x256xf32>,
    return
  }
  func.func @transform_1(%arg0: i32, %arg1: memref<96xi32, #tpu.memory_space<smem>>) -> (i32, i32) {
    %c0_i32 = arith.constant 0 : i32
    %c0_i32_0 = arith.constant 0 : i32
    %c0_i32_1 = arith.constant 0 : i32
    return %c0_i32, %c0_i32_0 : i32, i32
  }
  func.func @transform_2(%arg0: i32, %arg1: memref<96xi32, #tpu.memory_space<smem>>) -> (i32, i32) {
    %c0_i32 = arith.constant 0 : i32
    %c0_i32_0 = arith.constant 0 : i32
    %c0_i32_1 = arith.constant 0 : i32
    return %c0_i32, %c0_i32_0 : i32, i32
  }
  func.func @transform_3(%arg0: i32, %arg1: memref<96xi32, #tpu.memory_space<smem>>) -> (i32, i32) {
    %c0_i32 = arith.constant 0 : i32
    %c0_i32_0 = arith.constant 0 : i32
    %c0_i32_1 = arith.constant 0 : i32
    return %c0_i32, %c0_i32_0 : i32, i32
  }
  func.func @transform_4(%arg0: i32, %arg1: memref<96xi32, #tpu.memory_space<smem>>) -> (i32, i32) {
    %c0_i32 = arith.constant 0 : i32
    %c0_i32_0 = arith.constant 0 : i32
    %c0_i32_1 = arith.constant 0 : i32
    return %c0_i32, %c0_i32_0 : i32, i32
  }
  func.func @transform_5(%arg0: i32, %arg1: memref<96xi32, #tpu.memory_space<smem>>) -> (i32, i32) {
    %c0_i32 = arith.constant 0 : i32
    %c0_i32_0 = arith.constant 0 : i32
    %c0_i32_1 = arith.constant 0 : i32
    return %c0_i32, %c0_i32_0 : i32, i32
  }
  func.func @transform_6(%arg0: i32, %arg1: memref<96xi32, #tpu.memory_space<smem>>) -> (i32, i32) {
    %c0_i32 = arith.constant 0 : i32
    %c0_i32_0 = arith.constant 0 : i32
    %c0_i32_1 = arith.constant 0 : i32
    return %c0_i32, %c0_i32_0 : i32, i32
  }
  func.func @transform_7(%arg0: i32, %arg1: memref<96xi32, #tpu.memory_space<smem>>) -> (i32, i32) {
    %c0_i32 = arith.constant 0 : i32
    %c0_i32_0 = arith.constant 0 : i32
    %c0_i32_1 = arith.constant 0 : i32
    return %c0_i32, %c0_i32_0 : i32, i32
  }
  func.func @transform_8(%arg0: i32, %arg1: memref<96xi32, #tpu.memory_space<smem>>) -> (i32, i32) {
    %c0_i32 = arith.constant 0 : i32
    %c0_i32_0 = arith.constant 0 : i32
    %c0_i32_1 = arith.constant 0 : i32
    return %c0_i32, %c0_i32_0 : i32, i32
  }
  func.func @transform_9(%arg0: i32, %arg1: memref<96xi32, #tpu.memory_space<smem>>) -> (i32, i32) {
    %c0_i32 = arith.constant 0 : i32
    %c0_i32_0 = arith.constant 0 : i32
    %c0_i32_1 = arith.constant 0 : i32
    return %c0_i32, %c0_i32_0 : i32, i32
  }
}

</mosaic_0001>

<llo_original>
// kernel: bilstm_pooled_embedder.1
$region0: #{bilstm_pooled_embedder.1}
  #allocation0 [shape = 'u32[]', space=smem, size = 0x4, offset = 0x4, fixed_abs, tag = 'smem constant byte address 0x4 - core index']
  #allocation1 [shape = 'u32[144,128]{1,0:T(1,128)}', space=vmem, size = 0x12000, scoped, tag = 'internal scratch']
  #allocation2 [shape = 'f32[96,64]{1,0:T(8,128)}', space=vmem, size = 0xc000, scoped, tag = 'scratch operand']
  #allocation3 [shape = 'f32[12,8,512]{2,1,0:T(8,128)}', space=vmem, size = 0x30000, scoped, tag = 'scratch operand']
  #allocation4 [shape = 'f32[12,8,512]{2,1,0:T(8,128)}', space=vmem, size = 0x30000, scoped, tag = 'scratch operand']
  #allocation5 [shape = 's32[1]{0}', space=sflag, size = 0x4, scoped, tag = 'scratch operand']
  #allocation6 [shape = 's32[1]{0}', space=sflag, size = 0x4, scoped, tag = 'scoped memory for bilstm_pooled_embedder.1']
  #allocation7 [shape = 'u8[512]{0}', space=smem, size = 0x200, scoped, tag = 'prefetched SMEM operand 0']
  #allocation15 [shape = 's32[]', space=sflag, size = 0x4, offset = 0, fixed_abs, tag = 'sflag constant byte address 0x0 - dummy sync flag']
  %s0 = inlined_call_operand.vmem [shape: s32[96], index: 0, kind: input, shape index: {}]
  %s1 = inlined_call_operand.vmem [shape: f32[256,64], index: 1, kind: input, shape index: {}]
  %s2 = inlined_call_operand.vmem [shape: s32[8,1], index: 2, kind: input, shape index: {}]
  %s3 = inlined_call_operand.vmem [shape: f32[8,1], index: 3, kind: input, shape index: {}]
  %s4 = inlined_call_operand.vmem [shape: f32[64,512], index: 4, kind: input, shape index: {}]
  %s5 = inlined_call_operand.hbm [shape: f32[128,512], index: 5, kind: input, shape index: {}]
  %s6 = inlined_call_operand.vmem [shape: f32[1,512], index: 6, kind: input, shape index: {}]
  %s7 = inlined_call_operand.hbm [shape: f32[64,512], index: 7, kind: input, shape index: {}]
  %s8 = inlined_call_operand.hbm [shape: f32[128,512], index: 8, kind: input, shape index: {}]
  %s9 = inlined_call_operand.vmem [shape: f32[1,512], index: 9, kind: input, shape index: {}]
  %s10 = inlined_call_operand.hbm [shape: f32[8,256], index: 10, kind: output, shape index: {}]
  %s11 = sld [smem:[#allocation0]]
  $region98: #{bilstm_pooled_embedder.1} parent=0
    _
  %s13 = ssub.s32 1, %s11
  %s14 = scalar_select 0, %s13, %s11
  %s15 = sshll.u32 %s0, 4
  %s16 = int_to_ptr.vmem [resolvable:$true] %s15
  %18 = dma.vmem_to_smem %s16, 16, [#allocation7], [#allocation6]
  %19 = dma.done [#allocation6], 16
  %20 = sfence
  $region1: #{bilstm_pooled_embedder.1} parent=0
    #allocation8 [shape = 'u8[262144]{0}', space=vmem, size = 0x40000, scoped, tag = 'input window, operand 5, single buffered']
    #allocation9 [shape = 's32[1]{0}', space=sflag, size = 0x4, scoped, tag = 'scoped memory for bilstm_pooled_embedder.1']
    #allocation10 [shape = 's32[1]{0}', space=sflag, size = 0x4, scoped, tag = 'scoped memory for bilstm_pooled_embedder.1']
    #allocation11 [shape = 'u8[131072]{0}', space=vmem, size = 0x20000, scoped, tag = 'input window, operand 7, single buffered']
    #allocation12 [shape = 's32[1]{0}', space=sflag, size = 0x4, scoped, tag = 'scoped memory for bilstm_pooled_embedder.1']
    #allocation13 [shape = 'u8[262144]{0}', space=vmem, size = 0x40000, scoped, tag = 'input window, operand 8, single buffered']
    #allocation14 [shape = 'u8[8192]{0}', space=vmem, size = 0x2000, scoped, tag = 'output window, operand 0, single buffered']
    %21 = vsyncpa [#allocation9], 0
    %22 = vsyncpa [#allocation12], 0
    %23 = vsyncpa [#allocation10], 0
    // Predicated region
    $region2: #{bilstm_pooled_embedder.1} parent=1 // pred_check
      _
    $region3: #{bilstm_pooled_embedder.1} parent=1 // pred_check_branch
      %25 = sbr.rel (0) target = $region5
    $region4: #{bilstm_pooled_embedder.1} parent=1 // pred_region
      _
    $region5: #{bilstm_pooled_embedder.1} parent=1 // pred_fallthru
      _
    // Predicated region
    $region6: #{bilstm_pooled_embedder.1} parent=1 // pred_check
      _
    $region7: #{bilstm_pooled_embedder.1} parent=1 // pred_check_branch
      %27 = sbr.rel (0) target = $region9
    $region8: #{bilstm_pooled_embedder.1} parent=1 // pred_region
      _
    $region9: #{bilstm_pooled_embedder.1} parent=1 // pred_fallthru
      _
    // Predicated region
    $region10: #{bilstm_pooled_embedder.1} parent=1 // pred_check
      _
    $region11: #{bilstm_pooled_embedder.1} parent=1 // pred_check_branch
      %29 = sbr.rel (0) target = $region13
    $region12: #{bilstm_pooled_embedder.1} parent=1 // pred_region
      _
    $region13: #{bilstm_pooled_embedder.1} parent=1 // pred_fallthru
      _
    // Predicated region
    $region14: #{bilstm_pooled_embedder.1} parent=1 // pred_check
      _
    $region15: #{bilstm_pooled_embedder.1} parent=1 // pred_check_branch
      %31 = sbr.rel (0) target = $region17
    $region16: #{bilstm_pooled_embedder.1} parent=1 // pred_region
      %s33 = ssub.s32 8192, 8192
      %34 = vsyncadd [#allocation9], %s33
      %s35 = sshll.u32 [#allocation8], 4
      %s36 = int_to_ptr.vmem [resolvable:$true] %s35
      %41 = dma.hbm_to_vmem [thread:$0]  %s5, 8192, %s36, [#allocation9], 512, 512, 32
    $region17: #{bilstm_pooled_embedder.1} parent=1 // pred_fallthru
      _
    // Predicated region
    $region18: #{bilstm_pooled_embedder.1} parent=1 // pred_check
      _
    $region19: #{bilstm_pooled_embedder.1} parent=1 // pred_check_branch
      %43 = sbr.rel (0) target = $region21
    $region20: #{bilstm_pooled_embedder.1} parent=1 // pred_region
      _
    $region21: #{bilstm_pooled_embedder.1} parent=1 // pred_fallthru
      _
    // Predicated region
    $region22: #{bilstm_pooled_embedder.1} parent=1 // pred_check
      _
    $region23: #{bilstm_pooled_embedder.1} parent=1 // pred_check_branch
      %45 = sbr.rel (0) target = $region25
    $region24: #{bilstm_pooled_embedder.1} parent=1 // pred_region
      %s47 = ssub.s32 4096, 4096
      %48 = vsyncadd [#allocation12], %s47
      %s49 = sshll.u32 [#allocation11], 4
      %s50 = int_to_ptr.vmem [resolvable:$true] %s49
      %55 = dma.hbm_to_vmem [thread:$0]  %s7, 4096, %s50, [#allocation12], 512, 512, 32
    $region25: #{bilstm_pooled_embedder.1} parent=1 // pred_fallthru
      _
    // Predicated region
    $region26: #{bilstm_pooled_embedder.1} parent=1 // pred_check
      _
    $region27: #{bilstm_pooled_embedder.1} parent=1 // pred_check_branch
      %57 = sbr.rel (0) target = $region29
    $region28: #{bilstm_pooled_embedder.1} parent=1 // pred_region
      %s59 = ssub.s32 8192, 8192
      %60 = vsyncadd [#allocation12], %s59
      %s61 = sshll.u32 [#allocation13], 4
      %s62 = int_to_ptr.vmem [resolvable:$true] %s61
      %67 = dma.hbm_to_vmem [thread:$0]  %s8, 8192, %s62, [#allocation12], 512, 512, 32
    $region29: #{bilstm_pooled_embedder.1} parent=1 // pred_fallthru
      _
    // Predicated region
    $region30: #{bilstm_pooled_embedder.1} parent=1 // pred_check
      _
    $region31: #{bilstm_pooled_embedder.1} parent=1 // pred_check_branch
      %69 = sbr.rel (0) target = $region33
    $region32: #{bilstm_pooled_embedder.1} parent=1 // pred_region
      _
    $region33: #{bilstm_pooled_embedder.1} parent=1 // pred_fallthru
      _
    // Predicated region
    $region34: #{bilstm_pooled_embedder.1} parent=1 // pred_check
      _
    $region35: #{bilstm_pooled_embedder.1} parent=1 // pred_check_branch
      %71 = sbr.rel (0) target = $region37
    $region36: #{bilstm_pooled_embedder.1} parent=1 // pred_region
      %72 = dma.done [#allocation9], 8192
    $region37: #{bilstm_pooled_embedder.1} parent=1 // pred_fallthru
      _
    // Predicated region
    $region38: #{bilstm_pooled_embedder.1} parent=1 // pred_check
      _
    $region39: #{bilstm_pooled_embedder.1} parent=1 // pred_check_branch
      %74 = sbr.rel (0) target = $region41
    $region40: #{bilstm_pooled_embedder.1} parent=1 // pred_region
      %75 = dma.done [#allocation12], 4096
    $region41: #{bilstm_pooled_embedder.1} parent=1 // pred_fallthru
      _
    // Predicated region
    $region42: #{bilstm_pooled_embedder.1} parent=1 // pred_check
      _
    $region43: #{bilstm_pooled_embedder.1} parent=1 // pred_check_branch
      %77 = sbr.rel (0) target = $region45
    $region44: #{bilstm_pooled_embedder.1} parent=1 // pred_region
      %78 = dma.done [#allocation12], 8192
    $region45: #{bilstm_pooled_embedder.1} parent=1 // pred_fallthru
      _
    loop: start=0, step=1, limit=96
    $region46: #{bilstm_pooled_embedder.1} parent=1 // loop_pre_header
      _
    $region47: #{bilstm_pooled_embedder.1} parent=1 // loop_header
      %s80 = sphi 0, %s84
      %p81 = scmp.ge.s32.totalorder %s80, 96
    $region48: #{bilstm_pooled_embedder.1} parent=1 // loop_header_branch
      %83 = sbr.rel (%p81) target = $region52
    $region49: #{bilstm_pooled_embedder.1} parent=1 // loop_body
      %s85 = sld [smem:[#allocation7 + %s80]]
      %s86 = scalar_lea.vmem %s1, %s85
      %s87 = scalar_lea.vmem [#allocation2], %s80
      %p89 = scmp.lt.u32.totalorder 1, 8
      %p90 = pneg %p89
      // Predicated region
      $region53: #{bilstm_pooled_embedder.1} parent=49 // pred_check
        _
      $region54: #{bilstm_pooled_embedder.1} parent=49 // pred_check_branch
        %92 = sbr.rel (%p89) target = $region56
      $region55: #{bilstm_pooled_embedder.1} parent=49 // pred_region
        %s107 = sand.u32 1, 7
        %p108 = scmp.eq.s32.totalorder %s107, 0
        %p109 = pneg %p108
        // Predicated region
        $region68: #{bilstm_pooled_embedder.1} parent=55 // pred_check
          _
        $region69: #{bilstm_pooled_embedder.1} parent=55 // pred_check_branch
          %111 = sbr.rel (%p108) target = $region71
        $region70: #{bilstm_pooled_embedder.1} parent=55 // pred_region
          %s112 = sand.u32 1, 7
          %s113 = ssub.s32 1, %s112
          %s114 = scalar_lea.vmem %s86, %s113
          %s115 = ssub.s32 1, %s112
          %s116 = scalar_lea.vmem %s87, %s115 [#allocation2]
          %s117 = sshllo.u32 0, %s112
          loop: start=0, step=1, limit=1
          $region72: #{bilstm_pooled_embedder.1} parent=70 // loop_pre_header
            _
          $region73: #{bilstm_pooled_embedder.1} parent=70 // loop_header
            %s119 = sphi 0, %s123
            %p120 = scmp.ge.s32.totalorder %s119, 1
            %s124 = sphi %s114, %s114
            %s125 = sphi %s116, %s116
          $region74: #{bilstm_pooled_embedder.1} parent=70 // loop_header_branch
            %122 = sbr.rel (%p120) target = $region78
          $region75: #{bilstm_pooled_embedder.1} parent=70 // loop_body
            %v126 = vld [vmem:[%s124] sm:%s117]
            %127 = vst [vmem:[%s125] sm:%s117] %v126
          $region76: #{bilstm_pooled_embedder.1} parent=70 // loop_footer
            %s123 = sadd.s32 1, %s119
          $region77: #{bilstm_pooled_embedder.1} parent=70 // loop_footer_branch
            %118 = sbr.rel target = $region73
          $region78: #{bilstm_pooled_embedder.1} parent=70 // loop_exit
            _
        $region71: #{bilstm_pooled_embedder.1} parent=55 // pred_fallthru
          _
      $region56: #{bilstm_pooled_embedder.1} parent=49 // pred_fallthru
        _
      // Predicated region
      $region57: #{bilstm_pooled_embedder.1} parent=49 // pred_check
        %p93 = pneg %p89
      $region58: #{bilstm_pooled_embedder.1} parent=49 // pred_check_branch
        %95 = sbr.rel (%p93) target = $region60
      $region59: #{bilstm_pooled_embedder.1} parent=49 // pred_region
        %s96 = sshllo.u32 0, 1
        loop: start=0, step=1, limit=1
        $region61: #{bilstm_pooled_embedder.1} parent=59 // loop_pre_header
          _
        $region62: #{bilstm_pooled_embedder.1} parent=59 // loop_header
          %s98 = sphi 0, %s102
          %p99 = scmp.ge.s32.totalorder %s98, 1
          %s103 = sphi %s86, %s86
          %s104 = sphi %s87, %s87
        $region63: #{bilstm_pooled_embedder.1} parent=59 // loop_header_branch
          %101 = sbr.rel (%p99) target = $region67
        $region64: #{bilstm_pooled_embedder.1} parent=59 // loop_body
          %v105 = vld [vmem:[%s103] sm:%s96]
          %106 = vst [vmem:[%s104] sm:%s96] %v105
        $region65: #{bilstm_pooled_embedder.1} parent=59 // loop_footer
          %s102 = sadd.s32 1, %s98
        $region66: #{bilstm_pooled_embedder.1} parent=59 // loop_footer_branch
          %97 = sbr.rel target = $region62
        $region67: #{bilstm_pooled_embedder.1} parent=59 // loop_exit
          _
      $region60: #{bilstm_pooled_embedder.1} parent=49 // pred_fallthru
        _
      // Predicated region
      $region79: #{bilstm_pooled_embedder.1} parent=49 // pred_check
        _
      $region80: #{bilstm_pooled_embedder.1} parent=49 // pred_check_branch
        %130 = sbr.rel (0) target = $region82
      $region81: #{bilstm_pooled_embedder.1} parent=49 // pred_region
        %131 = vsyncadd [#allocation5], 16
      $region82: #{bilstm_pooled_embedder.1} parent=49 // pred_fallthru
        _
    $region50: #{bilstm_pooled_embedder.1} parent=1 // loop_footer
      %s84 = sadd.s32 1, %s80
    $region51: #{bilstm_pooled_embedder.1} parent=1 // loop_footer_branch
      %79 = sbr.rel target = $region47
    $region52: #{bilstm_pooled_embedder.1} parent=1 // loop_exit
      _
    loop: start=0, step=1, limit=96
    $region83: #{bilstm_pooled_embedder.1} parent=1 // loop_pre_header
      _
    $region84: #{bilstm_pooled_embedder.1} parent=1 // loop_header
      %s133 = sphi 0, %s137
      %p134 = scmp.ge.s32.totalorder %s133, 96
    $region85: #{bilstm_pooled_embedder.1} parent=1 // loop_header_branch
      %136 = sbr.rel (%p134) target = $region89
    $region86: #{bilstm_pooled_embedder.1} parent=1 // loop_body
      %s138 = smul.u32 1, 1
      %s139 = sshll.u32 %s138, 4
      %140 = dma.done [#allocation5], %s139
    $region87: #{bilstm_pooled_embedder.1} parent=1 // loop_footer
      %s137 = sadd.s32 1, %s133
    $region88: #{bilstm_pooled_embedder.1} parent=1 // loop_footer_branch
      %132 = sbr.rel target = $region84
    $region89: #{bilstm_pooled_embedder.1} parent=1 // loop_exit
      _
    %v141 = vld [vmem:[#allocation2] sm:$0xff]
    %v142 = vld [vmem:[#allocation2 + $0x8] sm:$0xff]
    %v143 = vld [vmem:[#allocation2 + $0x10] sm:$0xff]
    %v144 = vld [vmem:[#allocation2 + $0x18] sm:$0xff]
    %v145 = vld [vmem:[#allocation2 + $0x20] sm:$0xff]
    %v146 = vld [vmem:[#allocation2 + $0x28] sm:$0xff]
    %v147 = vld [vmem:[#allocation2 + $0x30] sm:$0xff]
    %v148 = vld [vmem:[#allocation2 + $0x38] sm:$0xff]
    %v149 = vld [vmem:[#allocation2 + $0x40] sm:$0xff]
    %v150 = vld [vmem:[#allocation2 + $0x48] sm:$0xff]
    %v151 = vld [vmem:[#allocation2 + $0x50] sm:$0xff]
    %v152 = vld [vmem:[#allocation2 + $0x58] sm:$0xff]
    %v153 = vld [vmem:[%s4] sm:$0xff]
    %v154 = vld [vmem:[%s4 + $0x8] sm:$0xff]
    %v155 = vld [vmem:[%s4 + $0x10] sm:$0xff]
    %v156 = vld [vmem:[%s4 + $0x18] sm:$0xff]
    %v157 = vld [vmem:[%s4 + $0x20] sm:$0xff]
    %v158 = vld [vmem:[%s4 + $0x28] sm:$0xff]
    %v159 = vld [vmem:[%s4 + $0x30] sm:$0xff]
    %v160 = vld [vmem:[%s4 + $0x38] sm:$0xff]
    %v161 = vld [vmem:[%s4 + $0x40] sm:$0xff]
    %v162 = vld [vmem:[%s4 + $0x48] sm:$0xff]
    %v163 = vld [vmem:[%s4 + $0x50] sm:$0xff]
    %v164 = vld [vmem:[%s4 + $0x58] sm:$0xff]
    %v165 = vld [vmem:[%s4 + $0x60] sm:$0xff]
    %v166 = vld [vmem:[%s4 + $0x68] sm:$0xff]
    %v167 = vld [vmem:[%s4 + $0x70] sm:$0xff]
    %v168 = vld [vmem:[%s4 + $0x78] sm:$0xff]
    %v169 = vld [vmem:[%s4 + $0x80] sm:$0xff]
    %v170 = vld [vmem:[%s4 + $0x88] sm:$0xff]
    %v171 = vld [vmem:[%s4 + $0x90] sm:$0xff]
    %v172 = vld [vmem:[%s4 + $0x98] sm:$0xff]
    %v173 = vld [vmem:[%s4 + $0xa0] sm:$0xff]
    %v174 = vld [vmem:[%s4 + $0xa8] sm:$0xff]
    %v175 = vld [vmem:[%s4 + $0xb0] sm:$0xff]
    %v176 = vld [vmem:[%s4 + $0xb8] sm:$0xff]
    %v177 = vld [vmem:[%s4 + $0xc0] sm:$0xff]
    %v178 = vld [vmem:[%s4 + $0xc8] sm:$0xff]
    %v179 = vld [vmem:[%s4 + $0xd0] sm:$0xff]
    %v180 = vld [vmem:[%s4 + $0xd8] sm:$0xff]
    %v181 = vld [vmem:[%s4 + $0xe0] sm:$0xff]
    %v182 = vld [vmem:[%s4 + $0xe8] sm:$0xff]
    %v183 = vld [vmem:[%s4 + $0xf0] sm:$0xff]
    %v184 = vld [vmem:[%s4 + $0xf8] sm:$0xff]
    %v185 = vld [vmem:[%s6] sm:$0xf]
    %v187 = vlaneseq
    %v188 = vshrl.u32 %v187, 7
    %v189 = vsub.s32 0, %v188
    %v190 = vrot.slane %v185, %v189
    %v191 = vlaneseq
    %v192 = vshrl.u32 %v191, 7
    %v193 = vsub.s32 1, %v192
    %v194 = vrot.slane %v185, %v193
    %v195 = vlaneseq
    %v196 = vshrl.u32 %v195, 7
    %v197 = vsub.s32 2, %v196
    %v198 = vrot.slane %v185, %v197
    %v199 = vlaneseq
    %v200 = vshrl.u32 %v199, 7
    %v201 = vsub.s32 3, %v200
    %v202 = vrot.slane %v185, %v201
    %vm207 = vcmask 523264
    %v209 = vsel %vm207, %v141, 0
    %v212 = vsel %vm207, %v142, 0
    %v215 = vsel %vm207, %v143, 0
    %v218 = vsel %vm207, %v144, 0
    %v221 = vsel %vm207, %v145, 0
    %v224 = vsel %vm207, %v146, 0
    %v227 = vsel %vm207, %v147, 0
    %v230 = vsel %vm207, %v148, 0
    %v233 = vsel %vm207, %v149, 0
    %v236 = vsel %vm207, %v150, 0
    %v239 = vsel %vm207, %v151, 0
    %v242 = vsel %vm207, %v152, 0
    %244 = vmatprep.subr.mxu0 %v154
    %245 = vmatpush1.msra.mxu0 %v153
    %246 = vmatprep.subr.mxu0 %v158
    %247 = vmatpush1.msra.mxu0 %v157
    %248 = vmatprep.subr.mxu0 %v162
    %249 = vmatpush1.msra.mxu0 %v161
    %250 = vmatprep.subr.mxu0 %v166
    %251 = vmatpush1.msra.mxu0 %v165
    %252 = vmatprep.subr.mxu0 %v170
    %253 = vmatpush1.msra.mxu0 %v169
    %254 = vmatprep.subr.mxu0 %v174
    %255 = vmatpush1.msra.mxu0 %v173
    %256 = vmatprep.subr.mxu0 %v178
    %257 = vmatpush1.msra.mxu0 %v177
    %258 = vmatprep.subr.mxu0 %v182
    %259 = vmatpush1.msra.mxu0 %v181
    %260 = vmatprep.subr.mxu0 0.0
    %261 = vmatpush1.msra.mxu0 0.0
    %262 = vmatprep.subr.mxu0 0.0
    %263 = vmatpush1.msra.mxu0 0.0
    %264 = vmatprep.subr.mxu0 0.0
    %265 = vmatpush1.msra.mxu0 0.0
    %266 = vmatprep.subr.mxu0 0.0
    %267 = vmatpush1.msra.mxu0 0.0
    %268 = vmatprep.subr.mxu0 0.0
    %269 = vmatpush1.msra.mxu0 0.0
    %270 = vmatprep.subr.mxu0 0.0
    %271 = vmatpush1.msra.mxu0 0.0
    %272 = vmatprep.subr.mxu0 0.0
    %273 = vmatpush1.msra.mxu0 0.0
    %274 = vmatprep.subr.mxu0 0.0
    %275 = vmatpush1.msra.mxu0 0.0
    %276 = vmatprep.subr.mxu0 0.0
    %277 = vmatpush1.msra.mxu0 0.0
    %278 = vmatprep.subr.mxu0 0.0
    %279 = vmatpush1.msra.mxu0 0.0
    %280 = vmatprep.subr.mxu0 0.0
    %281 = vmatpush1.msra.mxu0 0.0
    %282 = vmatprep.subr.mxu0 0.0
    %283 = vmatpush1.msra.mxu0 0.0
    %284 = vmatprep.subr.mxu0 0.0
    %285 = vmatpush1.msra.mxu0 0.0
    %286 = vmatprep.subr.mxu0 0.0
    %287 = vmatpush1.msra.mxu0 0.0
    %288 = vmatprep.subr.mxu0 0.0
    %289 = vmatpush1.msra.mxu0 0.0
    %290 = vmatprep.subr.mxu0 0.0
    %291 = vmatpush1.msra.mxu0 0.0
    %292 = vmatprep.subr.mxu0 0.0
    %293 = vmatpush1.msra.mxu0 0.0
    %294 = vmatprep.subr.mxu0 0.0
    %295 = vmatpush1.msra.mxu0 0.0
    %296 = vmatprep.subr.mxu0 0.0
    %297 = vmatpush1.msra.mxu0 0.0
    %298 = vmatprep.subr.mxu0 0.0
    %299 = vmatpush1.msra.mxu0 0.0
    %300 = vmatprep.subr.mxu0 0.0
    %301 = vmatpush1.msra.mxu0 0.0
    %302 = vmatprep.subr.mxu0 0.0
    %303 = vmatpush1.msra.mxu0 0.0
    %304 = vmatprep.subr.mxu0 0.0
    %305 = vmatpush1.msra.mxu0 0.0
    %306 = vmatprep.subr.mxu0 0.0
    %307 = vmatpush1.msra.mxu0 0.0
    %308 = vmatprep.mubr.f32.mxu0 0.0
    %309 = vmatmul.mubr.f32.gmra.mrb[0].mxu0 %v209
    %v310 = vpop.f32.mrb[0].mxu0
    %v311 = vadd.f32 %v190, %v310
    %v312 = vpop.f32.mrb[0].mxu0
    %v313 = vadd.f32 %v194, %v312
    %314 = vmatprep.mubr.f32.mxu0 0.0
    %315 = vmatmul.mubr.f32.gmra.mrb[0].mxu0 %v212
    %v316 = vpop.f32.mrb[0].mxu0
    %v317 = vadd.f32 %v190, %v316
    %v318 = vpop.f32.mrb[0].mxu0
    %v319 = vadd.f32 %v194, %v318
    %320 = vmatprep.mubr.f32.mxu0 0.0
    %321 = vmatmul.mubr.f32.gmra.mrb[0].mxu0 %v215
    %v322 = vpop.f32.mrb[0].mxu0
    %v323 = vadd.f32 %v190, %v322
    %v324 = vpop.f32.mrb[0].mxu0
    %v325 = vadd.f32 %v194, %v324
    %326 = vmatprep.mubr.f32.mxu0 0.0
    %327 = vmatmul.mubr.f32.gmra.mrb[0].mxu0 %v218
    %v328 = vpop.f32.mrb[0].mxu0
    %v329 = vadd.f32 %v190, %v328
    %v330 = vpop.f32.mrb[0].mxu0
    %v331 = vadd.f32 %v194, %v330
    %332 = vmatprep.mubr.f32.mxu0 0.0
    %333 = vmatmul.mubr.f32.gmra.mrb[0].mxu0 %v221
    %v334 = vpop.f32.mrb[0].mxu0
    %v335 = vadd.f32 %v190, %v334
    %v336 = vpop.f32.mrb[0].mxu0
    %v337 = vadd.f32 %v194, %v336
    %338 = vmatprep.mubr.f32.mxu0 0.0
    %339 = vmatmul.mubr.f32.gmra.mrb[0].mxu0 %v224
    %v340 = vpop.f32.mrb[0].mxu0
    %v341 = vadd.f32 %v190, %v340
    %v342 = vpop.f32.mrb[0].mxu0
    %v343 = vadd.f32 %v194, %v342
    %344 = vmatprep.mubr.f32.mxu0 0.0
    %345 = vmatmul.mubr.f32.gmra.mrb[0].mxu0 %v227
    %v346 = vpop.f32.mrb[0].mxu0
    %v347 = vadd.f32 %v190, %v346
    %v348 = vpop.f32.mrb[0].mxu0
    %v349 = vadd.f32 %v194, %v348
    %350 = vmatprep.mubr.f32.mxu0 0.0
    %351 = vmatmul.mubr.f32.gmra.mrb[0].mxu0 %v230
    %v352 = vpop.f32.mrb[0].mxu0
    %v353 = vadd.f32 %v190, %v352
    %v354 = vpop.f32.mrb[0].mxu0
    %v355 = vadd.f32 %v194, %v354
    %356 = vmatprep.mubr.f32.mxu0 0.0
    %357 = vmatmul.mubr.f32.gmra.mrb[0].mxu0 %v233
    %v358 = vpop.f32.mrb[0].mxu0
    %v359 = vadd.f32 %v190, %v358
    %v360 = vpop.f32.mrb[0].mxu0
    %v361 = vadd.f32 %v194, %v360
    %362 = vmatprep.mubr.f32.mxu0 0.0
    %363 = vmatmul.mubr.f32.gmra.mrb[0].mxu0 %v236
    %v364 = vpop.f32.mrb[0].mxu0
    %v365 = vadd.f32 %v190, %v364
    %v366 = vpop.f32.mrb[0].mxu0
    %v367 = vadd.f32 %v194, %v366
    %368 = vmatprep.mubr.f32.mxu0 0.0
    %369 = vmatmul.mubr.f32.gmra.mrb[0].mxu0 %v239
    %v370 = vpop.f32.mrb[0].mxu0
    %v371 = vadd.f32 %v190, %v370
    %v372 = vpop.f32.mrb[0].mxu0
    %v373 = vadd.f32 %v194, %v372
    %374 = vmatprep.mubr.f32.mxu0 0.0
    %375 = vmatmul.mubr.f32.gmra.mrb[0].mxu0 %v242
    %v376 = vpop.f32.mrb[0].mxu0
    %v377 = vadd.f32 %v190, %v376
    %v378 = vpop.f32.mrb[0].mxu0
    %v379 = vadd.f32 %v194, %v378
    %380 = vdwg.mxu0
    %381 = vmatprep.subr.mxu0 %v156
    %382 = vmatpush1.msra.mxu0 %v155
    %383 = vmatprep.subr.mxu0 %v160
    %384 = vmatpush1.msra.mxu0 %v159
    %385 = vmatprep.subr.mxu0 %v164
    %386 = vmatpush1.msra.mxu0 %v163
    %387 = vmatprep.subr.mxu0 %v168
    %388 = vmatpush1.msra.mxu0 %v167
    %389 = vmatprep.subr.mxu0 %v172
    %390 = vmatpush1.msra.mxu0 %v171
    %391 = vmatprep.subr.mxu0 %v176
    %392 = vmatpush1.msra.mxu0 %v175
    %393 = vmatprep.subr.mxu0 %v180
    %394 = vmatpush1.msra.mxu0 %v179
    %395 = vmatprep.subr.mxu0 %v184
    %396 = vmatpush1.msra.mxu0 %v183
    %397 = vmatprep.subr.mxu0 0.0
    %398 = vmatpush1.msra.mxu0 0.0
    %399 = vmatprep.subr.mxu0 0.0
    %400 = vmatpush1.msra.mxu0 0.0
    %401 = vmatprep.subr.mxu0 0.0
    %402 = vmatpush1.msra.mxu0 0.0
    %403 = vmatprep.subr.mxu0 0.0
    %404 = vmatpush1.msra.mxu0 0.0
    %405 = vmatprep.subr.mxu0 0.0
    %406 = vmatpush1.msra.mxu0 0.0
    %407 = vmatprep.subr.mxu0 0.0
    %408 = vmatpush1.msra.mxu0 0.0
    %409 = vmatprep.subr.mxu0 0.0
    %410 = vmatpush1.msra.mxu0 0.0
    %411 = vmatprep.subr.mxu0 0.0
    %412 = vmatpush1.msra.mxu0 0.0
    %413 = vmatprep.subr.mxu0 0.0
    %414 = vmatpush1.msra.mxu0 0.0
    %415 = vmatprep.subr.mxu0 0.0
    %416 = vmatpush1.msra.mxu0 0.0
    %417 = vmatprep.subr.mxu0 0.0
    %418 = vmatpush1.msra.mxu0 0.0
    %419 = vmatprep.subr.mxu0 0.0
    %420 = vmatpush1.msra.mxu0 0.0
    %421 = vmatprep.subr.mxu0 0.0
    %422 = vmatpush1.msra.mxu0 0.0
    %423 = vmatprep.subr.mxu0 0.0
    %424 = vmatpush1.msra.mxu0 0.0
    %425 = vmatprep.subr.mxu0 0.0
    %426 = vmatpush1.msra.mxu0 0.0
    %427 = vmatprep.subr.mxu0 0.0
    %428 = vmatpush1.msra.mxu0 0.0
    %429 = vmatprep.subr.mxu0 0.0
    %430 = vmatpush1.msra.mxu0 0.0
    %431 = vmatprep.subr.mxu0 0.0
    %432 = vmatpush1.msra.mxu0 0.0
    %433 = vmatprep.subr.mxu0 0.0
    %434 = vmatpush1.msra.mxu0 0.0
    %435 = vmatprep.subr.mxu0 0.0
    %436 = vmatpush1.msra.mxu0 0.0
    %437 = vmatprep.subr.mxu0 0.0
    %438 = vmatpush1.msra.mxu0 0.0
    %439 = vmatprep.subr.mxu0 0.0
    %440 = vmatpush1.msra.mxu0 0.0
    %441 = vmatprep.subr.mxu0 0.0
    %442 = vmatpush1.msra.mxu0 0.0
    %443 = vmatprep.subr.mxu0 0.0
    %444 = vmatpush1.msra.mxu0 0.0
    %445 = vmatprep.mubr.f32.mxu0 0.0
    %446 = vmatmul.mubr.f32.gmra.mrb[0].mxu0 %v209
    %v447 = vpop.f32.mrb[0].mxu0
    %v448 = vadd.f32 %v198, %v447
    %v449 = vpop.f32.mrb[0].mxu0
    %v450 = vadd.f32 %v202, %v449
    %451 = vmatprep.mubr.f32.mxu0 0.0
    %452 = vmatmul.mubr.f32.gmra.mrb[0].mxu0 %v212
    %v453 = vpop.f32.mrb[0].mxu0
    %v454 = vadd.f32 %v198, %v453
    %v455 = vpop.f32.mrb[0].mxu0
    %v456 = vadd.f32 %v202, %v455
    %457 = vmatprep.mubr.f32.mxu0 0.0
    %458 = vmatmul.mubr.f32.gmra.mrb[0].mxu0 %v215
    %v459 = vpop.f32.mrb[0].mxu0
    %v460 = vadd.f32 %v198, %v459
    %v461 = vpop.f32.mrb[0].mxu0
    %v462 = vadd.f32 %v202, %v461
    %463 = vmatprep.mubr.f32.mxu0 0.0
    %464 = vmatmul.mubr.f32.gmra.mrb[0].mxu0 %v218
    %v465 = vpop.f32.mrb[0].mxu0
    %v466 = vadd.f32 %v198, %v465
    %v467 = vpop.f32.mrb[0].mxu0
    %v468 = vadd.f32 %v202, %v467
    %469 = vmatprep.mubr.f32.mxu0 0.0
    %470 = vmatmul.mubr.f32.gmra.mrb[0].mxu0 %v221
    %v471 = vpop.f32.mrb[0].mxu0
    %v472 = vadd.f32 %v198, %v471
    %v473 = vpop.f32.mrb[0].mxu0
    %v474 = vadd.f32 %v202, %v473
    %475 = vmatprep.mubr.f32.mxu0 0.0
    %476 = vmatmul.mubr.f32.gmra.mrb[0].mxu0 %v224
    %v477 = vpop.f32.mrb[0].mxu0
    %v478 = vadd.f32 %v198, %v477
    %v479 = vpop.f32.mrb[0].mxu0
    %v480 = vadd.f32 %v202, %v479
    %481 = vmatprep.mubr.f32.mxu0 0.0
    %482 = vmatmul.mubr.f32.gmra.mrb[0].mxu0 %v227
    %v483 = vpop.f32.mrb[0].mxu0
    %v484 = vadd.f32 %v198, %v483
    %v485 = vpop.f32.mrb[0].mxu0
    %v486 = vadd.f32 %v202, %v485
    %487 = vmatprep.mubr.f32.mxu0 0.0
    %488 = vmatmul.mubr.f32.gmra.mrb[0].mxu0 %v230
    %v489 = vpop.f32.mrb[0].mxu0
    %v490 = vadd.f32 %v198, %v489
    %v491 = vpop.f32.mrb[0].mxu0
    %v492 = vadd.f32 %v202, %v491
    %493 = vmatprep.mubr.f32.mxu0 0.0
    %494 = vmatmul.mubr.f32.gmra.mrb[0].mxu0 %v233
    %v495 = vpop.f32.mrb[0].mxu0
    %v496 = vadd.f32 %v198, %v495
    %v497 = vpop.f32.mrb[0].mxu0
    %v498 = vadd.f32 %v202, %v497
    %499 = vmatprep.mubr.f32.mxu0 0.0
    %500 = vmatmul.mubr.f32.gmra.mrb[0].mxu0 %v236
    %v501 = vpop.f32.mrb[0].mxu0
    %v502 = vadd.f32 %v198, %v501
    %v503 = vpop.f32.mrb[0].mxu0
    %v504 = vadd.f32 %v202, %v503
    %505 = vmatprep.mubr.f32.mxu0 0.0
    %506 = vmatmul.mubr.f32.gmra.mrb[0].mxu0 %v239
    %v507 = vpop.f32.mrb[0].mxu0
    %v508 = vadd.f32 %v198, %v507
    %v509 = vpop.f32.mrb[0].mxu0
    %v510 = vadd.f32 %v202, %v509
    %511 = vmatprep.mubr.f32.mxu0 0.0
    %512 = vmatmul.mubr.f32.gmra.mrb[0].mxu0 %v242
    %v513 = vpop.f32.mrb[0].mxu0
    %v514 = vadd.f32 %v198, %v513
    %v515 = vpop.f32.mrb[0].mxu0
    %v516 = vadd.f32 %v202, %v515
    %517 = vdwg.mxu0
    %518 = vst [vmem:[#allocation3] sm:$0xff] %v311
    %519 = vst [vmem:[#allocation3 + $0x8] sm:$0xff] %v313
    %520 = vst [vmem:[#allocation3 + $0x10] sm:$0xff] %v448
    %521 = vst [vmem:[#allocation3 + $0x18] sm:$0xff] %v450
    %522 = vst [vmem:[#allocation3 + $0x20] sm:$0xff] %v317
    %523 = vst [vmem:[#allocation3 + $0x28] sm:$0xff] %v319
    %524 = vst [vmem:[#allocation3 + $0x30] sm:$0xff] %v454
    %525 = vst [vmem:[#allocation3 + $0x38] sm:$0xff] %v456
    %526 = vst [vmem:[#allocation3 + $0x40] sm:$0xff] %v323
    %527 = vst [vmem:[#allocation3 + $0x48] sm:$0xff] %v325
    %528 = vst [vmem:[#allocation3 + $0x50] sm:$0xff] %v460
    %529 = vst [vmem:[#allocation3 + $0x58] sm:$0xff] %v462
    %530 = vst [vmem:[#allocation3 + $0x60] sm:$0xff] %v329
    %531 = vst [vmem:[#allocation3 + $0x68] sm:$0xff] %v331
    %532 = vst [vmem:[#allocation3 + $0x70] sm:$0xff] %v466
    %533 = vst [vmem:[#allocation3 + $0x78] sm:$0xff] %v468
    %534 = vst [vmem:[#allocation3 + $0x80] sm:$0xff] %v335
    %535 = vst [vmem:[#allocation3 + $0x88] sm:$0xff] %v337
    %536 = vst [vmem:[#allocation3 + $0x90] sm:$0xff] %v472
    %537 = vst [vmem:[#allocation3 + $0x98] sm:$0xff] %v474
    %538 = vst [vmem:[#allocation3 + $0xa0] sm:$0xff] %v341
    %539 = vst [vmem:[#allocation3 + $0xa8] sm:$0xff] %v343
    %540 = vst [vmem:[#allocation3 + $0xb0] sm:$0xff] %v478
    %541 = vst [vmem:[#allocation3 + $0xb8] sm:$0xff] %v480
    %542 = vst [vmem:[#allocation3 + $0xc0] sm:$0xff] %v347
    %543 = vst [vmem:[#allocation3 + $0xc8] sm:$0xff] %v349
    %544 = vst [vmem:[#allocation3 + $0xd0] sm:$0xff] %v484
    %545 = vst [vmem:[#allocation3 + $0xd8] sm:$0xff] %v486
    %546 = vst [vmem:[#allocation3 + $0xe0] sm:$0xff] %v353
    %547 = vst [vmem:[#allocation3 + $0xe8] sm:$0xff] %v355
    %548 = vst [vmem:[#allocation3 + $0xf0] sm:$0xff] %v490
    %549 = vst [vmem:[#allocation3 + $0xf8] sm:$0xff] %v492
    %550 = vst [vmem:[#allocation3 + $0x100] sm:$0xff] %v359
    %551 = vst [vmem:[#allocation3 + $0x108] sm:$0xff] %v361
    %552 = vst [vmem:[#allocation3 + $0x110] sm:$0xff] %v496
    %553 = vst [vmem:[#allocation3 + $0x118] sm:$0xff] %v498
    %554 = vst [vmem:[#allocation3 + $0x120] sm:$0xff] %v365
    %555 = vst [vmem:[#allocation3 + $0x128] sm:$0xff] %v367
    %556 = vst [vmem:[#allocation3 + $0x130] sm:$0xff] %v502
    %557 = vst [vmem:[#allocation3 + $0x138] sm:$0xff] %v504
    %558 = vst [vmem:[#allocation3 + $0x140] sm:$0xff] %v371
    %559 = vst [vmem:[#allocation3 + $0x148] sm:$0xff] %v373
    %560 = vst [vmem:[#allocation3 + $0x150] sm:$0xff] %v508
    %561 = vst [vmem:[#allocation3 + $0x158] sm:$0xff] %v510
    %562 = vst [vmem:[#allocation3 + $0x160] sm:$0xff] %v377
    %563 = vst [vmem:[#allocation3 + $0x168] sm:$0xff] %v379
    %564 = vst [vmem:[#allocation3 + $0x170] sm:$0xff] %v514
    %565 = vst [vmem:[#allocation3 + $0x178] sm:$0xff] %v516
    %v566 = vld [vmem:[#allocation11] sm:$0xff]
    %v567 = vld [vmem:[#allocation11 + $0x8] sm:$0xff]
    %v568 = vld [vmem:[#allocation11 + $0x10] sm:$0xff]
    %v569 = vld [vmem:[#allocation11 + $0x18] sm:$0xff]
    %v570 = vld [vmem:[#allocation11 + $0x20] sm:$0xff]
    %v571 = vld [vmem:[#allocation11 + $0x28] sm:$0xff]
    %v572 = vld [vmem:[#allocation11 + $0x30] sm:$0xff]
    %v573 = vld [vmem:[#allocation11 + $0x38] sm:$0xff]
    %v574 = vld [vmem:[#allocation11 + $0x40] sm:$0xff]
    %v575 = vld [vmem:[#allocation11 + $0x48] sm:$0xff]
    %v576 = vld [vmem:[#allocation11 + $0x50] sm:$0xff]
    %v577 = vld [vmem:[#allocation11 + $0x58] sm:$0xff]
    %v578 = vld [vmem:[#allocation11 + $0x60] sm:$0xff]
    %v579 = vld [vmem:[#allocation11 + $0x68] sm:$0xff]
    %v580 = vld [vmem:[#allocation11 + $0x70] sm:$0xff]
    %v581 = vld [vmem:[#allocation11 + $0x78] sm:$0xff]
    %v582 = vld [vmem:[#allocation11 + $0x80] sm:$0xff]
    %v583 = vld [vmem:[#allocation11 + $0x88] sm:$0xff]
    %v584 = vld [vmem:[#allocation11 + $0x90] sm:$0xff]
    %v585 = vld [vmem:[#allocation11 + $0x98] sm:$0xff]
    %v586 = vld [vmem:[#allocation11 + $0xa0] sm:$0xff]
    %v587 = vld [vmem:[#allocation11 + $0xa8] sm:$0xff]
    %v588 = vld [vmem:[#allocation11 + $0xb0] sm:$0xff]
    %v589 = vld [vmem:[#allocation11 + $0xb8] sm:$0xff]
    %v590 = vld [vmem:[#allocation11 + $0xc0] sm:$0xff]
    %v591 = vld [vmem:[#allocation11 + $0xc8] sm:$0xff]
    %v592 = vld [vmem:[#allocation11 + $0xd0] sm:$0xff]
    %v593 = vld [vmem:[#allocation11 + $0xd8] sm:$0xff]
    %v594 = vld [vmem:[#allocation11 + $0xe0] sm:$0xff]
    %v595 = vld [vmem:[#allocation11 + $0xe8] sm:$0xff]
    %v596 = vld [vmem:[#allocation11 + $0xf0] sm:$0xff]
    %v597 = vld [vmem:[#allocation11 + $0xf8] sm:$0xff]
    %v598 = vld [vmem:[%s9] sm:$0xf]
    %v600 = vlaneseq
    %v601 = vshrl.u32 %v600, 7
    %v602 = vsub.s32 0, %v601
    %v603 = vrot.slane %v598, %v602
    %v604 = vlaneseq
    %v605 = vshrl.u32 %v604, 7
    %v606 = vsub.s32 1, %v605
    %v607 = vrot.slane %v598, %v606
    %v608 = vlaneseq
    %v609 = vshrl.u32 %v608, 7
    %v610 = vsub.s32 2, %v609
    %v611 = vrot.slane %v598, %v610
    %v612 = vlaneseq
    %v613 = vshrl.u32 %v612, 7
    %v614 = vsub.s32 3, %v613
    %v615 = vrot.slane %v598, %v614
    %620 = vmatprep.subr.mxu0 %v567
    %621 = vmatpush1.msra.mxu0 %v566
    %622 = vmatprep.subr.mxu0 %v571
    %623 = vmatpush1.msra.mxu0 %v570
    %624 = vmatprep.subr.mxu0 %v575
    %625 = vmatpush1.msra.mxu0 %v574
    %626 = vmatprep.subr.mxu0 %v579
    %627 = vmatpush1.msra.mxu0 %v578
    %628 = vmatprep.subr.mxu0 %v583
    %629 = vmatpush1.msra.mxu0 %v582
    %630 = vmatprep.subr.mxu0 %v587
    %631 = vmatpush1.msra.mxu0 %v586
    %632 = vmatprep.subr.mxu0 %v591
    %633 = vmatpush1.msra.mxu0 %v590
    %634 = vmatprep.subr.mxu0 %v595
    %635 = vmatpush1.msra.mxu0 %v594
    %636 = vmatprep.subr.mxu0 0.0
    %637 = vmatpush1.msra.mxu0 0.0
    %638 = vmatprep.subr.mxu0 0.0
    %639 = vmatpush1.msra.mxu0 0.0
    %640 = vmatprep.subr.mxu0 0.0
    %641 = vmatpush1.msra.mxu0 0.0
    %642 = vmatprep.subr.mxu0 0.0
    %643 = vmatpush1.msra.mxu0 0.0
    %644 = vmatprep.subr.mxu0 0.0
    %645 = vmatpush1.msra.mxu0 0.0
    %646 = vmatprep.subr.mxu0 0.0
    %647 = vmatpush1.msra.mxu0 0.0
    %648 = vmatprep.subr.mxu0 0.0
    %649 = vmatpush1.msra.mxu0 0.0
    %650 = vmatprep.subr.mxu0 0.0
    %651 = vmatpush1.msra.mxu0 0.0
    %652 = vmatprep.subr.mxu0 0.0
    %653 = vmatpush1.msra.mxu0 0.0
    %654 = vmatprep.subr.mxu0 0.0
    %655 = vmatpush1.msra.mxu0 0.0
    %656 = vmatprep.subr.mxu0 0.0
    %657 = vmatpush1.msra.mxu0 0.0
    %658 = vmatprep.subr.mxu0 0.0
    %659 = vmatpush1.msra.mxu0 0.0
    %660 = vmatprep.subr.mxu0 0.0
    %661 = vmatpush1.msra.mxu0 0.0
    %662 = vmatprep.subr.mxu0 0.0
    %663 = vmatpush1.msra.mxu0 0.0
    %664 = vmatprep.subr.mxu0 0.0
    %665 = vmatpush1.msra.mxu0 0.0
    %666 = vmatprep.subr.mxu0 0.0
    %667 = vmatpush1.msra.mxu0 0.0
    %668 = vmatprep.subr.mxu0 0.0
    %669 = vmatpush1.msra.mxu0 0.0
    %670 = vmatprep.subr.mxu0 0.0
    %671 = vmatpush1.msra.mxu0 0.0
    %672 = vmatprep.subr.mxu0 0.0
    %673 = vmatpush1.msra.mxu0 0.0
    %674 = vmatprep.subr.mxu0 0.0
    %675 = vmatpush1.msra.mxu0 0.0
    %676 = vmatprep.subr.mxu0 0.0
    %677 = vmatpush1.msra.mxu0 0.0
    %678 = vmatprep.subr.mxu0 0.0
    %679 = vmatpush1.msra.mxu0 0.0
    %680 = vmatprep.subr.mxu0 0.0
    %681 = vmatpush1.msra.mxu0 0.0
    %682 = vmatprep.subr.mxu0 0.0
    %683 = vmatpush1.msra.mxu0 0.0
    %684 = vmatprep.mubr.f32.mxu0 0.0
    %685 = vmatmul.mubr.f32.gmra.mrb[0].mxu0 %v209
    %v686 = vpop.f32.mrb[0].mxu0
    %v687 = vadd.f32 %v603, %v686
    %v688 = vpop.f32.mrb[0].mxu0
    %v689 = vadd.f32 %v607, %v688
    %690 = vmatprep.mubr.f32.mxu0 0.0
    %691 = vmatmul.mubr.f32.gmra.mrb[0].mxu0 %v212
    %v692 = vpop.f32.mrb[0].mxu0
    %v693 = vadd.f32 %v603, %v692
    %v694 = vpop.f32.mrb[0].mxu0
    %v695 = vadd.f32 %v607, %v694
    %696 = vmatprep.mubr.f32.mxu0 0.0
    %697 = vmatmul.mubr.f32.gmra.mrb[0].mxu0 %v215
    %v698 = vpop.f32.mrb[0].mxu0
    %v699 = vadd.f32 %v603, %v698
    %v700 = vpop.f32.mrb[0].mxu0
    %v701 = vadd.f32 %v607, %v700
    %702 = vmatprep.mubr.f32.mxu0 0.0
    %703 = vmatmul.mubr.f32.gmra.mrb[0].mxu0 %v218
    %v704 = vpop.f32.mrb[0].mxu0
    %v705 = vadd.f32 %v603, %v704
    %v706 = vpop.f32.mrb[0].mxu0
    %v707 = vadd.f32 %v607, %v706
    %708 = vmatprep.mubr.f32.mxu0 0.0
    %709 = vmatmul.mubr.f32.gmra.mrb[0].mxu0 %v221
    %v710 = vpop.f32.mrb[0].mxu0
    %v711 = vadd.f32 %v603, %v710
    %v712 = vpop.f32.mrb[0].mxu0
    %v713 = vadd.f32 %v607, %v712
    %714 = vmatprep.mubr.f32.mxu0 0.0
    %715 = vmatmul.mubr.f32.gmra.mrb[0].mxu0 %v224
    %v716 = vpop.f32.mrb[0].mxu0
    %v717 = vadd.f32 %v603, %v716
    %v718 = vpop.f32.mrb[0].mxu0
    %v719 = vadd.f32 %v607, %v718
    %720 = vmatprep.mubr.f32.mxu0 0.0
    %721 = vmatmul.mubr.f32.gmra.mrb[0].mxu0 %v227
    %v722 = vpop.f32.mrb[0].mxu0
    %v723 = vadd.f32 %v603, %v722
    %v724 = vpop.f32.mrb[0].mxu0
    %v725 = vadd.f32 %v607, %v724
    %726 = vmatprep.mubr.f32.mxu0 0.0
    %727 = vmatmul.mubr.f32.gmra.mrb[0].mxu0 %v230
    %v728 = vpop.f32.mrb[0].mxu0
    %v729 = vadd.f32 %v603, %v728
    %v730 = vpop.f32.mrb[0].mxu0
    %v731 = vadd.f32 %v607, %v730
    %732 = vmatprep.mubr.f32.mxu0 0.0
    %733 = vmatmul.mubr.f32.gmra.mrb[0].mxu0 %v233
    %v734 = vpop.f32.mrb[0].mxu0
    %v735 = vadd.f32 %v603, %v734
    %v736 = vpop.f32.mrb[0].mxu0
    %v737 = vadd.f32 %v607, %v736
    %738 = vmatprep.mubr.f32.mxu0 0.0
    %739 = vmatmul.mubr.f32.gmra.mrb[0].mxu0 %v236
    %v740 = vpop.f32.mrb[0].mxu0
    %v741 = vadd.f32 %v603, %v740
    %v742 = vpop.f32.mrb[0].mxu0
    %v743 = vadd.f32 %v607, %v742
    %744 = vmatprep.mubr.f32.mxu0 0.0
    %745 = vmatmul.mubr.f32.gmra.mrb[0].mxu0 %v239
    %v746 = vpop.f32.mrb[0].mxu0
    %v747 = vadd.f32 %v603, %v746
    %v748 = vpop.f32.mrb[0].mxu0
    %v749 = vadd.f32 %v607, %v748
    %750 = vmatprep.mubr.f32.mxu0 0.0
    %751 = vmatmul.mubr.f32.gmra.mrb[0].mxu0 %v242
    %v752 = vpop.f32.mrb[0].mxu0
    %v753 = vadd.f32 %v603, %v752
    %v754 = vpop.f32.mrb[0].mxu0
    %v755 = vadd.f32 %v607, %v754
    %756 = vdwg.mxu0
    %757 = vmatprep.subr.mxu0 %v569
    %758 = vmatpush1.msra.mxu0 %v568
    %759 = vmatprep.subr.mxu0 %v573
    %760 = vmatpush1.msra.mxu0 %v572
    %761 = vmatprep.subr.mxu0 %v577
    %762 = vmatpush1.msra.mxu0 %v576
    %763 = vmatprep.subr.mxu0 %v581
    %764 = vmatpush1.msra.mxu0 %v580
    %765 = vmatprep.subr.mxu0 %v585
    %766 = vmatpush1.msra.mxu0 %v584
    %767 = vmatprep.subr.mxu0 %v589
    %768 = vmatpush1.msra.mxu0 %v588
    %769 = vmatprep.subr.mxu0 %v593
    %770 = vmatpush1.msra.mxu0 %v592
    %771 = vmatprep.subr.mxu0 %v597
    %772 = vmatpush1.msra.mxu0 %v596
    %773 = vmatprep.subr.mxu0 0.0
    %774 = vmatpush1.msra.mxu0 0.0
    %775 = vmatprep.subr.mxu0 0.0
    %776 = vmatpush1.msra.mxu0 0.0
    %777 = vmatprep.subr.mxu0 0.0
    %778 = vmatpush1.msra.mxu0 0.0
    %779 = vmatprep.subr.mxu0 0.0
    %780 = vmatpush1.msra.mxu0 0.0
    %781 = vmatprep.subr.mxu0 0.0
    %782 = vmatpush1.msra.mxu0 0.0
    %783 = vmatprep.subr.mxu0 0.0
    %784 = vmatpush1.msra.mxu0 0.0
    %785 = vmatprep.subr.mxu0 0.0
    %786 = vmatpush1.msra.mxu0 0.0
    %787 = vmatprep.subr.mxu0 0.0
    %788 = vmatpush1.msra.mxu0 0.0
    %789 = vmatprep.subr.mxu0 0.0
    %790 = vmatpush1.msra.mxu0 0.0
    %791 = vmatprep.subr.mxu0 0.0
    %792 = vmatpush1.msra.mxu0 0.0
    %793 = vmatprep.subr.mxu0 0.0
    %794 = vmatpush1.msra.mxu0 0.0
    %795 = vmatprep.subr.mxu0 0.0
    %796 = vmatpush1.msra.mxu0 0.0
    %797 = vmatprep.subr.mxu0 0.0
    %798 = vmatpush1.msra.mxu0 0.0
    %799 = vmatprep.subr.mxu0 0.0
    %800 = vmatpush1.msra.mxu0 0.0
    %801 = vmatprep.subr.mxu0 0.0
    %802 = vmatpush1.msra.mxu0 0.0
    %803 = vmatprep.subr.mxu0 0.0
    %804 = vmatpush1.msra.mxu0 0.0
    %805 = vmatprep.subr.mxu0 0.0
    %806 = vmatpush1.msra.mxu0 0.0
    %807 = vmatprep.subr.mxu0 0.0
    %808 = vmatpush1.msra.mxu0 0.0
    %809 = vmatprep.subr.mxu0 0.0
    %810 = vmatpush1.msra.mxu0 0.0
    %811 = vmatprep.subr.mxu0 0.0
    %812 = vmatpush1.msra.mxu0 0.0
    %813 = vmatprep.subr.mxu0 0.0
    %814 = vmatpush1.msra.mxu0 0.0
    %815 = vmatprep.subr.mxu0 0.0
    %816 = vmatpush1.msra.mxu0 0.0
    %817 = vmatprep.subr.mxu0 0.0
    %818 = vmatpush1.msra.mxu0 0.0
    %819 = vmatprep.subr.mxu0 0.0
    %820 = vmatpush1.msra.mxu0 0.0
    %821 = vmatprep.mubr.f32.mxu0 0.0
    %822 = vmatmul.mubr.f32.gmra.mrb[0].mxu0 %v209
    %v823 = vpop.f32.mrb[0].mxu0
    %v824 = vadd.f32 %v611, %v823
    %v825 = vpop.f32.mrb[0].mxu0
    %v826 = vadd.f32 %v615, %v825
    %827 = vmatprep.mubr.f32.mxu0 0.0
    %828 = vmatmul.mubr.f32.gmra.mrb[0].mxu0 %v212
    %v829 = vpop.f32.mrb[0].mxu0
    %v830 = vadd.f32 %v611, %v829
    %v831 = vpop.f32.mrb[0].mxu0
    %v832 = vadd.f32 %v615, %v831
    %833 = vmatprep.mubr.f32.mxu0 0.0
    %834 = vmatmul.mubr.f32.gmra.mrb[0].mxu0 %v215
    %v835 = vpop.f32.mrb[0].mxu0
    %v836 = vadd.f32 %v611, %v835
    %v837 = vpop.f32.mrb[0].mxu0
    %v838 = vadd.f32 %v615, %v837
    %839 = vmatprep.mubr.f32.mxu0 0.0
    %840 = vmatmul.mubr.f32.gmra.mrb[0].mxu0 %v218
    %v841 = vpop.f32.mrb[0].mxu0
    %v842 = vadd.f32 %v611, %v841
    %v843 = vpop.f32.mrb[0].mxu0
    %v844 = vadd.f32 %v615, %v843
    %845 = vmatprep.mubr.f32.mxu0 0.0
    %846 = vmatmul.mubr.f32.gmra.mrb[0].mxu0 %v221
    %v847 = vpop.f32.mrb[0].mxu0
    %v848 = vadd.f32 %v611, %v847
    %v849 = vpop.f32.mrb[0].mxu0
    %v850 = vadd.f32 %v615, %v849
    %851 = vmatprep.mubr.f32.mxu0 0.0
    %852 = vmatmul.mubr.f32.gmra.mrb[0].mxu0 %v224
    %v853 = vpop.f32.mrb[0].mxu0
    %v854 = vadd.f32 %v611, %v853
    %v855 = vpop.f32.mrb[0].mxu0
    %v856 = vadd.f32 %v615, %v855
    %857 = vmatprep.mubr.f32.mxu0 0.0
    %858 = vmatmul.mubr.f32.gmra.mrb[0].mxu0 %v227
    %v859 = vpop.f32.mrb[0].mxu0
    %v860 = vadd.f32 %v611, %v859
    %v861 = vpop.f32.mrb[0].mxu0
    %v862 = vadd.f32 %v615, %v861
    %863 = vmatprep.mubr.f32.mxu0 0.0
    %864 = vmatmul.mubr.f32.gmra.mrb[0].mxu0 %v230
    %v865 = vpop.f32.mrb[0].mxu0
    %v866 = vadd.f32 %v611, %v865
    %v867 = vpop.f32.mrb[0].mxu0
    %v868 = vadd.f32 %v615, %v867
    %869 = vmatprep.mubr.f32.mxu0 0.0
    %870 = vmatmul.mubr.f32.gmra.mrb[0].mxu0 %v233
    %v871 = vpop.f32.mrb[0].mxu0
    %v872 = vadd.f32 %v611, %v871
    %v873 = vpop.f32.mrb[0].mxu0
    %v874 = vadd.f32 %v615, %v873
    %875 = vmatprep.mubr.f32.mxu0 0.0
    %876 = vmatmul.mubr.f32.gmra.mrb[0].mxu0 %v236
    %v877 = vpop.f32.mrb[0].mxu0
    %v878 = vadd.f32 %v611, %v877
    %v879 = vpop.f32.mrb[0].mxu0
    %v880 = vadd.f32 %v615, %v879
    %881 = vmatprep.mubr.f32.mxu0 0.0
    %882 = vmatmul.mubr.f32.gmra.mrb[0].mxu0 %v239
    %v883 = vpop.f32.mrb[0].mxu0
    %v884 = vadd.f32 %v611, %v883
    %v885 = vpop.f32.mrb[0].mxu0
    %v886 = vadd.f32 %v615, %v885
    %887 = vmatprep.mubr.f32.mxu0 0.0
    %888 = vmatmul.mubr.f32.gmra.mrb[0].mxu0 %v242
    %v889 = vpop.f32.mrb[0].mxu0
    %v890 = vadd.f32 %v611, %v889
    %v891 = vpop.f32.mrb[0].mxu0
    %v892 = vadd.f32 %v615, %v891
    %893 = vdwg.mxu0
    %894 = vst [vmem:[#allocation4] sm:$0xff] %v687
    %895 = vst [vmem:[#allocation4 + $0x8] sm:$0xff] %v689
    %896 = vst [vmem:[#allocation4 + $0x10] sm:$0xff] %v824
    %897 = vst [vmem:[#allocation4 + $0x18] sm:$0xff] %v826
    %898 = vst [vmem:[#allocation4 + $0x20] sm:$0xff] %v693
    %899 = vst [vmem:[#allocation4 + $0x28] sm:$0xff] %v695
    %900 = vst [vmem:[#allocation4 + $0x30] sm:$0xff] %v830
    %901 = vst [vmem:[#allocation4 + $0x38] sm:$0xff] %v832
    %902 = vst [vmem:[#allocation4 + $0x40] sm:$0xff] %v699
    %903 = vst [vmem:[#allocation4 + $0x48] sm:$0xff] %v701
    %904 = vst [vmem:[#allocation4 + $0x50] sm:$0xff] %v836
    %905 = vst [vmem:[#allocation4 + $0x58] sm:$0xff] %v838
    %906 = vst [vmem:[#allocation4 + $0x60] sm:$0xff] %v705
    %907 = vst [vmem:[#allocation4 + $0x68] sm:$0xff] %v707
    %908 = vst [vmem:[#allocation4 + $0x70] sm:$0xff] %v842
    %909 = vst [vmem:[#allocation4 + $0x78] sm:$0xff] %v844
    %910 = vst [vmem:[#allocation4 + $0x80] sm:$0xff] %v711
    %911 = vst [vmem:[#allocation4 + $0x88] sm:$0xff] %v713
    %912 = vst [vmem:[#allocation4 + $0x90] sm:$0xff] %v848
    %913 = vst [vmem:[#allocation4 + $0x98] sm:$0xff] %v850
    %914 = vst [vmem:[#allocation4 + $0xa0] sm:$0xff] %v717
    %915 = vst [vmem:[#allocation4 + $0xa8] sm:$0xff] %v719
    %916 = vst [vmem:[#allocation4 + $0xb0] sm:$0xff] %v854
    %917 = vst [vmem:[#allocation4 + $0xb8] sm:$0xff] %v856
    %918 = vst [vmem:[#allocation4 + $0xc0] sm:$0xff] %v723
    %919 = vst [vmem:[#allocation4 + $0xc8] sm:$0xff] %v725
    %920 = vst [vmem:[#allocation4 + $0xd0] sm:$0xff] %v860
    %921 = vst [vmem:[#allocation4 + $0xd8] sm:$0xff] %v862
    %922 = vst [vmem:[#allocation4 + $0xe0] sm:$0xff] %v729
    %923 = vst [vmem:[#allocation4 + $0xe8] sm:$0xff] %v731
    %924 = vst [vmem:[#allocation4 + $0xf0] sm:$0xff] %v866
    %925 = vst [vmem:[#allocation4 + $0xf8] sm:$0xff] %v868
    %926 = vst [vmem:[#allocation4 + $0x100] sm:$0xff] %v735
    %927 = vst [vmem:[#allocation4 + $0x108] sm:$0xff] %v737
    %928 = vst [vmem:[#allocation4 + $0x110] sm:$0xff] %v872
    %929 = vst [vmem:[#allocation4 + $0x118] sm:$0xff] %v874
    %930 = vst [vmem:[#allocation4 + $0x120] sm:$0xff] %v741
    %931 = vst [vmem:[#allocation4 + $0x128] sm:$0xff] %v743
    %932 = vst [vmem:[#allocation4 + $0x130] sm:$0xff] %v878
    %933 = vst [vmem:[#allocation4 + $0x138] sm:$0xff] %v880
    %934 = vst [vmem:[#allocation4 + $0x140] sm:$0xff] %v747
    %935 = vst [vmem:[#allocation4 + $0x148] sm:$0xff] %v749
    %936 = vst [vmem:[#allocation4 + $0x150] sm:$0xff] %v884
    %937 = vst [vmem:[#allocation4 + $0x158] sm:$0xff] %v886
    %938 = vst [vmem:[#allocation4 + $0x160] sm:$0xff] %v753
    %939 = vst [vmem:[#allocation4 + $0x168] sm:$0xff] %v755
    %940 = vst [vmem:[#allocation4 + $0x170] sm:$0xff] %v890
    %941 = vst [vmem:[#allocation4 + $0x178] sm:$0xff] %v892
    %v942 = vld [vmem:[#allocation8] sm:$0xff]
    %v943 = vld [vmem:[#allocation8 + $0x8] sm:$0xff]
    %v944 = vld [vmem:[#allocation8 + $0x10] sm:$0xff]
    %v945 = vld [vmem:[#allocation8 + $0x18] sm:$0xff]
    %v946 = vld [vmem:[#allocation8 + $0x20] sm:$0xff]
    %v947 = vld [vmem:[#allocation8 + $0x28] sm:$0xff]
    %v948 = vld [vmem:[#allocation8 + $0x30] sm:$0xff]
    %v949 = vld [vmem:[#allocation8 + $0x38] sm:$0xff]
    %v950 = vld [vmem:[#allocation8 + $0x40] sm:$0xff]
    %v951 = vld [vmem:[#allocation8 + $0x48] sm:$0xff]
    %v952 = vld [vmem:[#allocation8 + $0x50] sm:$0xff]
    %v953 = vld [vmem:[#allocation8 + $0x58] sm:$0xff]
    %v954 = vld [vmem:[#allocation8 + $0x60] sm:$0xff]
    %v955 = vld [vmem:[#allocation8 + $0x68] sm:$0xff]
    %v956 = vld [vmem:[#allocation8 + $0x70] sm:$0xff]
    %v957 = vld [vmem:[#allocation8 + $0x78] sm:$0xff]
    %v958 = vld [vmem:[#allocation8 + $0x80] sm:$0xff]
    %v959 = vld [vmem:[#allocation8 + $0x88] sm:$0xff]
    %v960 = vld [vmem:[#allocation8 + $0x90] sm:$0xff]
    %v961 = vld [vmem:[#allocation8 + $0x98] sm:$0xff]
    %v962 = vld [vmem:[#allocation8 + $0xa0] sm:$0xff]
    %v963 = vld [vmem:[#allocation8 + $0xa8] sm:$0xff]
    %v964 = vld [vmem:[#allocation8 + $0xb0] sm:$0xff]
    %v965 = vld [vmem:[#allocation8 + $0xb8] sm:$0xff]
    %v966 = vld [vmem:[#allocation8 + $0xc0] sm:$0xff]
    %v967 = vld [vmem:[#allocation8 + $0xc8] sm:$0xff]
    %v968 = vld [vmem:[#allocation8 + $0xd0] sm:$0xff]
    %v969 = vld [vmem:[#allocation8 + $0xd8] sm:$0xff]
    %v970 = vld [vmem:[#allocation8 + $0xe0] sm:$0xff]
    %v971 = vld [vmem:[#allocation8 + $0xe8] sm:$0xff]
    %v972 = vld [vmem:[#allocation8 + $0xf0] sm:$0xff]
    %v973 = vld [vmem:[#allocation8 + $0xf8] sm:$0xff]
    %v974 = vld [vmem:[#allocation8 + $0x100] sm:$0xff]
    %v975 = vld [vmem:[#allocation8 + $0x108] sm:$0xff]
    %v976 = vld [vmem:[#allocation8 + $0x110] sm:$0xff]
    %v977 = vld [vmem:[#allocation8 + $0x118] sm:$0xff]
    %v978 = vld [vmem:[#allocation8 + $0x120] sm:$0xff]
    %v979 = vld [vmem:[#allocation8 + $0x128] sm:$0xff]
    %v980 = vld [vmem:[#allocation8 + $0x130] sm:$0xff]
    %v981 = vld [vmem:[#allocation8 + $0x138] sm:$0xff]
    %v982 = vld [vmem:[#allocation8 + $0x140] sm:$0xff]
    %v983 = vld [vmem:[#allocation8 + $0x148] sm:$0xff]
    %v984 = vld [vmem:[#allocation8 + $0x150] sm:$0xff]
    %v985 = vld [vmem:[#allocation8 + $0x158] sm:$0xff]
    %v986 = vld [vmem:[#allocation8 + $0x160] sm:$0xff]
    %v987 = vld [vmem:[#allocation8 + $0x168] sm:$0xff]
    %v988 = vld [vmem:[#allocation8 + $0x170] sm:$0xff]
    %v989 = vld [vmem:[#allocation8 + $0x178] sm:$0xff]
    %v990 = vld [vmem:[#allocation8 + $0x180] sm:$0xff]
    %v991 = vld [vmem:[#allocation8 + $0x188] sm:$0xff]
    %v992 = vld [vmem:[#allocation8 + $0x190] sm:$0xff]
    %v993 = vld [vmem:[#allocation8 + $0x198] sm:$0xff]
    %v994 = vld [vmem:[#allocation8 + $0x1a0] sm:$0xff]
    %v995 = vld [vmem:[#allocation8 + $0x1a8] sm:$0xff]
    %v996 = vld [vmem:[#allocation8 + $0x1b0] sm:$0xff]
    %v997 = vld [vmem:[#allocation8 + $0x1b8] sm:$0xff]
    %v998 = vld [vmem:[#allocation8 + $0x1c0] sm:$0xff]
    %v999 = vld [vmem:[#allocation8 + $0x1c8] sm:$0xff]
    %v1000 = vld [vmem:[#allocation8 + $0x1d0] sm:$0xff]
    %v1001 = vld [vmem:[#allocation8 + $0x1d8] sm:$0xff]
    %v1002 = vld [vmem:[#allocation8 + $0x1e0] sm:$0xff]
    %v1003 = vld [vmem:[#allocation8 + $0x1e8] sm:$0xff]
    %v1004 = vld [vmem:[#allocation8 + $0x1f0] sm:$0xff]
    %v1005 = vld [vmem:[#allocation8 + $0x1f8] sm:$0xff]
    %v1006 = vld [vmem:[#allocation13] sm:$0xff]
    %v1007 = vld [vmem:[#allocation13 + $0x8] sm:$0xff]
    %v1008 = vld [vmem:[#allocation13 + $0x10] sm:$0xff]
    %v1009 = vld [vmem:[#allocation13 + $0x18] sm:$0xff]
    %v1010 = vld [vmem:[#allocation13 + $0x20] sm:$0xff]
    %v1011 = vld [vmem:[#allocation13 + $0x28] sm:$0xff]
    %v1012 = vld [vmem:[#allocation13 + $0x30] sm:$0xff]
    %v1013 = vld [vmem:[#allocation13 + $0x38] sm:$0xff]
    %v1014 = vld [vmem:[#allocation13 + $0x40] sm:$0xff]
    %v1015 = vld [vmem:[#allocation13 + $0x48] sm:$0xff]
    %v1016 = vld [vmem:[#allocation13 + $0x50] sm:$0xff]
    %v1017 = vld [vmem:[#allocation13 + $0x58] sm:$0xff]
    %v1018 = vld [vmem:[#allocation13 + $0x60] sm:$0xff]
    %v1019 = vld [vmem:[#allocation13 + $0x68] sm:$0xff]
    %v1020 = vld [vmem:[#allocation13 + $0x70] sm:$0xff]
    %v1021 = vld [vmem:[#allocation13 + $0x78] sm:$0xff]
    %v1022 = vld [vmem:[#allocation13 + $0x80] sm:$0xff]
    %v1023 = vld [vmem:[#allocation13 + $0x88] sm:$0xff]
    %v1024 = vld [vmem:[#allocation13 + $0x90] sm:$0xff]
    %v1025 = vld [vmem:[#allocation13 + $0x98] sm:$0xff]
    %v1026 = vld [vmem:[#allocation13 + $0xa0] sm:$0xff]
    %v1027 = vld [vmem:[#allocation13 + $0xa8] sm:$0xff]
    %v1028 = vld [vmem:[#allocation13 + $0xb0] sm:$0xff]
    %v1029 = vld [vmem:[#allocation13 + $0xb8] sm:$0xff]
    %v1030 = vld [vmem:[#allocation13 + $0xc0] sm:$0xff]
    %v1031 = vld [vmem:[#allocation13 + $0xc8] sm:$0xff]
    %v1032 = vld [vmem:[#allocation13 + $0xd0] sm:$0xff]
    %v1033 = vld [vmem:[#allocation13 + $0xd8] sm:$0xff]
    %v1034 = vld [vmem:[#allocation13 + $0xe0] sm:$0xff]
    %v1035 = vld [vmem:[#allocation13 + $0xe8] sm:$0xff]
    %v1036 = vld [vmem:[#allocation13 + $0xf0] sm:$0xff]
    %v1037 = vld [vmem:[#allocation13 + $0xf8] sm:$0xff]
    %v1038 = vld [vmem:[#allocation13 + $0x100] sm:$0xff]
    %v1039 = vld [vmem:[#allocation13 + $0x108] sm:$0xff]
    %v1040 = vld [vmem:[#allocation13 + $0x110] sm:$0xff]
    %v1041 = vld [vmem:[#allocation13 + $0x118] sm:$0xff]
    %v1042 = vld [vmem:[#allocation13 + $0x120] sm:$0xff]
    %v1043 = vld [vmem:[#allocation13 + $0x128] sm:$0xff]
    %v1044 = vld [vmem:[#allocation13 + $0x130] sm:$0xff]
    %v1045 = vld [vmem:[#allocation13 + $0x138] sm:$0xff]
    %v1046 = vld [vmem:[#allocation13 + $0x140] sm:$0xff]
    %v1047 = vld [vmem:[#allocation13 + $0x148] sm:$0xff]
    %v1048 = vld [vmem:[#allocation13 + $0x150] sm:$0xff]
    %v1049 = vld [vmem:[#allocation13 + $0x158] sm:$0xff]
    %v1050 = vld [vmem:[#allocation13 + $0x160] sm:$0xff]
    %v1051 = vld [vmem:[#allocation13 + $0x168] sm:$0xff]
    %v1052 = vld [vmem:[#allocation13 + $0x170] sm:$0xff]
    %v1053 = vld [vmem:[#allocation13 + $0x178] sm:$0xff]
    %v1054 = vld [vmem:[#allocation13 + $0x180] sm:$0xff]
    %v1055 = vld [vmem:[#allocation13 + $0x188] sm:$0xff]
    %v1056 = vld [vmem:[#allocation13 + $0x190] sm:$0xff]
    %v1057 = vld [vmem:[#allocation13 + $0x198] sm:$0xff]
    %v1058 = vld [vmem:[#allocation13 + $0x1a0] sm:$0xff]
    %v1059 = vld [vmem:[#allocation13 + $0x1a8] sm:$0xff]
    %v1060 = vld [vmem:[#allocation13 + $0x1b0] sm:$0xff]
    %v1061 = vld [vmem:[#allocation13 + $0x1b8] sm:$0xff]
    %v1062 = vld [vmem:[#allocation13 + $0x1c0] sm:$0xff]
    %v1063 = vld [vmem:[#allocation13 + $0x1c8] sm:$0xff]
    %v1064 = vld [vmem:[#allocation13 + $0x1d0] sm:$0xff]
    %v1065 = vld [vmem:[#allocation13 + $0x1d8] sm:$0xff]
    %v1066 = vld [vmem:[#allocation13 + $0x1e0] sm:$0xff]
    %v1067 = vld [vmem:[#allocation13 + $0x1e8] sm:$0xff]
    %v1068 = vld [vmem:[#allocation13 + $0x1f0] sm:$0xff]
    %v1069 = vld [vmem:[#allocation13 + $0x1f8] sm:$0xff]
    %v1070 = vld [vmem:[%s2] sm:$0xff]
    %v1071 = vld [vmem:[#allocation3] sm:$0xff]
    %v1072 = vld [vmem:[#allocation3 + $0x8] sm:$0xff]
    %v1073 = vld [vmem:[#allocation3 + $0x10] sm:$0xff]
    %v1074 = vld [vmem:[#allocation3 + $0x18] sm:$0xff]
    %1075 = vmatprep.subr.mxu0 %v943
    %1076 = vmatpush1.msra.mxu0 %v942
    %1077 = vmatprep.subr.mxu0 %v947
    %1078 = vmatpush1.msra.mxu0 %v946
    %1079 = vmatprep.subr.mxu0 %v951
    %1080 = vmatpush1.msra.mxu0 %v950
    %1081 = vmatprep.subr.mxu0 %v955
    %1082 = vmatpush1.msra.mxu0 %v954
    %1083 = vmatprep.subr.mxu0 %v959
    %1084 = vmatpush1.msra.mxu0 %v958
    %1085 = vmatprep.subr.mxu0 %v963
    %1086 = vmatpush1.msra.mxu0 %v962
    %1087 = vmatprep.subr.mxu0 %v967
    %1088 = vmatpush1.msra.mxu0 %v966
    %1089 = vmatprep.subr.mxu0 %v971
    %1090 = vmatpush1.msra.mxu0 %v970
    %1091 = vmatprep.subr.mxu0 %v975
    %1092 = vmatpush1.msra.mxu0 %v974
    %1093 = vmatprep.subr.mxu0 %v979
    %1094 = vmatpush1.msra.mxu0 %v978
    %1095 = vmatprep.subr.mxu0 %v983
    %1096 = vmatpush1.msra.mxu0 %v982
    %1097 = vmatprep.subr.mxu0 %v987
    %1098 = vmatpush1.msra.mxu0 %v986
    %1099 = vmatprep.subr.mxu0 %v991
    %1100 = vmatpush1.msra.mxu0 %v990
    %1101 = vmatprep.subr.mxu0 %v995
    %1102 = vmatpush1.msra.mxu0 %v994
    %1103 = vmatprep.subr.mxu0 %v999
    %1104 = vmatpush1.msra.mxu0 %v998
    %1105 = vmatprep.subr.mxu0 %v1003
    %1106 = vmatpush1.msra.mxu0 %v1002
    %1107 = vmatprep.subr.mxu0 0.0
    %1108 = vmatpush1.msra.mxu0 0.0
    %1109 = vmatprep.subr.mxu0 0.0
    %1110 = vmatpush1.msra.mxu0 0.0
    %1111 = vmatprep.subr.mxu0 0.0
    %1112 = vmatpush1.msra.mxu0 0.0
    %1113 = vmatprep.subr.mxu0 0.0
    %1114 = vmatpush1.msra.mxu0 0.0
    %1115 = vmatprep.subr.mxu0 0.0
    %1116 = vmatpush1.msra.mxu0 0.0
    %1117 = vmatprep.subr.mxu0 0.0
    %1118 = vmatpush1.msra.mxu0 0.0
    %1119 = vmatprep.subr.mxu0 0.0
    %1120 = vmatpush1.msra.mxu0 0.0
    %1121 = vmatprep.subr.mxu0 0.0
    %1122 = vmatpush1.msra.mxu0 0.0
    %1123 = vmatprep.subr.mxu0 0.0
    %1124 = vmatpush1.msra.mxu0 0.0
    %1125 = vmatprep.subr.mxu0 0.0
    %1126 = vmatpush1.msra.mxu0 0.0
    %1127 = vmatprep.subr.mxu0 0.0
    %1128 = vmatpush1.msra.mxu0 0.0
    %1129 = vmatprep.subr.mxu0 0.0
    %1130 = vmatpush1.msra.mxu0 0.0
    %1131 = vmatprep.subr.mxu0 0.0
    %1132 = vmatpush1.msra.mxu0 0.0
    %1133 = vmatprep.subr.mxu0 0.0
    %1134 = vmatpush1.msra.mxu0 0.0
    %1135 = vmatprep.subr.mxu0 0.0
    %1136 = vmatpush1.msra.mxu0 0.0
    %1137 = vmatprep.subr.mxu0 0.0
    %1138 = vmatpush1.msra.mxu0 0.0
    %1139 = vmatprep.mubr.f32.mxu0 0.0
    %1140 = vmatmul.mubr.f32.gmra.mrb[0].mxu0 0.0
    %v1141 = vpop.f32.mrb[0].mxu0
    %v1142 = vadd.f32 0.0, %v1141
    %v1143 = vpop.f32.mrb[0].mxu0
    %v1144 = vadd.f32 0.0, %v1143
    %1145 = vdwg.mxu0
    %1146 = vmatprep.subr.mxu0 %v945
    %1147 = vmatpush1.msra.mxu0 %v944
    %1148 = vmatprep.subr.mxu0 %v949
    %1149 = vmatpush1.msra.mxu0 %v948
    %1150 = vmatprep.subr.mxu0 %v953
    %1151 = vmatpush1.msra.mxu0 %v952
    %1152 = vmatprep.subr.mxu0 %v957
    %1153 = vmatpush1.msra.mxu0 %v956
    %1154 = vmatprep.subr.mxu0 %v961
    %1155 = vmatpush1.msra.mxu0 %v960
    %1156 = vmatprep.subr.mxu0 %v965
    %1157 = vmatpush1.msra.mxu0 %v964
    %1158 = vmatprep.subr.mxu0 %v969
    %1159 = vmatpush1.msra.mxu0 %v968
    %1160 = vmatprep.subr.mxu0 %v973
    %1161 = vmatpush1.msra.mxu0 %v972
    %1162 = vmatprep.subr.mxu0 %v977
    %1163 = vmatpush1.msra.mxu0 %v976
    %1164 = vmatprep.subr.mxu0 %v981
    %1165 = vmatpush1.msra.mxu0 %v980
    %1166 = vmatprep.subr.mxu0 %v985
    %1167 = vmatpush1.msra.mxu0 %v984
    %1168 = vmatprep.subr.mxu0 %v989
    %1169 = vmatpush1.msra.mxu0 %v988
    %1170 = vmatprep.subr.mxu0 %v993
    %1171 = vmatpush1.msra.mxu0 %v992
    %1172 = vmatprep.subr.mxu0 %v997
    %1173 = vmatpush1.msra.mxu0 %v996
    %1174 = vmatprep.subr.mxu0 %v1001
    %1175 = vmatpush1.msra.mxu0 %v1000
    %1176 = vmatprep.subr.mxu0 %v1005
    %1177 = vmatpush1.msra.mxu0 %v1004
    %1178 = vmatprep.subr.mxu0 0.0
    %1179 = vmatpush1.msra.mxu0 0.0
    %1180 = vmatprep.subr.mxu0 0.0
    %1181 = vmatpush1.msra.mxu0 0.0
    %1182 = vmatprep.subr.mxu0 0.0
    %1183 = vmatpush1.msra.mxu0 0.0
    %1184 = vmatprep.subr.mxu0 0.0
    %1185 = vmatpush1.msra.mxu0 0.0
    %1186 = vmatprep.subr.mxu0 0.0
    %1187 = vmatpush1.msra.mxu0 0.0
    %1188 = vmatprep.subr.mxu0 0.0
    %1189 = vmatpush1.msra.mxu0 0.0
    %1190 = vmatprep.subr.mxu0 0.0
    %1191 = vmatpush1.msra.mxu0 0.0
    %1192 = vmatprep.subr.mxu0 0.0
    %1193 = vmatpush1.msra.mxu0 0.0
    %1194 = vmatprep.subr.mxu0 0.0
    %1195 = vmatpush1.msra.mxu0 0.0
    %1196 = vmatprep.subr.mxu0 0.0
    %1197 = vmatpush1.msra.mxu0 0.0
    %1198 = vmatprep.subr.mxu0 0.0
    %1199 = vmatpush1.msra.mxu0 0.0
    %1200 = vmatprep.subr.mxu0 0.0
    %1201 = vmatpush1.msra.mxu0 0.0
    %1202 = vmatprep.subr.mxu0 0.0
    %1203 = vmatpush1.msra.mxu0 0.0
    %1204 = vmatprep.subr.mxu0 0.0
    %1205 = vmatpush1.msra.mxu0 0.0
    %1206 = vmatprep.subr.mxu0 0.0
    %1207 = vmatpush1.msra.mxu0 0.0
    %1208 = vmatprep.subr.mxu0 0.0
    %1209 = vmatpush1.msra.mxu0 0.0
    %1210 = vmatprep.mubr.f32.mxu0 0.0
    %1211 = vmatmul.mubr.f32.gmra.mrb[0].mxu0 0.0
    %v1212 = vpop.f32.mrb[0].mxu0
    %v1213 = vadd.f32 0.0, %v1212
    %v1214 = vpop.f32.mrb[0].mxu0
    %v1215 = vadd.f32 0.0, %v1214
    %1216 = vdwg.mxu0
    %v1217 = vadd.f32 %v1071, %v1142
    %v1218 = vadd.f32 %v1072, %v1144
    %v1219 = vadd.f32 %v1073, %v1213
    %v1220 = vadd.f32 %v1074, %v1215
    %v1221 = vsub.f32 0.0, %v1217
    %v1222 = vmul.f32 %v1221, 1.442695
    %v1223 = vpow.pop %v1222
    %v1224 = vadd.f32 %v1223, 1.0
    %v1225 = vrcp.pop %v1224
    %v1226 = vmul.f32 1.0, %v1225
    %v1227 = vsub.f32 0.0, %v1218
    %v1228 = vmul.f32 %v1227, 1.442695
    %v1229 = vpow.pop %v1228
    %v1230 = vadd.f32 %v1229, 1.0
    %v1231 = vrcp.pop %v1230
    %v1232 = vmul.f32 1.0, %v1231
    %v1233 = vtanh.pop %v1219
    %v1234 = vsub.f32 0.0, %v1220
    %v1235 = vmul.f32 %v1234, 1.442695
    %v1236 = vpow.pop %v1235
    %v1237 = vadd.f32 %v1236, 1.0
    %v1238 = vrcp.pop %v1237
    %v1239 = vmul.f32 1.0, %v1238
    %v1240 = vmul.f32 %v1232, 0.0
    %v1241 = vmul.f32 %v1226, %v1233
    %v1242 = vadd.f32 %v1240, %v1241
    %v1243 = vtanh.pop %v1242
    %v1244 = vmul.f32 %v1239, %v1243
    %vm1245 = vcmp.gt.s32.totalorder %v1070, 0
    %v1246 = vsel %vm1245, 1, 0
    %1247 = vset.pattern.permute.xlu0 0
    %1248 = vperm.xlu0 %1247, %v1246
    %v1249 = vpop.permute.xlu0 %1248
    %vm1250 = vcmp.eq.s32.totalorder %v1249, 1
    %v1251 = vsel %vm1250, %v1244, 0.0
    %v1252 = vsel %vm1250, %v1242, 0.0
    %v1253 = vmax.f32 %v1244, -3.4028235e+38
    %v1254 = vsel %vm1250, %v1253, -3.4028235e+38
    %s1255 = scalar_lea.vmem [#allocation4], 352
    %v1256 = vld [vmem:[%s1255] sm:$0xff]
    %v1257 = vld [vmem:[%s1255 + $0x8] sm:$0xff]
    %v1258 = vld [vmem:[%s1255 + $0x10] sm:$0xff]
    %v1259 = vld [vmem:[%s1255 + $0x18] sm:$0xff]
    %1260 = vmatprep.subr.mxu0 %v1007
    %1261 = vmatpush1.msra.mxu0 %v1006
    %1262 = vmatprep.subr.mxu0 %v1011
    %1263 = vmatpush1.msra.mxu0 %v1010
    %1264 = vmatprep.subr.mxu0 %v1015
    %1265 = vmatpush1.msra.mxu0 %v1014
    %1266 = vmatprep.subr.mxu0 %v1019
    %1267 = vmatpush1.msra.mxu0 %v1018
    %1268 = vmatprep.subr.mxu0 %v1023
    %1269 = vmatpush1.msra.mxu0 %v1022
    %1270 = vmatprep.subr.mxu0 %v1027
    %1271 = vmatpush1.msra.mxu0 %v1026
    %1272 = vmatprep.subr.mxu0 %v1031
    %1273 = vmatpush1.msra.mxu0 %v1030
    %1274 = vmatprep.subr.mxu0 %v1035
    %1275 = vmatpush1.msra.mxu0 %v1034
    %1276 = vmatprep.subr.mxu0 %v1039
    %1277 = vmatpush1.msra.mxu0 %v1038
    %1278 = vmatprep.subr.mxu0 %v1043
    %1279 = vmatpush1.msra.mxu0 %v1042
    %1280 = vmatprep.subr.mxu0 %v1047
    %1281 = vmatpush1.msra.mxu0 %v1046
    %1282 = vmatprep.subr.mxu0 %v1051
    %1283 = vmatpush1.msra.mxu0 %v1050
    %1284 = vmatprep.subr.mxu0 %v1055
    %1285 = vmatpush1.msra.mxu0 %v1054
    %1286 = vmatprep.subr.mxu0 %v1059
    %1287 = vmatpush1.msra.mxu0 %v1058
    %1288 = vmatprep.subr.mxu0 %v1063
    %1289 = vmatpush1.msra.mxu0 %v1062
    %1290 = vmatprep.subr.mxu0 %v1067
    %1291 = vmatpush1.msra.mxu0 %v1066
    %1292 = vmatprep.subr.mxu0 0.0
    %1293 = vmatpush1.msra.mxu0 0.0
    %1294 = vmatprep.subr.mxu0 0.0
    %1295 = vmatpush1.msra.mxu0 0.0
    %1296 = vmatprep.subr.mxu0 0.0
    %1297 = vmatpush1.msra.mxu0 0.0
    %1298 = vmatprep.subr.mxu0 0.0
    %1299 = vmatpush1.msra.mxu0 0.0
    %1300 = vmatprep.subr.mxu0 0.0
    %1301 = vmatpush1.msra.mxu0 0.0
    %1302 = vmatprep.subr.mxu0 0.0
    %1303 = vmatpush1.msra.mxu0 0.0
    %1304 = vmatprep.subr.mxu0 0.0
    %1305 = vmatpush1.msra.mxu0 0.0
    %1306 = vmatprep.subr.mxu0 0.0
    %1307 = vmatpush1.msra.mxu0 0.0
    %1308 = vmatprep.subr.mxu0 0.0
    %1309 = vmatpush1.msra.mxu0 0.0
    %1310 = vmatprep.subr.mxu0 0.0
    %1311 = vmatpush1.msra.mxu0 0.0
    %1312 = vmatprep.subr.mxu0 0.0
    %1313 = vmatpush1.msra.mxu0 0.0
    %1314 = vmatprep.subr.mxu0 0.0
    %1315 = vmatpush1.msra.mxu0 0.0
    %1316 = vmatprep.subr.mxu0 0.0
    %1317 = vmatpush1.msra.mxu0 0.0
    %1318 = vmatprep.subr.mxu0 0.0
    %1319 = vmatpush1.msra.mxu0 0.0
    %1320 = vmatprep.subr.mxu0 0.0
    %1321 = vmatpush1.msra.mxu0 0.0
    %1322 = vmatprep.subr.mxu0 0.0
    %1323 = vmatpush1.msra.mxu0 0.0
    %1324 = vmatprep.mubr.f32.mxu0 0.0
    %1325 = vmatmul.mubr.f32.gmra.mrb[0].mxu0 0.0
    %v1326 = vpop.f32.mrb[0].mxu0
    %v1327 = vadd.f32 0.0, %v1326
    %v1328 = vpop.f32.mrb[0].mxu0
    %v1329 = vadd.f32 0.0, %v1328
    %1330 = vdwg.mxu0
    %1331 = vmatprep.subr.mxu0 %v1009
    %1332 = vmatpush1.msra.mxu0 %v1008
    %1333 = vmatprep.subr.mxu0 %v1013
    %1334 = vmatpush1.msra.mxu0 %v1012
    %1335 = vmatprep.subr.mxu0 %v1017
    %1336 = vmatpush1.msra.mxu0 %v1016
    %1337 = vmatprep.subr.mxu0 %v1021
    %1338 = vmatpush1.msra.mxu0 %v1020
    %1339 = vmatprep.subr.mxu0 %v1025
    %1340 = vmatpush1.msra.mxu0 %v1024
    %1341 = vmatprep.subr.mxu0 %v1029
    %1342 = vmatpush1.msra.mxu0 %v1028
    %1343 = vmatprep.subr.mxu0 %v1033
    %1344 = vmatpush1.msra.mxu0 %v1032
    %1345 = vmatprep.subr.mxu0 %v1037
    %1346 = vmatpush1.msra.mxu0 %v1036
    %1347 = vmatprep.subr.mxu0 %v1041
    %1348 = vmatpush1.msra.mxu0 %v1040
    %1349 = vmatprep.subr.mxu0 %v1045
    %1350 = vmatpush1.msra.mxu0 %v1044
    %1351 = vmatprep.subr.mxu0 %v1049
    %1352 = vmatpush1.msra.mxu0 %v1048
    %1353 = vmatprep.subr.mxu0 %v1053
    %1354 = vmatpush1.msra.mxu0 %v1052
    %1355 = vmatprep.subr.mxu0 %v1057
    %1356 = vmatpush1.msra.mxu0 %v1056
    %1357 = vmatprep.subr.mxu0 %v1061
    %1358 = vmatpush1.msra.mxu0 %v1060
    %1359 = vmatprep.subr.mxu0 %v1065
    %1360 = vmatpush1.msra.mxu0 %v1064
    %1361 = vmatprep.subr.mxu0 %v1069
    %1362 = vmatpush1.msra.mxu0 %v1068
    %1363 = vmatprep.subr.mxu0 0.0
    %1364 = vmatpush1.msra.mxu0 0.0
    %1365 = vmatprep.subr.mxu0 0.0
    %1366 = vmatpush1.msra.mxu0 0.0
    %1367 = vmatprep.subr.mxu0 0.0
    %1368 = vmatpush1.msra.mxu0 0.0
    %1369 = vmatprep.subr.mxu0 0.0
    %1370 = vmatpush1.msra.mxu0 0.0
    %1371 = vmatprep.subr.mxu0 0.0
    %1372 = vmatpush1.msra.mxu0 0.0
    %1373 = vmatprep.subr.mxu0 0.0
    %1374 = vmatpush1.msra.mxu0 0.0
    %1375 = vmatprep.subr.mxu0 0.0
    %1376 = vmatpush1.msra.mxu0 0.0
    %1377 = vmatprep.subr.mxu0 0.0
    %1378 = vmatpush1.msra.mxu0 0.0
    %1379 = vmatprep.subr.mxu0 0.0
    %1380 = vmatpush1.msra.mxu0 0.0
    %1381 = vmatprep.subr.mxu0 0.0
    %1382 = vmatpush1.msra.mxu0 0.0
    %1383 = vmatprep.subr.mxu0 0.0
    %1384 = vmatpush1.msra.mxu0 0.0
    %1385 = vmatprep.subr.mxu0 0.0
    %1386 = vmatpush1.msra.mxu0 0.0
    %1387 = vmatprep.subr.mxu0 0.0
    %1388 = vmatpush1.msra.mxu0 0.0
    %1389 = vmatprep.subr.mxu0 0.0
    %1390 = vmatpush1.msra.mxu0 0.0
    %1391 = vmatprep.subr.mxu0 0.0
    %1392 = vmatpush1.msra.mxu0 0.0
    %1393 = vmatprep.subr.mxu0 0.0
    %1394 = vmatpush1.msra.mxu0 0.0
    %1395 = vmatprep.mubr.f32.mxu0 0.0
    %1396 = vmatmul.mubr.f32.gmra.mrb[0].mxu0 0.0
    %v1397 = vpop.f32.mrb[0].mxu0
    %v1398 = vadd.f32 0.0, %v1397
    %v1399 = vpop.f32.mrb[0].mxu0
    %v1400 = vadd.f32 0.0, %v1399
    %1401 = vdwg.mxu0
    %v1402 = vadd.f32 %v1256, %v1327
    %v1403 = vadd.f32 %v1257, %v1329
    %v1404 = vadd.f32 %v1258, %v1398
    %v1405 = vadd.f32 %v1259, %v1400
    %v1406 = vsub.f32 0.0, %v1402
    %v1407 = vmul.f32 %v1406, 1.442695
    %v1408 = vpow.pop %v1407
    %v1409 = vadd.f32 %v1408, 1.0
    %v1410 = vrcp.pop %v1409
    %v1411 = vmul.f32 1.0, %v1410
    %v1412 = vsub.f32 0.0, %v1403
    %v1413 = vmul.f32 %v1412, 1.442695
    %v1414 = vpow.pop %v1413
    %v1415 = vadd.f32 %v1414, 1.0
    %v1416 = vrcp.pop %v1415
    %v1417 = vmul.f32 1.0, %v1416
    %v1418 = vtanh.pop %v1404
    %v1419 = vsub.f32 0.0, %v1405
    %v1420 = vmul.f32 %v1419, 1.442695
    %v1421 = vpow.pop %v1420
    %v1422 = vadd.f32 %v1421, 1.0
    %v1423 = vrcp.pop %v1422
    %v1424 = vmul.f32 1.0, %v1423
    %v1425 = vmul.f32 %v1417, 0.0
    %v1426 = vmul.f32 %v1411, %v1418
    %v1427 = vadd.f32 %v1425, %v1426
    %v1428 = vtanh.pop %v1427
    %v1429 = vmul.f32 %v1424, %v1428
    %vm1430 = vcmp.gt.s32.totalorder %v1070, 11
    %v1431 = vsel %vm1430, 1, 0
    %1432 = vset.pattern.permute.xlu0 0
    %1433 = vperm.xlu0 %1432, %v1431
    %v1434 = vpop.permute.xlu0 %1433
    %vm1435 = vcmp.eq.s32.totalorder %v1434, 1
    %v1436 = vsel %vm1435, %v1429, 0.0
    %v1437 = vsel %vm1435, %v1427, 0.0
    %v1438 = vmax.f32 %v1429, -3.4028235e+38
    %v1439 = vsel %vm1435, %v1438, -3.4028235e+38
    %s1440 = scalar_lea.vmem [#allocation3], 32
    %v1441 = vld [vmem:[%s1440] sm:$0xff]
    %v1442 = vld [vmem:[%s1440 + $0x8] sm:$0xff]
    %v1443 = vld [vmem:[%s1440 + $0x10] sm:$0xff]
    %v1444 = vld [vmem:[%s1440 + $0x18] sm:$0xff]
    %1445 = vmatprep.subr.mxu0 %v943
    %1446 = vmatpush1.msra.mxu0 %v942
    %1447 = vmatprep.subr.mxu0 %v947
    %1448 = vmatpush1.msra.mxu0 %v946
    %1449 = vmatprep.subr.mxu0 %v951
    %1450 = vmatpush1.msra.mxu0 %v950
    %1451 = vmatprep.subr.mxu0 %v955
    %1452 = vmatpush1.msra.mxu0 %v954
    %1453 = vmatprep.subr.mxu0 %v959
    %1454 = vmatpush1.msra.mxu0 %v958
    %1455 = vmatprep.subr.mxu0 %v963
    %1456 = vmatpush1.msra.mxu0 %v962
    %1457 = vmatprep.subr.mxu0 %v967
    %1458 = vmatpush1.msra.mxu0 %v966
    %1459 = vmatprep.subr.mxu0 %v971
    %1460 = vmatpush1.msra.mxu0 %v970
    %1461 = vmatprep.subr.mxu0 %v975
    %1462 = vmatpush1.msra.mxu0 %v974
    %1463 = vmatprep.subr.mxu0 %v979
    %1464 = vmatpush1.msra.mxu0 %v978
    %1465 = vmatprep.subr.mxu0 %v983
    %1466 = vmatpush1.msra.mxu0 %v982
    %1467 = vmatprep.subr.mxu0 %v987
    %1468 = vmatpush1.msra.mxu0 %v986
    %1469 = vmatprep.subr.mxu0 %v991
    %1470 = vmatpush1.msra.mxu0 %v990
    %1471 = vmatprep.subr.mxu0 %v995
    %1472 = vmatpush1.msra.mxu0 %v994
    %1473 = vmatprep.subr.mxu0 %v999
    %1474 = vmatpush1.msra.mxu0 %v998
    %1475 = vmatprep.subr.mxu0 %v1003
    %1476 = vmatpush1.msra.mxu0 %v1002
    %1477 = vmatprep.subr.mxu0 0.0
    %1478 = vmatpush1.msra.mxu0 0.0
    %1479 = vmatprep.subr.mxu0 0.0
    %1480 = vmatpush1.msra.mxu0 0.0
    %1481 = vmatprep.subr.mxu0 0.0
    %1482 = vmatpush1.msra.mxu0 0.0
    %1483 = vmatprep.subr.mxu0 0.0
    %1484 = vmatpush1.msra.mxu0 0.0
    %1485 = vmatprep.subr.mxu0 0.0
    %1486 = vmatpush1.msra.mxu0 0.0
    %1487 = vmatprep.subr.mxu0 0.0
    %1488 = vmatpush1.msra.mxu0 0.0
    %1489 = vmatprep.subr.mxu0 0.0
    %1490 = vmatpush1.msra.mxu0 0.0
    %1491 = vmatprep.subr.mxu0 0.0
    %1492 = vmatpush1.msra.mxu0 0.0
    %1493 = vmatprep.subr.mxu0 0.0
    %1494 = vmatpush1.msra.mxu0 0.0
    %1495 = vmatprep.subr.mxu0 0.0
    %1496 = vmatpush1.msra.mxu0 0.0
    %1497 = vmatprep.subr.mxu0 0.0
    %1498 = vmatpush1.msra.mxu0 0.0
    %1499 = vmatprep.subr.mxu0 0.0
    %1500 = vmatpush1.msra.mxu0 0.0
    %1501 = vmatprep.subr.mxu0 0.0
    %1502 = vmatpush1.msra.mxu0 0.0
    %1503 = vmatprep.subr.mxu0 0.0
    %1504 = vmatpush1.msra.mxu0 0.0
    %1505 = vmatprep.subr.mxu0 0.0
    %1506 = vmatpush1.msra.mxu0 0.0
    %1507 = vmatprep.subr.mxu0 0.0
    %1508 = vmatpush1.msra.mxu0 0.0
    %1509 = vmatprep.mubr.f32.mxu0 0.0
    %1510 = vmatmul.mubr.f32.gmra.mrb[0].mxu0 %v1251
    %v1511 = vpop.f32.mrb[0].mxu0
    %v1512 = vadd.f32 0.0, %v1511
    %v1513 = vpop.f32.mrb[0].mxu0
    %v1514 = vadd.f32 0.0, %v1513
    %1515 = vdwg.mxu0
    %1516 = vmatprep.subr.mxu0 %v945
    %1517 = vmatpush1.msra.mxu0 %v944
    %1518 = vmatprep.subr.mxu0 %v949
    %1519 = vmatpush1.msra.mxu0 %v948
    %1520 = vmatprep.subr.mxu0 %v953
    %1521 = vmatpush1.msra.mxu0 %v952
    %1522 = vmatprep.subr.mxu0 %v957
    %1523 = vmatpush1.msra.mxu0 %v956
    %1524 = vmatprep.subr.mxu0 %v961
    %1525 = vmatpush1.msra.mxu0 %v960
    %1526 = vmatprep.subr.mxu0 %v965
    %1527 = vmatpush1.msra.mxu0 %v964
    %1528 = vmatprep.subr.mxu0 %v969
    %1529 = vmatpush1.msra.mxu0 %v968
    %1530 = vmatprep.subr.mxu0 %v973
    %1531 = vmatpush1.msra.mxu0 %v972
    %1532 = vmatprep.subr.mxu0 %v977
    %1533 = vmatpush1.msra.mxu0 %v976
    %1534 = vmatprep.subr.mxu0 %v981
    %1535 = vmatpush1.msra.mxu0 %v980
    %1536 = vmatprep.subr.mxu0 %v985
    %1537 = vmatpush1.msra.mxu0 %v984
    %1538 = vmatprep.subr.mxu0 %v989
    %1539 = vmatpush1.msra.mxu0 %v988
    %1540 = vmatprep.subr.mxu0 %v993
    %1541 = vmatpush1.msra.mxu0 %v992
    %1542 = vmatprep.subr.mxu0 %v997
    %1543 = vmatpush1.msra.mxu0 %v996
    %1544 = vmatprep.subr.mxu0 %v1001
    %1545 = vmatpush1.msra.mxu0 %v1000
    %1546 = vmatprep.subr.mxu0 %v1005
    %1547 = vmatpush1.msra.mxu0 %v1004
    %1548 = vmatprep.subr.mxu0 0.0
    %1549 = vmatpush1.msra.mxu0 0.0
    %1550 = vmatprep.subr.mxu0 0.0
    %1551 = vmatpush1.msra.mxu0 0.0
    %1552 = vmatprep.subr.mxu0 0.0
    %1553 = vmatpush1.msra.mxu0 0.0
    %1554 = vmatprep.subr.mxu0 0.0
    %1555 = vmatpush1.msra.mxu0 0.0
    %1556 = vmatprep.subr.mxu0 0.0
    %1557 = vmatpush1.msra.mxu0 0.0
    %1558 = vmatprep.subr.mxu0 0.0
    %1559 = vmatpush1.msra.mxu0 0.0
    %1560 = vmatprep.subr.mxu0 0.0
    %1561 = vmatpush1.msra.mxu0 0.0
    %1562 = vmatprep.subr.mxu0 0.0
    %1563 = vmatpush1.msra.mxu0 0.0
    %1564 = vmatprep.subr.mxu0 0.0
    %1565 = vmatpush1.msra.mxu0 0.0
    %1566 = vmatprep.subr.mxu0 0.0
    %1567 = vmatpush1.msra.mxu0 0.0
    %1568 = vmatprep.subr.mxu0 0.0
    %1569 = vmatpush1.msra.mxu0 0.0
    %1570 = vmatprep.subr.mxu0 0.0
    %1571 = vmatpush1.msra.mxu0 0.0
    %1572 = vmatprep.subr.mxu0 0.0
    %1573 = vmatpush1.msra.mxu0 0.0
    %1574 = vmatprep.subr.mxu0 0.0
    %1575 = vmatpush1.msra.mxu0 0.0
    %1576 = vmatprep.subr.mxu0 0.0
    %1577 = vmatpush1.msra.mxu0 0.0
    %1578 = vmatprep.subr.mxu0 0.0
    %1579 = vmatpush1.msra.mxu0 0.0
    %1580 = vmatprep.mubr.f32.mxu0 0.0
    %1581 = vmatmul.mubr.f32.gmra.mrb[0].mxu0 %v1251
    %v1582 = vpop.f32.mrb[0].mxu0
    %v1583 = vadd.f32 0.0, %v1582
    %v1584 = vpop.f32.mrb[0].mxu0
    %v1585 = vadd.f32 0.0, %v1584
    %1586 = vdwg.mxu0
    %v1587 = vadd.f32 %v1441, %v1512
    %v1588 = vadd.f32 %v1442, %v1514
    %v1589 = vadd.f32 %v1443, %v1583
    %v1590 = vadd.f32 %v1444, %v1585
    %v1591 = vsub.f32 0.0, %v1587
    %v1592 = vmul.f32 %v1591, 1.442695
    %v1593 = vpow.pop %v1592
    %v1594 = vadd.f32 %v1593, 1.0
    %v1595 = vrcp.pop %v1594
    %v1596 = vmul.f32 1.0, %v1595
    %v1597 = vsub.f32 0.0, %v1588
    %v1598 = vmul.f32 %v1597, 1.442695
    %v1599 = vpow.pop %v1598
    %v1600 = vadd.f32 %v1599, 1.0
    %v1601 = vrcp.pop %v1600
    %v1602 = vmul.f32 1.0, %v1601
    %v1603 = vtanh.pop %v1589
    %v1604 = vsub.f32 0.0, %v1590
    %v1605 = vmul.f32 %v1604, 1.442695
    %v1606 = vpow.pop %v1605
    %v1607 = vadd.f32 %v1606, 1.0
    %v1608 = vrcp.pop %v1607
    %v1609 = vmul.f32 1.0, %v1608
    %v1610 = vmul.f32 %v1602, %v1252
    %v1611 = vmul.f32 %v1596, %v1603
    %v1612 = vadd.f32 %v1610, %v1611
    %v1613 = vtanh.pop %v1612
    %v1614 = vmul.f32 %v1609, %v1613
    %vm1615 = vcmp.gt.s32.totalorder %v1070, 1
    %v1616 = vsel %vm1615, 1, 0
    %1617 = vset.pattern.permute.xlu0 0
    %1618 = vperm.xlu0 %1617, %v1616
    %v1619 = vpop.permute.xlu0 %1618
    %vm1620 = vcmp.eq.s32.totalorder %v1619, 1
    %v1621 = vsel %vm1620, %v1614, %v1251
    %v1622 = vsel %vm1620, %v1612, %v1252
    %v1623 = vmax.f32 %v1254, %v1614
    %v1624 = vsel %vm1620, %v1623, %v1254
    %s1625 = scalar_lea.vmem [#allocation4], 320
    %v1626 = vld [vmem:[%s1625] sm:$0xff]
    %v1627 = vld [vmem:[%s1625 + $0x8] sm:$0xff]
    %v1628 = vld [vmem:[%s1625 + $0x10] sm:$0xff]
    %v1629 = vld [vmem:[%s1625 + $0x18] sm:$0xff]
    %1630 = vmatprep.subr.mxu0 %v1007
    %1631 = vmatpush1.msra.mxu0 %v1006
    %1632 = vmatprep.subr.mxu0 %v1011
    %1633 = vmatpush1.msra.mxu0 %v1010
    %1634 = vmatprep.subr.mxu0 %v1015
    %1635 = vmatpush1.msra.mxu0 %v1014
    %1636 = vmatprep.subr.mxu0 %v1019
    %1637 = vmatpush1.msra.mxu0 %v1018
    %1638 = vmatprep.subr.mxu0 %v1023
    %1639 = vmatpush1.msra.mxu0 %v1022
    %1640 = vmatprep.subr.mxu0 %v1027
    %1641 = vmatpush1.msra.mxu0 %v1026
    %1642 = vmatprep.subr.mxu0 %v1031
    %1643 = vmatpush1.msra.mxu0 %v1030
    %1644 = vmatprep.subr.mxu0 %v1035
    %1645 = vmatpush1.msra.mxu0 %v1034
    %1646 = vmatprep.subr.mxu0 %v1039
    %1647 = vmatpush1.msra.mxu0 %v1038
    %1648 = vmatprep.subr.mxu0 %v1043
    %1649 = vmatpush1.msra.mxu0 %v1042
    %1650 = vmatprep.subr.mxu0 %v1047
    %1651 = vmatpush1.msra.mxu0 %v1046
    %1652 = vmatprep.subr.mxu0 %v1051
    %1653 = vmatpush1.msra.mxu0 %v1050
    %1654 = vmatprep.subr.mxu0 %v1055
    %1655 = vmatpush1.msra.mxu0 %v1054
    %1656 = vmatprep.subr.mxu0 %v1059
    %1657 = vmatpush1.msra.mxu0 %v1058
    %1658 = vmatprep.subr.mxu0 %v1063
    %1659 = vmatpush1.msra.mxu0 %v1062
    %1660 = vmatprep.subr.mxu0 %v1067
    %1661 = vmatpush1.msra.mxu0 %v1066
    %1662 = vmatprep.subr.mxu0 0.0
    %1663 = vmatpush1.msra.mxu0 0.0
    %1664 = vmatprep.subr.mxu0 0.0
    %1665 = vmatpush1.msra.mxu0 0.0
    %1666 = vmatprep.subr.mxu0 0.0
    %1667 = vmatpush1.msra.mxu0 0.0
    %1668 = vmatprep.subr.mxu0 0.0
    %1669 = vmatpush1.msra.mxu0 0.0
    %1670 = vmatprep.subr.mxu0 0.0
    %1671 = vmatpush1.msra.mxu0 0.0
    %1672 = vmatprep.subr.mxu0 0.0
    %1673 = vmatpush1.msra.mxu0 0.0
    %1674 = vmatprep.subr.mxu0 0.0
    %1675 = vmatpush1.msra.mxu0 0.0
    %1676 = vmatprep.subr.mxu0 0.0
    %1677 = vmatpush1.msra.mxu0 0.0
    %1678 = vmatprep.subr.mxu0 0.0
    %1679 = vmatpush1.msra.mxu0 0.0
    %1680 = vmatprep.subr.mxu0 0.0
    %1681 = vmatpush1.msra.mxu0 0.0
    %1682 = vmatprep.subr.mxu0 0.0
    %1683 = vmatpush1.msra.mxu0 0.0
    %1684 = vmatprep.subr.mxu0 0.0
    %1685 = vmatpush1.msra.mxu0 0.0
    %1686 = vmatprep.subr.mxu0 0.0
    %1687 = vmatpush1.msra.mxu0 0.0
    %1688 = vmatprep.subr.mxu0 0.0
    %1689 = vmatpush1.msra.mxu0 0.0
    %1690 = vmatprep.subr.mxu0 0.0
    %1691 = vmatpush1.msra.mxu0 0.0
    %1692 = vmatprep.subr.mxu0 0.0
    %1693 = vmatpush1.msra.mxu0 0.0
    %1694 = vmatprep.mubr.f32.mxu0 0.0
    %1695 = vmatmul.mubr.f32.gmra.mrb[0].mxu0 %v1436
    %v1696 = vpop.f32.mrb[0].mxu0
    %v1697 = vadd.f32 0.0, %v1696
    %v1698 = vpop.f32.mrb[0].mxu0
    %v1699 = vadd.f32 0.0, %v1698
    %1700 = vdwg.mxu0
    %1701 = vmatprep.subr.mxu0 %v1009
    %1702 = vmatpush1.msra.mxu0 %v1008
    %1703 = vmatprep.subr.mxu0 %v1013
    %1704 = vmatpush1.msra.mxu0 %v1012
    %1705 = vmatprep.subr.mxu0 %v1017
    %1706 = vmatpush1.msra.mxu0 %v1016
    %1707 = vmatprep.subr.mxu0 %v1021
    %1708 = vmatpush1.msra.mxu0 %v1020
    %1709 = vmatprep.subr.mxu0 %v1025
    %1710 = vmatpush1.msra.mxu0 %v1024
    %1711 = vmatprep.subr.mxu0 %v1029
    %1712 = vmatpush1.msra.mxu0 %v1028
    %1713 = vmatprep.subr.mxu0 %v1033
    %1714 = vmatpush1.msra.mxu0 %v1032
    %1715 = vmatprep.subr.mxu0 %v1037
    %1716 = vmatpush1.msra.mxu0 %v1036
    %1717 = vmatprep.subr.mxu0 %v1041
    %1718 = vmatpush1.msra.mxu0 %v1040
    %1719 = vmatprep.subr.mxu0 %v1045
    %1720 = vmatpush1.msra.mxu0 %v1044
    %1721 = vmatprep.subr.mxu0 %v1049
    %1722 = vmatpush1.msra.mxu0 %v1048
    %1723 = vmatprep.subr.mxu0 %v1053
    %1724 = vmatpush1.msra.mxu0 %v1052
    %1725 = vmatprep.subr.mxu0 %v1057
    %1726 = vmatpush1.msra.mxu0 %v1056
    %1727 = vmatprep.subr.mxu0 %v1061
    %1728 = vmatpush1.msra.mxu0 %v1060
    %1729 = vmatprep.subr.mxu0 %v1065
    %1730 = vmatpush1.msra.mxu0 %v1064
    %1731 = vmatprep.subr.mxu0 %v1069
    %1732 = vmatpush1.msra.mxu0 %v1068
    %1733 = vmatprep.subr.mxu0 0.0
    %1734 = vmatpush1.msra.mxu0 0.0
    %1735 = vmatprep.subr.mxu0 0.0
    %1736 = vmatpush1.msra.mxu0 0.0
    %1737 = vmatprep.subr.mxu0 0.0
    %1738 = vmatpush1.msra.mxu0 0.0
    %1739 = vmatprep.subr.mxu0 0.0
    %1740 = vmatpush1.msra.mxu0 0.0
    %1741 = vmatprep.subr.mxu0 0.0
    %1742 = vmatpush1.msra.mxu0 0.0
    %1743 = vmatprep.subr.mxu0 0.0
    %1744 = vmatpush1.msra.mxu0 0.0
    %1745 = vmatprep.subr.mxu0 0.0
    %1746 = vmatpush1.msra.mxu0 0.0
    %1747 = vmatprep.subr.mxu0 0.0
    %1748 = vmatpush1.msra.mxu0 0.0
    %1749 = vmatprep.subr.mxu0 0.0
    %1750 = vmatpush1.msra.mxu0 0.0
    %1751 = vmatprep.subr.mxu0 0.0
    %1752 = vmatpush1.msra.mxu0 0.0
    %1753 = vmatprep.subr.mxu0 0.0
    %1754 = vmatpush1.msra.mxu0 0.0
    %1755 = vmatprep.subr.mxu0 0.0
    %1756 = vmatpush1.msra.mxu0 0.0
    %1757 = vmatprep.subr.mxu0 0.0
    %1758 = vmatpush1.msra.mxu0 0.0
    %1759 = vmatprep.subr.mxu0 0.0
    %1760 = vmatpush1.msra.mxu0 0.0
    %1761 = vmatprep.subr.mxu0 0.0
    %1762 = vmatpush1.msra.mxu0 0.0
    %1763 = vmatprep.subr.mxu0 0.0
    %1764 = vmatpush1.msra.mxu0 0.0
    %1765 = vmatprep.mubr.f32.mxu0 0.0
    %1766 = vmatmul.mubr.f32.gmra.mrb[0].mxu0 %v1436
    %v1767 = vpop.f32.mrb[0].mxu0
    %v1768 = vadd.f32 0.0, %v1767
    %v1769 = vpop.f32.mrb[0].mxu0
    %v1770 = vadd.f32 0.0, %v1769
    %1771 = vdwg.mxu0
    %v1772 = vadd.f32 %v1626, %v1697
    %v1773 = vadd.f32 %v1627, %v1699
    %v1774 = vadd.f32 %v1628, %v1768
    %v1775 = vadd.f32 %v1629, %v1770
    %v1776 = vsub.f32 0.0, %v1772
    %v1777 = vmul.f32 %v1776, 1.442695
    %v1778 = vpow.pop %v1777
    %v1779 = vadd.f32 %v1778, 1.0
    %v1780 = vrcp.pop %v1779
    %v1781 = vmul.f32 1.0, %v1780
    %v1782 = vsub.f32 0.0, %v1773
    %v1783 = vmul.f32 %v1782, 1.442695
    %v1784 = vpow.pop %v1783
    %v1785 = vadd.f32 %v1784, 1.0
    %v1786 = vrcp.pop %v1785
    %v1787 = vmul.f32 1.0, %v1786
    %v1788 = vtanh.pop %v1774
    %v1789 = vsub.f32 0.0, %v1775
    %v1790 = vmul.f32 %v1789, 1.442695
    %v1791 = vpow.pop %v1790
    %v1792 = vadd.f32 %v1791, 1.0
    %v1793 = vrcp.pop %v1792
    %v1794 = vmul.f32 1.0, %v1793
    %v1795 = vmul.f32 %v1787, %v1437
    %v1796 = vmul.f32 %v1781, %v1788
    %v1797 = vadd.f32 %v1795, %v1796
    %v1798 = vtanh.pop %v1797
    %v1799 = vmul.f32 %v1794, %v1798
    %vm1800 = vcmp.gt.s32.totalorder %v1070, 10
    %v1801 = vsel %vm1800, 1, 0
    %1802 = vset.pattern.permute.xlu0 0
    %1803 = vperm.xlu0 %1802, %v1801
    %v1804 = vpop.permute.xlu0 %1803
    %vm1805 = vcmp.eq.s32.totalorder %v1804, 1
    %v1806 = vsel %vm1805, %v1799, %v1436
    %v1807 = vsel %vm1805, %v1797, %v1437
    %v1808 = vmax.f32 %v1439, %v1799
    %v1809 = vsel %vm1805, %v1808, %v1439
    %s1810 = scalar_lea.vmem [#allocation3], 64
    %v1811 = vld [vmem:[%s1810] sm:$0xff]
    %v1812 = vld [vmem:[%s1810 + $0x8] sm:$0xff]
    %v1813 = vld [vmem:[%s1810 + $0x10] sm:$0xff]
    %v1814 = vld [vmem:[%s1810 + $0x18] sm:$0xff]
    %1815 = vmatprep.subr.mxu0 %v943
    %1816 = vmatpush1.msra.mxu0 %v942
    %1817 = vmatprep.subr.mxu0 %v947
    %1818 = vmatpush1.msra.mxu0 %v946
    %1819 = vmatprep.subr.mxu0 %v951
    %1820 = vmatpush1.msra.mxu0 %v950
    %1821 = vmatprep.subr.mxu0 %v955
    %1822 = vmatpush1.msra.mxu0 %v954
    %1823 = vmatprep.subr.mxu0 %v959
    %1824 = vmatpush1.msra.mxu0 %v958
    %1825 = vmatprep.subr.mxu0 %v963
    %1826 = vmatpush1.msra.mxu0 %v962
    %1827 = vmatprep.subr.mxu0 %v967
    %1828 = vmatpush1.msra.mxu0 %v966
    %1829 = vmatprep.subr.mxu0 %v971
    %1830 = vmatpush1.msra.mxu0 %v970
    %1831 = vmatprep.subr.mxu0 %v975
    %1832 = vmatpush1.msra.mxu0 %v974
    %1833 = vmatprep.subr.mxu0 %v979
    %1834 = vmatpush1.msra.mxu0 %v978
    %1835 = vmatprep.subr.mxu0 %v983
    %1836 = vmatpush1.msra.mxu0 %v982
    %1837 = vmatprep.subr.mxu0 %v987
    %1838 = vmatpush1.msra.mxu0 %v986
    %1839 = vmatprep.subr.mxu0 %v991
    %1840 = vmatpush1.msra.mxu0 %v990
    %1841 = vmatprep.subr.mxu0 %v995
    %1842 = vmatpush1.msra.mxu0 %v994
    %1843 = vmatprep.subr.mxu0 %v999
    %1844 = vmatpush1.msra.mxu0 %v998
    %1845 = vmatprep.subr.mxu0 %v1003
    %1846 = vmatpush1.msra.mxu0 %v1002
    %1847 = vmatprep.subr.mxu0 0.0
    %1848 = vmatpush1.msra.mxu0 0.0
    %1849 = vmatprep.subr.mxu0 0.0
    %1850 = vmatpush1.msra.mxu0 0.0
    %1851 = vmatprep.subr.mxu0 0.0
    %1852 = vmatpush1.msra.mxu0 0.0
    %1853 = vmatprep.subr.mxu0 0.0
    %1854 = vmatpush1.msra.mxu0 0.0
    %1855 = vmatprep.subr.mxu0 0.0
    %1856 = vmatpush1.msra.mxu0 0.0
    %1857 = vmatprep.subr.mxu0 0.0
    %1858 = vmatpush1.msra.mxu0 0.0
    %1859 = vmatprep.subr.mxu0 0.0
    %1860 = vmatpush1.msra.mxu0 0.0
    %1861 = vmatprep.subr.mxu0 0.0
    %1862 = vmatpush1.msra.mxu0 0.0
    %1863 = vmatprep.subr.mxu0 0.0
    %1864 = vmatpush1.msra.mxu0 0.0
    %1865 = vmatprep.subr.mxu0 0.0
    %1866 = vmatpush1.msra.mxu0 0.0
    %1867 = vmatprep.subr.mxu0 0.0
    %1868 = vmatpush1.msra.mxu0 0.0
    %1869 = vmatprep.subr.mxu0 0.0
    %1870 = vmatpush1.msra.mxu0 0.0
    %1871 = vmatprep.subr.mxu0 0.0
    %1872 = vmatpush1.msra.mxu0 0.0
    %1873 = vmatprep.subr.mxu0 0.0
    %1874 = vmatpush1.msra.mxu0 0.0
    %1875 = vmatprep.subr.mxu0 0.0
    %1876 = vmatpush1.msra.mxu0 0.0
    %1877 = vmatprep.subr.mxu0 0.0
    %1878 = vmatpush1.msra.mxu0 0.0
    %1879 = vmatprep.mubr.f32.mxu0 0.0
    %1880 = vmatmul.mubr.f32.gmra.mrb[0].mxu0 %v1621
    %v1881 = vpop.f32.mrb[0].mxu0
    %v1882 = vadd.f32 0.0, %v1881
    %v1883 = vpop.f32.mrb[0].mxu0
    %v1884 = vadd.f32 0.0, %v1883
    %1885 = vdwg.mxu0
    %1886 = vmatprep.subr.mxu0 %v945
    %1887 = vmatpush1.msra.mxu0 %v944
    %1888 = vmatprep.subr.mxu0 %v949
    %1889 = vmatpush1.msra.mxu0 %v948
    %1890 = vmatprep.subr.mxu0 %v953
    %1891 = vmatpush1.msra.mxu0 %v952
    %1892 = vmatprep.subr.mxu0 %v957
    %1893 = vmatpush1.msra.mxu0 %v956
    %1894 = vmatprep.subr.mxu0 %v961
    %1895 = vmatpush1.msra.mxu0 %v960
    %1896 = vmatprep.subr.mxu0 %v965
    %1897 = vmatpush1.msra.mxu0 %v964
    %1898 = vmatprep.subr.mxu0 %v969
    %1899 = vmatpush1.msra.mxu0 %v968
    %1900 = vmatprep.subr.mxu0 %v973
    %1901 = vmatpush1.msra.mxu0 %v972
    %1902 = vmatprep.subr.mxu0 %v977
    %1903 = vmatpush1.msra.mxu0 %v976
    %1904 = vmatprep.subr.mxu0 %v981
    %1905 = vmatpush1.msra.mxu0 %v980
    %1906 = vmatprep.subr.mxu0 %v985
    %1907 = vmatpush1.msra.mxu0 %v984
    %1908 = vmatprep.subr.mxu0 %v989
    %1909 = vmatpush1.msra.mxu0 %v988
    %1910 = vmatprep.subr.mxu0 %v993
    %1911 = vmatpush1.msra.mxu0 %v992
    %1912 = vmatprep.subr.mxu0 %v997
    %1913 = vmatpush1.msra.mxu0 %v996
    %1914 = vmatprep.subr.mxu0 %v1001
    %1915 = vmatpush1.msra.mxu0 %v1000
    %1916 = vmatprep.subr.mxu0 %v1005
    %1917 = vmatpush1.msra.mxu0 %v1004
    %1918 = vmatprep.subr.mxu0 0.0
    %1919 = vmatpush1.msra.mxu0 0.0
    %1920 = vmatprep.subr.mxu0 0.0
    %1921 = vmatpush1.msra.mxu0 0.0
    %1922 = vmatprep.subr.mxu0 0.0
    %1923 = vmatpush1.msra.mxu0 0.0
    %1924 = vmatprep.subr.mxu0 0.0
    %1925 = vmatpush1.msra.mxu0 0.0
    %1926 = vmatprep.subr.mxu0 0.0
    %1927 = vmatpush1.msra.mxu0 0.0
    %1928 = vmatprep.subr.mxu0 0.0
    %1929 = vmatpush1.msra.mxu0 0.0
    %1930 = vmatprep.subr.mxu0 0.0
    %1931 = vmatpush1.msra.mxu0 0.0
    %1932 = vmatprep.subr.mxu0 0.0
    %1933 = vmatpush1.msra.mxu0 0.0
    %1934 = vmatprep.subr.mxu0 0.0
    %1935 = vmatpush1.msra.mxu0 0.0
    %1936 = vmatprep.subr.mxu0 0.0
    %1937 = vmatpush1.msra.mxu0 0.0
    %1938 = vmatprep.subr.mxu0 0.0
    %1939 = vmatpush1.msra.mxu0 0.0
    %1940 = vmatprep.subr.mxu0 0.0
    %1941 = vmatpush1.msra.mxu0 0.0
    %1942 = vmatprep.subr.mxu0 0.0
    %1943 = vmatpush1.msra.mxu0 0.0
    %1944 = vmatprep.subr.mxu0 0.0
    %1945 = vmatpush1.msra.mxu0 0.0
    %1946 = vmatprep.subr.mxu0 0.0
    %1947 = vmatpush1.msra.mxu0 0.0
    %1948 = vmatprep.subr.mxu0 0.0
    %1949 = vmatpush1.msra.mxu0 0.0
    %1950 = vmatprep.mubr.f32.mxu0 0.0
    %1951 = vmatmul.mubr.f32.gmra.mrb[0].mxu0 %v1621
    %v1952 = vpop.f32.mrb[0].mxu0
    %v1953 = vadd.f32 0.0, %v1952
    %v1954 = vpop.f32.mrb[0].mxu0
    %v1955 = vadd.f32 0.0, %v1954
    %1956 = vdwg.mxu0
    %v1957 = vadd.f32 %v1811, %v1882
    %v1958 = vadd.f32 %v1812, %v1884
    %v1959 = vadd.f32 %v1813, %v1953
    %v1960 = vadd.f32 %v1814, %v1955
    %v1961 = vsub.f32 0.0, %v1957
    %v1962 = vmul.f32 %v1961, 1.442695
    %v1963 = vpow.pop %v1962
    %v1964 = vadd.f32 %v1963, 1.0
    %v1965 = vrcp.pop %v1964
    %v1966 = vmul.f32 1.0, %v1965
    %v1967 = vsub.f32 0.0, %v1958
    %v1968 = vmul.f32 %v1967, 1.442695
    %v1969 = vpow.pop %v1968
    %v1970 = vadd.f32 %v1969, 1.0
    %v1971 = vrcp.pop %v1970
    %v1972 = vmul.f32 1.0, %v1971
    %v1973 = vtanh.pop %v1959
    %v1974 = vsub.f32 0.0, %v1960
    %v1975 = vmul.f32 %v1974, 1.442695
    %v1976 = vpow.pop %v1975
    %v1977 = vadd.f32 %v1976, 1.0
    %v1978 = vrcp.pop %v1977
    %v1979 = vmul.f32 1.0, %v1978
    %v1980 = vmul.f32 %v1972, %v1622
    %v1981 = vmul.f32 %v1966, %v1973
    %v1982 = vadd.f32 %v1980, %v1981
    %v1983 = vtanh.pop %v1982
    %v1984 = vmul.f32 %v1979, %v1983
    %vm1985 = vcmp.gt.s32.totalorder %v1070, 2
    %v1986 = vsel %vm1985, 1, 0
    %1987 = vset.pattern.permute.xlu0 0
    %1988 = vperm.xlu0 %1987, %v1986
    %v1989 = vpop.permute.xlu0 %1988
    %vm1990 = vcmp.eq.s32.totalorder %v1989, 1
    %v1991 = vsel %vm1990, %v1984, %v1621
    %v1992 = vsel %vm1990, %v1982, %v1622
    %v1993 = vmax.f32 %v1624, %v1984
    %v1994 = vsel %vm1990, %v1993, %v1624
    %s1995 = scalar_lea.vmem [#allocation4], 288
    %v1996 = vld [vmem:[%s1995] sm:$0xff]
    %v1997 = vld [vmem:[%s1995 + $0x8] sm:$0xff]
    %v1998 = vld [vmem:[%s1995 + $0x10] sm:$0xff]
    %v1999 = vld [vmem:[%s1995 + $0x18] sm:$0xff]
    %2000 = vmatprep.subr.mxu0 %v1007
    %2001 = vmatpush1.msra.mxu0 %v1006
    %2002 = vmatprep.subr.mxu0 %v1011
    %2003 = vmatpush1.msra.mxu0 %v1010
    %2004 = vmatprep.subr.mxu0 %v1015
    %2005 = vmatpush1.msra.mxu0 %v1014
    %2006 = vmatprep.subr.mxu0 %v1019
    %2007 = vmatpush1.msra.mxu0 %v1018
    %2008 = vmatprep.subr.mxu0 %v1023
    %2009 = vmatpush1.msra.mxu0 %v1022
    %2010 = vmatprep.subr.mxu0 %v1027
    %2011 = vmatpush1.msra.mxu0 %v1026
    %2012 = vmatprep.subr.mxu0 %v1031
    %2013 = vmatpush1.msra.mxu0 %v1030
    %2014 = vmatprep.subr.mxu0 %v1035
    %2015 = vmatpush1.msra.mxu0 %v1034
    %2016 = vmatprep.subr.mxu0 %v1039
    %2017 = vmatpush1.msra.mxu0 %v1038
    %2018 = vmatprep.subr.mxu0 %v1043
    %2019 = vmatpush1.msra.mxu0 %v1042
    %2020 = vmatprep.subr.mxu0 %v1047
    %2021 = vmatpush1.msra.mxu0 %v1046
    %2022 = vmatprep.subr.mxu0 %v1051
    %2023 = vmatpush1.msra.mxu0 %v1050
    %2024 = vmatprep.subr.mxu0 %v1055
    %2025 = vmatpush1.msra.mxu0 %v1054
    %2026 = vmatprep.subr.mxu0 %v1059
    %2027 = vmatpush1.msra.mxu0 %v1058
    %2028 = vmatprep.subr.mxu0 %v1063
    %2029 = vmatpush1.msra.mxu0 %v1062
    %2030 = vmatprep.subr.mxu0 %v1067
    %2031 = vmatpush1.msra.mxu0 %v1066
    %2032 = vmatprep.subr.mxu0 0.0
    %2033 = vmatpush1.msra.mxu0 0.0
    %2034 = vmatprep.subr.mxu0 0.0
    %2035 = vmatpush1.msra.mxu0 0.0
    %2036 = vmatprep.subr.mxu0 0.0
    %2037 = vmatpush1.msra.mxu0 0.0
    %2038 = vmatprep.subr.mxu0 0.0
    %2039 = vmatpush1.msra.mxu0 0.0
    %2040 = vmatprep.subr.mxu0 0.0
    %2041 = vmatpush1.msra.mxu0 0.0
    %2042 = vmatprep.subr.mxu0 0.0
    %2043 = vmatpush1.msra.mxu0 0.0
    %2044 = vmatprep.subr.mxu0 0.0
    %2045 = vmatpush1.msra.mxu0 0.0
    %2046 = vmatprep.subr.mxu0 0.0
    %2047 = vmatpush1.msra.mxu0 0.0
    %2048 = vmatprep.subr.mxu0 0.0
    %2049 = vmatpush1.msra.mxu0 0.0
    %2050 = vmatprep.subr.mxu0 0.0
    %2051 = vmatpush1.msra.mxu0 0.0
    %2052 = vmatprep.subr.mxu0 0.0
    %2053 = vmatpush1.msra.mxu0 0.0
    %2054 = vmatprep.subr.mxu0 0.0
    %2055 = vmatpush1.msra.mxu0 0.0
    %2056 = vmatprep.subr.mxu0 0.0
    %2057 = vmatpush1.msra.mxu0 0.0
    %2058 = vmatprep.subr.mxu0 0.0
    %2059 = vmatpush1.msra.mxu0 0.0
    %2060 = vmatprep.subr.mxu0 0.0
    %2061 = vmatpush1.msra.mxu0 0.0
    %2062 = vmatprep.subr.mxu0 0.0
    %2063 = vmatpush1.msra.mxu0 0.0
    %2064 = vmatprep.mubr.f32.mxu0 0.0
    %2065 = vmatmul.mubr.f32.gmra.mrb[0].mxu0 %v1806
    %v2066 = vpop.f32.mrb[0].mxu0
    %v2067 = vadd.f32 0.0, %v2066
    %v2068 = vpop.f32.mrb[0].mxu0
    %v2069 = vadd.f32 0.0, %v2068
    %2070 = vdwg.mxu0
    %2071 = vmatprep.subr.mxu0 %v1009
    %2072 = vmatpush1.msra.mxu0 %v1008
    %2073 = vmatprep.subr.mxu0 %v1013
    %2074 = vmatpush1.msra.mxu0 %v1012
    %2075 = vmatprep.subr.mxu0 %v1017
    %2076 = vmatpush1.msra.mxu0 %v1016
    %2077 = vmatprep.subr.mxu0 %v1021
    %2078 = vmatpush1.msra.mxu0 %v1020
    %2079 = vmatprep.subr.mxu0 %v1025
    %2080 = vmatpush1.msra.mxu0 %v1024
    %2081 = vmatprep.subr.mxu0 %v1029
    %2082 = vmatpush1.msra.mxu0 %v1028
    %2083 = vmatprep.subr.mxu0 %v1033
    %2084 = vmatpush1.msra.mxu0 %v1032
    %2085 = vmatprep.subr.mxu0 %v1037
    %2086 = vmatpush1.msra.mxu0 %v1036
    %2087 = vmatprep.subr.mxu0 %v1041
    %2088 = vmatpush1.msra.mxu0 %v1040
    %2089 = vmatprep.subr.mxu0 %v1045
    %2090 = vmatpush1.msra.mxu0 %v1044
    %2091 = vmatprep.subr.mxu0 %v1049
    %2092 = vmatpush1.msra.mxu0 %v1048
    %2093 = vmatprep.subr.mxu0 %v1053
    %2094 = vmatpush1.msra.mxu0 %v1052
    %2095 = vmatprep.subr.mxu0 %v1057
    %2096 = vmatpush1.msra.mxu0 %v1056
    %2097 = vmatprep.subr.mxu0 %v1061
    %2098 = vmatpush1.msra.mxu0 %v1060
    %2099 = vmatprep.subr.mxu0 %v1065
    %2100 = vmatpush1.msra.mxu0 %v1064
    %2101 = vmatprep.subr.mxu0 %v1069
    %2102 = vmatpush1.msra.mxu0 %v1068
    %2103 = vmatprep.subr.mxu0 0.0
    %2104 = vmatpush1.msra.mxu0 0.0
    %2105 = vmatprep.subr.mxu0 0.0
    %2106 = vmatpush1.msra.mxu0 0.0
    %2107 = vmatprep.subr.mxu0 0.0
    %2108 = vmatpush1.msra.mxu0 0.0
    %2109 = vmatprep.subr.mxu0 0.0
    %2110 = vmatpush1.msra.mxu0 0.0
    %2111 = vmatprep.subr.mxu0 0.0
    %2112 = vmatpush1.msra.mxu0 0.0
    %2113 = vmatprep.subr.mxu0 0.0
    %2114 = vmatpush1.msra.mxu0 0.0
    %2115 = vmatprep.subr.mxu0 0.0
    %2116 = vmatpush1.msra.mxu0 0.0
    %2117 = vmatprep.subr.mxu0 0.0
    %2118 = vmatpush1.msra.mxu0 0.0
    %2119 = vmatprep.subr.mxu0 0.0
    %2120 = vmatpush1.msra.mxu0 0.0
    %2121 = vmatprep.subr.mxu0 0.0
    %2122 = vmatpush1.msra.mxu0 0.0
    %2123 = vmatprep.subr.mxu0 0.0
    %2124 = vmatpush1.msra.mxu0 0.0
    %2125 = vmatprep.subr.mxu0 0.0
    %2126 = vmatpush1.msra.mxu0 0.0
    %2127 = vmatprep.subr.mxu0 0.0
    %2128 = vmatpush1.msra.mxu0 0.0
    %2129 = vmatprep.subr.mxu0 0.0
    %2130 = vmatpush1.msra.mxu0 0.0
    %2131 = vmatprep.subr.mxu0 0.0
    %2132 = vmatpush1.msra.mxu0 0.0
    %2133 = vmatprep.subr.mxu0 0.0
    %2134 = vmatpush1.msra.mxu0 0.0
    %2135 = vmatprep.mubr.f32.mxu0 0.0
    %2136 = vmatmul.mubr.f32.gmra.mrb[0].mxu0 %v1806
    %v2137 = vpop.f32.mrb[0].mxu0
    %v2138 = vadd.f32 0.0, %v2137
    %v2139 = vpop.f32.mrb[0].mxu0
    %v2140 = vadd.f32 0.0, %v2139
    %2141 = vdwg.mxu0
    %v2142 = vadd.f32 %v1996, %v2067
    %v2143 = vadd.f32 %v1997, %v2069
    %v2144 = vadd.f32 %v1998, %v2138
    %v2145 = vadd.f32 %v1999, %v2140
    %v2146 = vsub.f32 0.0, %v2142
    %v2147 = vmul.f32 %v2146, 1.442695
    %v2148 = vpow.pop %v2147
    %v2149 = vadd.f32 %v2148, 1.0
    %v2150 = vrcp.pop %v2149
    %v2151 = vmul.f32 1.0, %v2150
    %v2152 = vsub.f32 0.0, %v2143
    %v2153 = vmul.f32 %v2152, 1.442695
    %v2154 = vpow.pop %v2153
    %v2155 = vadd.f32 %v2154, 1.0
    %v2156 = vrcp.pop %v2155
    %v2157 = vmul.f32 1.0, %v2156
    %v2158 = vtanh.pop %v2144
    %v2159 = vsub.f32 0.0, %v2145
    %v2160 = vmul.f32 %v2159, 1.442695
    %v2161 = vpow.pop %v2160
    %v2162 = vadd.f32 %v2161, 1.0
    %v2163 = vrcp.pop %v2162
    %v2164 = vmul.f32 1.0, %v2163
    %v2165 = vmul.f32 %v2157, %v1807
    %v2166 = vmul.f32 %v2151, %v2158
    %v2167 = vadd.f32 %v2165, %v2166
    %v2168 = vtanh.pop %v2167
    %v2169 = vmul.f32 %v2164, %v2168
    %vm2170 = vcmp.gt.s32.totalorder %v1070, 9
    %v2171 = vsel %vm2170, 1, 0
    %2172 = vset.pattern.permute.xlu0 0
    %2173 = vperm.xlu0 %2172, %v2171
    %v2174 = vpop.permute.xlu0 %2173
    %vm2175 = vcmp.eq.s32.totalorder %v2174, 1
    %v2176 = vsel %vm2175, %v2169, %v1806
    %v2177 = vsel %vm2175, %v2167, %v1807
    %v2178 = vmax.f32 %v1809, %v2169
    %v2179 = vsel %vm2175, %v2178, %v1809
    %s2180 = scalar_lea.vmem [#allocation3], 96
    %v2181 = vld [vmem:[%s2180] sm:$0xff]
    %v2182 = vld [vmem:[%s2180 + $0x8] sm:$0xff]
    %v2183 = vld [vmem:[%s2180 + $0x10] sm:$0xff]
    %v2184 = vld [vmem:[%s2180 + $0x18] sm:$0xff]
    %2185 = vmatprep.subr.mxu0 %v943
    %2186 = vmatpush1.msra.mxu0 %v942
    %2187 = vmatprep.subr.mxu0 %v947
    %2188 = vmatpush1.msra.mxu0 %v946
    %2189 = vmatprep.subr.mxu0 %v951
    %2190 = vmatpush1.msra.mxu0 %v950
    %2191 = vmatprep.subr.mxu0 %v955
    %2192 = vmatpush1.msra.mxu0 %v954
    %2193 = vmatprep.subr.mxu0 %v959
    %2194 = vmatpush1.msra.mxu0 %v958
    %2195 = vmatprep.subr.mxu0 %v963
    %2196 = vmatpush1.msra.mxu0 %v962
    %2197 = vmatprep.subr.mxu0 %v967
    %2198 = vmatpush1.msra.mxu0 %v966
    %2199 = vmatprep.subr.mxu0 %v971
    %2200 = vmatpush1.msra.mxu0 %v970
    %2201 = vmatprep.subr.mxu0 %v975
    %2202 = vmatpush1.msra.mxu0 %v974
    %2203 = vmatprep.subr.mxu0 %v979
    %2204 = vmatpush1.msra.mxu0 %v978
    %2205 = vmatprep.subr.mxu0 %v983
    %2206 = vmatpush1.msra.mxu0 %v982
    %2207 = vmatprep.subr.mxu0 %v987
    %2208 = vmatpush1.msra.mxu0 %v986
    %2209 = vmatprep.subr.mxu0 %v991
    %2210 = vmatpush1.msra.mxu0 %v990
    %2211 = vmatprep.subr.mxu0 %v995
    %2212 = vmatpush1.msra.mxu0 %v994
    %2213 = vmatprep.subr.mxu0 %v999
    %2214 = vmatpush1.msra.mxu0 %v998
    %2215 = vmatprep.subr.mxu0 %v1003
    %2216 = vmatpush1.msra.mxu0 %v1002
    %2217 = vmatprep.subr.mxu0 0.0
    %2218 = vmatpush1.msra.mxu0 0.0
    %2219 = vmatprep.subr.mxu0 0.0
    %2220 = vmatpush1.msra.mxu0 0.0
    %2221 = vmatprep.subr.mxu0 0.0
    %2222 = vmatpush1.msra.mxu0 0.0
    %2223 = vmatprep.subr.mxu0 0.0
    %2224 = vmatpush1.msra.mxu0 0.0
    %2225 = vmatprep.subr.mxu0 0.0
    %2226 = vmatpush1.msra.mxu0 0.0
    %2227 = vmatprep.subr.mxu0 0.0
    %2228 = vmatpush1.msra.mxu0 0.0
    %2229 = vmatprep.subr.mxu0 0.0
    %2230 = vmatpush1.msra.mxu0 0.0
    %2231 = vmatprep.subr.mxu0 0.0
    %2232 = vmatpush1.msra.mxu0 0.0
    %2233 = vmatprep.subr.mxu0 0.0
    %2234 = vmatpush1.msra.mxu0 0.0
    %2235 = vmatprep.subr.mxu0 0.0
    %2236 = vmatpush1.msra.mxu0 0.0
    %2237 = vmatprep.subr.mxu0 0.0
    %2238 = vmatpush1.msra.mxu0 0.0
    %2239 = vmatprep.subr.mxu0 0.0
    %2240 = vmatpush1.msra.mxu0 0.0
    %2241 = vmatprep.subr.mxu0 0.0
    %2242 = vmatpush1.msra.mxu0 0.0
    %2243 = vmatprep.subr.mxu0 0.0
    %2244 = vmatpush1.msra.mxu0 0.0
    %2245 = vmatprep.subr.mxu0 0.0
    %2246 = vmatpush1.msra.mxu0 0.0
    %2247 = vmatprep.subr.mxu0 0.0
    %2248 = vmatpush1.msra.mxu0 0.0
    %2249 = vmatprep.mubr.f32.mxu0 0.0
    %2250 = vmatmul.mubr.f32.gmra.mrb[0].mxu0 %v1991
    %v2251 = vpop.f32.mrb[0].mxu0
    %v2252 = vadd.f32 0.0, %v2251
    %v2253 = vpop.f32.mrb[0].mxu0
    %v2254 = vadd.f32 0.0, %v2253
    %2255 = vdwg.mxu0
    %2256 = vmatprep.subr.mxu0 %v945
    %2257 = vmatpush1.msra.mxu0 %v944
    %2258 = vmatprep.subr.mxu0 %v949
    %2259 = vmatpush1.msra.mxu0 %v948
    %2260 = vmatprep.subr.mxu0 %v953
    %2261 = vmatpush1.msra.mxu0 %v952
    %2262 = vmatprep.subr.mxu0 %v957
    %2263 = vmatpush1.msra.mxu0 %v956
    %2264 = vmatprep.subr.mxu0 %v961
    %2265 = vmatpush1.msra.mxu0 %v960
    %2266 = vmatprep.subr.mxu0 %v965
    %2267 = vmatpush1.msra.mxu0 %v964
    %2268 = vmatprep.subr.mxu0 %v969
    %2269 = vmatpush1.msra.mxu0 %v968
    %2270 = vmatprep.subr.mxu0 %v973
    %2271 = vmatpush1.msra.mxu0 %v972
    %2272 = vmatprep.subr.mxu0 %v977
    %2273 = vmatpush1.msra.mxu0 %v976
    %2274 = vmatprep.subr.mxu0 %v981
    %2275 = vmatpush1.msra.mxu0 %v980
    %2276 = vmatprep.subr.mxu0 %v985
    %2277 = vmatpush1.msra.mxu0 %v984
    %2278 = vmatprep.subr.mxu0 %v989
    %2279 = vmatpush1.msra.mxu0 %v988
    %2280 = vmatprep.subr.mxu0 %v993
    %2281 = vmatpush1.msra.mxu0 %v992
    %2282 = vmatprep.subr.mxu0 %v997
    %2283 = vmatpush1.msra.mxu0 %v996
    %2284 = vmatprep.subr.mxu0 %v1001
    %2285 = vmatpush1.msra.mxu0 %v1000
    %2286 = vmatprep.subr.mxu0 %v1005
    %2287 = vmatpush1.msra.mxu0 %v1004
    %2288 = vmatprep.subr.mxu0 0.0
    %2289 = vmatpush1.msra.mxu0 0.0
    %2290 = vmatprep.subr.mxu0 0.0
    %2291 = vmatpush1.msra.mxu0 0.0
    %2292 = vmatprep.subr.mxu0 0.0
    %2293 = vmatpush1.msra.mxu0 0.0
    %2294 = vmatprep.subr.mxu0 0.0
    %2295 = vmatpush1.msra.mxu0 0.0
    %2296 = vmatprep.subr.mxu0 0.0
    %2297 = vmatpush1.msra.mxu0 0.0
    %2298 = vmatprep.subr.mxu0 0.0
    %2299 = vmatpush1.msra.mxu0 0.0
    %2300 = vmatprep.subr.mxu0 0.0
    %2301 = vmatpush1.msra.mxu0 0.0
    %2302 = vmatprep.subr.mxu0 0.0
    %2303 = vmatpush1.msra.mxu0 0.0
    %2304 = vmatprep.subr.mxu0 0.0
    %2305 = vmatpush1.msra.mxu0 0.0
    %2306 = vmatprep.subr.mxu0 0.0
    %2307 = vmatpush1.msra.mxu0 0.0
    %2308 = vmatprep.subr.mxu0 0.0
    %2309 = vmatpush1.msra.mxu0 0.0
    %2310 = vmatprep.subr.mxu0 0.0
    %2311 = vmatpush1.msra.mxu0 0.0
    %2312 = vmatprep.subr.mxu0 0.0
    %2313 = vmatpush1.msra.mxu0 0.0
    %2314 = vmatprep.subr.mxu0 0.0
    %2315 = vmatpush1.msra.mxu0 0.0
    %2316 = vmatprep.subr.mxu0 0.0
    %2317 = vmatpush1.msra.mxu0 0.0
    %2318 = vmatprep.subr.mxu0 0.0
    %2319 = vmatpush1.msra.mxu0 0.0
    %2320 = vmatprep.mubr.f32.mxu0 0.0
    %2321 = vmatmul.mubr.f32.gmra.mrb[0].mxu0 %v1991
    %v2322 = vpop.f32.mrb[0].mxu0
    %v2323 = vadd.f32 0.0, %v2322
    %v2324 = vpop.f32.mrb[0].mxu0
    %v2325 = vadd.f32 0.0, %v2324
    %2326 = vdwg.mxu0
    %v2327 = vadd.f32 %v2181, %v2252
    %v2328 = vadd.f32 %v2182, %v2254
    %v2329 = vadd.f32 %v2183, %v2323
    %v2330 = vadd.f32 %v2184, %v2325
    %v2331 = vsub.f32 0.0, %v2327
    %v2332 = vmul.f32 %v2331, 1.442695
    %v2333 = vpow.pop %v2332
    %v2334 = vadd.f32 %v2333, 1.0
    %v2335 = vrcp.pop %v2334
    %v2336 = vmul.f32 1.0, %v2335
    %v2337 = vsub.f32 0.0, %v2328
    %v2338 = vmul.f32 %v2337, 1.442695
    %v2339 = vpow.pop %v2338
    %v2340 = vadd.f32 %v2339, 1.0
    %v2341 = vrcp.pop %v2340
    %v2342 = vmul.f32 1.0, %v2341
    %v2343 = vtanh.pop %v2329
    %v2344 = vsub.f32 0.0, %v2330
    %v2345 = vmul.f32 %v2344, 1.442695
    %v2346 = vpow.pop %v2345
    %v2347 = vadd.f32 %v2346, 1.0
    %v2348 = vrcp.pop %v2347
    %v2349 = vmul.f32 1.0, %v2348
    %v2350 = vmul.f32 %v2342, %v1992
    %v2351 = vmul.f32 %v2336, %v2343
    %v2352 = vadd.f32 %v2350, %v2351
    %v2353 = vtanh.pop %v2352
    %v2354 = vmul.f32 %v2349, %v2353
    %vm2355 = vcmp.gt.s32.totalorder %v1070, 3
    %v2356 = vsel %vm2355, 1, 0
    %2357 = vset.pattern.permute.xlu0 0
    %2358 = vperm.xlu0 %2357, %v2356
    %v2359 = vpop.permute.xlu0 %2358
    %vm2360 = vcmp.eq.s32.totalorder %v2359, 1
    %v2361 = vsel %vm2360, %v2354, %v1991
    %v2362 = vsel %vm2360, %v2352, %v1992
    %v2363 = vmax.f32 %v1994, %v2354
    %v2364 = vsel %vm2360, %v2363, %v1994
    %s2365 = scalar_lea.vmem [#allocation4], 256
    %v2366 = vld [vmem:[%s2365] sm:$0xff]
    %v2367 = vld [vmem:[%s2365 + $0x8] sm:$0xff]
    %v2368 = vld [vmem:[%s2365 + $0x10] sm:$0xff]
    %v2369 = vld [vmem:[%s2365 + $0x18] sm:$0xff]
    %2370 = vmatprep.subr.mxu0 %v1007
    %2371 = vmatpush1.msra.mxu0 %v1006
    %2372 = vmatprep.subr.mxu0 %v1011
    %2373 = vmatpush1.msra.mxu0 %v1010
    %2374 = vmatprep.subr.mxu0 %v1015
    %2375 = vmatpush1.msra.mxu0 %v1014
    %2376 = vmatprep.subr.mxu0 %v1019
    %2377 = vmatpush1.msra.mxu0 %v1018
    %2378 = vmatprep.subr.mxu0 %v1023
    %2379 = vmatpush1.msra.mxu0 %v1022
    %2380 = vmatprep.subr.mxu0 %v1027
    %2381 = vmatpush1.msra.mxu0 %v1026
    %2382 = vmatprep.subr.mxu0 %v1031
    %2383 = vmatpush1.msra.mxu0 %v1030
    %2384 = vmatprep.subr.mxu0 %v1035
    %2385 = vmatpush1.msra.mxu0 %v1034
    %2386 = vmatprep.subr.mxu0 %v1039
    %2387 = vmatpush1.msra.mxu0 %v1038
    %2388 = vmatprep.subr.mxu0 %v1043
    %2389 = vmatpush1.msra.mxu0 %v1042
    %2390 = vmatprep.subr.mxu0 %v1047
    %2391 = vmatpush1.msra.mxu0 %v1046
    %2392 = vmatprep.subr.mxu0 %v1051
    %2393 = vmatpush1.msra.mxu0 %v1050
    %2394 = vmatprep.subr.mxu0 %v1055
    %2395 = vmatpush1.msra.mxu0 %v1054
    %2396 = vmatprep.subr.mxu0 %v1059
    %2397 = vmatpush1.msra.mxu0 %v1058
    %2398 = vmatprep.subr.mxu0 %v1063
    %2399 = vmatpush1.msra.mxu0 %v1062
    %2400 = vmatprep.subr.mxu0 %v1067
    %2401 = vmatpush1.msra.mxu0 %v1066
    %2402 = vmatprep.subr.mxu0 0.0
    %2403 = vmatpush1.msra.mxu0 0.0
    %2404 = vmatprep.subr.mxu0 0.0
    %2405 = vmatpush1.msra.mxu0 0.0
    %2406 = vmatprep.subr.mxu0 0.0
    %2407 = vmatpush1.msra.mxu0 0.0
    %2408 = vmatprep.subr.mxu0 0.0
    %2409 = vmatpush1.msra.mxu0 0.0
    %2410 = vmatprep.subr.mxu0 0.0
    %2411 = vmatpush1.msra.mxu0 0.0
    %2412 = vmatprep.subr.mxu0 0.0
    %2413 = vmatpush1.msra.mxu0 0.0
    %2414 = vmatprep.subr.mxu0 0.0
    %2415 = vmatpush1.msra.mxu0 0.0
    %2416 = vmatprep.subr.mxu0 0.0
    %2417 = vmatpush1.msra.mxu0 0.0
    %2418 = vmatprep.subr.mxu0 0.0
    %2419 = vmatpush1.msra.mxu0 0.0
    %2420 = vmatprep.subr.mxu0 0.0
    %2421 = vmatpush1.msra.mxu0 0.0
    %2422 = vmatprep.subr.mxu0 0.0
    %2423 = vmatpush1.msra.mxu0 0.0
    %2424 = vmatprep.subr.mxu0 0.0
    %2425 = vmatpush1.msra.mxu0 0.0
    %2426 = vmatprep.subr.mxu0 0.0
    %2427 = vmatpush1.msra.mxu0 0.0
    %2428 = vmatprep.subr.mxu0 0.0
    %2429 = vmatpush1.msra.mxu0 0.0
    %2430 = vmatprep.subr.mxu0 0.0
    %2431 = vmatpush1.msra.mxu0 0.0
    %2432 = vmatprep.subr.mxu0 0.0
    %2433 = vmatpush1.msra.mxu0 0.0
    %2434 = vmatprep.mubr.f32.mxu0 0.0
    %2435 = vmatmul.mubr.f32.gmra.mrb[0].mxu0 %v2176
    %v2436 = vpop.f32.mrb[0].mxu0
    %v2437 = vadd.f32 0.0, %v2436
    %v2438 = vpop.f32.mrb[0].mxu0
    %v2439 = vadd.f32 0.0, %v2438
    %2440 = vdwg.mxu0
    %2441 = vmatprep.subr.mxu0 %v1009
    %2442 = vmatpush1.msra.mxu0 %v1008
    %2443 = vmatprep.subr.mxu0 %v1013
    %2444 = vmatpush1.msra.mxu0 %v1012
    %2445 = vmatprep.subr.mxu0 %v1017
    %2446 = vmatpush1.msra.mxu0 %v1016
    %2447 = vmatprep.subr.mxu0 %v1021
    %2448 = vmatpush1.msra.mxu0 %v1020
    %2449 = vmatprep.subr.mxu0 %v1025
    %2450 = vmatpush1.msra.mxu0 %v1024
    %2451 = vmatprep.subr.mxu0 %v1029
    %2452 = vmatpush1.msra.mxu0 %v1028
    %2453 = vmatprep.subr.mxu0 %v1033
    %2454 = vmatpush1.msra.mxu0 %v1032
    %2455 = vmatprep.subr.mxu0 %v1037
    %2456 = vmatpush1.msra.mxu0 %v1036
    %2457 = vmatprep.subr.mxu0 %v1041
    %2458 = vmatpush1.msra.mxu0 %v1040
    %2459 = vmatprep.subr.mxu0 %v1045
    %2460 = vmatpush1.msra.mxu0 %v1044
    %2461 = vmatprep.subr.mxu0 %v1049
    %2462 = vmatpush1.msra.mxu0 %v1048
    %2463 = vmatprep.subr.mxu0 %v1053
    %2464 = vmatpush1.msra.mxu0 %v1052
    %2465 = vmatprep.subr.mxu0 %v1057
    %2466 = vmatpush1.msra.mxu0 %v1056
    %2467 = vmatprep.subr.mxu0 %v1061
    %2468 = vmatpush1.msra.mxu0 %v1060
    %2469 = vmatprep.subr.mxu0 %v1065
    %2470 = vmatpush1.msra.mxu0 %v1064
    %2471 = vmatprep.subr.mxu0 %v1069
    %2472 = vmatpush1.msra.mxu0 %v1068
    %2473 = vmatprep.subr.mxu0 0.0
    %2474 = vmatpush1.msra.mxu0 0.0
    %2475 = vmatprep.subr.mxu0 0.0
    %2476 = vmatpush1.msra.mxu0 0.0
    %2477 = vmatprep.subr.mxu0 0.0
    %2478 = vmatpush1.msra.mxu0 0.0
    %2479 = vmatprep.subr.mxu0 0.0
    %2480 = vmatpush1.msra.mxu0 0.0
    %2481 = vmatprep.subr.mxu0 0.0
    %2482 = vmatpush1.msra.mxu0 0.0
    %2483 = vmatprep.subr.mxu0 0.0
    %2484 = vmatpush1.msra.mxu0 0.0
    %2485 = vmatprep.subr.mxu0 0.0
    %2486 = vmatpush1.msra.mxu0 0.0
    %2487 = vmatprep.subr.mxu0 0.0
    %2488 = vmatpush1.msra.mxu0 0.0
    %2489 = vmatprep.subr.mxu0 0.0
    %2490 = vmatpush1.msra.mxu0 0.0
    %2491 = vmatprep.subr.mxu0 0.0
    %2492 = vmatpush1.msra.mxu0 0.0
    %2493 = vmatprep.subr.mxu0 0.0
    %2494 = vmatpush1.msra.mxu0 0.0
    %2495 = vmatprep.subr.mxu0 0.0
    %2496 = vmatpush1.msra.mxu0 0.0
    %2497 = vmatprep.subr.mxu0 0.0
    %2498 = vmatpush1.msra.mxu0 0.0
    %2499 = vmatprep.subr.mxu0 0.0
    %2500 = vmatpush1.msra.mxu0 0.0
    %2501 = vmatprep.subr.mxu0 0.0
    %2502 = vmatpush1.msra.mxu0 0.0
    %2503 = vmatprep.subr.mxu0 0.0
    %2504 = vmatpush1.msra.mxu0 0.0
    %2505 = vmatprep.mubr.f32.mxu0 0.0
    %2506 = vmatmul.mubr.f32.gmra.mrb[0].mxu0 %v2176
    %v2507 = vpop.f32.mrb[0].mxu0
    %v2508 = vadd.f32 0.0, %v2507
    %v2509 = vpop.f32.mrb[0].mxu0
    %v2510 = vadd.f32 0.0, %v2509
    %2511 = vdwg.mxu0
    %v2512 = vadd.f32 %v2366, %v2437
    %v2513 = vadd.f32 %v2367, %v2439
    %v2514 = vadd.f32 %v2368, %v2508
    %v2515 = vadd.f32 %v2369, %v2510
    %v2516 = vsub.f32 0.0, %v2512
    %v2517 = vmul.f32 %v2516, 1.442695
    %v2518 = vpow.pop %v2517
    %v2519 = vadd.f32 %v2518, 1.0
    %v2520 = vrcp.pop %v2519
    %v2521 = vmul.f32 1.0, %v2520
    %v2522 = vsub.f32 0.0, %v2513
    %v2523 = vmul.f32 %v2522, 1.442695
    %v2524 = vpow.pop %v2523
    %v2525 = vadd.f32 %v2524, 1.0
    %v2526 = vrcp.pop %v2525
    %v2527 = vmul.f32 1.0, %v2526
    %v2528 = vtanh.pop %v2514
    %v2529 = vsub.f32 0.0, %v2515
    %v2530 = vmul.f32 %v2529, 1.442695
    %v2531 = vpow.pop %v2530
    %v2532 = vadd.f32 %v2531, 1.0
    %v2533 = vrcp.pop %v2532
    %v2534 = vmul.f32 1.0, %v2533
    %v2535 = vmul.f32 %v2527, %v2177
    %v2536 = vmul.f32 %v2521, %v2528
    %v2537 = vadd.f32 %v2535, %v2536
    %v2538 = vtanh.pop %v2537
    %v2539 = vmul.f32 %v2534, %v2538
    %vm2540 = vcmp.gt.s32.totalorder %v1070, 8
    %v2541 = vsel %vm2540, 1, 0
    %2542 = vset.pattern.permute.xlu0 0
    %2543 = vperm.xlu0 %2542, %v2541
    %v2544 = vpop.permute.xlu0 %2543
    %vm2545 = vcmp.eq.s32.totalorder %v2544, 1
    %v2546 = vsel %vm2545, %v2539, %v2176
    %v2547 = vsel %vm2545, %v2537, %v2177
    %v2548 = vmax.f32 %v2179, %v2539
    %v2549 = vsel %vm2545, %v2548, %v2179
    %s2550 = scalar_lea.vmem [#allocation3], 128
    %v2551 = vld [vmem:[%s2550] sm:$0xff]
    %v2552 = vld [vmem:[%s2550 + $0x8] sm:$0xff]
    %v2553 = vld [vmem:[%s2550 + $0x10] sm:$0xff]
    %v2554 = vld [vmem:[%s2550 + $0x18] sm:$0xff]
    %2555 = vmatprep.subr.mxu0 %v943
    %2556 = vmatpush1.msra.mxu0 %v942
    %2557 = vmatprep.subr.mxu0 %v947
    %2558 = vmatpush1.msra.mxu0 %v946
    %2559 = vmatprep.subr.mxu0 %v951
    %2560 = vmatpush1.msra.mxu0 %v950
    %2561 = vmatprep.subr.mxu0 %v955
    %2562 = vmatpush1.msra.mxu0 %v954
    %2563 = vmatprep.subr.mxu0 %v959
    %2564 = vmatpush1.msra.mxu0 %v958
    %2565 = vmatprep.subr.mxu0 %v963
    %2566 = vmatpush1.msra.mxu0 %v962
    %2567 = vmatprep.subr.mxu0 %v967
    %2568 = vmatpush1.msra.mxu0 %v966
    %2569 = vmatprep.subr.mxu0 %v971
    %2570 = vmatpush1.msra.mxu0 %v970
    %2571 = vmatprep.subr.mxu0 %v975
    %2572 = vmatpush1.msra.mxu0 %v974
    %2573 = vmatprep.subr.mxu0 %v979
    %2574 = vmatpush1.msra.mxu0 %v978
    %2575 = vmatprep.subr.mxu0 %v983
    %2576 = vmatpush1.msra.mxu0 %v982
    %2577 = vmatprep.subr.mxu0 %v987
    %2578 = vmatpush1.msra.mxu0 %v986
    %2579 = vmatprep.subr.mxu0 %v991
    %2580 = vmatpush1.msra.mxu0 %v990
    %2581 = vmatprep.subr.mxu0 %v995
    %2582 = vmatpush1.msra.mxu0 %v994
    %2583 = vmatprep.subr.mxu0 %v999
    %2584 = vmatpush1.msra.mxu0 %v998
    %2585 = vmatprep.subr.mxu0 %v1003
    %2586 = vmatpush1.msra.mxu0 %v1002
    %2587 = vmatprep.subr.mxu0 0.0
    %2588 = vmatpush1.msra.mxu0 0.0
    %2589 = vmatprep.subr.mxu0 0.0
    %2590 = vmatpush1.msra.mxu0 0.0
    %2591 = vmatprep.subr.mxu0 0.0
    %2592 = vmatpush1.msra.mxu0 0.0
    %2593 = vmatprep.subr.mxu0 0.0
    %2594 = vmatpush1.msra.mxu0 0.0
    %2595 = vmatprep.subr.mxu0 0.0
    %2596 = vmatpush1.msra.mxu0 0.0
    %2597 = vmatprep.subr.mxu0 0.0
    %2598 = vmatpush1.msra.mxu0 0.0
    %2599 = vmatprep.subr.mxu0 0.0
    %2600 = vmatpush1.msra.mxu0 0.0
    %2601 = vmatprep.subr.mxu0 0.0
    %2602 = vmatpush1.msra.mxu0 0.0
    %2603 = vmatprep.subr.mxu0 0.0
    %2604 = vmatpush1.msra.mxu0 0.0
    %2605 = vmatprep.subr.mxu0 0.0
    %2606 = vmatpush1.msra.mxu0 0.0
    %2607 = vmatprep.subr.mxu0 0.0
    %2608 = vmatpush1.msra.mxu0 0.0
    %2609 = vmatprep.subr.mxu0 0.0
    %2610 = vmatpush1.msra.mxu0 0.0
    %2611 = vmatprep.subr.mxu0 0.0
    %2612 = vmatpush1.msra.mxu0 0.0
    %2613 = vmatprep.subr.mxu0 0.0
    %2614 = vmatpush1.msra.mxu0 0.0
    %2615 = vmatprep.subr.mxu0 0.0
    %2616 = vmatpush1.msra.mxu0 0.0
    %2617 = vmatprep.subr.mxu0 0.0
    %2618 = vmatpush1.msra.mxu0 0.0
    %2619 = vmatprep.mubr.f32.mxu0 0.0
    %2620 = vmatmul.mubr.f32.gmra.mrb[0].mxu0 %v2361
    %v2621 = vpop.f32.mrb[0].mxu0
    %v2622 = vadd.f32 0.0, %v2621
    %v2623 = vpop.f32.mrb[0].mxu0
    %v2624 = vadd.f32 0.0, %v2623
    %2625 = vdwg.mxu0
    %2626 = vmatprep.subr.mxu0 %v945
    %2627 = vmatpush1.msra.mxu0 %v944
    %2628 = vmatprep.subr.mxu0 %v949
    %2629 = vmatpush1.msra.mxu0 %v948
    %2630 = vmatprep.subr.mxu0 %v953
    %2631 = vmatpush1.msra.mxu0 %v952
    %2632 = vmatprep.subr.mxu0 %v957
    %2633 = vmatpush1.msra.mxu0 %v956
    %2634 = vmatprep.subr.mxu0 %v961
    %2635 = vmatpush1.msra.mxu0 %v960
    %2636 = vmatprep.subr.mxu0 %v965
    %2637 = vmatpush1.msra.mxu0 %v964
    %2638 = vmatprep.subr.mxu0 %v969
    %2639 = vmatpush1.msra.mxu0 %v968
    %2640 = vmatprep.subr.mxu0 %v973
    %2641 = vmatpush1.msra.mxu0 %v972
    %2642 = vmatprep.subr.mxu0 %v977
    %2643 = vmatpush1.msra.mxu0 %v976
    %2644 = vmatprep.subr.mxu0 %v981
    %2645 = vmatpush1.msra.mxu0 %v980
    %2646 = vmatprep.subr.mxu0 %v985
    %2647 = vmatpush1.msra.mxu0 %v984
    %2648 = vmatprep.subr.mxu0 %v989
    %2649 = vmatpush1.msra.mxu0 %v988
    %2650 = vmatprep.subr.mxu0 %v993
    %2651 = vmatpush1.msra.mxu0 %v992
    %2652 = vmatprep.subr.mxu0 %v997
    %2653 = vmatpush1.msra.mxu0 %v996
    %2654 = vmatprep.subr.mxu0 %v1001
    %2655 = vmatpush1.msra.mxu0 %v1000
    %2656 = vmatprep.subr.mxu0 %v1005
    %2657 = vmatpush1.msra.mxu0 %v1004
    %2658 = vmatprep.subr.mxu0 0.0
    %2659 = vmatpush1.msra.mxu0 0.0
    %2660 = vmatprep.subr.mxu0 0.0
    %2661 = vmatpush1.msra.mxu0 0.0
    %2662 = vmatprep.subr.mxu0 0.0
    %2663 = vmatpush1.msra.mxu0 0.0
    %2664 = vmatprep.subr.mxu0 0.0
    %2665 = vmatpush1.msra.mxu0 0.0
    %2666 = vmatprep.subr.mxu0 0.0
    %2667 = vmatpush1.msra.mxu0 0.0
    %2668 = vmatprep.subr.mxu0 0.0
    %2669 = vmatpush1.msra.mxu0 0.0
    %2670 = vmatprep.subr.mxu0 0.0
    %2671 = vmatpush1.msra.mxu0 0.0
    %2672 = vmatprep.subr.mxu0 0.0
    %2673 = vmatpush1.msra.mxu0 0.0
    %2674 = vmatprep.subr.mxu0 0.0
    %2675 = vmatpush1.msra.mxu0 0.0
    %2676 = vmatprep.subr.mxu0 0.0
    %2677 = vmatpush1.msra.mxu0 0.0
    %2678 = vmatprep.subr.mxu0 0.0
    %2679 = vmatpush1.msra.mxu0 0.0
    %2680 = vmatprep.subr.mxu0 0.0
    %2681 = vmatpush1.msra.mxu0 0.0
    %2682 = vmatprep.subr.mxu0 0.0
    %2683 = vmatpush1.msra.mxu0 0.0
    %2684 = vmatprep.subr.mxu0 0.0
    %2685 = vmatpush1.msra.mxu0 0.0
    %2686 = vmatprep.subr.mxu0 0.0
    %2687 = vmatpush1.msra.mxu0 0.0
    %2688 = vmatprep.subr.mxu0 0.0
    %2689 = vmatpush1.msra.mxu0 0.0
    %2690 = vmatprep.mubr.f32.mxu0 0.0
    %2691 = vmatmul.mubr.f32.gmra.mrb[0].mxu0 %v2361
    %v2692 = vpop.f32.mrb[0].mxu0
    %v2693 = vadd.f32 0.0, %v2692
    %v2694 = vpop.f32.mrb[0].mxu0
    %v2695 = vadd.f32 0.0, %v2694
    %2696 = vdwg.mxu0
    %v2697 = vadd.f32 %v2551, %v2622
    %v2698 = vadd.f32 %v2552, %v2624
    %v2699 = vadd.f32 %v2553, %v2693
    %v2700 = vadd.f32 %v2554, %v2695
    %v2701 = vsub.f32 0.0, %v2697
    %v2702 = vmul.f32 %v2701, 1.442695
    %v2703 = vpow.pop %v2702
    %v2704 = vadd.f32 %v2703, 1.0
    %v2705 = vrcp.pop %v2704
    %v2706 = vmul.f32 1.0, %v2705
    %v2707 = vsub.f32 0.0, %v2698
    %v2708 = vmul.f32 %v2707, 1.442695
    %v2709 = vpow.pop %v2708
    %v2710 = vadd.f32 %v2709, 1.0
    %v2711 = vrcp.pop %v2710
    %v2712 = vmul.f32 1.0, %v2711
    %v2713 = vtanh.pop %v2699
    %v2714 = vsub.f32 0.0, %v2700
    %v2715 = vmul.f32 %v2714, 1.442695
    %v2716 = vpow.pop %v2715
    %v2717 = vadd.f32 %v2716, 1.0
    %v2718 = vrcp.pop %v2717
    %v2719 = vmul.f32 1.0, %v2718
    %v2720 = vmul.f32 %v2712, %v2362
    %v2721 = vmul.f32 %v2706, %v2713
    %v2722 = vadd.f32 %v2720, %v2721
    %v2723 = vtanh.pop %v2722
    %v2724 = vmul.f32 %v2719, %v2723
    %vm2725 = vcmp.gt.s32.totalorder %v1070, 4
    %v2726 = vsel %vm2725, 1, 0
    %2727 = vset.pattern.permute.xlu0 0
    %2728 = vperm.xlu0 %2727, %v2726
    %v2729 = vpop.permute.xlu0 %2728
    %vm2730 = vcmp.eq.s32.totalorder %v2729, 1
    %v2731 = vsel %vm2730, %v2724, %v2361
    %v2732 = vsel %vm2730, %v2722, %v2362
    %v2733 = vmax.f32 %v2364, %v2724
    %v2734 = vsel %vm2730, %v2733, %v2364
    %s2735 = scalar_lea.vmem [#allocation4], 224
    %v2736 = vld [vmem:[%s2735] sm:$0xff]
    %v2737 = vld [vmem:[%s2735 + $0x8] sm:$0xff]
    %v2738 = vld [vmem:[%s2735 + $0x10] sm:$0xff]
    %v2739 = vld [vmem:[%s2735 + $0x18] sm:$0xff]
    %2740 = vmatprep.subr.mxu0 %v1007
    %2741 = vmatpush1.msra.mxu0 %v1006
    %2742 = vmatprep.subr.mxu0 %v1011
    %2743 = vmatpush1.msra.mxu0 %v1010
    %2744 = vmatprep.subr.mxu0 %v1015
    %2745 = vmatpush1.msra.mxu0 %v1014
    %2746 = vmatprep.subr.mxu0 %v1019
    %2747 = vmatpush1.msra.mxu0 %v1018
    %2748 = vmatprep.subr.mxu0 %v1023
    %2749 = vmatpush1.msra.mxu0 %v1022
    %2750 = vmatprep.subr.mxu0 %v1027
    %2751 = vmatpush1.msra.mxu0 %v1026
    %2752 = vmatprep.subr.mxu0 %v1031
    %2753 = vmatpush1.msra.mxu0 %v1030
    %2754 = vmatprep.subr.mxu0 %v1035
    %2755 = vmatpush1.msra.mxu0 %v1034
    %2756 = vmatprep.subr.mxu0 %v1039
    %2757 = vmatpush1.msra.mxu0 %v1038
    %2758 = vmatprep.subr.mxu0 %v1043
    %2759 = vmatpush1.msra.mxu0 %v1042
    %2760 = vmatprep.subr.mxu0 %v1047
    %2761 = vmatpush1.msra.mxu0 %v1046
    %2762 = vmatprep.subr.mxu0 %v1051
    %2763 = vmatpush1.msra.mxu0 %v1050
    %2764 = vmatprep.subr.mxu0 %v1055
    %2765 = vmatpush1.msra.mxu0 %v1054
    %2766 = vmatprep.subr.mxu0 %v1059
    %2767 = vmatpush1.msra.mxu0 %v1058
    %2768 = vmatprep.subr.mxu0 %v1063
    %2769 = vmatpush1.msra.mxu0 %v1062
    %2770 = vmatprep.subr.mxu0 %v1067
    %2771 = vmatpush1.msra.mxu0 %v1066
    %2772 = vmatprep.subr.mxu0 0.0
    %2773 = vmatpush1.msra.mxu0 0.0
    %2774 = vmatprep.subr.mxu0 0.0
    %2775 = vmatpush1.msra.mxu0 0.0
    %2776 = vmatprep.subr.mxu0 0.0
    %2777 = vmatpush1.msra.mxu0 0.0
    %2778 = vmatprep.subr.mxu0 0.0
    %2779 = vmatpush1.msra.mxu0 0.0
    %2780 = vmatprep.subr.mxu0 0.0
    %2781 = vmatpush1.msra.mxu0 0.0
    %2782 = vmatprep.subr.mxu0 0.0
    %2783 = vmatpush1.msra.mxu0 0.0
    %2784 = vmatprep.subr.mxu0 0.0
    %2785 = vmatpush1.msra.mxu0 0.0
    %2786 = vmatprep.subr.mxu0 0.0
    %2787 = vmatpush1.msra.mxu0 0.0
    %2788 = vmatprep.subr.mxu0 0.0
    %2789 = vmatpush1.msra.mxu0 0.0
    %2790 = vmatprep.subr.mxu0 0.0
    %2791 = vmatpush1.msra.mxu0 0.0
    %2792 = vmatprep.subr.mxu0 0.0
    %2793 = vmatpush1.msra.mxu0 0.0
    %2794 = vmatprep.subr.mxu0 0.0
    %2795 = vmatpush1.msra.mxu0 0.0
    %2796 = vmatprep.subr.mxu0 0.0
    %2797 = vmatpush1.msra.mxu0 0.0
    %2798 = vmatprep.subr.mxu0 0.0
    %2799 = vmatpush1.msra.mxu0 0.0
    %2800 = vmatprep.subr.mxu0 0.0
    %2801 = vmatpush1.msra.mxu0 0.0
    %2802 = vmatprep.subr.mxu0 0.0
    %2803 = vmatpush1.msra.mxu0 0.0
    %2804 = vmatprep.mubr.f32.mxu0 0.0
    %2805 = vmatmul.mubr.f32.gmra.mrb[0].mxu0 %v2546
    %v2806 = vpop.f32.mrb[0].mxu0
    %v2807 = vadd.f32 0.0, %v2806
    %v2808 = vpop.f32.mrb[0].mxu0
    %v2809 = vadd.f32 0.0, %v2808
    %2810 = vdwg.mxu0
    %2811 = vmatprep.subr.mxu0 %v1009
    %2812 = vmatpush1.msra.mxu0 %v1008
    %2813 = vmatprep.subr.mxu0 %v1013
    %2814 = vmatpush1.msra.mxu0 %v1012
    %2815 = vmatprep.subr.mxu0 %v1017
    %2816 = vmatpush1.msra.mxu0 %v1016
    %2817 = vmatprep.subr.mxu0 %v1021
    %2818 = vmatpush1.msra.mxu0 %v1020
    %2819 = vmatprep.subr.mxu0 %v1025
    %2820 = vmatpush1.msra.mxu0 %v1024
    %2821 = vmatprep.subr.mxu0 %v1029
    %2822 = vmatpush1.msra.mxu0 %v1028
    %2823 = vmatprep.subr.mxu0 %v1033
    %2824 = vmatpush1.msra.mxu0 %v1032
    %2825 = vmatprep.subr.mxu0 %v1037
    %2826 = vmatpush1.msra.mxu0 %v1036
    %2827 = vmatprep.subr.mxu0 %v1041
    %2828 = vmatpush1.msra.mxu0 %v1040
    %2829 = vmatprep.subr.mxu0 %v1045
    %2830 = vmatpush1.msra.mxu0 %v1044
    %2831 = vmatprep.subr.mxu0 %v1049
    %2832 = vmatpush1.msra.mxu0 %v1048
    %2833 = vmatprep.subr.mxu0 %v1053
    %2834 = vmatpush1.msra.mxu0 %v1052
    %2835 = vmatprep.subr.mxu0 %v1057
    %2836 = vmatpush1.msra.mxu0 %v1056
    %2837 = vmatprep.subr.mxu0 %v1061
    %2838 = vmatpush1.msra.mxu0 %v1060
    %2839 = vmatprep.subr.mxu0 %v1065
    %2840 = vmatpush1.msra.mxu0 %v1064
    %2841 = vmatprep.subr.mxu0 %v1069
    %2842 = vmatpush1.msra.mxu0 %v1068
    %2843 = vmatprep.subr.mxu0 0.0
    %2844 = vmatpush1.msra.mxu0 0.0
    %2845 = vmatprep.subr.mxu0 0.0
    %2846 = vmatpush1.msra.mxu0 0.0
    %2847 = vmatprep.subr.mxu0 0.0
    %2848 = vmatpush1.msra.mxu0 0.0
    %2849 = vmatprep.subr.mxu0 0.0
    %2850 = vmatpush1.msra.mxu0 0.0
    %2851 = vmatprep.subr.mxu0 0.0
    %2852 = vmatpush1.msra.mxu0 0.0
    %2853 = vmatprep.subr.mxu0 0.0
    %2854 = vmatpush1.msra.mxu0 0.0
    %2855 = vmatprep.subr.mxu0 0.0
    %2856 = vmatpush1.msra.mxu0 0.0
    %2857 = vmatprep.subr.mxu0 0.0
    %2858 = vmatpush1.msra.mxu0 0.0
    %2859 = vmatprep.subr.mxu0 0.0
    %2860 = vmatpush1.msra.mxu0 0.0
    %2861 = vmatprep.subr.mxu0 0.0
    %2862 = vmatpush1.msra.mxu0 0.0
    %2863 = vmatprep.subr.mxu0 0.0
    %2864 = vmatpush1.msra.mxu0 0.0
    %2865 = vmatprep.subr.mxu0 0.0
    %2866 = vmatpush1.msra.mxu0 0.0
    %2867 = vmatprep.subr.mxu0 0.0
    %2868 = vmatpush1.msra.mxu0 0.0
    %2869 = vmatprep.subr.mxu0 0.0
    %2870 = vmatpush1.msra.mxu0 0.0
    %2871 = vmatprep.subr.mxu0 0.0
    %2872 = vmatpush1.msra.mxu0 0.0
    %2873 = vmatprep.subr.mxu0 0.0
    %2874 = vmatpush1.msra.mxu0 0.0
    %2875 = vmatprep.mubr.f32.mxu0 0.0
    %2876 = vmatmul.mubr.f32.gmra.mrb[0].mxu0 %v2546
    %v2877 = vpop.f32.mrb[0].mxu0
    %v2878 = vadd.f32 0.0, %v2877
    %v2879 = vpop.f32.mrb[0].mxu0
    %v2880 = vadd.f32 0.0, %v2879
    %2881 = vdwg.mxu0
    %v2882 = vadd.f32 %v2736, %v2807
    %v2883 = vadd.f32 %v2737, %v2809
    %v2884 = vadd.f32 %v2738, %v2878
    %v2885 = vadd.f32 %v2739, %v2880
    %v2886 = vsub.f32 0.0, %v2882
    %v2887 = vmul.f32 %v2886, 1.442695
    %v2888 = vpow.pop %v2887
    %v2889 = vadd.f32 %v2888, 1.0
    %v2890 = vrcp.pop %v2889
    %v2891 = vmul.f32 1.0, %v2890
    %v2892 = vsub.f32 0.0, %v2883
    %v2893 = vmul.f32 %v2892, 1.442695
    %v2894 = vpow.pop %v2893
    %v2895 = vadd.f32 %v2894, 1.0
    %v2896 = vrcp.pop %v2895
    %v2897 = vmul.f32 1.0, %v2896
    %v2898 = vtanh.pop %v2884
    %v2899 = vsub.f32 0.0, %v2885
    %v2900 = vmul.f32 %v2899, 1.442695
    %v2901 = vpow.pop %v2900
    %v2902 = vadd.f32 %v2901, 1.0
    %v2903 = vrcp.pop %v2902
    %v2904 = vmul.f32 1.0, %v2903
    %v2905 = vmul.f32 %v2897, %v2547
    %v2906 = vmul.f32 %v2891, %v2898
    %v2907 = vadd.f32 %v2905, %v2906
    %v2908 = vtanh.pop %v2907
    %v2909 = vmul.f32 %v2904, %v2908
    %vm2910 = vcmp.gt.s32.totalorder %v1070, 7
    %v2911 = vsel %vm2910, 1, 0
    %2912 = vset.pattern.permute.xlu0 0
    %2913 = vperm.xlu0 %2912, %v2911
    %v2914 = vpop.permute.xlu0 %2913
    %vm2915 = vcmp.eq.s32.totalorder %v2914, 1
    %v2916 = vsel %vm2915, %v2909, %v2546
    %v2917 = vsel %vm2915, %v2907, %v2547
    %v2918 = vmax.f32 %v2549, %v2909
    %v2919 = vsel %vm2915, %v2918, %v2549
    %s2920 = scalar_lea.vmem [#allocation3], 160
    %v2921 = vld [vmem:[%s2920] sm:$0xff]
    %v2922 = vld [vmem:[%s2920 + $0x8] sm:$0xff]
    %v2923 = vld [vmem:[%s2920 + $0x10] sm:$0xff]
    %v2924 = vld [vmem:[%s2920 + $0x18] sm:$0xff]
    %2925 = vmatprep.subr.mxu0 %v943
    %2926 = vmatpush1.msra.mxu0 %v942
    %2927 = vmatprep.subr.mxu0 %v947
    %2928 = vmatpush1.msra.mxu0 %v946
    %2929 = vmatprep.subr.mxu0 %v951
    %2930 = vmatpush1.msra.mxu0 %v950
    %2931 = vmatprep.subr.mxu0 %v955
    %2932 = vmatpush1.msra.mxu0 %v954
    %2933 = vmatprep.subr.mxu0 %v959
    %2934 = vmatpush1.msra.mxu0 %v958
    %2935 = vmatprep.subr.mxu0 %v963
    %2936 = vmatpush1.msra.mxu0 %v962
    %2937 = vmatprep.subr.mxu0 %v967
    %2938 = vmatpush1.msra.mxu0 %v966
    %2939 = vmatprep.subr.mxu0 %v971
    %2940 = vmatpush1.msra.mxu0 %v970
    %2941 = vmatprep.subr.mxu0 %v975
    %2942 = vmatpush1.msra.mxu0 %v974
    %2943 = vmatprep.subr.mxu0 %v979
    %2944 = vmatpush1.msra.mxu0 %v978
    %2945 = vmatprep.subr.mxu0 %v983
    %2946 = vmatpush1.msra.mxu0 %v982
    %2947 = vmatprep.subr.mxu0 %v987
    %2948 = vmatpush1.msra.mxu0 %v986
    %2949 = vmatprep.subr.mxu0 %v991
    %2950 = vmatpush1.msra.mxu0 %v990
    %2951 = vmatprep.subr.mxu0 %v995
    %2952 = vmatpush1.msra.mxu0 %v994
    %2953 = vmatprep.subr.mxu0 %v999
    %2954 = vmatpush1.msra.mxu0 %v998
    %2955 = vmatprep.subr.mxu0 %v1003
    %2956 = vmatpush1.msra.mxu0 %v1002
    %2957 = vmatprep.subr.mxu0 0.0
    %2958 = vmatpush1.msra.mxu0 0.0
    %2959 = vmatprep.subr.mxu0 0.0
    %2960 = vmatpush1.msra.mxu0 0.0
    %2961 = vmatprep.subr.mxu0 0.0
    %2962 = vmatpush1.msra.mxu0 0.0
    %2963 = vmatprep.subr.mxu0 0.0
    %2964 = vmatpush1.msra.mxu0 0.0
    %2965 = vmatprep.subr.mxu0 0.0
    %2966 = vmatpush1.msra.mxu0 0.0
    %2967 = vmatprep.subr.mxu0 0.0
    %2968 = vmatpush1.msra.mxu0 0.0
    %2969 = vmatprep.subr.mxu0 0.0
    %2970 = vmatpush1.msra.mxu0 0.0
    %2971 = vmatprep.subr.mxu0 0.0
    %2972 = vmatpush1.msra.mxu0 0.0
    %2973 = vmatprep.subr.mxu0 0.0
    %2974 = vmatpush1.msra.mxu0 0.0
    %2975 = vmatprep.subr.mxu0 0.0
    %2976 = vmatpush1.msra.mxu0 0.0
    %2977 = vmatprep.subr.mxu0 0.0
    %2978 = vmatpush1.msra.mxu0 0.0
    %2979 = vmatprep.subr.mxu0 0.0
    %2980 = vmatpush1.msra.mxu0 0.0
    %2981 = vmatprep.subr.mxu0 0.0
    %2982 = vmatpush1.msra.mxu0 0.0
    %2983 = vmatprep.subr.mxu0 0.0
    %2984 = vmatpush1.msra.mxu0 0.0
    %2985 = vmatprep.subr.mxu0 0.0
    %2986 = vmatpush1.msra.mxu0 0.0
    %2987 = vmatprep.subr.mxu0 0.0
    %2988 = vmatpush1.msra.mxu0 0.0
    %2989 = vmatprep.mubr.f32.mxu0 0.0
    %2990 = vmatmul.mubr.f32.gmra.mrb[0].mxu0 %v2731
    %v2991 = vpop.f32.mrb[0].mxu0
    %v2992 = vadd.f32 0.0, %v2991
    %v2993 = vpop.f32.mrb[0].mxu0
    %v2994 = vadd.f32 0.0, %v2993
    %2995 = vdwg.mxu0
    %2996 = vmatprep.subr.mxu0 %v945
    %2997 = vmatpush1.msra.mxu0 %v944
    %2998 = vmatprep.subr.mxu0 %v949
    %2999 = vmatpush1.msra.mxu0 %v948
    %3000 = vmatprep.subr.mxu0 %v953
    %3001 = vmatpush1.msra.mxu0 %v952
    %3002 = vmatprep.subr.mxu0 %v957
    %3003 = vmatpush1.msra.mxu0 %v956
    %3004 = vmatprep.subr.mxu0 %v961
    %3005 = vmatpush1.msra.mxu0 %v960
    %3006 = vmatprep.subr.mxu0 %v965
    %3007 = vmatpush1.msra.mxu0 %v964
    %3008 = vmatprep.subr.mxu0 %v969
    %3009 = vmatpush1.msra.mxu0 %v968
    %3010 = vmatprep.subr.mxu0 %v973
    %3011 = vmatpush1.msra.mxu0 %v972
    %3012 = vmatprep.subr.mxu0 %v977
    %3013 = vmatpush1.msra.mxu0 %v976
    %3014 = vmatprep.subr.mxu0 %v981
    %3015 = vmatpush1.msra.mxu0 %v980
    %3016 = vmatprep.subr.mxu0 %v985
    %3017 = vmatpush1.msra.mxu0 %v984
    %3018 = vmatprep.subr.mxu0 %v989
    %3019 = vmatpush1.msra.mxu0 %v988
    %3020 = vmatprep.subr.mxu0 %v993
    %3021 = vmatpush1.msra.mxu0 %v992
    %3022 = vmatprep.subr.mxu0 %v997
    %3023 = vmatpush1.msra.mxu0 %v996
    %3024 = vmatprep.subr.mxu0 %v1001
    %3025 = vmatpush1.msra.mxu0 %v1000
    %3026 = vmatprep.subr.mxu0 %v1005
    %3027 = vmatpush1.msra.mxu0 %v1004
    %3028 = vmatprep.subr.mxu0 0.0
    %3029 = vmatpush1.msra.mxu0 0.0
    %3030 = vmatprep.subr.mxu0 0.0
    %3031 = vmatpush1.msra.mxu0 0.0
    %3032 = vmatprep.subr.mxu0 0.0
    %3033 = vmatpush1.msra.mxu0 0.0
    %3034 = vmatprep.subr.mxu0 0.0
    %3035 = vmatpush1.msra.mxu0 0.0
    %3036 = vmatprep.subr.mxu0 0.0
    %3037 = vmatpush1.msra.mxu0 0.0
    %3038 = vmatprep.subr.mxu0 0.0
    %3039 = vmatpush1.msra.mxu0 0.0
    %3040 = vmatprep.subr.mxu0 0.0
    %3041 = vmatpush1.msra.mxu0 0.0
    %3042 = vmatprep.subr.mxu0 0.0
    %3043 = vmatpush1.msra.mxu0 0.0
    %3044 = vmatprep.subr.mxu0 0.0
    %3045 = vmatpush1.msra.mxu0 0.0
    %3046 = vmatprep.subr.mxu0 0.0
    %3047 = vmatpush1.msra.mxu0 0.0
    %3048 = vmatprep.subr.mxu0 0.0
    %3049 = vmatpush1.msra.mxu0 0.0
    %3050 = vmatprep.subr.mxu0 0.0
    %3051 = vmatpush1.msra.mxu0 0.0
    %3052 = vmatprep.subr.mxu0 0.0
    %3053 = vmatpush1.msra.mxu0 0.0
    %3054 = vmatprep.subr.mxu0 0.0
    %3055 = vmatpush1.msra.mxu0 0.0
    %3056 = vmatprep.subr.mxu0 0.0
    %3057 = vmatpush1.msra.mxu0 0.0
    %3058 = vmatprep.subr.mxu0 0.0
    %3059 = vmatpush1.msra.mxu0 0.0
    %3060 = vmatprep.mubr.f32.mxu0 0.0
    %3061 = vmatmul.mubr.f32.gmra.mrb[0].mxu0 %v2731
    %v3062 = vpop.f32.mrb[0].mxu0
    %v3063 = vadd.f32 0.0, %v3062
    %v3064 = vpop.f32.mrb[0].mxu0
    %v3065 = vadd.f32 0.0, %v3064
    %3066 = vdwg.mxu0
    %v3067 = vadd.f32 %v2921, %v2992
    %v3068 = vadd.f32 %v2922, %v2994
    %v3069 = vadd.f32 %v2923, %v3063
    %v3070 = vadd.f32 %v2924, %v3065
    %v3071 = vsub.f32 0.0, %v3067
    %v3072 = vmul.f32 %v3071, 1.442695
    %v3073 = vpow.pop %v3072
    %v3074 = vadd.f32 %v3073, 1.0
    %v3075 = vrcp.pop %v3074
    %v3076 = vmul.f32 1.0, %v3075
    %v3077 = vsub.f32 0.0, %v3068
    %v3078 = vmul.f32 %v3077, 1.442695
    %v3079 = vpow.pop %v3078
    %v3080 = vadd.f32 %v3079, 1.0
    %v3081 = vrcp.pop %v3080
    %v3082 = vmul.f32 1.0, %v3081
    %v3083 = vtanh.pop %v3069
    %v3084 = vsub.f32 0.0, %v3070
    %v3085 = vmul.f32 %v3084, 1.442695
    %v3086 = vpow.pop %v3085
    %v3087 = vadd.f32 %v3086, 1.0
    %v3088 = vrcp.pop %v3087
    %v3089 = vmul.f32 1.0, %v3088
    %v3090 = vmul.f32 %v3082, %v2732
    %v3091 = vmul.f32 %v3076, %v3083
    %v3092 = vadd.f32 %v3090, %v3091
    %v3093 = vtanh.pop %v3092
    %v3094 = vmul.f32 %v3089, %v3093
    %vm3095 = vcmp.gt.s32.totalorder %v1070, 5
    %v3096 = vsel %vm3095, 1, 0
    %3097 = vset.pattern.permute.xlu0 0
    %3098 = vperm.xlu0 %3097, %v3096
    %v3099 = vpop.permute.xlu0 %3098
    %vm3100 = vcmp.eq.s32.totalorder %v3099, 1
    %v3101 = vsel %vm3100, %v3094, %v2731
    %v3102 = vsel %vm3100, %v3092, %v2732
    %v3103 = vmax.f32 %v2734, %v3094
    %v3104 = vsel %vm3100, %v3103, %v2734
    %s3105 = scalar_lea.vmem [#allocation4], 192
    %v3106 = vld [vmem:[%s3105] sm:$0xff]
    %v3107 = vld [vmem:[%s3105 + $0x8] sm:$0xff]
    %v3108 = vld [vmem:[%s3105 + $0x10] sm:$0xff]
    %v3109 = vld [vmem:[%s3105 + $0x18] sm:$0xff]
    %3110 = vmatprep.subr.mxu0 %v1007
    %3111 = vmatpush1.msra.mxu0 %v1006
    %3112 = vmatprep.subr.mxu0 %v1011
    %3113 = vmatpush1.msra.mxu0 %v1010
    %3114 = vmatprep.subr.mxu0 %v1015
    %3115 = vmatpush1.msra.mxu0 %v1014
    %3116 = vmatprep.subr.mxu0 %v1019
    %3117 = vmatpush1.msra.mxu0 %v1018
    %3118 = vmatprep.subr.mxu0 %v1023
    %3119 = vmatpush1.msra.mxu0 %v1022
    %3120 = vmatprep.subr.mxu0 %v1027
    %3121 = vmatpush1.msra.mxu0 %v1026
    %3122 = vmatprep.subr.mxu0 %v1031
    %3123 = vmatpush1.msra.mxu0 %v1030
    %3124 = vmatprep.subr.mxu0 %v1035
    %3125 = vmatpush1.msra.mxu0 %v1034
    %3126 = vmatprep.subr.mxu0 %v1039
    %3127 = vmatpush1.msra.mxu0 %v1038
    %3128 = vmatprep.subr.mxu0 %v1043
    %3129 = vmatpush1.msra.mxu0 %v1042
    %3130 = vmatprep.subr.mxu0 %v1047
    %3131 = vmatpush1.msra.mxu0 %v1046
    %3132 = vmatprep.subr.mxu0 %v1051
    %3133 = vmatpush1.msra.mxu0 %v1050
    %3134 = vmatprep.subr.mxu0 %v1055
    %3135 = vmatpush1.msra.mxu0 %v1054
    %3136 = vmatprep.subr.mxu0 %v1059
    %3137 = vmatpush1.msra.mxu0 %v1058
    %3138 = vmatprep.subr.mxu0 %v1063
    %3139 = vmatpush1.msra.mxu0 %v1062
    %3140 = vmatprep.subr.mxu0 %v1067
    %3141 = vmatpush1.msra.mxu0 %v1066
    %3142 = vmatprep.subr.mxu0 0.0
    %3143 = vmatpush1.msra.mxu0 0.0
    %3144 = vmatprep.subr.mxu0 0.0
    %3145 = vmatpush1.msra.mxu0 0.0
    %3146 = vmatprep.subr.mxu0 0.0
    %3147 = vmatpush1.msra.mxu0 0.0
    %3148 = vmatprep.subr.mxu0 0.0
    %3149 = vmatpush1.msra.mxu0 0.0
    %3150 = vmatprep.subr.mxu0 0.0
    %3151 = vmatpush1.msra.mxu0 0.0
    %3152 = vmatprep.subr.mxu0 0.0
    %3153 = vmatpush1.msra.mxu0 0.0
    %3154 = vmatprep.subr.mxu0 0.0
    %3155 = vmatpush1.msra.mxu0 0.0
    %3156 = vmatprep.subr.mxu0 0.0
    %3157 = vmatpush1.msra.mxu0 0.0
    %3158 = vmatprep.subr.mxu0 0.0
    %3159 = vmatpush1.msra.mxu0 0.0
    %3160 = vmatprep.subr.mxu0 0.0
    %3161 = vmatpush1.msra.mxu0 0.0
    %3162 = vmatprep.subr.mxu0 0.0
    %3163 = vmatpush1.msra.mxu0 0.0
    %3164 = vmatprep.subr.mxu0 0.0
    %3165 = vmatpush1.msra.mxu0 0.0
    %3166 = vmatprep.subr.mxu0 0.0
    %3167 = vmatpush1.msra.mxu0 0.0
    %3168 = vmatprep.subr.mxu0 0.0
    %3169 = vmatpush1.msra.mxu0 0.0
    %3170 = vmatprep.subr.mxu0 0.0
    %3171 = vmatpush1.msra.mxu0 0.0
    %3172 = vmatprep.subr.mxu0 0.0
    %3173 = vmatpush1.msra.mxu0 0.0
    %3174 = vmatprep.mubr.f32.mxu0 0.0
    %3175 = vmatmul.mubr.f32.gmra.mrb[0].mxu0 %v2916
    %v3176 = vpop.f32.mrb[0].mxu0
    %v3177 = vadd.f32 0.0, %v3176
    %v3178 = vpop.f32.mrb[0].mxu0
    %v3179 = vadd.f32 0.0, %v3178
    %3180 = vdwg.mxu0
    %3181 = vmatprep.subr.mxu0 %v1009
    %3182 = vmatpush1.msra.mxu0 %v1008
    %3183 = vmatprep.subr.mxu0 %v1013
    %3184 = vmatpush1.msra.mxu0 %v1012
    %3185 = vmatprep.subr.mxu0 %v1017
    %3186 = vmatpush1.msra.mxu0 %v1016
    %3187 = vmatprep.subr.mxu0 %v1021
    %3188 = vmatpush1.msra.mxu0 %v1020
    %3189 = vmatprep.subr.mxu0 %v1025
    %3190 = vmatpush1.msra.mxu0 %v1024
    %3191 = vmatprep.subr.mxu0 %v1029
    %3192 = vmatpush1.msra.mxu0 %v1028
    %3193 = vmatprep.subr.mxu0 %v1033
    %3194 = vmatpush1.msra.mxu0 %v1032
    %3195 = vmatprep.subr.mxu0 %v1037
    %3196 = vmatpush1.msra.mxu0 %v1036
    %3197 = vmatprep.subr.mxu0 %v1041
    %3198 = vmatpush1.msra.mxu0 %v1040
    %3199 = vmatprep.subr.mxu0 %v1045
    %3200 = vmatpush1.msra.mxu0 %v1044
    %3201 = vmatprep.subr.mxu0 %v1049
    %3202 = vmatpush1.msra.mxu0 %v1048
    %3203 = vmatprep.subr.mxu0 %v1053
    %3204 = vmatpush1.msra.mxu0 %v1052
    %3205 = vmatprep.subr.mxu0 %v1057
    %3206 = vmatpush1.msra.mxu0 %v1056
    %3207 = vmatprep.subr.mxu0 %v1061
    %3208 = vmatpush1.msra.mxu0 %v1060
    %3209 = vmatprep.subr.mxu0 %v1065
    %3210 = vmatpush1.msra.mxu0 %v1064
    %3211 = vmatprep.subr.mxu0 %v1069
    %3212 = vmatpush1.msra.mxu0 %v1068
    %3213 = vmatprep.subr.mxu0 0.0
    %3214 = vmatpush1.msra.mxu0 0.0
    %3215 = vmatprep.subr.mxu0 0.0
    %3216 = vmatpush1.msra.mxu0 0.0
    %3217 = vmatprep.subr.mxu0 0.0
    %3218 = vmatpush1.msra.mxu0 0.0
    %3219 = vmatprep.subr.mxu0 0.0
    %3220 = vmatpush1.msra.mxu0 0.0
    %3221 = vmatprep.subr.mxu0 0.0
    %3222 = vmatpush1.msra.mxu0 0.0
    %3223 = vmatprep.subr.mxu0 0.0
    %3224 = vmatpush1.msra.mxu0 0.0
    %3225 = vmatprep.subr.mxu0 0.0
    %3226 = vmatpush1.msra.mxu0 0.0
    %3227 = vmatprep.subr.mxu0 0.0
    %3228 = vmatpush1.msra.mxu0 0.0
    %3229 = vmatprep.subr.mxu0 0.0
    %3230 = vmatpush1.msra.mxu0 0.0
    %3231 = vmatprep.subr.mxu0 0.0
    %3232 = vmatpush1.msra.mxu0 0.0
    %3233 = vmatprep.subr.mxu0 0.0
    %3234 = vmatpush1.msra.mxu0 0.0
    %3235 = vmatprep.subr.mxu0 0.0
    %3236 = vmatpush1.msra.mxu0 0.0
    %3237 = vmatprep.subr.mxu0 0.0
    %3238 = vmatpush1.msra.mxu0 0.0
    %3239 = vmatprep.subr.mxu0 0.0
    %3240 = vmatpush1.msra.mxu0 0.0
    %3241 = vmatprep.subr.mxu0 0.0
    %3242 = vmatpush1.msra.mxu0 0.0
    %3243 = vmatprep.subr.mxu0 0.0
    %3244 = vmatpush1.msra.mxu0 0.0
    %3245 = vmatprep.mubr.f32.mxu0 0.0
    %3246 = vmatmul.mubr.f32.gmra.mrb[0].mxu0 %v2916
    %v3247 = vpop.f32.mrb[0].mxu0
    %v3248 = vadd.f32 0.0, %v3247
    %v3249 = vpop.f32.mrb[0].mxu0
    %v3250 = vadd.f32 0.0, %v3249
    %3251 = vdwg.mxu0
    %v3252 = vadd.f32 %v3106, %v3177
    %v3253 = vadd.f32 %v3107, %v3179
    %v3254 = vadd.f32 %v3108, %v3248
    %v3255 = vadd.f32 %v3109, %v3250
    %v3256 = vsub.f32 0.0, %v3252
    %v3257 = vmul.f32 %v3256, 1.442695
    %v3258 = vpow.pop %v3257
    %v3259 = vadd.f32 %v3258, 1.0
    %v3260 = vrcp.pop %v3259
    %v3261 = vmul.f32 1.0, %v3260
    %v3262 = vsub.f32 0.0, %v3253
    %v3263 = vmul.f32 %v3262, 1.442695
    %v3264 = vpow.pop %v3263
    %v3265 = vadd.f32 %v3264, 1.0
    %v3266 = vrcp.pop %v3265
    %v3267 = vmul.f32 1.0, %v3266
    %v3268 = vtanh.pop %v3254
    %v3269 = vsub.f32 0.0, %v3255
    %v3270 = vmul.f32 %v3269, 1.442695
    %v3271 = vpow.pop %v3270
    %v3272 = vadd.f32 %v3271, 1.0
    %v3273 = vrcp.pop %v3272
    %v3274 = vmul.f32 1.0, %v3273
    %v3275 = vmul.f32 %v3267, %v2917
    %v3276 = vmul.f32 %v3261, %v3268
    %v3277 = vadd.f32 %v3275, %v3276
    %v3278 = vtanh.pop %v3277
    %v3279 = vmul.f32 %v3274, %v3278
    %vm3280 = vcmp.gt.s32.totalorder %v1070, 6
    %v3281 = vsel %vm3280, 1, 0
    %3282 = vset.pattern.permute.xlu0 0
    %3283 = vperm.xlu0 %3282, %v3281
    %v3284 = vpop.permute.xlu0 %3283
    %vm3285 = vcmp.eq.s32.totalorder %v3284, 1
    %v3286 = vsel %vm3285, %v3279, %v2916
    %v3287 = vsel %vm3285, %v3277, %v2917
    %v3288 = vmax.f32 %v2919, %v3279
    %v3289 = vsel %vm3285, %v3288, %v2919
    %s3290 = scalar_lea.vmem [#allocation3], 192
    %v3291 = vld [vmem:[%s3290] sm:$0xff]
    %v3292 = vld [vmem:[%s3290 + $0x8] sm:$0xff]
    %v3293 = vld [vmem:[%s3290 + $0x10] sm:$0xff]
    %v3294 = vld [vmem:[%s3290 + $0x18] sm:$0xff]
    %3295 = vmatprep.subr.mxu0 %v943
    %3296 = vmatpush1.msra.mxu0 %v942
    %3297 = vmatprep.subr.mxu0 %v947
    %3298 = vmatpush1.msra.mxu0 %v946
    %3299 = vmatprep.subr.mxu0 %v951
    %3300 = vmatpush1.msra.mxu0 %v950
    %3301 = vmatprep.subr.mxu0 %v955
    %3302 = vmatpush1.msra.mxu0 %v954
    %3303 = vmatprep.subr.mxu0 %v959
    %3304 = vmatpush1.msra.mxu0 %v958
    %3305 = vmatprep.subr.mxu0 %v963
    %3306 = vmatpush1.msra.mxu0 %v962
    %3307 = vmatprep.subr.mxu0 %v967
    %3308 = vmatpush1.msra.mxu0 %v966
    %3309 = vmatprep.subr.mxu0 %v971
    %3310 = vmatpush1.msra.mxu0 %v970
    %3311 = vmatprep.subr.mxu0 %v975
    %3312 = vmatpush1.msra.mxu0 %v974
    %3313 = vmatprep.subr.mxu0 %v979
    %3314 = vmatpush1.msra.mxu0 %v978
    %3315 = vmatprep.subr.mxu0 %v983
    %3316 = vmatpush1.msra.mxu0 %v982
    %3317 = vmatprep.subr.mxu0 %v987
    %3318 = vmatpush1.msra.mxu0 %v986
    %3319 = vmatprep.subr.mxu0 %v991
    %3320 = vmatpush1.msra.mxu0 %v990
    %3321 = vmatprep.subr.mxu0 %v995
    %3322 = vmatpush1.msra.mxu0 %v994
    %3323 = vmatprep.subr.mxu0 %v999
    %3324 = vmatpush1.msra.mxu0 %v998
    %3325 = vmatprep.subr.mxu0 %v1003
    %3326 = vmatpush1.msra.mxu0 %v1002
    %3327 = vmatprep.subr.mxu0 0.0
    %3328 = vmatpush1.msra.mxu0 0.0
    %3329 = vmatprep.subr.mxu0 0.0
    %3330 = vmatpush1.msra.mxu0 0.0
    %3331 = vmatprep.subr.mxu0 0.0
    %3332 = vmatpush1.msra.mxu0 0.0
    %3333 = vmatprep.subr.mxu0 0.0
    %3334 = vmatpush1.msra.mxu0 0.0
    %3335 = vmatprep.subr.mxu0 0.0
    %3336 = vmatpush1.msra.mxu0 0.0
    %3337 = vmatprep.subr.mxu0 0.0
    %3338 = vmatpush1.msra.mxu0 0.0
    %3339 = vmatprep.subr.mxu0 0.0
    %3340 = vmatpush1.msra.mxu0 0.0
    %3341 = vmatprep.subr.mxu0 0.0
    %3342 = vmatpush1.msra.mxu0 0.0
    %3343 = vmatprep.subr.mxu0 0.0
    %3344 = vmatpush1.msra.mxu0 0.0
    %3345 = vmatprep.subr.mxu0 0.0
    %3346 = vmatpush1.msra.mxu0 0.0
    %3347 = vmatprep.subr.mxu0 0.0
    %3348 = vmatpush1.msra.mxu0 0.0
    %3349 = vmatprep.subr.mxu0 0.0
    %3350 = vmatpush1.msra.mxu0 0.0
    %3351 = vmatprep.subr.mxu0 0.0
    %3352 = vmatpush1.msra.mxu0 0.0
    %3353 = vmatprep.subr.mxu0 0.0
    %3354 = vmatpush1.msra.mxu0 0.0
    %3355 = vmatprep.subr.mxu0 0.0
    %3356 = vmatpush1.msra.mxu0 0.0
    %3357 = vmatprep.subr.mxu0 0.0
    %3358 = vmatpush1.msra.mxu0 0.0
    %3359 = vmatprep.mubr.f32.mxu0 0.0
    %3360 = vmatmul.mubr.f32.gmra.mrb[0].mxu0 %v3101
    %v3361 = vpop.f32.mrb[0].mxu0
    %v3362 = vadd.f32 0.0, %v3361
    %v3363 = vpop.f32.mrb[0].mxu0
    %v3364 = vadd.f32 0.0, %v3363
    %3365 = vdwg.mxu0
    %3366 = vmatprep.subr.mxu0 %v945
    %3367 = vmatpush1.msra.mxu0 %v944
    %3368 = vmatprep.subr.mxu0 %v949
    %3369 = vmatpush1.msra.mxu0 %v948
    %3370 = vmatprep.subr.mxu0 %v953
    %3371 = vmatpush1.msra.mxu0 %v952
    %3372 = vmatprep.subr.mxu0 %v957
    %3373 = vmatpush1.msra.mxu0 %v956
    %3374 = vmatprep.subr.mxu0 %v961
    %3375 = vmatpush1.msra.mxu0 %v960
    %3376 = vmatprep.subr.mxu0 %v965
    %3377 = vmatpush1.msra.mxu0 %v964
    %3378 = vmatprep.subr.mxu0 %v969
    %3379 = vmatpush1.msra.mxu0 %v968
    %3380 = vmatprep.subr.mxu0 %v973
    %3381 = vmatpush1.msra.mxu0 %v972
    %3382 = vmatprep.subr.mxu0 %v977
    %3383 = vmatpush1.msra.mxu0 %v976
    %3384 = vmatprep.subr.mxu0 %v981
    %3385 = vmatpush1.msra.mxu0 %v980
    %3386 = vmatprep.subr.mxu0 %v985
    %3387 = vmatpush1.msra.mxu0 %v984
    %3388 = vmatprep.subr.mxu0 %v989
    %3389 = vmatpush1.msra.mxu0 %v988
    %3390 = vmatprep.subr.mxu0 %v993
    %3391 = vmatpush1.msra.mxu0 %v992
    %3392 = vmatprep.subr.mxu0 %v997
    %3393 = vmatpush1.msra.mxu0 %v996
    %3394 = vmatprep.subr.mxu0 %v1001
    %3395 = vmatpush1.msra.mxu0 %v1000
    %3396 = vmatprep.subr.mxu0 %v1005
    %3397 = vmatpush1.msra.mxu0 %v1004
    %3398 = vmatprep.subr.mxu0 0.0
    %3399 = vmatpush1.msra.mxu0 0.0
    %3400 = vmatprep.subr.mxu0 0.0
    %3401 = vmatpush1.msra.mxu0 0.0
    %3402 = vmatprep.subr.mxu0 0.0
    %3403 = vmatpush1.msra.mxu0 0.0
    %3404 = vmatprep.subr.mxu0 0.0
    %3405 = vmatpush1.msra.mxu0 0.0
    %3406 = vmatprep.subr.mxu0 0.0
    %3407 = vmatpush1.msra.mxu0 0.0
    %3408 = vmatprep.subr.mxu0 0.0
    %3409 = vmatpush1.msra.mxu0 0.0
    %3410 = vmatprep.subr.mxu0 0.0
    %3411 = vmatpush1.msra.mxu0 0.0
    %3412 = vmatprep.subr.mxu0 0.0
    %3413 = vmatpush1.msra.mxu0 0.0
    %3414 = vmatprep.subr.mxu0 0.0
    %3415 = vmatpush1.msra.mxu0 0.0
    %3416 = vmatprep.subr.mxu0 0.0
    %3417 = vmatpush1.msra.mxu0 0.0
    %3418 = vmatprep.subr.mxu0 0.0
    %3419 = vmatpush1.msra.mxu0 0.0
    %3420 = vmatprep.subr.mxu0 0.0
    %3421 = vmatpush1.msra.mxu0 0.0
    %3422 = vmatprep.subr.mxu0 0.0
    %3423 = vmatpush1.msra.mxu0 0.0
    %3424 = vmatprep.subr.mxu0 0.0
    %3425 = vmatpush1.msra.mxu0 0.0
    %3426 = vmatprep.subr.mxu0 0.0
    %3427 = vmatpush1.msra.mxu0 0.0
    %3428 = vmatprep.subr.mxu0 0.0
    %3429 = vmatpush1.msra.mxu0 0.0
    %3430 = vmatprep.mubr.f32.mxu0 0.0
    %3431 = vmatmul.mubr.f32.gmra.mrb[0].mxu0 %v3101
    %v3432 = vpop.f32.mrb[0].mxu0
    %v3433 = vadd.f32 0.0, %v3432
    %v3434 = vpop.f32.mrb[0].mxu0
    %v3435 = vadd.f32 0.0, %v3434
    %3436 = vdwg.mxu0
    %v3437 = vadd.f32 %v3291, %v3362
    %v3438 = vadd.f32 %v3292, %v3364
    %v3439 = vadd.f32 %v3293, %v3433
    %v3440 = vadd.f32 %v3294, %v3435
    %v3441 = vsub.f32 0.0, %v3437
    %v3442 = vmul.f32 %v3441, 1.442695
    %v3443 = vpow.pop %v3442
    %v3444 = vadd.f32 %v3443, 1.0
    %v3445 = vrcp.pop %v3444
    %v3446 = vmul.f32 1.0, %v3445
    %v3447 = vsub.f32 0.0, %v3438
    %v3448 = vmul.f32 %v3447, 1.442695
    %v3449 = vpow.pop %v3448
    %v3450 = vadd.f32 %v3449, 1.0
    %v3451 = vrcp.pop %v3450
    %v3452 = vmul.f32 1.0, %v3451
    %v3453 = vtanh.pop %v3439
    %v3454 = vsub.f32 0.0, %v3440
    %v3455 = vmul.f32 %v3454, 1.442695
    %v3456 = vpow.pop %v3455
    %v3457 = vadd.f32 %v3456, 1.0
    %v3458 = vrcp.pop %v3457
    %v3459 = vmul.f32 1.0, %v3458
    %v3460 = vmul.f32 %v3452, %v3102
    %v3461 = vmul.f32 %v3446, %v3453
    %v3462 = vadd.f32 %v3460, %v3461
    %v3463 = vtanh.pop %v3462
    %v3464 = vmul.f32 %v3459, %v3463
    %v3465 = vsel %vm3285, %v3464, %v3101
    %v3466 = vsel %vm3285, %v3462, %v3102
    %v3467 = vmax.f32 %v3104, %v3464
    %v3468 = vsel %vm3285, %v3467, %v3104
    %s3469 = scalar_lea.vmem [#allocation4], 160
    %v3470 = vld [vmem:[%s3469] sm:$0xff]
    %v3471 = vld [vmem:[%s3469 + $0x8] sm:$0xff]
    %v3472 = vld [vmem:[%s3469 + $0x10] sm:$0xff]
    %v3473 = vld [vmem:[%s3469 + $0x18] sm:$0xff]
    %3474 = vmatprep.subr.mxu0 %v1007
    %3475 = vmatpush1.msra.mxu0 %v1006
    %3476 = vmatprep.subr.mxu0 %v1011
    %3477 = vmatpush1.msra.mxu0 %v1010
    %3478 = vmatprep.subr.mxu0 %v1015
    %3479 = vmatpush1.msra.mxu0 %v1014
    %3480 = vmatprep.subr.mxu0 %v1019
    %3481 = vmatpush1.msra.mxu0 %v1018
    %3482 = vmatprep.subr.mxu0 %v1023
    %3483 = vmatpush1.msra.mxu0 %v1022
    %3484 = vmatprep.subr.mxu0 %v1027
    %3485 = vmatpush1.msra.mxu0 %v1026
    %3486 = vmatprep.subr.mxu0 %v1031
    %3487 = vmatpush1.msra.mxu0 %v1030
    %3488 = vmatprep.subr.mxu0 %v1035
    %3489 = vmatpush1.msra.mxu0 %v1034
    %3490 = vmatprep.subr.mxu0 %v1039
    %3491 = vmatpush1.msra.mxu0 %v1038
    %3492 = vmatprep.subr.mxu0 %v1043
    %3493 = vmatpush1.msra.mxu0 %v1042
    %3494 = vmatprep.subr.mxu0 %v1047
    %3495 = vmatpush1.msra.mxu0 %v1046
    %3496 = vmatprep.subr.mxu0 %v1051
    %3497 = vmatpush1.msra.mxu0 %v1050
    %3498 = vmatprep.subr.mxu0 %v1055
    %3499 = vmatpush1.msra.mxu0 %v1054
    %3500 = vmatprep.subr.mxu0 %v1059
    %3501 = vmatpush1.msra.mxu0 %v1058
    %3502 = vmatprep.subr.mxu0 %v1063
    %3503 = vmatpush1.msra.mxu0 %v1062
    %3504 = vmatprep.subr.mxu0 %v1067
    %3505 = vmatpush1.msra.mxu0 %v1066
    %3506 = vmatprep.subr.mxu0 0.0
    %3507 = vmatpush1.msra.mxu0 0.0
    %3508 = vmatprep.subr.mxu0 0.0
    %3509 = vmatpush1.msra.mxu0 0.0
    %3510 = vmatprep.subr.mxu0 0.0
    %3511 = vmatpush1.msra.mxu0 0.0
    %3512 = vmatprep.subr.mxu0 0.0
    %3513 = vmatpush1.msra.mxu0 0.0
    %3514 = vmatprep.subr.mxu0 0.0
    %3515 = vmatpush1.msra.mxu0 0.0
    %3516 = vmatprep.subr.mxu0 0.0
    %3517 = vmatpush1.msra.mxu0 0.0
    %3518 = vmatprep.subr.mxu0 0.0
    %3519 = vmatpush1.msra.mxu0 0.0
    %3520 = vmatprep.subr.mxu0 0.0
    %3521 = vmatpush1.msra.mxu0 0.0
    %3522 = vmatprep.subr.mxu0 0.0
    %3523 = vmatpush1.msra.mxu0 0.0
    %3524 = vmatprep.subr.mxu0 0.0
    %3525 = vmatpush1.msra.mxu0 0.0
    %3526 = vmatprep.subr.mxu0 0.0
    %3527 = vmatpush1.msra.mxu0 0.0
    %3528 = vmatprep.subr.mxu0 0.0
    %3529 = vmatpush1.msra.mxu0 0.0
    %3530 = vmatprep.subr.mxu0 0.0
    %3531 = vmatpush1.msra.mxu0 0.0
    %3532 = vmatprep.subr.mxu0 0.0
    %3533 = vmatpush1.msra.mxu0 0.0
    %3534 = vmatprep.subr.mxu0 0.0
    %3535 = vmatpush1.msra.mxu0 0.0
    %3536 = vmatprep.subr.mxu0 0.0
    %3537 = vmatpush1.msra.mxu0 0.0
    %3538 = vmatprep.mubr.f32.mxu0 0.0
    %3539 = vmatmul.mubr.f32.gmra.mrb[0].mxu0 %v3286
    %v3540 = vpop.f32.mrb[0].mxu0
    %v3541 = vadd.f32 0.0, %v3540
    %v3542 = vpop.f32.mrb[0].mxu0
    %v3543 = vadd.f32 0.0, %v3542
    %3544 = vdwg.mxu0
    %3545 = vmatprep.subr.mxu0 %v1009
    %3546 = vmatpush1.msra.mxu0 %v1008
    %3547 = vmatprep.subr.mxu0 %v1013
    %3548 = vmatpush1.msra.mxu0 %v1012
    %3549 = vmatprep.subr.mxu0 %v1017
    %3550 = vmatpush1.msra.mxu0 %v1016
    %3551 = vmatprep.subr.mxu0 %v1021
    %3552 = vmatpush1.msra.mxu0 %v1020
    %3553 = vmatprep.subr.mxu0 %v1025
    %3554 = vmatpush1.msra.mxu0 %v1024
    %3555 = vmatprep.subr.mxu0 %v1029
    %3556 = vmatpush1.msra.mxu0 %v1028
    %3557 = vmatprep.subr.mxu0 %v1033
    %3558 = vmatpush1.msra.mxu0 %v1032
    %3559 = vmatprep.subr.mxu0 %v1037
    %3560 = vmatpush1.msra.mxu0 %v1036
    %3561 = vmatprep.subr.mxu0 %v1041
    %3562 = vmatpush1.msra.mxu0 %v1040
    %3563 = vmatprep.subr.mxu0 %v1045
    %3564 = vmatpush1.msra.mxu0 %v1044
    %3565 = vmatprep.subr.mxu0 %v1049
    %3566 = vmatpush1.msra.mxu0 %v1048
    %3567 = vmatprep.subr.mxu0 %v1053
    %3568 = vmatpush1.msra.mxu0 %v1052
    %3569 = vmatprep.subr.mxu0 %v1057
    %3570 = vmatpush1.msra.mxu0 %v1056
    %3571 = vmatprep.subr.mxu0 %v1061
    %3572 = vmatpush1.msra.mxu0 %v1060
    %3573 = vmatprep.subr.mxu0 %v1065
    %3574 = vmatpush1.msra.mxu0 %v1064
    %3575 = vmatprep.subr.mxu0 %v1069
    %3576 = vmatpush1.msra.mxu0 %v1068
    %3577 = vmatprep.subr.mxu0 0.0
    %3578 = vmatpush1.msra.mxu0 0.0
    %3579 = vmatprep.subr.mxu0 0.0
    %3580 = vmatpush1.msra.mxu0 0.0
    %3581 = vmatprep.subr.mxu0 0.0
    %3582 = vmatpush1.msra.mxu0 0.0
    %3583 = vmatprep.subr.mxu0 0.0
    %3584 = vmatpush1.msra.mxu0 0.0
    %3585 = vmatprep.subr.mxu0 0.0
    %3586 = vmatpush1.msra.mxu0 0.0
    %3587 = vmatprep.subr.mxu0 0.0
    %3588 = vmatpush1.msra.mxu0 0.0
    %3589 = vmatprep.subr.mxu0 0.0
    %3590 = vmatpush1.msra.mxu0 0.0
    %3591 = vmatprep.subr.mxu0 0.0
    %3592 = vmatpush1.msra.mxu0 0.0
    %3593 = vmatprep.subr.mxu0 0.0
    %3594 = vmatpush1.msra.mxu0 0.0
    %3595 = vmatprep.subr.mxu0 0.0
    %3596 = vmatpush1.msra.mxu0 0.0
    %3597 = vmatprep.subr.mxu0 0.0
    %3598 = vmatpush1.msra.mxu0 0.0
    %3599 = vmatprep.subr.mxu0 0.0
    %3600 = vmatpush1.msra.mxu0 0.0
    %3601 = vmatprep.subr.mxu0 0.0
    %3602 = vmatpush1.msra.mxu0 0.0
    %3603 = vmatprep.subr.mxu0 0.0
    %3604 = vmatpush1.msra.mxu0 0.0
    %3605 = vmatprep.subr.mxu0 0.0
    %3606 = vmatpush1.msra.mxu0 0.0
    %3607 = vmatprep.subr.mxu0 0.0
    %3608 = vmatpush1.msra.mxu0 0.0
    %3609 = vmatprep.mubr.f32.mxu0 0.0
    %3610 = vmatmul.mubr.f32.gmra.mrb[0].mxu0 %v3286
    %v3611 = vpop.f32.mrb[0].mxu0
    %v3612 = vadd.f32 0.0, %v3611
    %v3613 = vpop.f32.mrb[0].mxu0
    %v3614 = vadd.f32 0.0, %v3613
    %3615 = vdwg.mxu0
    %v3616 = vadd.f32 %v3470, %v3541
    %v3617 = vadd.f32 %v3471, %v3543
    %v3618 = vadd.f32 %v3472, %v3612
    %v3619 = vadd.f32 %v3473, %v3614
    %v3620 = vsub.f32 0.0, %v3616
    %v3621 = vmul.f32 %v3620, 1.442695
    %v3622 = vpow.pop %v3621
    %v3623 = vadd.f32 %v3622, 1.0
    %v3624 = vrcp.pop %v3623
    %v3625 = vmul.f32 1.0, %v3624
    %v3626 = vsub.f32 0.0, %v3617
    %v3627 = vmul.f32 %v3626, 1.442695
    %v3628 = vpow.pop %v3627
    %v3629 = vadd.f32 %v3628, 1.0
    %v3630 = vrcp.pop %v3629
    %v3631 = vmul.f32 1.0, %v3630
    %v3632 = vtanh.pop %v3618
    %v3633 = vsub.f32 0.0, %v3619
    %v3634 = vmul.f32 %v3633, 1.442695
    %v3635 = vpow.pop %v3634
    %v3636 = vadd.f32 %v3635, 1.0
    %v3637 = vrcp.pop %v3636
    %v3638 = vmul.f32 1.0, %v3637
    %v3639 = vmul.f32 %v3631, %v3287
    %v3640 = vmul.f32 %v3625, %v3632
    %v3641 = vadd.f32 %v3639, %v3640
    %v3642 = vtanh.pop %v3641
    %v3643 = vmul.f32 %v3638, %v3642
    %v3644 = vsel %vm3100, %v3643, %v3286
    %v3645 = vsel %vm3100, %v3641, %v3287
    %v3646 = vmax.f32 %v3289, %v3643
    %v3647 = vsel %vm3100, %v3646, %v3289
    %s3648 = scalar_lea.vmem [#allocation3], 224
    %v3649 = vld [vmem:[%s3648] sm:$0xff]
    %v3650 = vld [vmem:[%s3648 + $0x8] sm:$0xff]
    %v3651 = vld [vmem:[%s3648 + $0x10] sm:$0xff]
    %v3652 = vld [vmem:[%s3648 + $0x18] sm:$0xff]
    %3653 = vmatprep.subr.mxu0 %v943
    %3654 = vmatpush1.msra.mxu0 %v942
    %3655 = vmatprep.subr.mxu0 %v947
    %3656 = vmatpush1.msra.mxu0 %v946
    %3657 = vmatprep.subr.mxu0 %v951
    %3658 = vmatpush1.msra.mxu0 %v950
    %3659 = vmatprep.subr.mxu0 %v955
    %3660 = vmatpush1.msra.mxu0 %v954
    %3661 = vmatprep.subr.mxu0 %v959
    %3662 = vmatpush1.msra.mxu0 %v958
    %3663 = vmatprep.subr.mxu0 %v963
    %3664 = vmatpush1.msra.mxu0 %v962
    %3665 = vmatprep.subr.mxu0 %v967
    %3666 = vmatpush1.msra.mxu0 %v966
    %3667 = vmatprep.subr.mxu0 %v971
    %3668 = vmatpush1.msra.mxu0 %v970
    %3669 = vmatprep.subr.mxu0 %v975
    %3670 = vmatpush1.msra.mxu0 %v974
    %3671 = vmatprep.subr.mxu0 %v979
    %3672 = vmatpush1.msra.mxu0 %v978
    %3673 = vmatprep.subr.mxu0 %v983
    %3674 = vmatpush1.msra.mxu0 %v982
    %3675 = vmatprep.subr.mxu0 %v987
    %3676 = vmatpush1.msra.mxu0 %v986
    %3677 = vmatprep.subr.mxu0 %v991
    %3678 = vmatpush1.msra.mxu0 %v990
    %3679 = vmatprep.subr.mxu0 %v995
    %3680 = vmatpush1.msra.mxu0 %v994
    %3681 = vmatprep.subr.mxu0 %v999
    %3682 = vmatpush1.msra.mxu0 %v998
    %3683 = vmatprep.subr.mxu0 %v1003
    %3684 = vmatpush1.msra.mxu0 %v1002
    %3685 = vmatprep.subr.mxu0 0.0
    %3686 = vmatpush1.msra.mxu0 0.0
    %3687 = vmatprep.subr.mxu0 0.0
    %3688 = vmatpush1.msra.mxu0 0.0
    %3689 = vmatprep.subr.mxu0 0.0
    %3690 = vmatpush1.msra.mxu0 0.0
    %3691 = vmatprep.subr.mxu0 0.0
    %3692 = vmatpush1.msra.mxu0 0.0
    %3693 = vmatprep.subr.mxu0 0.0
    %3694 = vmatpush1.msra.mxu0 0.0
    %3695 = vmatprep.subr.mxu0 0.0
    %3696 = vmatpush1.msra.mxu0 0.0
    %3697 = vmatprep.subr.mxu0 0.0
    %3698 = vmatpush1.msra.mxu0 0.0
    %3699 = vmatprep.subr.mxu0 0.0
    %3700 = vmatpush1.msra.mxu0 0.0
    %3701 = vmatprep.subr.mxu0 0.0
    %3702 = vmatpush1.msra.mxu0 0.0
    %3703 = vmatprep.subr.mxu0 0.0
    %3704 = vmatpush1.msra.mxu0 0.0
    %3705 = vmatprep.subr.mxu0 0.0
    %3706 = vmatpush1.msra.mxu0 0.0
    %3707 = vmatprep.subr.mxu0 0.0
    %3708 = vmatpush1.msra.mxu0 0.0
    %3709 = vmatprep.subr.mxu0 0.0
    %3710 = vmatpush1.msra.mxu0 0.0
    %3711 = vmatprep.subr.mxu0 0.0
    %3712 = vmatpush1.msra.mxu0 0.0
    %3713 = vmatprep.subr.mxu0 0.0
    %3714 = vmatpush1.msra.mxu0 0.0
    %3715 = vmatprep.subr.mxu0 0.0
    %3716 = vmatpush1.msra.mxu0 0.0
    %3717 = vmatprep.mubr.f32.mxu0 0.0
    %3718 = vmatmul.mubr.f32.gmra.mrb[0].mxu0 %v3465
    %v3719 = vpop.f32.mrb[0].mxu0
    %v3720 = vadd.f32 0.0, %v3719
    %v3721 = vpop.f32.mrb[0].mxu0
    %v3722 = vadd.f32 0.0, %v3721
    %3723 = vdwg.mxu0
    %3724 = vmatprep.subr.mxu0 %v945
    %3725 = vmatpush1.msra.mxu0 %v944
    %3726 = vmatprep.subr.mxu0 %v949
    %3727 = vmatpush1.msra.mxu0 %v948
    %3728 = vmatprep.subr.mxu0 %v953
    %3729 = vmatpush1.msra.mxu0 %v952
    %3730 = vmatprep.subr.mxu0 %v957
    %3731 = vmatpush1.msra.mxu0 %v956
    %3732 = vmatprep.subr.mxu0 %v961
    %3733 = vmatpush1.msra.mxu0 %v960
    %3734 = vmatprep.subr.mxu0 %v965
    %3735 = vmatpush1.msra.mxu0 %v964
    %3736 = vmatprep.subr.mxu0 %v969
    %3737 = vmatpush1.msra.mxu0 %v968
    %3738 = vmatprep.subr.mxu0 %v973
    %3739 = vmatpush1.msra.mxu0 %v972
    %3740 = vmatprep.subr.mxu0 %v977
    %3741 = vmatpush1.msra.mxu0 %v976
    %3742 = vmatprep.subr.mxu0 %v981
    %3743 = vmatpush1.msra.mxu0 %v980
    %3744 = vmatprep.subr.mxu0 %v985
    %3745 = vmatpush1.msra.mxu0 %v984
    %3746 = vmatprep.subr.mxu0 %v989
    %3747 = vmatpush1.msra.mxu0 %v988
    %3748 = vmatprep.subr.mxu0 %v993
    %3749 = vmatpush1.msra.mxu0 %v992
    %3750 = vmatprep.subr.mxu0 %v997
    %3751 = vmatpush1.msra.mxu0 %v996
    %3752 = vmatprep.subr.mxu0 %v1001
    %3753 = vmatpush1.msra.mxu0 %v1000
    %3754 = vmatprep.subr.mxu0 %v1005
    %3755 = vmatpush1.msra.mxu0 %v1004
    %3756 = vmatprep.subr.mxu0 0.0
    %3757 = vmatpush1.msra.mxu0 0.0
    %3758 = vmatprep.subr.mxu0 0.0
    %3759 = vmatpush1.msra.mxu0 0.0
    %3760 = vmatprep.subr.mxu0 0.0
    %3761 = vmatpush1.msra.mxu0 0.0
    %3762 = vmatprep.subr.mxu0 0.0
    %3763 = vmatpush1.msra.mxu0 0.0
    %3764 = vmatprep.subr.mxu0 0.0
    %3765 = vmatpush1.msra.mxu0 0.0
    %3766 = vmatprep.subr.mxu0 0.0
    %3767 = vmatpush1.msra.mxu0 0.0
    %3768 = vmatprep.subr.mxu0 0.0
    %3769 = vmatpush1.msra.mxu0 0.0
    %3770 = vmatprep.subr.mxu0 0.0
    %3771 = vmatpush1.msra.mxu0 0.0
    %3772 = vmatprep.subr.mxu0 0.0
    %3773 = vmatpush1.msra.mxu0 0.0
    %3774 = vmatprep.subr.mxu0 0.0
    %3775 = vmatpush1.msra.mxu0 0.0
    %3776 = vmatprep.subr.mxu0 0.0
    %3777 = vmatpush1.msra.mxu0 0.0
    %3778 = vmatprep.subr.mxu0 0.0
    %3779 = vmatpush1.msra.mxu0 0.0
    %3780 = vmatprep.subr.mxu0 0.0
    %3781 = vmatpush1.msra.mxu0 0.0
    %3782 = vmatprep.subr.mxu0 0.0
    %3783 = vmatpush1.msra.mxu0 0.0
    %3784 = vmatprep.subr.mxu0 0.0
    %3785 = vmatpush1.msra.mxu0 0.0
    %3786 = vmatprep.subr.mxu0 0.0
    %3787 = vmatpush1.msra.mxu0 0.0
    %3788 = vmatprep.mubr.f32.mxu0 0.0
    %3789 = vmatmul.mubr.f32.gmra.mrb[0].mxu0 %v3465
    %v3790 = vpop.f32.mrb[0].mxu0
    %v3791 = vadd.f32 0.0, %v3790
    %v3792 = vpop.f32.mrb[0].mxu0
    %v3793 = vadd.f32 0.0, %v3792
    %3794 = vdwg.mxu0
    %v3795 = vadd.f32 %v3649, %v3720
    %v3796 = vadd.f32 %v3650, %v3722
    %v3797 = vadd.f32 %v3651, %v3791
    %v3798 = vadd.f32 %v3652, %v3793
    %v3799 = vsub.f32 0.0, %v3795
    %v3800 = vmul.f32 %v3799, 1.442695
    %v3801 = vpow.pop %v3800
    %v3802 = vadd.f32 %v3801, 1.0
    %v3803 = vrcp.pop %v3802
    %v3804 = vmul.f32 1.0, %v3803
    %v3805 = vsub.f32 0.0, %v3796
    %v3806 = vmul.f32 %v3805, 1.442695
    %v3807 = vpow.pop %v3806
    %v3808 = vadd.f32 %v3807, 1.0
    %v3809 = vrcp.pop %v3808
    %v3810 = vmul.f32 1.0, %v3809
    %v3811 = vtanh.pop %v3797
    %v3812 = vsub.f32 0.0, %v3798
    %v3813 = vmul.f32 %v3812, 1.442695
    %v3814 = vpow.pop %v3813
    %v3815 = vadd.f32 %v3814, 1.0
    %v3816 = vrcp.pop %v3815
    %v3817 = vmul.f32 1.0, %v3816
    %v3818 = vmul.f32 %v3810, %v3466
    %v3819 = vmul.f32 %v3804, %v3811
    %v3820 = vadd.f32 %v3818, %v3819
    %v3821 = vtanh.pop %v3820
    %v3822 = vmul.f32 %v3817, %v3821
    %v3823 = vsel %vm2915, %v3822, %v3465
    %v3824 = vsel %vm2915, %v3820, %v3466
    %v3825 = vmax.f32 %v3468, %v3822
    %v3826 = vsel %vm2915, %v3825, %v3468
    %s3827 = scalar_lea.vmem [#allocation4], 128
    %v3828 = vld [vmem:[%s3827] sm:$0xff]
    %v3829 = vld [vmem:[%s3827 + $0x8] sm:$0xff]
    %v3830 = vld [vmem:[%s3827 + $0x10] sm:$0xff]
    %v3831 = vld [vmem:[%s3827 + $0x18] sm:$0xff]
    %3832 = vmatprep.subr.mxu0 %v1007
    %3833 = vmatpush1.msra.mxu0 %v1006
    %3834 = vmatprep.subr.mxu0 %v1011
    %3835 = vmatpush1.msra.mxu0 %v1010
    %3836 = vmatprep.subr.mxu0 %v1015
    %3837 = vmatpush1.msra.mxu0 %v1014
    %3838 = vmatprep.subr.mxu0 %v1019
    %3839 = vmatpush1.msra.mxu0 %v1018
    %3840 = vmatprep.subr.mxu0 %v1023
    %3841 = vmatpush1.msra.mxu0 %v1022
    %3842 = vmatprep.subr.mxu0 %v1027
    %3843 = vmatpush1.msra.mxu0 %v1026
    %3844 = vmatprep.subr.mxu0 %v1031
    %3845 = vmatpush1.msra.mxu0 %v1030
    %3846 = vmatprep.subr.mxu0 %v1035
    %3847 = vmatpush1.msra.mxu0 %v1034
    %3848 = vmatprep.subr.mxu0 %v1039
    %3849 = vmatpush1.msra.mxu0 %v1038
    %3850 = vmatprep.subr.mxu0 %v1043
    %3851 = vmatpush1.msra.mxu0 %v1042
    %3852 = vmatprep.subr.mxu0 %v1047
    %3853 = vmatpush1.msra.mxu0 %v1046
    %3854 = vmatprep.subr.mxu0 %v1051
    %3855 = vmatpush1.msra.mxu0 %v1050
    %3856 = vmatprep.subr.mxu0 %v1055
    %3857 = vmatpush1.msra.mxu0 %v1054
    %3858 = vmatprep.subr.mxu0 %v1059
    %3859 = vmatpush1.msra.mxu0 %v1058
    %3860 = vmatprep.subr.mxu0 %v1063
    %3861 = vmatpush1.msra.mxu0 %v1062
    %3862 = vmatprep.subr.mxu0 %v1067
    %3863 = vmatpush1.msra.mxu0 %v1066
    %3864 = vmatprep.subr.mxu0 0.0
    %3865 = vmatpush1.msra.mxu0 0.0
    %3866 = vmatprep.subr.mxu0 0.0
    %3867 = vmatpush1.msra.mxu0 0.0
    %3868 = vmatprep.subr.mxu0 0.0
    %3869 = vmatpush1.msra.mxu0 0.0
    %3870 = vmatprep.subr.mxu0 0.0
    %3871 = vmatpush1.msra.mxu0 0.0
    %3872 = vmatprep.subr.mxu0 0.0
    %3873 = vmatpush1.msra.mxu0 0.0
    %3874 = vmatprep.subr.mxu0 0.0
    %3875 = vmatpush1.msra.mxu0 0.0
    %3876 = vmatprep.subr.mxu0 0.0
    %3877 = vmatpush1.msra.mxu0 0.0
    %3878 = vmatprep.subr.mxu0 0.0
    %3879 = vmatpush1.msra.mxu0 0.0
    %3880 = vmatprep.subr.mxu0 0.0
    %3881 = vmatpush1.msra.mxu0 0.0
    %3882 = vmatprep.subr.mxu0 0.0
    %3883 = vmatpush1.msra.mxu0 0.0
    %3884 = vmatprep.subr.mxu0 0.0
    %3885 = vmatpush1.msra.mxu0 0.0
    %3886 = vmatprep.subr.mxu0 0.0
    %3887 = vmatpush1.msra.mxu0 0.0
    %3888 = vmatprep.subr.mxu0 0.0
    %3889 = vmatpush1.msra.mxu0 0.0
    %3890 = vmatprep.subr.mxu0 0.0
    %3891 = vmatpush1.msra.mxu0 0.0
    %3892 = vmatprep.subr.mxu0 0.0
    %3893 = vmatpush1.msra.mxu0 0.0
    %3894 = vmatprep.subr.mxu0 0.0
    %3895 = vmatpush1.msra.mxu0 0.0
    %3896 = vmatprep.mubr.f32.mxu0 0.0
    %3897 = vmatmul.mubr.f32.gmra.mrb[0].mxu0 %v3644
    %v3898 = vpop.f32.mrb[0].mxu0
    %v3899 = vadd.f32 0.0, %v3898
    %v3900 = vpop.f32.mrb[0].mxu0
    %v3901 = vadd.f32 0.0, %v3900
    %3902 = vdwg.mxu0
    %3903 = vmatprep.subr.mxu0 %v1009
    %3904 = vmatpush1.msra.mxu0 %v1008
    %3905 = vmatprep.subr.mxu0 %v1013
    %3906 = vmatpush1.msra.mxu0 %v1012
    %3907 = vmatprep.subr.mxu0 %v1017
    %3908 = vmatpush1.msra.mxu0 %v1016
    %3909 = vmatprep.subr.mxu0 %v1021
    %3910 = vmatpush1.msra.mxu0 %v1020
    %3911 = vmatprep.subr.mxu0 %v1025
    %3912 = vmatpush1.msra.mxu0 %v1024
    %3913 = vmatprep.subr.mxu0 %v1029
    %3914 = vmatpush1.msra.mxu0 %v1028
    %3915 = vmatprep.subr.mxu0 %v1033
    %3916 = vmatpush1.msra.mxu0 %v1032
    %3917 = vmatprep.subr.mxu0 %v1037
    %3918 = vmatpush1.msra.mxu0 %v1036
    %3919 = vmatprep.subr.mxu0 %v1041
    %3920 = vmatpush1.msra.mxu0 %v1040
    %3921 = vmatprep.subr.mxu0 %v1045
    %3922 = vmatpush1.msra.mxu0 %v1044
    %3923 = vmatprep.subr.mxu0 %v1049
    %3924 = vmatpush1.msra.mxu0 %v1048
    %3925 = vmatprep.subr.mxu0 %v1053
    %3926 = vmatpush1.msra.mxu0 %v1052
    %3927 = vmatprep.subr.mxu0 %v1057
    %3928 = vmatpush1.msra.mxu0 %v1056
    %3929 = vmatprep.subr.mxu0 %v1061
    %3930 = vmatpush1.msra.mxu0 %v1060
    %3931 = vmatprep.subr.mxu0 %v1065
    %3932 = vmatpush1.msra.mxu0 %v1064
    %3933 = vmatprep.subr.mxu0 %v1069
    %3934 = vmatpush1.msra.mxu0 %v1068
    %3935 = vmatprep.subr.mxu0 0.0
    %3936 = vmatpush1.msra.mxu0 0.0
    %3937 = vmatprep.subr.mxu0 0.0
    %3938 = vmatpush1.msra.mxu0 0.0
    %3939 = vmatprep.subr.mxu0 0.0
    %3940 = vmatpush1.msra.mxu0 0.0
    %3941 = vmatprep.subr.mxu0 0.0
    %3942 = vmatpush1.msra.mxu0 0.0
    %3943 = vmatprep.subr.mxu0 0.0
    %3944 = vmatpush1.msra.mxu0 0.0
    %3945 = vmatprep.subr.mxu0 0.0
    %3946 = vmatpush1.msra.mxu0 0.0
    %3947 = vmatprep.subr.mxu0 0.0
    %3948 = vmatpush1.msra.mxu0 0.0
    %3949 = vmatprep.subr.mxu0 0.0
    %3950 = vmatpush1.msra.mxu0 0.0
    %3951 = vmatprep.subr.mxu0 0.0
    %3952 = vmatpush1.msra.mxu0 0.0
    %3953 = vmatprep.subr.mxu0 0.0
    %3954 = vmatpush1.msra.mxu0 0.0
    %3955 = vmatprep.subr.mxu0 0.0
    %3956 = vmatpush1.msra.mxu0 0.0
    %3957 = vmatprep.subr.mxu0 0.0
    %3958 = vmatpush1.msra.mxu0 0.0
    %3959 = vmatprep.subr.mxu0 0.0
    %3960 = vmatpush1.msra.mxu0 0.0
    %3961 = vmatprep.subr.mxu0 0.0
    %3962 = vmatpush1.msra.mxu0 0.0
    %3963 = vmatprep.subr.mxu0 0.0
    %3964 = vmatpush1.msra.mxu0 0.0
    %3965 = vmatprep.subr.mxu0 0.0
    %3966 = vmatpush1.msra.mxu0 0.0
    %3967 = vmatprep.mubr.f32.mxu0 0.0
    %3968 = vmatmul.mubr.f32.gmra.mrb[0].mxu0 %v3644
    %v3969 = vpop.f32.mrb[0].mxu0
    %v3970 = vadd.f32 0.0, %v3969
    %v3971 = vpop.f32.mrb[0].mxu0
    %v3972 = vadd.f32 0.0, %v3971
    %3973 = vdwg.mxu0
    %v3974 = vadd.f32 %v3828, %v3899
    %v3975 = vadd.f32 %v3829, %v3901
    %v3976 = vadd.f32 %v3830, %v3970
    %v3977 = vadd.f32 %v3831, %v3972
    %v3978 = vsub.f32 0.0, %v3974
    %v3979 = vmul.f32 %v3978, 1.442695
    %v3980 = vpow.pop %v3979
    %v3981 = vadd.f32 %v3980, 1.0
    %v3982 = vrcp.pop %v3981
    %v3983 = vmul.f32 1.0, %v3982
    %v3984 = vsub.f32 0.0, %v3975
    %v3985 = vmul.f32 %v3984, 1.442695
    %v3986 = vpow.pop %v3985
    %v3987 = vadd.f32 %v3986, 1.0
    %v3988 = vrcp.pop %v3987
    %v3989 = vmul.f32 1.0, %v3988
    %v3990 = vtanh.pop %v3976
    %v3991 = vsub.f32 0.0, %v3977
    %v3992 = vmul.f32 %v3991, 1.442695
    %v3993 = vpow.pop %v3992
    %v3994 = vadd.f32 %v3993, 1.0
    %v3995 = vrcp.pop %v3994
    %v3996 = vmul.f32 1.0, %v3995
    %v3997 = vmul.f32 %v3989, %v3645
    %v3998 = vmul.f32 %v3983, %v3990
    %v3999 = vadd.f32 %v3997, %v3998
    %v4000 = vtanh.pop %v3999
    %v4001 = vmul.f32 %v3996, %v4000
    %v4002 = vsel %vm2730, %v4001, %v3644
    %v4003 = vsel %vm2730, %v3999, %v3645
    %v4004 = vmax.f32 %v3647, %v4001
    %v4005 = vsel %vm2730, %v4004, %v3647
    %s4006 = scalar_lea.vmem [#allocation3], 256
    %v4007 = vld [vmem:[%s4006] sm:$0xff]
    %v4008 = vld [vmem:[%s4006 + $0x8] sm:$0xff]
    %v4009 = vld [vmem:[%s4006 + $0x10] sm:$0xff]
    %v4010 = vld [vmem:[%s4006 + $0x18] sm:$0xff]
    %4011 = vmatprep.subr.mxu0 %v943
    %4012 = vmatpush1.msra.mxu0 %v942
    %4013 = vmatprep.subr.mxu0 %v947
    %4014 = vmatpush1.msra.mxu0 %v946
    %4015 = vmatprep.subr.mxu0 %v951
    %4016 = vmatpush1.msra.mxu0 %v950
    %4017 = vmatprep.subr.mxu0 %v955
    %4018 = vmatpush1.msra.mxu0 %v954
    %4019 = vmatprep.subr.mxu0 %v959
    %4020 = vmatpush1.msra.mxu0 %v958
    %4021 = vmatprep.subr.mxu0 %v963
    %4022 = vmatpush1.msra.mxu0 %v962
    %4023 = vmatprep.subr.mxu0 %v967
    %4024 = vmatpush1.msra.mxu0 %v966
    %4025 = vmatprep.subr.mxu0 %v971
    %4026 = vmatpush1.msra.mxu0 %v970
    %4027 = vmatprep.subr.mxu0 %v975
    %4028 = vmatpush1.msra.mxu0 %v974
    %4029 = vmatprep.subr.mxu0 %v979
    %4030 = vmatpush1.msra.mxu0 %v978
    %4031 = vmatprep.subr.mxu0 %v983
    %4032 = vmatpush1.msra.mxu0 %v982
    %4033 = vmatprep.subr.mxu0 %v987
    %4034 = vmatpush1.msra.mxu0 %v986
    %4035 = vmatprep.subr.mxu0 %v991
    %4036 = vmatpush1.msra.mxu0 %v990
    %4037 = vmatprep.subr.mxu0 %v995
    %4038 = vmatpush1.msra.mxu0 %v994
    %4039 = vmatprep.subr.mxu0 %v999
    %4040 = vmatpush1.msra.mxu0 %v998
    %4041 = vmatprep.subr.mxu0 %v1003
    %4042 = vmatpush1.msra.mxu0 %v1002
    %4043 = vmatprep.subr.mxu0 0.0
    %4044 = vmatpush1.msra.mxu0 0.0
    %4045 = vmatprep.subr.mxu0 0.0
    %4046 = vmatpush1.msra.mxu0 0.0
    %4047 = vmatprep.subr.mxu0 0.0
    %4048 = vmatpush1.msra.mxu0 0.0
    %4049 = vmatprep.subr.mxu0 0.0
    %4050 = vmatpush1.msra.mxu0 0.0
    %4051 = vmatprep.subr.mxu0 0.0
    %4052 = vmatpush1.msra.mxu0 0.0
    %4053 = vmatprep.subr.mxu0 0.0
    %4054 = vmatpush1.msra.mxu0 0.0
    %4055 = vmatprep.subr.mxu0 0.0
    %4056 = vmatpush1.msra.mxu0 0.0
    %4057 = vmatprep.subr.mxu0 0.0
    %4058 = vmatpush1.msra.mxu0 0.0
    %4059 = vmatprep.subr.mxu0 0.0
    %4060 = vmatpush1.msra.mxu0 0.0
    %4061 = vmatprep.subr.mxu0 0.0
    %4062 = vmatpush1.msra.mxu0 0.0
    %4063 = vmatprep.subr.mxu0 0.0
    %4064 = vmatpush1.msra.mxu0 0.0
    %4065 = vmatprep.subr.mxu0 0.0
    %4066 = vmatpush1.msra.mxu0 0.0
    %4067 = vmatprep.subr.mxu0 0.0
    %4068 = vmatpush1.msra.mxu0 0.0
    %4069 = vmatprep.subr.mxu0 0.0
    %4070 = vmatpush1.msra.mxu0 0.0
    %4071 = vmatprep.subr.mxu0 0.0
    %4072 = vmatpush1.msra.mxu0 0.0
    %4073 = vmatprep.subr.mxu0 0.0
    %4074 = vmatpush1.msra.mxu0 0.0
    %4075 = vmatprep.mubr.f32.mxu0 0.0
    %4076 = vmatmul.mubr.f32.gmra.mrb[0].mxu0 %v3823
    %v4077 = vpop.f32.mrb[0].mxu0
    %v4078 = vadd.f32 0.0, %v4077
    %v4079 = vpop.f32.mrb[0].mxu0
    %v4080 = vadd.f32 0.0, %v4079
    %4081 = vdwg.mxu0
    %4082 = vmatprep.subr.mxu0 %v945
    %4083 = vmatpush1.msra.mxu0 %v944
    %4084 = vmatprep.subr.mxu0 %v949
    %4085 = vmatpush1.msra.mxu0 %v948
    %4086 = vmatprep.subr.mxu0 %v953
    %4087 = vmatpush1.msra.mxu0 %v952
    %4088 = vmatprep.subr.mxu0 %v957
    %4089 = vmatpush1.msra.mxu0 %v956
    %4090 = vmatprep.subr.mxu0 %v961
    %4091 = vmatpush1.msra.mxu0 %v960
    %4092 = vmatprep.subr.mxu0 %v965
    %4093 = vmatpush1.msra.mxu0 %v964
    %4094 = vmatprep.subr.mxu0 %v969
    %4095 = vmatpush1.msra.mxu0 %v968
    %4096 = vmatprep.subr.mxu0 %v973
    %4097 = vmatpush1.msra.mxu0 %v972
    %4098 = vmatprep.subr.mxu0 %v977
    %4099 = vmatpush1.msra.mxu0 %v976
    %4100 = vmatprep.subr.mxu0 %v981
    %4101 = vmatpush1.msra.mxu0 %v980
    %4102 = vmatprep.subr.mxu0 %v985
    %4103 = vmatpush1.msra.mxu0 %v984
    %4104 = vmatprep.subr.mxu0 %v989
    %4105 = vmatpush1.msra.mxu0 %v988
    %4106 = vmatprep.subr.mxu0 %v993
    %4107 = vmatpush1.msra.mxu0 %v992
    %4108 = vmatprep.subr.mxu0 %v997
    %4109 = vmatpush1.msra.mxu0 %v996
    %4110 = vmatprep.subr.mxu0 %v1001
    %4111 = vmatpush1.msra.mxu0 %v1000
    %4112 = vmatprep.subr.mxu0 %v1005
    %4113 = vmatpush1.msra.mxu0 %v1004
    %4114 = vmatprep.subr.mxu0 0.0
    %4115 = vmatpush1.msra.mxu0 0.0
    %4116 = vmatprep.subr.mxu0 0.0
    %4117 = vmatpush1.msra.mxu0 0.0
    %4118 = vmatprep.subr.mxu0 0.0
    %4119 = vmatpush1.msra.mxu0 0.0
    %4120 = vmatprep.subr.mxu0 0.0
    %4121 = vmatpush1.msra.mxu0 0.0
    %4122 = vmatprep.subr.mxu0 0.0
    %4123 = vmatpush1.msra.mxu0 0.0
    %4124 = vmatprep.subr.mxu0 0.0
    %4125 = vmatpush1.msra.mxu0 0.0
    %4126 = vmatprep.subr.mxu0 0.0
    %4127 = vmatpush1.msra.mxu0 0.0
    %4128 = vmatprep.subr.mxu0 0.0
    %4129 = vmatpush1.msra.mxu0 0.0
    %4130 = vmatprep.subr.mxu0 0.0
    %4131 = vmatpush1.msra.mxu0 0.0
    %4132 = vmatprep.subr.mxu0 0.0
    %4133 = vmatpush1.msra.mxu0 0.0
    %4134 = vmatprep.subr.mxu0 0.0
    %4135 = vmatpush1.msra.mxu0 0.0
    %4136 = vmatprep.subr.mxu0 0.0
    %4137 = vmatpush1.msra.mxu0 0.0
    %4138 = vmatprep.subr.mxu0 0.0
    %4139 = vmatpush1.msra.mxu0 0.0
    %4140 = vmatprep.subr.mxu0 0.0
    %4141 = vmatpush1.msra.mxu0 0.0
    %4142 = vmatprep.subr.mxu0 0.0
    %4143 = vmatpush1.msra.mxu0 0.0
    %4144 = vmatprep.subr.mxu0 0.0
    %4145 = vmatpush1.msra.mxu0 0.0
    %4146 = vmatprep.mubr.f32.mxu0 0.0
    %4147 = vmatmul.mubr.f32.gmra.mrb[0].mxu0 %v3823
    %v4148 = vpop.f32.mrb[0].mxu0
    %v4149 = vadd.f32 0.0, %v4148
    %v4150 = vpop.f32.mrb[0].mxu0
    %v4151 = vadd.f32 0.0, %v4150
    %4152 = vdwg.mxu0
    %v4153 = vadd.f32 %v4007, %v4078
    %v4154 = vadd.f32 %v4008, %v4080
    %v4155 = vadd.f32 %v4009, %v4149
    %v4156 = vadd.f32 %v4010, %v4151
    %v4157 = vsub.f32 0.0, %v4153
    %v4158 = vmul.f32 %v4157, 1.442695
    %v4159 = vpow.pop %v4158
    %v4160 = vadd.f32 %v4159, 1.0
    %v4161 = vrcp.pop %v4160
    %v4162 = vmul.f32 1.0, %v4161
    %v4163 = vsub.f32 0.0, %v4154
    %v4164 = vmul.f32 %v4163, 1.442695
    %v4165 = vpow.pop %v4164
    %v4166 = vadd.f32 %v4165, 1.0
    %v4167 = vrcp.pop %v4166
    %v4168 = vmul.f32 1.0, %v4167
    %v4169 = vtanh.pop %v4155
    %v4170 = vsub.f32 0.0, %v4156
    %v4171 = vmul.f32 %v4170, 1.442695
    %v4172 = vpow.pop %v4171
    %v4173 = vadd.f32 %v4172, 1.0
    %v4174 = vrcp.pop %v4173
    %v4175 = vmul.f32 1.0, %v4174
    %v4176 = vmul.f32 %v4168, %v3824
    %v4177 = vmul.f32 %v4162, %v4169
    %v4178 = vadd.f32 %v4176, %v4177
    %v4179 = vtanh.pop %v4178
    %v4180 = vmul.f32 %v4175, %v4179
    %v4181 = vsel %vm2545, %v4180, %v3823
    %v4182 = vsel %vm2545, %v4178, %v3824
    %v4183 = vmax.f32 %v3826, %v4180
    %v4184 = vsel %vm2545, %v4183, %v3826
    %s4185 = scalar_lea.vmem [#allocation4], 96
    %v4186 = vld [vmem:[%s4185] sm:$0xff]
    %v4187 = vld [vmem:[%s4185 + $0x8] sm:$0xff]
    %v4188 = vld [vmem:[%s4185 + $0x10] sm:$0xff]
    %v4189 = vld [vmem:[%s4185 + $0x18] sm:$0xff]
    %4190 = vmatprep.subr.mxu0 %v1007
    %4191 = vmatpush1.msra.mxu0 %v1006
    %4192 = vmatprep.subr.mxu0 %v1011
    %4193 = vmatpush1.msra.mxu0 %v1010
    %4194 = vmatprep.subr.mxu0 %v1015
    %4195 = vmatpush1.msra.mxu0 %v1014
    %4196 = vmatprep.subr.mxu0 %v1019
    %4197 = vmatpush1.msra.mxu0 %v1018
    %4198 = vmatprep.subr.mxu0 %v1023
    %4199 = vmatpush1.msra.mxu0 %v1022
    %4200 = vmatprep.subr.mxu0 %v1027
    %4201 = vmatpush1.msra.mxu0 %v1026
    %4202 = vmatprep.subr.mxu0 %v1031
    %4203 = vmatpush1.msra.mxu0 %v1030
    %4204 = vmatprep.subr.mxu0 %v1035
    %4205 = vmatpush1.msra.mxu0 %v1034
    %4206 = vmatprep.subr.mxu0 %v1039
    %4207 = vmatpush1.msra.mxu0 %v1038
    %4208 = vmatprep.subr.mxu0 %v1043
    %4209 = vmatpush1.msra.mxu0 %v1042
    %4210 = vmatprep.subr.mxu0 %v1047
    %4211 = vmatpush1.msra.mxu0 %v1046
    %4212 = vmatprep.subr.mxu0 %v1051
    %4213 = vmatpush1.msra.mxu0 %v1050
    %4214 = vmatprep.subr.mxu0 %v1055
    %4215 = vmatpush1.msra.mxu0 %v1054
    %4216 = vmatprep.subr.mxu0 %v1059
    %4217 = vmatpush1.msra.mxu0 %v1058
    %4218 = vmatprep.subr.mxu0 %v1063
    %4219 = vmatpush1.msra.mxu0 %v1062
    %4220 = vmatprep.subr.mxu0 %v1067
    %4221 = vmatpush1.msra.mxu0 %v1066
    %4222 = vmatprep.subr.mxu0 0.0
    %4223 = vmatpush1.msra.mxu0 0.0
    %4224 = vmatprep.subr.mxu0 0.0
    %4225 = vmatpush1.msra.mxu0 0.0
    %4226 = vmatprep.subr.mxu0 0.0
    %4227 = vmatpush1.msra.mxu0 0.0
    %4228 = vmatprep.subr.mxu0 0.0
    %4229 = vmatpush1.msra.mxu0 0.0
    %4230 = vmatprep.subr.mxu0 0.0
    %4231 = vmatpush1.msra.mxu0 0.0
    %4232 = vmatprep.subr.mxu0 0.0
    %4233 = vmatpush1.msra.mxu0 0.0
    %4234 = vmatprep.subr.mxu0 0.0
    %4235 = vmatpush1.msra.mxu0 0.0
    %4236 = vmatprep.subr.mxu0 0.0
    %4237 = vmatpush1.msra.mxu0 0.0
    %4238 = vmatprep.subr.mxu0 0.0
    %4239 = vmatpush1.msra.mxu0 0.0
    %4240 = vmatprep.subr.mxu0 0.0
    %4241 = vmatpush1.msra.mxu0 0.0
    %4242 = vmatprep.subr.mxu0 0.0
    %4243 = vmatpush1.msra.mxu0 0.0
    %4244 = vmatprep.subr.mxu0 0.0
    %4245 = vmatpush1.msra.mxu0 0.0
    %4246 = vmatprep.subr.mxu0 0.0
    %4247 = vmatpush1.msra.mxu0 0.0
    %4248 = vmatprep.subr.mxu0 0.0
    %4249 = vmatpush1.msra.mxu0 0.0
    %4250 = vmatprep.subr.mxu0 0.0
    %4251 = vmatpush1.msra.mxu0 0.0
    %4252 = vmatprep.subr.mxu0 0.0
    %4253 = vmatpush1.msra.mxu0 0.0
    %4254 = vmatprep.mubr.f32.mxu0 0.0
    %4255 = vmatmul.mubr.f32.gmra.mrb[0].mxu0 %v4002
    %v4256 = vpop.f32.mrb[0].mxu0
    %v4257 = vadd.f32 0.0, %v4256
    %v4258 = vpop.f32.mrb[0].mxu0
    %v4259 = vadd.f32 0.0, %v4258
    %4260 = vdwg.mxu0
    %4261 = vmatprep.subr.mxu0 %v1009
    %4262 = vmatpush1.msra.mxu0 %v1008
    %4263 = vmatprep.subr.mxu0 %v1013
    %4264 = vmatpush1.msra.mxu0 %v1012
    %4265 = vmatprep.subr.mxu0 %v1017
    %4266 = vmatpush1.msra.mxu0 %v1016
    %4267 = vmatprep.subr.mxu0 %v1021
    %4268 = vmatpush1.msra.mxu0 %v1020
    %4269 = vmatprep.subr.mxu0 %v1025
    %4270 = vmatpush1.msra.mxu0 %v1024
    %4271 = vmatprep.subr.mxu0 %v1029
    %4272 = vmatpush1.msra.mxu0 %v1028
    %4273 = vmatprep.subr.mxu0 %v1033
    %4274 = vmatpush1.msra.mxu0 %v1032
    %4275 = vmatprep.subr.mxu0 %v1037
    %4276 = vmatpush1.msra.mxu0 %v1036
    %4277 = vmatprep.subr.mxu0 %v1041
    %4278 = vmatpush1.msra.mxu0 %v1040
    %4279 = vmatprep.subr.mxu0 %v1045
    %4280 = vmatpush1.msra.mxu0 %v1044
    %4281 = vmatprep.subr.mxu0 %v1049
    %4282 = vmatpush1.msra.mxu0 %v1048
    %4283 = vmatprep.subr.mxu0 %v1053
    %4284 = vmatpush1.msra.mxu0 %v1052
    %4285 = vmatprep.subr.mxu0 %v1057
    %4286 = vmatpush1.msra.mxu0 %v1056
    %4287 = vmatprep.subr.mxu0 %v1061
    %4288 = vmatpush1.msra.mxu0 %v1060
    %4289 = vmatprep.subr.mxu0 %v1065
    %4290 = vmatpush1.msra.mxu0 %v1064
    %4291 = vmatprep.subr.mxu0 %v1069
    %4292 = vmatpush1.msra.mxu0 %v1068
    %4293 = vmatprep.subr.mxu0 0.0
    %4294 = vmatpush1.msra.mxu0 0.0
    %4295 = vmatprep.subr.mxu0 0.0
    %4296 = vmatpush1.msra.mxu0 0.0
    %4297 = vmatprep.subr.mxu0 0.0
    %4298 = vmatpush1.msra.mxu0 0.0
    %4299 = vmatprep.subr.mxu0 0.0
    %4300 = vmatpush1.msra.mxu0 0.0
    %4301 = vmatprep.subr.mxu0 0.0
    %4302 = vmatpush1.msra.mxu0 0.0
    %4303 = vmatprep.subr.mxu0 0.0
    %4304 = vmatpush1.msra.mxu0 0.0
    %4305 = vmatprep.subr.mxu0 0.0
    %4306 = vmatpush1.msra.mxu0 0.0
    %4307 = vmatprep.subr.mxu0 0.0
    %4308 = vmatpush1.msra.mxu0 0.0
    %4309 = vmatprep.subr.mxu0 0.0
    %4310 = vmatpush1.msra.mxu0 0.0
    %4311 = vmatprep.subr.mxu0 0.0
    %4312 = vmatpush1.msra.mxu0 0.0
    %4313 = vmatprep.subr.mxu0 0.0
    %4314 = vmatpush1.msra.mxu0 0.0
    %4315 = vmatprep.subr.mxu0 0.0
    %4316 = vmatpush1.msra.mxu0 0.0
    %4317 = vmatprep.subr.mxu0 0.0
    %4318 = vmatpush1.msra.mxu0 0.0
    %4319 = vmatprep.subr.mxu0 0.0
    %4320 = vmatpush1.msra.mxu0 0.0
    %4321 = vmatprep.subr.mxu0 0.0
    %4322 = vmatpush1.msra.mxu0 0.0
    %4323 = vmatprep.subr.mxu0 0.0
    %4324 = vmatpush1.msra.mxu0 0.0
    %4325 = vmatprep.mubr.f32.mxu0 0.0
    %4326 = vmatmul.mubr.f32.gmra.mrb[0].mxu0 %v4002
    %v4327 = vpop.f32.mrb[0].mxu0
    %v4328 = vadd.f32 0.0, %v4327
    %v4329 = vpop.f32.mrb[0].mxu0
    %v4330 = vadd.f32 0.0, %v4329
    %4331 = vdwg.mxu0
    %v4332 = vadd.f32 %v4186, %v4257
    %v4333 = vadd.f32 %v4187, %v4259
    %v4334 = vadd.f32 %v4188, %v4328
    %v4335 = vadd.f32 %v4189, %v4330
    %v4336 = vsub.f32 0.0, %v4332
    %v4337 = vmul.f32 %v4336, 1.442695
    %v4338 = vpow.pop %v4337
    %v4339 = vadd.f32 %v4338, 1.0
    %v4340 = vrcp.pop %v4339
    %v4341 = vmul.f32 1.0, %v4340
    %v4342 = vsub.f32 0.0, %v4333
    %v4343 = vmul.f32 %v4342, 1.442695
    %v4344 = vpow.pop %v4343
    %v4345 = vadd.f32 %v4344, 1.0
    %v4346 = vrcp.pop %v4345
    %v4347 = vmul.f32 1.0, %v4346
    %v4348 = vtanh.pop %v4334
    %v4349 = vsub.f32 0.0, %v4335
    %v4350 = vmul.f32 %v4349, 1.442695
    %v4351 = vpow.pop %v4350
    %v4352 = vadd.f32 %v4351, 1.0
    %v4353 = vrcp.pop %v4352
    %v4354 = vmul.f32 1.0, %v4353
    %v4355 = vmul.f32 %v4347, %v4003
    %v4356 = vmul.f32 %v4341, %v4348
    %v4357 = vadd.f32 %v4355, %v4356
    %v4358 = vtanh.pop %v4357
    %v4359 = vmul.f32 %v4354, %v4358
    %v4360 = vsel %vm2360, %v4359, %v4002
    %v4361 = vsel %vm2360, %v4357, %v4003
    %v4362 = vmax.f32 %v4005, %v4359
    %v4363 = vsel %vm2360, %v4362, %v4005
    %s4364 = scalar_lea.vmem [#allocation3], 288
    %v4365 = vld [vmem:[%s4364] sm:$0xff]
    %v4366 = vld [vmem:[%s4364 + $0x8] sm:$0xff]
    %v4367 = vld [vmem:[%s4364 + $0x10] sm:$0xff]
    %v4368 = vld [vmem:[%s4364 + $0x18] sm:$0xff]
    %4369 = vmatprep.subr.mxu0 %v943
    %4370 = vmatpush1.msra.mxu0 %v942
    %4371 = vmatprep.subr.mxu0 %v947
    %4372 = vmatpush1.msra.mxu0 %v946
    %4373 = vmatprep.subr.mxu0 %v951
    %4374 = vmatpush1.msra.mxu0 %v950
    %4375 = vmatprep.subr.mxu0 %v955
    %4376 = vmatpush1.msra.mxu0 %v954
    %4377 = vmatprep.subr.mxu0 %v959
    %4378 = vmatpush1.msra.mxu0 %v958
    %4379 = vmatprep.subr.mxu0 %v963
    %4380 = vmatpush1.msra.mxu0 %v962
    %4381 = vmatprep.subr.mxu0 %v967
    %4382 = vmatpush1.msra.mxu0 %v966
    %4383 = vmatprep.subr.mxu0 %v971
    %4384 = vmatpush1.msra.mxu0 %v970
    %4385 = vmatprep.subr.mxu0 %v975
    %4386 = vmatpush1.msra.mxu0 %v974
    %4387 = vmatprep.subr.mxu0 %v979
    %4388 = vmatpush1.msra.mxu0 %v978
    %4389 = vmatprep.subr.mxu0 %v983
    %4390 = vmatpush1.msra.mxu0 %v982
    %4391 = vmatprep.subr.mxu0 %v987
    %4392 = vmatpush1.msra.mxu0 %v986
    %4393 = vmatprep.subr.mxu0 %v991
    %4394 = vmatpush1.msra.mxu0 %v990
    %4395 = vmatprep.subr.mxu0 %v995
    %4396 = vmatpush1.msra.mxu0 %v994
    %4397 = vmatprep.subr.mxu0 %v999
    %4398 = vmatpush1.msra.mxu0 %v998
    %4399 = vmatprep.subr.mxu0 %v1003
    %4400 = vmatpush1.msra.mxu0 %v1002
    %4401 = vmatprep.subr.mxu0 0.0
    %4402 = vmatpush1.msra.mxu0 0.0
    %4403 = vmatprep.subr.mxu0 0.0
    %4404 = vmatpush1.msra.mxu0 0.0
    %4405 = vmatprep.subr.mxu0 0.0
    %4406 = vmatpush1.msra.mxu0 0.0
    %4407 = vmatprep.subr.mxu0 0.0
    %4408 = vmatpush1.msra.mxu0 0.0
    %4409 = vmatprep.subr.mxu0 0.0
    %4410 = vmatpush1.msra.mxu0 0.0
    %4411 = vmatprep.subr.mxu0 0.0
    %4412 = vmatpush1.msra.mxu0 0.0
    %4413 = vmatprep.subr.mxu0 0.0
    %4414 = vmatpush1.msra.mxu0 0.0
    %4415 = vmatprep.subr.mxu0 0.0
    %4416 = vmatpush1.msra.mxu0 0.0
    %4417 = vmatprep.subr.mxu0 0.0
    %4418 = vmatpush1.msra.mxu0 0.0
    %4419 = vmatprep.subr.mxu0 0.0
    %4420 = vmatpush1.msra.mxu0 0.0
    %4421 = vmatprep.subr.mxu0 0.0
    %4422 = vmatpush1.msra.mxu0 0.0
    %4423 = vmatprep.subr.mxu0 0.0
    %4424 = vmatpush1.msra.mxu0 0.0
    %4425 = vmatprep.subr.mxu0 0.0
    %4426 = vmatpush1.msra.mxu0 0.0
    %4427 = vmatprep.subr.mxu0 0.0
    %4428 = vmatpush1.msra.mxu0 0.0
    %4429 = vmatprep.subr.mxu0 0.0
    %4430 = vmatpush1.msra.mxu0 0.0
    %4431 = vmatprep.subr.mxu0 0.0
    %4432 = vmatpush1.msra.mxu0 0.0
    %4433 = vmatprep.mubr.f32.mxu0 0.0
    %4434 = vmatmul.mubr.f32.gmra.mrb[0].mxu0 %v4181
    %v4435 = vpop.f32.mrb[0].mxu0
    %v4436 = vadd.f32 0.0, %v4435
    %v4437 = vpop.f32.mrb[0].mxu0
    %v4438 = vadd.f32 0.0, %v4437
    %4439 = vdwg.mxu0
    %4440 = vmatprep.subr.mxu0 %v945
    %4441 = vmatpush1.msra.mxu0 %v944
    %4442 = vmatprep.subr.mxu0 %v949
    %4443 = vmatpush1.msra.mxu0 %v948
    %4444 = vmatprep.subr.mxu0 %v953
    %4445 = vmatpush1.msra.mxu0 %v952
    %4446 = vmatprep.subr.mxu0 %v957
    %4447 = vmatpush1.msra.mxu0 %v956
    %4448 = vmatprep.subr.mxu0 %v961
    %4449 = vmatpush1.msra.mxu0 %v960
    %4450 = vmatprep.subr.mxu0 %v965
    %4451 = vmatpush1.msra.mxu0 %v964
    %4452 = vmatprep.subr.mxu0 %v969
    %4453 = vmatpush1.msra.mxu0 %v968
    %4454 = vmatprep.subr.mxu0 %v973
    %4455 = vmatpush1.msra.mxu0 %v972
    %4456 = vmatprep.subr.mxu0 %v977
    %4457 = vmatpush1.msra.mxu0 %v976
    %4458 = vmatprep.subr.mxu0 %v981
    %4459 = vmatpush1.msra.mxu0 %v980
    %4460 = vmatprep.subr.mxu0 %v985
    %4461 = vmatpush1.msra.mxu0 %v984
    %4462 = vmatprep.subr.mxu0 %v989
    %4463 = vmatpush1.msra.mxu0 %v988
    %4464 = vmatprep.subr.mxu0 %v993
    %4465 = vmatpush1.msra.mxu0 %v992
    %4466 = vmatprep.subr.mxu0 %v997
    %4467 = vmatpush1.msra.mxu0 %v996
    %4468 = vmatprep.subr.mxu0 %v1001
    %4469 = vmatpush1.msra.mxu0 %v1000
    %4470 = vmatprep.subr.mxu0 %v1005
    %4471 = vmatpush1.msra.mxu0 %v1004
    %4472 = vmatprep.subr.mxu0 0.0
    %4473 = vmatpush1.msra.mxu0 0.0
    %4474 = vmatprep.subr.mxu0 0.0
    %4475 = vmatpush1.msra.mxu0 0.0
    %4476 = vmatprep.subr.mxu0 0.0
    %4477 = vmatpush1.msra.mxu0 0.0
    %4478 = vmatprep.subr.mxu0 0.0
    %4479 = vmatpush1.msra.mxu0 0.0
    %4480 = vmatprep.subr.mxu0 0.0
    %4481 = vmatpush1.msra.mxu0 0.0
    %4482 = vmatprep.subr.mxu0 0.0
    %4483 = vmatpush1.msra.mxu0 0.0
    %4484 = vmatprep.subr.mxu0 0.0
    %4485 = vmatpush1.msra.mxu0 0.0
    %4486 = vmatprep.subr.mxu0 0.0
    %4487 = vmatpush1.msra.mxu0 0.0
    %4488 = vmatprep.subr.mxu0 0.0
    %4489 = vmatpush1.msra.mxu0 0.0
    %4490 = vmatprep.subr.mxu0 0.0
    %4491 = vmatpush1.msra.mxu0 0.0
    %4492 = vmatprep.subr.mxu0 0.0
    %4493 = vmatpush1.msra.mxu0 0.0
    %4494 = vmatprep.subr.mxu0 0.0
    %4495 = vmatpush1.msra.mxu0 0.0
    %4496 = vmatprep.subr.mxu0 0.0
    %4497 = vmatpush1.msra.mxu0 0.0
    %4498 = vmatprep.subr.mxu0 0.0
    %4499 = vmatpush1.msra.mxu0 0.0
    %4500 = vmatprep.subr.mxu0 0.0
    %4501 = vmatpush1.msra.mxu0 0.0
    %4502 = vmatprep.subr.mxu0 0.0
    %4503 = vmatpush1.msra.mxu0 0.0
    %4504 = vmatprep.mubr.f32.mxu0 0.0
    %4505 = vmatmul.mubr.f32.gmra.mrb[0].mxu0 %v4181
    %v4506 = vpop.f32.mrb[0].mxu0
    %v4507 = vadd.f32 0.0, %v4506
    %v4508 = vpop.f32.mrb[0].mxu0
    %v4509 = vadd.f32 0.0, %v4508
    %4510 = vdwg.mxu0
    %v4511 = vadd.f32 %v4365, %v4436
    %v4512 = vadd.f32 %v4366, %v4438
    %v4513 = vadd.f32 %v4367, %v4507
    %v4514 = vadd.f32 %v4368, %v4509
    %v4515 = vsub.f32 0.0, %v4511
    %v4516 = vmul.f32 %v4515, 1.442695
    %v4517 = vpow.pop %v4516
    %v4518 = vadd.f32 %v4517, 1.0
    %v4519 = vrcp.pop %v4518
    %v4520 = vmul.f32 1.0, %v4519
    %v4521 = vsub.f32 0.0, %v4512
    %v4522 = vmul.f32 %v4521, 1.442695
    %v4523 = vpow.pop %v4522
    %v4524 = vadd.f32 %v4523, 1.0
    %v4525 = vrcp.pop %v4524
    %v4526 = vmul.f32 1.0, %v4525
    %v4527 = vtanh.pop %v4513
    %v4528 = vsub.f32 0.0, %v4514
    %v4529 = vmul.f32 %v4528, 1.442695
    %v4530 = vpow.pop %v4529
    %v4531 = vadd.f32 %v4530, 1.0
    %v4532 = vrcp.pop %v4531
    %v4533 = vmul.f32 1.0, %v4532
    %v4534 = vmul.f32 %v4526, %v4182
    %v4535 = vmul.f32 %v4520, %v4527
    %v4536 = vadd.f32 %v4534, %v4535
    %v4537 = vtanh.pop %v4536
    %v4538 = vmul.f32 %v4533, %v4537
    %v4539 = vsel %vm2175, %v4538, %v4181
    %v4540 = vsel %vm2175, %v4536, %v4182
    %v4541 = vmax.f32 %v4184, %v4538
    %v4542 = vsel %vm2175, %v4541, %v4184
    %s4543 = scalar_lea.vmem [#allocation4], 64
    %v4544 = vld [vmem:[%s4543] sm:$0xff]
    %v4545 = vld [vmem:[%s4543 + $0x8] sm:$0xff]
    %v4546 = vld [vmem:[%s4543 + $0x10] sm:$0xff]
    %v4547 = vld [vmem:[%s4543 + $0x18] sm:$0xff]
    %4548 = vmatprep.subr.mxu0 %v1007
    %4549 = vmatpush1.msra.mxu0 %v1006
    %4550 = vmatprep.subr.mxu0 %v1011
    %4551 = vmatpush1.msra.mxu0 %v1010
    %4552 = vmatprep.subr.mxu0 %v1015
    %4553 = vmatpush1.msra.mxu0 %v1014
    %4554 = vmatprep.subr.mxu0 %v1019
    %4555 = vmatpush1.msra.mxu0 %v1018
    %4556 = vmatprep.subr.mxu0 %v1023
    %4557 = vmatpush1.msra.mxu0 %v1022
    %4558 = vmatprep.subr.mxu0 %v1027
    %4559 = vmatpush1.msra.mxu0 %v1026
    %4560 = vmatprep.subr.mxu0 %v1031
    %4561 = vmatpush1.msra.mxu0 %v1030
    %4562 = vmatprep.subr.mxu0 %v1035
    %4563 = vmatpush1.msra.mxu0 %v1034
    %4564 = vmatprep.subr.mxu0 %v1039
    %4565 = vmatpush1.msra.mxu0 %v1038
    %4566 = vmatprep.subr.mxu0 %v1043
    %4567 = vmatpush1.msra.mxu0 %v1042
    %4568 = vmatprep.subr.mxu0 %v1047
    %4569 = vmatpush1.msra.mxu0 %v1046
    %4570 = vmatprep.subr.mxu0 %v1051
    %4571 = vmatpush1.msra.mxu0 %v1050
    %4572 = vmatprep.subr.mxu0 %v1055
    %4573 = vmatpush1.msra.mxu0 %v1054
    %4574 = vmatprep.subr.mxu0 %v1059
    %4575 = vmatpush1.msra.mxu0 %v1058
    %4576 = vmatprep.subr.mxu0 %v1063
    %4577 = vmatpush1.msra.mxu0 %v1062
    %4578 = vmatprep.subr.mxu0 %v1067
    %4579 = vmatpush1.msra.mxu0 %v1066
    %4580 = vmatprep.subr.mxu0 0.0
    %4581 = vmatpush1.msra.mxu0 0.0
    %4582 = vmatprep.subr.mxu0 0.0
    %4583 = vmatpush1.msra.mxu0 0.0
    %4584 = vmatprep.subr.mxu0 0.0
    %4585 = vmatpush1.msra.mxu0 0.0
    %4586 = vmatprep.subr.mxu0 0.0
    %4587 = vmatpush1.msra.mxu0 0.0
    %4588 = vmatprep.subr.mxu0 0.0
    %4589 = vmatpush1.msra.mxu0 0.0
    %4590 = vmatprep.subr.mxu0 0.0
    %4591 = vmatpush1.msra.mxu0 0.0
    %4592 = vmatprep.subr.mxu0 0.0
    %4593 = vmatpush1.msra.mxu0 0.0
    %4594 = vmatprep.subr.mxu0 0.0
    %4595 = vmatpush1.msra.mxu0 0.0
    %4596 = vmatprep.subr.mxu0 0.0
    %4597 = vmatpush1.msra.mxu0 0.0
    %4598 = vmatprep.subr.mxu0 0.0
    %4599 = vmatpush1.msra.mxu0 0.0
    %4600 = vmatprep.subr.mxu0 0.0
    %4601 = vmatpush1.msra.mxu0 0.0
    %4602 = vmatprep.subr.mxu0 0.0
    %4603 = vmatpush1.msra.mxu0 0.0
    %4604 = vmatprep.subr.mxu0 0.0
    %4605 = vmatpush1.msra.mxu0 0.0
    %4606 = vmatprep.subr.mxu0 0.0
    %4607 = vmatpush1.msra.mxu0 0.0
    %4608 = vmatprep.subr.mxu0 0.0
    %4609 = vmatpush1.msra.mxu0 0.0
    %4610 = vmatprep.subr.mxu0 0.0
    %4611 = vmatpush1.msra.mxu0 0.0
    %4612 = vmatprep.mubr.f32.mxu0 0.0
    %4613 = vmatmul.mubr.f32.gmra.mrb[0].mxu0 %v4360
    %v4614 = vpop.f32.mrb[0].mxu0
    %v4615 = vadd.f32 0.0, %v4614
    %v4616 = vpop.f32.mrb[0].mxu0
    %v4617 = vadd.f32 0.0, %v4616
    %4618 = vdwg.mxu0
    %4619 = vmatprep.subr.mxu0 %v1009
    %4620 = vmatpush1.msra.mxu0 %v1008
    %4621 = vmatprep.subr.mxu0 %v1013
    %4622 = vmatpush1.msra.mxu0 %v1012
    %4623 = vmatprep.subr.mxu0 %v1017
    %4624 = vmatpush1.msra.mxu0 %v1016
    %4625 = vmatprep.subr.mxu0 %v1021
    %4626 = vmatpush1.msra.mxu0 %v1020
    %4627 = vmatprep.subr.mxu0 %v1025
    %4628 = vmatpush1.msra.mxu0 %v1024
    %4629 = vmatprep.subr.mxu0 %v1029
    %4630 = vmatpush1.msra.mxu0 %v1028
    %4631 = vmatprep.subr.mxu0 %v1033
    %4632 = vmatpush1.msra.mxu0 %v1032
    %4633 = vmatprep.subr.mxu0 %v1037
    %4634 = vmatpush1.msra.mxu0 %v1036
    %4635 = vmatprep.subr.mxu0 %v1041
    %4636 = vmatpush1.msra.mxu0 %v1040
    %4637 = vmatprep.subr.mxu0 %v1045
    %4638 = vmatpush1.msra.mxu0 %v1044
    %4639 = vmatprep.subr.mxu0 %v1049
    %4640 = vmatpush1.msra.mxu0 %v1048
    %4641 = vmatprep.subr.mxu0 %v1053
    %4642 = vmatpush1.msra.mxu0 %v1052
    %4643 = vmatprep.subr.mxu0 %v1057
    %4644 = vmatpush1.msra.mxu0 %v1056
    %4645 = vmatprep.subr.mxu0 %v1061
    %4646 = vmatpush1.msra.mxu0 %v1060
    %4647 = vmatprep.subr.mxu0 %v1065
    %4648 = vmatpush1.msra.mxu0 %v1064
    %4649 = vmatprep.subr.mxu0 %v1069
    %4650 = vmatpush1.msra.mxu0 %v1068
    %4651 = vmatprep.subr.mxu0 0.0
    %4652 = vmatpush1.msra.mxu0 0.0
    %4653 = vmatprep.subr.mxu0 0.0
    %4654 = vmatpush1.msra.mxu0 0.0
    %4655 = vmatprep.subr.mxu0 0.0
    %4656 = vmatpush1.msra.mxu0 0.0
    %4657 = vmatprep.subr.mxu0 0.0
    %4658 = vmatpush1.msra.mxu0 0.0
    %4659 = vmatprep.subr.mxu0 0.0
    %4660 = vmatpush1.msra.mxu0 0.0
    %4661 = vmatprep.subr.mxu0 0.0
    %4662 = vmatpush1.msra.mxu0 0.0
    %4663 = vmatprep.subr.mxu0 0.0
    %4664 = vmatpush1.msra.mxu0 0.0
    %4665 = vmatprep.subr.mxu0 0.0
    %4666 = vmatpush1.msra.mxu0 0.0
    %4667 = vmatprep.subr.mxu0 0.0
    %4668 = vmatpush1.msra.mxu0 0.0
    %4669 = vmatprep.subr.mxu0 0.0
    %4670 = vmatpush1.msra.mxu0 0.0
    %4671 = vmatprep.subr.mxu0 0.0
    %4672 = vmatpush1.msra.mxu0 0.0
    %4673 = vmatprep.subr.mxu0 0.0
    %4674 = vmatpush1.msra.mxu0 0.0
    %4675 = vmatprep.subr.mxu0 0.0
    %4676 = vmatpush1.msra.mxu0 0.0
    %4677 = vmatprep.subr.mxu0 0.0
    %4678 = vmatpush1.msra.mxu0 0.0
    %4679 = vmatprep.subr.mxu0 0.0
    %4680 = vmatpush1.msra.mxu0 0.0
    %4681 = vmatprep.subr.mxu0 0.0
    %4682 = vmatpush1.msra.mxu0 0.0
    %4683 = vmatprep.mubr.f32.mxu0 0.0
    %4684 = vmatmul.mubr.f32.gmra.mrb[0].mxu0 %v4360
    %v4685 = vpop.f32.mrb[0].mxu0
    %v4686 = vadd.f32 0.0, %v4685
    %v4687 = vpop.f32.mrb[0].mxu0
    %v4688 = vadd.f32 0.0, %v4687
    %4689 = vdwg.mxu0
    %v4690 = vadd.f32 %v4544, %v4615
    %v4691 = vadd.f32 %v4545, %v4617
    %v4692 = vadd.f32 %v4546, %v4686
    %v4693 = vadd.f32 %v4547, %v4688
    %v4694 = vsub.f32 0.0, %v4690
    %v4695 = vmul.f32 %v4694, 1.442695
    %v4696 = vpow.pop %v4695
    %v4697 = vadd.f32 %v4696, 1.0
    %v4698 = vrcp.pop %v4697
    %v4699 = vmul.f32 1.0, %v4698
    %v4700 = vsub.f32 0.0, %v4691
    %v4701 = vmul.f32 %v4700, 1.442695
    %v4702 = vpow.pop %v4701
    %v4703 = vadd.f32 %v4702, 1.0
    %v4704 = vrcp.pop %v4703
    %v4705 = vmul.f32 1.0, %v4704
    %v4706 = vtanh.pop %v4692
    %v4707 = vsub.f32 0.0, %v4693
    %v4708 = vmul.f32 %v4707, 1.442695
    %v4709 = vpow.pop %v4708
    %v4710 = vadd.f32 %v4709, 1.0
    %v4711 = vrcp.pop %v4710
    %v4712 = vmul.f32 1.0, %v4711
    %v4713 = vmul.f32 %v4705, %v4361
    %v4714 = vmul.f32 %v4699, %v4706
    %v4715 = vadd.f32 %v4713, %v4714
    %v4716 = vtanh.pop %v4715
    %v4717 = vmul.f32 %v4712, %v4716
    %v4718 = vsel %vm1990, %v4717, %v4360
    %v4719 = vsel %vm1990, %v4715, %v4361
    %v4720 = vmax.f32 %v4363, %v4717
    %v4721 = vsel %vm1990, %v4720, %v4363
    %s4722 = scalar_lea.vmem [#allocation3], 320
    %v4723 = vld [vmem:[%s4722] sm:$0xff]
    %v4724 = vld [vmem:[%s4722 + $0x8] sm:$0xff]
    %v4725 = vld [vmem:[%s4722 + $0x10] sm:$0xff]
    %v4726 = vld [vmem:[%s4722 + $0x18] sm:$0xff]
    %4727 = vmatprep.subr.mxu0 %v943
    %4728 = vmatpush1.msra.mxu0 %v942
    %4729 = vmatprep.subr.mxu0 %v947
    %4730 = vmatpush1.msra.mxu0 %v946
    %4731 = vmatprep.subr.mxu0 %v951
    %4732 = vmatpush1.msra.mxu0 %v950
    %4733 = vmatprep.subr.mxu0 %v955
    %4734 = vmatpush1.msra.mxu0 %v954
    %4735 = vmatprep.subr.mxu0 %v959
    %4736 = vmatpush1.msra.mxu0 %v958
    %4737 = vmatprep.subr.mxu0 %v963
    %4738 = vmatpush1.msra.mxu0 %v962
    %4739 = vmatprep.subr.mxu0 %v967
    %4740 = vmatpush1.msra.mxu0 %v966
    %4741 = vmatprep.subr.mxu0 %v971
    %4742 = vmatpush1.msra.mxu0 %v970
    %4743 = vmatprep.subr.mxu0 %v975
    %4744 = vmatpush1.msra.mxu0 %v974
    %4745 = vmatprep.subr.mxu0 %v979
    %4746 = vmatpush1.msra.mxu0 %v978
    %4747 = vmatprep.subr.mxu0 %v983
    %4748 = vmatpush1.msra.mxu0 %v982
    %4749 = vmatprep.subr.mxu0 %v987
    %4750 = vmatpush1.msra.mxu0 %v986
    %4751 = vmatprep.subr.mxu0 %v991
    %4752 = vmatpush1.msra.mxu0 %v990
    %4753 = vmatprep.subr.mxu0 %v995
    %4754 = vmatpush1.msra.mxu0 %v994
    %4755 = vmatprep.subr.mxu0 %v999
    %4756 = vmatpush1.msra.mxu0 %v998
    %4757 = vmatprep.subr.mxu0 %v1003
    %4758 = vmatpush1.msra.mxu0 %v1002
    %4759 = vmatprep.subr.mxu0 0.0
    %4760 = vmatpush1.msra.mxu0 0.0
    %4761 = vmatprep.subr.mxu0 0.0
    %4762 = vmatpush1.msra.mxu0 0.0
    %4763 = vmatprep.subr.mxu0 0.0
    %4764 = vmatpush1.msra.mxu0 0.0
    %4765 = vmatprep.subr.mxu0 0.0
    %4766 = vmatpush1.msra.mxu0 0.0
    %4767 = vmatprep.subr.mxu0 0.0
    %4768 = vmatpush1.msra.mxu0 0.0
    %4769 = vmatprep.subr.mxu0 0.0
    %4770 = vmatpush1.msra.mxu0 0.0
    %4771 = vmatprep.subr.mxu0 0.0
    %4772 = vmatpush1.msra.mxu0 0.0
    %4773 = vmatprep.subr.mxu0 0.0
    %4774 = vmatpush1.msra.mxu0 0.0
    %4775 = vmatprep.subr.mxu0 0.0
    %4776 = vmatpush1.msra.mxu0 0.0
    %4777 = vmatprep.subr.mxu0 0.0
    %4778 = vmatpush1.msra.mxu0 0.0
    %4779 = vmatprep.subr.mxu0 0.0
    %4780 = vmatpush1.msra.mxu0 0.0
    %4781 = vmatprep.subr.mxu0 0.0
    %4782 = vmatpush1.msra.mxu0 0.0
    %4783 = vmatprep.subr.mxu0 0.0
    %4784 = vmatpush1.msra.mxu0 0.0
    %4785 = vmatprep.subr.mxu0 0.0
    %4786 = vmatpush1.msra.mxu0 0.0
    %4787 = vmatprep.subr.mxu0 0.0
    %4788 = vmatpush1.msra.mxu0 0.0
    %4789 = vmatprep.subr.mxu0 0.0
    %4790 = vmatpush1.msra.mxu0 0.0
    %4791 = vmatprep.mubr.f32.mxu0 0.0
    %4792 = vmatmul.mubr.f32.gmra.mrb[0].mxu0 %v4539
    %v4793 = vpop.f32.mrb[0].mxu0
    %v4794 = vadd.f32 0.0, %v4793
    %v4795 = vpop.f32.mrb[0].mxu0
    %v4796 = vadd.f32 0.0, %v4795
    %4797 = vdwg.mxu0
    %4798 = vmatprep.subr.mxu0 %v945
    %4799 = vmatpush1.msra.mxu0 %v944
    %4800 = vmatprep.subr.mxu0 %v949
    %4801 = vmatpush1.msra.mxu0 %v948
    %4802 = vmatprep.subr.mxu0 %v953
    %4803 = vmatpush1.msra.mxu0 %v952
    %4804 = vmatprep.subr.mxu0 %v957
    %4805 = vmatpush1.msra.mxu0 %v956
    %4806 = vmatprep.subr.mxu0 %v961
    %4807 = vmatpush1.msra.mxu0 %v960
    %4808 = vmatprep.subr.mxu0 %v965
    %4809 = vmatpush1.msra.mxu0 %v964
    %4810 = vmatprep.subr.mxu0 %v969
    %4811 = vmatpush1.msra.mxu0 %v968
    %4812 = vmatprep.subr.mxu0 %v973
    %4813 = vmatpush1.msra.mxu0 %v972
    %4814 = vmatprep.subr.mxu0 %v977
    %4815 = vmatpush1.msra.mxu0 %v976
    %4816 = vmatprep.subr.mxu0 %v981
    %4817 = vmatpush1.msra.mxu0 %v980
    %4818 = vmatprep.subr.mxu0 %v985
    %4819 = vmatpush1.msra.mxu0 %v984
    %4820 = vmatprep.subr.mxu0 %v989
    %4821 = vmatpush1.msra.mxu0 %v988
    %4822 = vmatprep.subr.mxu0 %v993
    %4823 = vmatpush1.msra.mxu0 %v992
    %4824 = vmatprep.subr.mxu0 %v997
    %4825 = vmatpush1.msra.mxu0 %v996
    %4826 = vmatprep.subr.mxu0 %v1001
    %4827 = vmatpush1.msra.mxu0 %v1000
    %4828 = vmatprep.subr.mxu0 %v1005
    %4829 = vmatpush1.msra.mxu0 %v1004
    %4830 = vmatprep.subr.mxu0 0.0
    %4831 = vmatpush1.msra.mxu0 0.0
    %4832 = vmatprep.subr.mxu0 0.0
    %4833 = vmatpush1.msra.mxu0 0.0
    %4834 = vmatprep.subr.mxu0 0.0
    %4835 = vmatpush1.msra.mxu0 0.0
    %4836 = vmatprep.subr.mxu0 0.0
    %4837 = vmatpush1.msra.mxu0 0.0
    %4838 = vmatprep.subr.mxu0 0.0
    %4839 = vmatpush1.msra.mxu0 0.0
    %4840 = vmatprep.subr.mxu0 0.0
    %4841 = vmatpush1.msra.mxu0 0.0
    %4842 = vmatprep.subr.mxu0 0.0
    %4843 = vmatpush1.msra.mxu0 0.0
    %4844 = vmatprep.subr.mxu0 0.0
    %4845 = vmatpush1.msra.mxu0 0.0
    %4846 = vmatprep.subr.mxu0 0.0
    %4847 = vmatpush1.msra.mxu0 0.0
    %4848 = vmatprep.subr.mxu0 0.0
    %4849 = vmatpush1.msra.mxu0 0.0
    %4850 = vmatprep.subr.mxu0 0.0
    %4851 = vmatpush1.msra.mxu0 0.0
    %4852 = vmatprep.subr.mxu0 0.0
    %4853 = vmatpush1.msra.mxu0 0.0
    %4854 = vmatprep.subr.mxu0 0.0
    %4855 = vmatpush1.msra.mxu0 0.0
    %4856 = vmatprep.subr.mxu0 0.0
    %4857 = vmatpush1.msra.mxu0 0.0
    %4858 = vmatprep.subr.mxu0 0.0
    %4859 = vmatpush1.msra.mxu0 0.0
    %4860 = vmatprep.subr.mxu0 0.0
    %4861 = vmatpush1.msra.mxu0 0.0
    %4862 = vmatprep.mubr.f32.mxu0 0.0
    %4863 = vmatmul.mubr.f32.gmra.mrb[0].mxu0 %v4539
    %v4864 = vpop.f32.mrb[0].mxu0
    %v4865 = vadd.f32 0.0, %v4864
    %v4866 = vpop.f32.mrb[0].mxu0
    %v4867 = vadd.f32 0.0, %v4866
    %4868 = vdwg.mxu0
    %v4869 = vadd.f32 %v4723, %v4794
    %v4870 = vadd.f32 %v4724, %v4796
    %v4871 = vadd.f32 %v4725, %v4865
    %v4872 = vadd.f32 %v4726, %v4867
    %v4873 = vsub.f32 0.0, %v4869
    %v4874 = vmul.f32 %v4873, 1.442695
    %v4875 = vpow.pop %v4874
    %v4876 = vadd.f32 %v4875, 1.0
    %v4877 = vrcp.pop %v4876
    %v4878 = vmul.f32 1.0, %v4877
    %v4879 = vsub.f32 0.0, %v4870
    %v4880 = vmul.f32 %v4879, 1.442695
    %v4881 = vpow.pop %v4880
    %v4882 = vadd.f32 %v4881, 1.0
    %v4883 = vrcp.pop %v4882
    %v4884 = vmul.f32 1.0, %v4883
    %v4885 = vtanh.pop %v4871
    %v4886 = vsub.f32 0.0, %v4872
    %v4887 = vmul.f32 %v4886, 1.442695
    %v4888 = vpow.pop %v4887
    %v4889 = vadd.f32 %v4888, 1.0
    %v4890 = vrcp.pop %v4889
    %v4891 = vmul.f32 1.0, %v4890
    %v4892 = vmul.f32 %v4884, %v4540
    %v4893 = vmul.f32 %v4878, %v4885
    %v4894 = vadd.f32 %v4892, %v4893
    %v4895 = vtanh.pop %v4894
    %v4896 = vmul.f32 %v4891, %v4895
    %v4897 = vsel %vm1805, %v4896, %v4539
    %v4898 = vsel %vm1805, %v4894, %v4540
    %v4899 = vmax.f32 %v4542, %v4896
    %v4900 = vsel %vm1805, %v4899, %v4542
    %s4901 = scalar_lea.vmem [#allocation4], 32
    %v4902 = vld [vmem:[%s4901] sm:$0xff]
    %v4903 = vld [vmem:[%s4901 + $0x8] sm:$0xff]
    %v4904 = vld [vmem:[%s4901 + $0x10] sm:$0xff]
    %v4905 = vld [vmem:[%s4901 + $0x18] sm:$0xff]
    %4906 = vmatprep.subr.mxu0 %v1007
    %4907 = vmatpush1.msra.mxu0 %v1006
    %4908 = vmatprep.subr.mxu0 %v1011
    %4909 = vmatpush1.msra.mxu0 %v1010
    %4910 = vmatprep.subr.mxu0 %v1015
    %4911 = vmatpush1.msra.mxu0 %v1014
    %4912 = vmatprep.subr.mxu0 %v1019
    %4913 = vmatpush1.msra.mxu0 %v1018
    %4914 = vmatprep.subr.mxu0 %v1023
    %4915 = vmatpush1.msra.mxu0 %v1022
    %4916 = vmatprep.subr.mxu0 %v1027
    %4917 = vmatpush1.msra.mxu0 %v1026
    %4918 = vmatprep.subr.mxu0 %v1031
    %4919 = vmatpush1.msra.mxu0 %v1030
    %4920 = vmatprep.subr.mxu0 %v1035
    %4921 = vmatpush1.msra.mxu0 %v1034
    %4922 = vmatprep.subr.mxu0 %v1039
    %4923 = vmatpush1.msra.mxu0 %v1038
    %4924 = vmatprep.subr.mxu0 %v1043
    %4925 = vmatpush1.msra.mxu0 %v1042
    %4926 = vmatprep.subr.mxu0 %v1047
    %4927 = vmatpush1.msra.mxu0 %v1046
    %4928 = vmatprep.subr.mxu0 %v1051
    %4929 = vmatpush1.msra.mxu0 %v1050
    %4930 = vmatprep.subr.mxu0 %v1055
    %4931 = vmatpush1.msra.mxu0 %v1054
    %4932 = vmatprep.subr.mxu0 %v1059
    %4933 = vmatpush1.msra.mxu0 %v1058
    %4934 = vmatprep.subr.mxu0 %v1063
    %4935 = vmatpush1.msra.mxu0 %v1062
    %4936 = vmatprep.subr.mxu0 %v1067
    %4937 = vmatpush1.msra.mxu0 %v1066
    %4938 = vmatprep.subr.mxu0 0.0
    %4939 = vmatpush1.msra.mxu0 0.0
    %4940 = vmatprep.subr.mxu0 0.0
    %4941 = vmatpush1.msra.mxu0 0.0
    %4942 = vmatprep.subr.mxu0 0.0
    %4943 = vmatpush1.msra.mxu0 0.0
    %4944 = vmatprep.subr.mxu0 0.0
    %4945 = vmatpush1.msra.mxu0 0.0
    %4946 = vmatprep.subr.mxu0 0.0
    %4947 = vmatpush1.msra.mxu0 0.0
    %4948 = vmatprep.subr.mxu0 0.0
    %4949 = vmatpush1.msra.mxu0 0.0
    %4950 = vmatprep.subr.mxu0 0.0
    %4951 = vmatpush1.msra.mxu0 0.0
    %4952 = vmatprep.subr.mxu0 0.0
    %4953 = vmatpush1.msra.mxu0 0.0
    %4954 = vmatprep.subr.mxu0 0.0
    %4955 = vmatpush1.msra.mxu0 0.0
    %4956 = vmatprep.subr.mxu0 0.0
    %4957 = vmatpush1.msra.mxu0 0.0
    %4958 = vmatprep.subr.mxu0 0.0
    %4959 = vmatpush1.msra.mxu0 0.0
    %4960 = vmatprep.subr.mxu0 0.0
    %4961 = vmatpush1.msra.mxu0 0.0
    %4962 = vmatprep.subr.mxu0 0.0
    %4963 = vmatpush1.msra.mxu0 0.0
    %4964 = vmatprep.subr.mxu0 0.0
    %4965 = vmatpush1.msra.mxu0 0.0
    %4966 = vmatprep.subr.mxu0 0.0
    %4967 = vmatpush1.msra.mxu0 0.0
    %4968 = vmatprep.subr.mxu0 0.0
    %4969 = vmatpush1.msra.mxu0 0.0
    %4970 = vmatprep.mubr.f32.mxu0 0.0
    %4971 = vmatmul.mubr.f32.gmra.mrb[0].mxu0 %v4718
    %v4972 = vpop.f32.mrb[0].mxu0
    %v4973 = vadd.f32 0.0, %v4972
    %v4974 = vpop.f32.mrb[0].mxu0
    %v4975 = vadd.f32 0.0, %v4974
    %4976 = vdwg.mxu0
    %4977 = vmatprep.subr.mxu0 %v1009
    %4978 = vmatpush1.msra.mxu0 %v1008
    %4979 = vmatprep.subr.mxu0 %v1013
    %4980 = vmatpush1.msra.mxu0 %v1012
    %4981 = vmatprep.subr.mxu0 %v1017
    %4982 = vmatpush1.msra.mxu0 %v1016
    %4983 = vmatprep.subr.mxu0 %v1021
    %4984 = vmatpush1.msra.mxu0 %v1020
    %4985 = vmatprep.subr.mxu0 %v1025
    %4986 = vmatpush1.msra.mxu0 %v1024
    %4987 = vmatprep.subr.mxu0 %v1029
    %4988 = vmatpush1.msra.mxu0 %v1028
    %4989 = vmatprep.subr.mxu0 %v1033
    %4990 = vmatpush1.msra.mxu0 %v1032
    %4991 = vmatprep.subr.mxu0 %v1037
    %4992 = vmatpush1.msra.mxu0 %v1036
    %4993 = vmatprep.subr.mxu0 %v1041
    %4994 = vmatpush1.msra.mxu0 %v1040
    %4995 = vmatprep.subr.mxu0 %v1045
    %4996 = vmatpush1.msra.mxu0 %v1044
    %4997 = vmatprep.subr.mxu0 %v1049
    %4998 = vmatpush1.msra.mxu0 %v1048
    %4999 = vmatprep.subr.mxu0 %v1053
    %5000 = vmatpush1.msra.mxu0 %v1052
    %5001 = vmatprep.subr.mxu0 %v1057
    %5002 = vmatpush1.msra.mxu0 %v1056
    %5003 = vmatprep.subr.mxu0 %v1061
    %5004 = vmatpush1.msra.mxu0 %v1060
    %5005 = vmatprep.subr.mxu0 %v1065
    %5006 = vmatpush1.msra.mxu0 %v1064
    %5007 = vmatprep.subr.mxu0 %v1069
    %5008 = vmatpush1.msra.mxu0 %v1068
    %5009 = vmatprep.subr.mxu0 0.0
    %5010 = vmatpush1.msra.mxu0 0.0
    %5011 = vmatprep.subr.mxu0 0.0
    %5012 = vmatpush1.msra.mxu0 0.0
    %5013 = vmatprep.subr.mxu0 0.0
    %5014 = vmatpush1.msra.mxu0 0.0
    %5015 = vmatprep.subr.mxu0 0.0
    %5016 = vmatpush1.msra.mxu0 0.0
    %5017 = vmatprep.subr.mxu0 0.0
    %5018 = vmatpush1.msra.mxu0 0.0
    %5019 = vmatprep.subr.mxu0 0.0
    %5020 = vmatpush1.msra.mxu0 0.0
    %5021 = vmatprep.subr.mxu0 0.0
    %5022 = vmatpush1.msra.mxu0 0.0
    %5023 = vmatprep.subr.mxu0 0.0
    %5024 = vmatpush1.msra.mxu0 0.0
    %5025 = vmatprep.subr.mxu0 0.0
    %5026 = vmatpush1.msra.mxu0 0.0
    %5027 = vmatprep.subr.mxu0 0.0
    %5028 = vmatpush1.msra.mxu0 0.0
    %5029 = vmatprep.subr.mxu0 0.0
    %5030 = vmatpush1.msra.mxu0 0.0
    %5031 = vmatprep.subr.mxu0 0.0
    %5032 = vmatpush1.msra.mxu0 0.0
    %5033 = vmatprep.subr.mxu0 0.0
    %5034 = vmatpush1.msra.mxu0 0.0
    %5035 = vmatprep.subr.mxu0 0.0
    %5036 = vmatpush1.msra.mxu0 0.0
    %5037 = vmatprep.subr.mxu0 0.0
    %5038 = vmatpush1.msra.mxu0 0.0
    %5039 = vmatprep.subr.mxu0 0.0
    %5040 = vmatpush1.msra.mxu0 0.0
    %5041 = vmatprep.mubr.f32.mxu0 0.0
    %5042 = vmatmul.mubr.f32.gmra.mrb[0].mxu0 %v4718
    %v5043 = vpop.f32.mrb[0].mxu0
    %v5044 = vadd.f32 0.0, %v5043
    %v5045 = vpop.f32.mrb[0].mxu0
    %v5046 = vadd.f32 0.0, %v5045
    %5047 = vdwg.mxu0
    %v5048 = vadd.f32 %v4902, %v4973
    %v5049 = vadd.f32 %v4903, %v4975
    %v5050 = vadd.f32 %v4904, %v5044
    %v5051 = vadd.f32 %v4905, %v5046
    %v5052 = vsub.f32 0.0, %v5048
    %v5053 = vmul.f32 %v5052, 1.442695
    %v5054 = vpow.pop %v5053
    %v5055 = vadd.f32 %v5054, 1.0
    %v5056 = vrcp.pop %v5055
    %v5057 = vmul.f32 1.0, %v5056
    %v5058 = vsub.f32 0.0, %v5049
    %v5059 = vmul.f32 %v5058, 1.442695
    %v5060 = vpow.pop %v5059
    %v5061 = vadd.f32 %v5060, 1.0
    %v5062 = vrcp.pop %v5061
    %v5063 = vmul.f32 1.0, %v5062
    %v5064 = vtanh.pop %v5050
    %v5065 = vsub.f32 0.0, %v5051
    %v5066 = vmul.f32 %v5065, 1.442695
    %v5067 = vpow.pop %v5066
    %v5068 = vadd.f32 %v5067, 1.0
    %v5069 = vrcp.pop %v5068
    %v5070 = vmul.f32 1.0, %v5069
    %v5071 = vmul.f32 %v5063, %v4719
    %v5072 = vmul.f32 %v5057, %v5064
    %v5073 = vadd.f32 %v5071, %v5072
    %v5074 = vtanh.pop %v5073
    %v5075 = vmul.f32 %v5070, %v5074
    %v5076 = vsel %vm1620, %v5075, %v4718
    %v5077 = vsel %vm1620, %v5073, %v4719
    %v5078 = vmax.f32 %v4721, %v5075
    %v5079 = vsel %vm1620, %v5078, %v4721
    %s5080 = scalar_lea.vmem [#allocation3], 352
    %v5081 = vld [vmem:[%s5080] sm:$0xff]
    %v5082 = vld [vmem:[%s5080 + $0x8] sm:$0xff]
    %v5083 = vld [vmem:[%s5080 + $0x10] sm:$0xff]
    %v5084 = vld [vmem:[%s5080 + $0x18] sm:$0xff]
    %5085 = vmatprep.subr.mxu0 %v943
    %5086 = vmatpush1.msra.mxu0 %v942
    %5087 = vmatprep.subr.mxu0 %v947
    %5088 = vmatpush1.msra.mxu0 %v946
    %5089 = vmatprep.subr.mxu0 %v951
    %5090 = vmatpush1.msra.mxu0 %v950
    %5091 = vmatprep.subr.mxu0 %v955
    %5092 = vmatpush1.msra.mxu0 %v954
    %5093 = vmatprep.subr.mxu0 %v959
    %5094 = vmatpush1.msra.mxu0 %v958
    %5095 = vmatprep.subr.mxu0 %v963
    %5096 = vmatpush1.msra.mxu0 %v962
    %5097 = vmatprep.subr.mxu0 %v967
    %5098 = vmatpush1.msra.mxu0 %v966
    %5099 = vmatprep.subr.mxu0 %v971
    %5100 = vmatpush1.msra.mxu0 %v970
    %5101 = vmatprep.subr.mxu0 %v975
    %5102 = vmatpush1.msra.mxu0 %v974
    %5103 = vmatprep.subr.mxu0 %v979
    %5104 = vmatpush1.msra.mxu0 %v978
    %5105 = vmatprep.subr.mxu0 %v983
    %5106 = vmatpush1.msra.mxu0 %v982
    %5107 = vmatprep.subr.mxu0 %v987
    %5108 = vmatpush1.msra.mxu0 %v986
    %5109 = vmatprep.subr.mxu0 %v991
    %5110 = vmatpush1.msra.mxu0 %v990
    %5111 = vmatprep.subr.mxu0 %v995
    %5112 = vmatpush1.msra.mxu0 %v994
    %5113 = vmatprep.subr.mxu0 %v999
    %5114 = vmatpush1.msra.mxu0 %v998
    %5115 = vmatprep.subr.mxu0 %v1003
    %5116 = vmatpush1.msra.mxu0 %v1002
    %5117 = vmatprep.subr.mxu0 0.0
    %5118 = vmatpush1.msra.mxu0 0.0
    %5119 = vmatprep.subr.mxu0 0.0
    %5120 = vmatpush1.msra.mxu0 0.0
    %5121 = vmatprep.subr.mxu0 0.0
    %5122 = vmatpush1.msra.mxu0 0.0
    %5123 = vmatprep.subr.mxu0 0.0
    %5124 = vmatpush1.msra.mxu0 0.0
    %5125 = vmatprep.subr.mxu0 0.0
    %5126 = vmatpush1.msra.mxu0 0.0
    %5127 = vmatprep.subr.mxu0 0.0
    %5128 = vmatpush1.msra.mxu0 0.0
    %5129 = vmatprep.subr.mxu0 0.0
    %5130 = vmatpush1.msra.mxu0 0.0
    %5131 = vmatprep.subr.mxu0 0.0
    %5132 = vmatpush1.msra.mxu0 0.0
    %5133 = vmatprep.subr.mxu0 0.0
    %5134 = vmatpush1.msra.mxu0 0.0
    %5135 = vmatprep.subr.mxu0 0.0
    %5136 = vmatpush1.msra.mxu0 0.0
    %5137 = vmatprep.subr.mxu0 0.0
    %5138 = vmatpush1.msra.mxu0 0.0
    %5139 = vmatprep.subr.mxu0 0.0
    %5140 = vmatpush1.msra.mxu0 0.0
    %5141 = vmatprep.subr.mxu0 0.0
    %5142 = vmatpush1.msra.mxu0 0.0
    %5143 = vmatprep.subr.mxu0 0.0
    %5144 = vmatpush1.msra.mxu0 0.0
    %5145 = vmatprep.subr.mxu0 0.0
    %5146 = vmatpush1.msra.mxu0 0.0
    %5147 = vmatprep.subr.mxu0 0.0
    %5148 = vmatpush1.msra.mxu0 0.0
    %5149 = vmatprep.mubr.f32.mxu0 0.0
    %5150 = vmatmul.mubr.f32.gmra.mrb[0].mxu0 %v4897
    %v5151 = vpop.f32.mrb[0].mxu0
    %v5152 = vadd.f32 0.0, %v5151
    %v5153 = vpop.f32.mrb[0].mxu0
    %v5154 = vadd.f32 0.0, %v5153
    %5155 = vdwg.mxu0
    %5156 = vmatprep.subr.mxu0 %v945
    %5157 = vmatpush1.msra.mxu0 %v944
    %5158 = vmatprep.subr.mxu0 %v949
    %5159 = vmatpush1.msra.mxu0 %v948
    %5160 = vmatprep.subr.mxu0 %v953
    %5161 = vmatpush1.msra.mxu0 %v952
    %5162 = vmatprep.subr.mxu0 %v957
    %5163 = vmatpush1.msra.mxu0 %v956
    %5164 = vmatprep.subr.mxu0 %v961
    %5165 = vmatpush1.msra.mxu0 %v960
    %5166 = vmatprep.subr.mxu0 %v965
    %5167 = vmatpush1.msra.mxu0 %v964
    %5168 = vmatprep.subr.mxu0 %v969
    %5169 = vmatpush1.msra.mxu0 %v968
    %5170 = vmatprep.subr.mxu0 %v973
    %5171 = vmatpush1.msra.mxu0 %v972
    %5172 = vmatprep.subr.mxu0 %v977
    %5173 = vmatpush1.msra.mxu0 %v976
    %5174 = vmatprep.subr.mxu0 %v981
    %5175 = vmatpush1.msra.mxu0 %v980
    %5176 = vmatprep.subr.mxu0 %v985
    %5177 = vmatpush1.msra.mxu0 %v984
    %5178 = vmatprep.subr.mxu0 %v989
    %5179 = vmatpush1.msra.mxu0 %v988
    %5180 = vmatprep.subr.mxu0 %v993
    %5181 = vmatpush1.msra.mxu0 %v992
    %5182 = vmatprep.subr.mxu0 %v997
    %5183 = vmatpush1.msra.mxu0 %v996
    %5184 = vmatprep.subr.mxu0 %v1001
    %5185 = vmatpush1.msra.mxu0 %v1000
    %5186 = vmatprep.subr.mxu0 %v1005
    %5187 = vmatpush1.msra.mxu0 %v1004
    %5188 = vmatprep.subr.mxu0 0.0
    %5189 = vmatpush1.msra.mxu0 0.0
    %5190 = vmatprep.subr.mxu0 0.0
    %5191 = vmatpush1.msra.mxu0 0.0
    %5192 = vmatprep.subr.mxu0 0.0
    %5193 = vmatpush1.msra.mxu0 0.0
    %5194 = vmatprep.subr.mxu0 0.0
    %5195 = vmatpush1.msra.mxu0 0.0
    %5196 = vmatprep.subr.mxu0 0.0
    %5197 = vmatpush1.msra.mxu0 0.0
    %5198 = vmatprep.subr.mxu0 0.0
    %5199 = vmatpush1.msra.mxu0 0.0
    %5200 = vmatprep.subr.mxu0 0.0
    %5201 = vmatpush1.msra.mxu0 0.0
    %5202 = vmatprep.subr.mxu0 0.0
    %5203 = vmatpush1.msra.mxu0 0.0
    %5204 = vmatprep.subr.mxu0 0.0
    %5205 = vmatpush1.msra.mxu0 0.0
    %5206 = vmatprep.subr.mxu0 0.0
    %5207 = vmatpush1.msra.mxu0 0.0
    %5208 = vmatprep.subr.mxu0 0.0
    %5209 = vmatpush1.msra.mxu0 0.0
    %5210 = vmatprep.subr.mxu0 0.0
    %5211 = vmatpush1.msra.mxu0 0.0
    %5212 = vmatprep.subr.mxu0 0.0
    %5213 = vmatpush1.msra.mxu0 0.0
    %5214 = vmatprep.subr.mxu0 0.0
    %5215 = vmatpush1.msra.mxu0 0.0
    %5216 = vmatprep.subr.mxu0 0.0
    %5217 = vmatpush1.msra.mxu0 0.0
    %5218 = vmatprep.subr.mxu0 0.0
    %5219 = vmatpush1.msra.mxu0 0.0
    %5220 = vmatprep.mubr.f32.mxu0 0.0
    %5221 = vmatmul.mubr.f32.gmra.mrb[0].mxu0 %v4897
    %v5222 = vpop.f32.mrb[0].mxu0
    %v5223 = vadd.f32 0.0, %v5222
    %v5224 = vpop.f32.mrb[0].mxu0
    %v5225 = vadd.f32 0.0, %v5224
    %5226 = vdwg.mxu0
    %v5227 = vadd.f32 %v5081, %v5152
    %v5228 = vadd.f32 %v5082, %v5154
    %v5229 = vadd.f32 %v5083, %v5223
    %v5230 = vadd.f32 %v5084, %v5225
    %v5231 = vsub.f32 0.0, %v5227
    %v5232 = vmul.f32 %v5231, 1.442695
    %v5233 = vpow.pop %v5232
    %v5234 = vadd.f32 %v5233, 1.0
    %v5235 = vrcp.pop %v5234
    %v5236 = vmul.f32 1.0, %v5235
    %v5237 = vsub.f32 0.0, %v5228
    %v5238 = vmul.f32 %v5237, 1.442695
    %v5239 = vpow.pop %v5238
    %v5240 = vadd.f32 %v5239, 1.0
    %v5241 = vrcp.pop %v5240
    %v5242 = vmul.f32 1.0, %v5241
    %v5243 = vtanh.pop %v5229
    %v5244 = vsub.f32 0.0, %v5230
    %v5245 = vmul.f32 %v5244, 1.442695
    %v5246 = vpow.pop %v5245
    %v5247 = vadd.f32 %v5246, 1.0
    %v5248 = vrcp.pop %v5247
    %v5249 = vmul.f32 1.0, %v5248
    %v5250 = vmul.f32 %v5242, %v4898
    %v5251 = vmul.f32 %v5236, %v5243
    %v5252 = vadd.f32 %v5250, %v5251
    %v5253 = vtanh.pop %v5252
    %v5254 = vmul.f32 %v5249, %v5253
    %v5255 = vmax.f32 %v4900, %v5254
    %v5256 = vsel %vm1435, %v5255, %v4900
    %v5257 = vld [vmem:[#allocation4] sm:$0xff]
    %v5258 = vld [vmem:[#allocation4 + $0x8] sm:$0xff]
    %v5259 = vld [vmem:[#allocation4 + $0x10] sm:$0xff]
    %v5260 = vld [vmem:[#allocation4 + $0x18] sm:$0xff]
    %5261 = vmatprep.subr.mxu0 %v1007
    %5262 = vmatpush1.msra.mxu0 %v1006
    %5263 = vmatprep.subr.mxu0 %v1011
    %5264 = vmatpush1.msra.mxu0 %v1010
    %5265 = vmatprep.subr.mxu0 %v1015
    %5266 = vmatpush1.msra.mxu0 %v1014
    %5267 = vmatprep.subr.mxu0 %v1019
    %5268 = vmatpush1.msra.mxu0 %v1018
    %5269 = vmatprep.subr.mxu0 %v1023
    %5270 = vmatpush1.msra.mxu0 %v1022
    %5271 = vmatprep.subr.mxu0 %v1027
    %5272 = vmatpush1.msra.mxu0 %v1026
    %5273 = vmatprep.subr.mxu0 %v1031
    %5274 = vmatpush1.msra.mxu0 %v1030
    %5275 = vmatprep.subr.mxu0 %v1035
    %5276 = vmatpush1.msra.mxu0 %v1034
    %5277 = vmatprep.subr.mxu0 %v1039
    %5278 = vmatpush1.msra.mxu0 %v1038
    %5279 = vmatprep.subr.mxu0 %v1043
    %5280 = vmatpush1.msra.mxu0 %v1042
    %5281 = vmatprep.subr.mxu0 %v1047
    %5282 = vmatpush1.msra.mxu0 %v1046
    %5283 = vmatprep.subr.mxu0 %v1051
    %5284 = vmatpush1.msra.mxu0 %v1050
    %5285 = vmatprep.subr.mxu0 %v1055
    %5286 = vmatpush1.msra.mxu0 %v1054
    %5287 = vmatprep.subr.mxu0 %v1059
    %5288 = vmatpush1.msra.mxu0 %v1058
    %5289 = vmatprep.subr.mxu0 %v1063
    %5290 = vmatpush1.msra.mxu0 %v1062
    %5291 = vmatprep.subr.mxu0 %v1067
    %5292 = vmatpush1.msra.mxu0 %v1066
    %5293 = vmatprep.subr.mxu0 0.0
    %5294 = vmatpush1.msra.mxu0 0.0
    %5295 = vmatprep.subr.mxu0 0.0
    %5296 = vmatpush1.msra.mxu0 0.0
    %5297 = vmatprep.subr.mxu0 0.0
    %5298 = vmatpush1.msra.mxu0 0.0
    %5299 = vmatprep.subr.mxu0 0.0
    %5300 = vmatpush1.msra.mxu0 0.0
    %5301 = vmatprep.subr.mxu0 0.0
    %5302 = vmatpush1.msra.mxu0 0.0
    %5303 = vmatprep.subr.mxu0 0.0
    %5304 = vmatpush1.msra.mxu0 0.0
    %5305 = vmatprep.subr.mxu0 0.0
    %5306 = vmatpush1.msra.mxu0 0.0
    %5307 = vmatprep.subr.mxu0 0.0
    %5308 = vmatpush1.msra.mxu0 0.0
    %5309 = vmatprep.subr.mxu0 0.0
    %5310 = vmatpush1.msra.mxu0 0.0
    %5311 = vmatprep.subr.mxu0 0.0
    %5312 = vmatpush1.msra.mxu0 0.0
    %5313 = vmatprep.subr.mxu0 0.0
    %5314 = vmatpush1.msra.mxu0 0.0
    %5315 = vmatprep.subr.mxu0 0.0
    %5316 = vmatpush1.msra.mxu0 0.0
    %5317 = vmatprep.subr.mxu0 0.0
    %5318 = vmatpush1.msra.mxu0 0.0
    %5319 = vmatprep.subr.mxu0 0.0
    %5320 = vmatpush1.msra.mxu0 0.0
    %5321 = vmatprep.subr.mxu0 0.0
    %5322 = vmatpush1.msra.mxu0 0.0
    %5323 = vmatprep.subr.mxu0 0.0
    %5324 = vmatpush1.msra.mxu0 0.0
    %5325 = vmatprep.mubr.f32.mxu0 0.0
    %5326 = vmatmul.mubr.f32.gmra.mrb[0].mxu0 %v5076
    %v5327 = vpop.f32.mrb[0].mxu0
    %v5328 = vadd.f32 0.0, %v5327
    %v5329 = vpop.f32.mrb[0].mxu0
    %v5330 = vadd.f32 0.0, %v5329
    %5331 = vdwg.mxu0
    %5332 = vmatprep.subr.mxu0 %v1009
    %5333 = vmatpush1.msra.mxu0 %v1008
    %5334 = vmatprep.subr.mxu0 %v1013
    %5335 = vmatpush1.msra.mxu0 %v1012
    %5336 = vmatprep.subr.mxu0 %v1017
    %5337 = vmatpush1.msra.mxu0 %v1016
    %5338 = vmatprep.subr.mxu0 %v1021
    %5339 = vmatpush1.msra.mxu0 %v1020
    %5340 = vmatprep.subr.mxu0 %v1025
    %5341 = vmatpush1.msra.mxu0 %v1024
    %5342 = vmatprep.subr.mxu0 %v1029
    %5343 = vmatpush1.msra.mxu0 %v1028
    %5344 = vmatprep.subr.mxu0 %v1033
    %5345 = vmatpush1.msra.mxu0 %v1032
    %5346 = vmatprep.subr.mxu0 %v1037
    %5347 = vmatpush1.msra.mxu0 %v1036
    %5348 = vmatprep.subr.mxu0 %v1041
    %5349 = vmatpush1.msra.mxu0 %v1040
    %5350 = vmatprep.subr.mxu0 %v1045
    %5351 = vmatpush1.msra.mxu0 %v1044
    %5352 = vmatprep.subr.mxu0 %v1049
    %5353 = vmatpush1.msra.mxu0 %v1048
    %5354 = vmatprep.subr.mxu0 %v1053
    %5355 = vmatpush1.msra.mxu0 %v1052
    %5356 = vmatprep.subr.mxu0 %v1057
    %5357 = vmatpush1.msra.mxu0 %v1056
    %5358 = vmatprep.subr.mxu0 %v1061
    %5359 = vmatpush1.msra.mxu0 %v1060
    %5360 = vmatprep.subr.mxu0 %v1065
    %5361 = vmatpush1.msra.mxu0 %v1064
    %5362 = vmatprep.subr.mxu0 %v1069
    %5363 = vmatpush1.msra.mxu0 %v1068
    %5364 = vmatprep.subr.mxu0 0.0
    %5365 = vmatpush1.msra.mxu0 0.0
    %5366 = vmatprep.subr.mxu0 0.0
    %5367 = vmatpush1.msra.mxu0 0.0
    %5368 = vmatprep.subr.mxu0 0.0
    %5369 = vmatpush1.msra.mxu0 0.0
    %5370 = vmatprep.subr.mxu0 0.0
    %5371 = vmatpush1.msra.mxu0 0.0
    %5372 = vmatprep.subr.mxu0 0.0
    %5373 = vmatpush1.msra.mxu0 0.0
    %5374 = vmatprep.subr.mxu0 0.0
    %5375 = vmatpush1.msra.mxu0 0.0
    %5376 = vmatprep.subr.mxu0 0.0
    %5377 = vmatpush1.msra.mxu0 0.0
    %5378 = vmatprep.subr.mxu0 0.0
    %5379 = vmatpush1.msra.mxu0 0.0
    %5380 = vmatprep.subr.mxu0 0.0
    %5381 = vmatpush1.msra.mxu0 0.0
    %5382 = vmatprep.subr.mxu0 0.0
    %5383 = vmatpush1.msra.mxu0 0.0
    %5384 = vmatprep.subr.mxu0 0.0
    %5385 = vmatpush1.msra.mxu0 0.0
    %5386 = vmatprep.subr.mxu0 0.0
    %5387 = vmatpush1.msra.mxu0 0.0
    %5388 = vmatprep.subr.mxu0 0.0
    %5389 = vmatpush1.msra.mxu0 0.0
    %5390 = vmatprep.subr.mxu0 0.0
    %5391 = vmatpush1.msra.mxu0 0.0
    %5392 = vmatprep.subr.mxu0 0.0
    %5393 = vmatpush1.msra.mxu0 0.0
    %5394 = vmatprep.subr.mxu0 0.0
    %5395 = vmatpush1.msra.mxu0 0.0
    %5396 = vmatprep.mubr.f32.mxu0 0.0
    %5397 = vmatmul.mubr.f32.gmra.mrb[0].mxu0 %v5076
    %v5398 = vpop.f32.mrb[0].mxu0
    %v5399 = vadd.f32 0.0, %v5398
    %v5400 = vpop.f32.mrb[0].mxu0
    %v5401 = vadd.f32 0.0, %v5400
    %5402 = vdwg.mxu0
    %v5403 = vadd.f32 %v5257, %v5328
    %v5404 = vadd.f32 %v5258, %v5330
    %v5405 = vadd.f32 %v5259, %v5399
    %v5406 = vadd.f32 %v5260, %v5401
    %v5407 = vsub.f32 0.0, %v5403
    %v5408 = vmul.f32 %v5407, 1.442695
    %v5409 = vpow.pop %v5408
    %v5410 = vadd.f32 %v5409, 1.0
    %v5411 = vrcp.pop %v5410
    %v5412 = vmul.f32 1.0, %v5411
    %v5413 = vsub.f32 0.0, %v5404
    %v5414 = vmul.f32 %v5413, 1.442695
    %v5415 = vpow.pop %v5414
    %v5416 = vadd.f32 %v5415, 1.0
    %v5417 = vrcp.pop %v5416
    %v5418 = vmul.f32 1.0, %v5417
    %v5419 = vtanh.pop %v5405
    %v5420 = vsub.f32 0.0, %v5406
    %v5421 = vmul.f32 %v5420, 1.442695
    %v5422 = vpow.pop %v5421
    %v5423 = vadd.f32 %v5422, 1.0
    %v5424 = vrcp.pop %v5423
    %v5425 = vmul.f32 1.0, %v5424
    %v5426 = vmul.f32 %v5418, %v5077
    %v5427 = vmul.f32 %v5412, %v5419
    %v5428 = vadd.f32 %v5426, %v5427
    %v5429 = vtanh.pop %v5428
    %v5430 = vmul.f32 %v5425, %v5429
    %v5431 = vmax.f32 %v5079, %v5430
    %v5432 = vsel %vm1250, %v5431, %v5079
    %v5433 = vld [vmem:[%s3] sm:$0xff]
    %vm5434 = vcmp.gt.f32.partialorder %v5433, 0.0
    %v5435 = vmax.f32 %v5256, 0.0
    %v5436 = vsel %vm5434, 1, 0
    %5437 = vset.pattern.permute.xlu0 0
    %5438 = vperm.xlu0 %5437, %v5436
    %v5439 = vpop.permute.xlu0 %5438
    %vm5440 = vcmp.eq.s32.totalorder %v5439, 1
    %v5441 = vsel %vm5440, %v5435, %v5256
    %v5442 = vmax.f32 %v5432, 0.0
    %v5443 = vsel %vm5440, %v5442, %v5432
    %5444 = vst [vmem:[#allocation14] sm:$0xff] %v5441
    %5445 = vst [vmem:[#allocation14 + $0x8] sm:$0xff] %v5443
    // Predicated region
    $region90: #{bilstm_pooled_embedder.1} parent=1 // pred_check
      _
    $region91: #{bilstm_pooled_embedder.1} parent=1 // pred_check_branch
      %5447 = sbr.rel (0) target = $region93
    $region92: #{bilstm_pooled_embedder.1} parent=1 // pred_region
      %s5449 = ssub.s32 256, 256
      %5450 = vsyncadd [#allocation10], %s5449
      %s5452 = sshll.u32 [#allocation14], 4
      %s5453 = int_to_ptr.vmem [resolvable:$true] %s5452
      %5455 = dma.vmem_to_hbm [thread:$0]  %s5453, 256, %s10, [#allocation10]
    $region93: #{bilstm_pooled_embedder.1} parent=1 // pred_fallthru
      _
    // Predicated region
    $region94: #{bilstm_pooled_embedder.1} parent=1 // pred_check
      _
    $region95: #{bilstm_pooled_embedder.1} parent=1 // pred_check_branch
      %5457 = sbr.rel (0) target = $region97
    $region96: #{bilstm_pooled_embedder.1} parent=1 // pred_region
      %5458 = dma.done [#allocation10], 256
    $region97: #{bilstm_pooled_embedder.1} parent=1 // pred_fallthru
      _
    %5459 = vsyncpa [#allocation9], 1
    %5460 = vsyncpa [#allocation12], 1
    %5461 = vsyncpa [#allocation10], 1
  %5462 = vsyncmov [#allocation5]
  %s5463 = vpop.sfrf %5462
  %p5464 = scmp.eq.s32.totalorder %s5463, 0
  %p5465 = pneg %p5464
  %5467 = shalt.err (%p5465)

</llo_original>
